<compile_context>
chip_gen: v7x
topology: tpu7x:2x2x1
jax: 0.10.0
libtpu: 0.0.40
codegen_flags: <defaults>
</compile_context>

<pallas_src>
import jax
import jax.numpy as jnp
from jax.experimental import pallas as pl
from jax.experimental.pallas import tpu as pltpu


_LN_EPS = 1e-5
_MM_DTYPE = jnp.bfloat16          # MXU input dtype (accumulation stays f32)


# ----------------------------------------------------------------------------
# In-kernel helpers.  Activations are carried as (Bb, L, C) float32; for every
# matmul the batch dim is folded into M: (Bb*L, Cin) x (Cin, Cout).
# ----------------------------------------------------------------------------
def _mm(a2, w2):
    """(M, K) x (K, N) bf16 matmul with f32 accumulation."""
    return jnp.dot(a2, w2, preferred_element_type=jnp.float32)


def _spatial_pos(shape):
    """int32 iota over the spatial axis (axis=1)."""
    return jax.lax.broadcasted_iota(jnp.int32, shape, 1)


def _taps(x3):
    """Return (x[s-1], x[s+1]) with zero rows at the per-sample boundaries.

    The roll is a plain sublane rotation on the batch-folded 2-D view; rows
    that wrapped across a sample boundary are exactly the rows that must be
    zero (s == 0 / s == L-1), so a single spatial-position mask handles both
    the wrap and the padding=1 semantics.
    """
    Bb, L, C = x3.shape
    M = Bb * L
    x2 = x3.reshape(M, C)
    prev = pltpu.roll(x2, 1, axis=0).reshape(Bb, L, C)        # x[s-1]
    nxt = pltpu.roll(x2, M - 1, axis=0).reshape(Bb, L, C)     # x[s+1]
    pos = _spatial_pos(x3.shape)
    zero = jnp.zeros_like(x3)
    prev = jnp.where(pos == 0, zero, prev)
    nxt = jnp.where(pos == L - 1, zero, nxt)
    return prev, nxt


def _layernorm(y3):
    """LayerNorm over the spatial axis (axis=1), no affine — matches
    nn.LayerNorm(S, elementwise_affine=False) applied to (B, C, S)."""
    mu = jnp.mean(y3, axis=1, keepdims=True)
    d = y3 - mu
    var = jnp.mean(d * d, axis=1, keepdims=True)
    return d * jax.lax.rsqrt(var + _LN_EPS)


def _elu(y3):
    # exp only ever sees non-positive values -> no inf on the discarded branch.
    return jnp.where(y3 > 0.0, y3, jnp.exp(jnp.minimum(y3, 0.0)) - 1.0)


def _sel01(shape, cmp):
    """Tiny 0/1 selector (bf16) from iota over dims 1 (rows) and 2 (cols)."""
    r = jax.lax.broadcasted_iota(jnp.int32, shape, 1)
    c = jax.lax.broadcasted_iota(jnp.int32, shape, 2)
    return cmp(r, c).astype(jnp.float32).astype(_MM_DTYPE)


def _maxpool2(y3):
    """MaxPool1d(kernel=2, stride=2) over the spatial axis."""
    Bb, L, C = y3.shape
    y2 = y3.reshape(Bb * L, C)
    pair = jnp.maximum(y2, pltpu.roll(y2, Bb * L - 1, axis=0))   # max(y[s], y[s+1])
    pair3 = pair.reshape(Bb, L, C).astype(_MM_DTYPE)
    sel = _sel01((Bb, L // 2, L), lambda r, c: c == 2 * r)       # pick even rows
    return jnp.einsum("bml,bld->bmd", sel, pair3,
                      preferred_element_type=jnp.float32)


def _conv3(parts):
    """Conv1d(kernel=3, stride=1, padding=1), bias-free (bias cancelled by LN).

    `parts` is a list of (x3 (Bb, L, Cin_p), w_ref (3*Cin_p, Cout)) whose
    channel-concat forms the layer input.  Packed weight rows are
    [tap0; tap1; tap2] (tap0 multiplies x[s-1])."""
    Bb, L, _ = parts[0][0].shape
    M = Bb * L
    acc = None
    for x3, w_ref in parts:
        n = x3.shape[2]
        prev, nxt = _taps(x3)
        y = _mm(prev.reshape(M, n).astype(_MM_DTYPE), w_ref[0:n, :])
        y = y + _mm(x3.reshape(M, n).astype(_MM_DTYPE), w_ref[n:2 * n, :])
        y = y + _mm(nxt.reshape(M, n).astype(_MM_DTYPE), w_ref[2 * n:3 * n, :])
        acc = y if acc is None else acc + y
    return acc.reshape(Bb, L, -1)


def _tconv4(parts):
    """ConvTranspose1d(kernel=4, stride=2, padding=1): L -> 2L, bias-free.
        out[2m]   = x[m]   @ w1 + x[m-1] @ w3
        out[2m+1] = x[m+1] @ w0 + x[m]   @ w2
    Packed weight rows per branch: [w1; w3; w0; w2]."""
    Bb, L, _ = parts[0][0].shape
    M = Bb * L
    even = odd = None
    for x3, w_ref in parts:
        n = x3.shape[2]
        prev, nxt = _taps(x3)
        xb = x3.reshape(M, n).astype(_MM_DTYPE)
        pb = prev.reshape(M, n).astype(_MM_DTYPE)
        nb = nxt.reshape(M, n).astype(_MM_DTYPE)
        e = _mm(xb, w_ref[0:n, :]) + _mm(pb, w_ref[n:2 * n, :])
        o = _mm(nb, w_ref[2 * n:3 * n, :]) + _mm(xb, w_ref[3 * n:4 * n, :])
        even = e if even is None else even + e
        odd = o if odd is None else odd + o
    cout = even.shape[1]
    even3 = even.reshape(Bb, L, cout).astype(_MM_DTYPE)
    odd3 = odd.reshape(Bb, L, cout).astype(_MM_DTYPE)
    # Even/odd interleave as two tiny batched 0/1 matmuls (linear in Bb).
    ue = _sel01((Bb, 2 * L, L), lambda r, c: r == 2 * c)
    uo = _sel01((Bb, 2 * L, L), lambda r, c: r == 2 * c + 1)
    return (jnp.einsum("bml,bld->bmd", ue, even3, preferred_element_type=jnp.float32)
            + jnp.einsum("bml,bld->bmd", uo, odd3, preferred_element_type=jnp.float32))


def _cae_kernel(x_ref,
                w1_ref, w2_ref, w3_ref,
                t1_ref, t2a_ref, t2b_ref, t3a_ref, t3b_ref,
                woa_ref, wob_ref,
                out_ref):
    x0 = x_ref[...].astype(jnp.float32)                               # (Bb, S, C)

    def enc(parts):
        return _maxpool2(_elu(_layernorm(_conv3(parts))))

    c1 = enc([(x0, w1_ref)])                                          # (Bb, S/2, 2C)
    c2 = enc([(c1, w2_ref)])                                          # (Bb, S/4, 4C)
    c3 = enc([(c2, w3_ref)])                                          # (Bb, S/8, 4C)

    d1 = _elu(_layernorm(_tconv4([(c3, t1_ref)])))                    # (Bb, S/4, 4C)
    d2 = _elu(_layernorm(_tconv4([(d1, t2a_ref), (c2, t2b_ref)])))    # (Bb, S/2, 2C)
    d3 = _elu(_layernorm(_tconv4([(d2, t3a_ref), (c1, t3b_ref)])))    # (Bb, S,   C)
    y = _elu(_layernorm(_conv3([(d3, woa_ref), (x0, wob_ref)])))      # (Bb, S,   C)

    out_ref[...] = y.astype(out_ref.dtype)


# ----------------------------------------------------------------------------
# Host-side weight packing + wrappers.
# ----------------------------------------------------------------------------
def _pack_conv(w, sizes):
    """PyTorch Conv1d weight (Cout, Cin, 3) -> per-branch (3*n, Cout) bf16."""
    outs, start = [], 0
    for n in sizes:
        sub = w[:, start:start + n, :]                                # (Cout, n, 3)
        outs.append(jnp.transpose(sub, (2, 1, 0))
                    .reshape(3 * n, w.shape[0]).astype(_MM_DTYPE))
        start += n
    return outs


def _pack_tconv(w, sizes):
    """PyTorch ConvTranspose1d weight (Cin, Cout, 4) -> per-branch (4*n, Cout)
    bf16, tap order [w1; w3; w0; w2] matching _tconv4."""
    outs, start = [], 0
    for n in sizes:
        sub = w[start:start + n, :, :]                                # (n, Cout, 4)
        outs.append(jnp.concatenate(
            [sub[:, :, 1], sub[:, :, 3], sub[:, :, 0], sub[:, :, 2]],
            axis=0).astype(_MM_DTYPE))
        start += n
    return outs


def _pick_block_b(batch, cap=8):
    bb = 1
    for d in range(1, min(batch, cap) + 1):
        if batch % d == 0:
            bb = d
    return bb


def conv_autoencoder_forward_cl(x_cl, params, *, block_b=None):
    """Channels-last entry point: x_cl is (B, S, C); returns (B, S, C)."""
    B, S, C = x_cl.shape
    # S multiple of 64 keeps every stage's length (S, S/2, S/4, S/8) a multiple
    # of 8, so batch<->spatial folds are layout-free (module default S_=64).
    assert S % 64 == 0, "S must be a multiple of 64"
    Bb = _pick_block_b(B) if block_b is None else block_b
    assert B % Bb == 0

    (w1,) = _pack_conv(params["w1"], [C])
    (w2,) = _pack_conv(params["w2"], [2 * C])
    (w3,) = _pack_conv(params["w3"], [4 * C])
    (t1,) = _pack_tconv(params["tw1"], [4 * C])
    t2a, t2b = _pack_tconv(params["tw2"], [4 * C, 4 * C])
    t3a, t3b = _pack_tconv(params["tw3"], [2 * C, 2 * C])
    woa, wob = _pack_conv(params["wo"], [C, C])
    weights = [w1, w2, w3, t1, t2a, t2b, t3a, t3b, woa, wob]
    # Conv/tconv biases are intentionally NOT passed: each layer is followed by
    # an affine-free LayerNorm over the spatial axis, which removes them exactly.

    x_cl = x_cl.astype(jnp.float32)

    in_specs = [pl.BlockSpec((Bb, S, C), lambda i: (i, 0, 0))]
    in_specs += [pl.BlockSpec(w.shape, lambda i: (0, 0)) for w in weights]

    return pl.pallas_call(
        _cae_kernel,
        out_shape=jax.ShapeDtypeStruct((B, S, C), jnp.float32),
        grid=(B // Bb,),
        in_specs=in_specs,
        out_specs=pl.BlockSpec((Bb, S, C), lambda i: (i, 0, 0)),
        compiler_params=pltpu.CompilerParams(
            dimension_semantics=("parallel",)),
    )(x_cl, *weights)


def conv_autoencoder_forward(x, params):
    """PyTorch-layout wrapper: x is (B, num_ch, S); returns (B, num_ch, S)."""
    out_cl = conv_autoencoder_forward_cl(jnp.transpose(x, (0, 2, 1)), params)
    return jnp.transpose(out_cl, (0, 2, 1))


# ----------------------------------------------------------------------------
# Pure-JAX f32 reference (mirrors the PyTorch module exactly, incl. biases)
# + parameter init.
# ----------------------------------------------------------------------------
def _reference_forward(x, p):
    hi = jax.lax.Precision.HIGHEST

    def conv(x, w, b):
        y = jax.lax.conv_general_dilated(
            x, w, window_strides=(1,), padding=((1, 1),),
            dimension_numbers=("NCH", "OIH", "NCH"), precision=hi)
        return y + b[None, :, None]

    def tconv(x, w, b):
        w_conv = jnp.flip(jnp.transpose(w, (1, 0, 2)), axis=2)
        y = jax.lax.conv_general_dilated(
            x, w_conv, window_strides=(1,), padding=((2, 2),),
            lhs_dilation=(2,), dimension_numbers=("NCH", "OIH", "NCH"),
            precision=hi)
        return y + b[None, :, None]

    def ln(y):
        mu = jnp.mean(y, axis=-1, keepdims=True)
        var = jnp.mean((y - mu) ** 2, axis=-1, keepdims=True)
        return (y - mu) / jnp.sqrt(var + _LN_EPS)

    def elu(y):
        return jnp.where(y > 0, y, jnp.exp(jnp.minimum(y, 0.0)) - 1.0)

    def pool(y):
        b_, c_, s_ = y.shape
        return jnp.max(y.reshape(b_, c_, s_ // 2, 2), axis=-1)

    c1 = pool(elu(ln(conv(x, p["w1"], p["b1"]))))
    c2 = pool(elu(ln(conv(c1, p["w2"], p["b2"]))))
    c3 = pool(elu(ln(conv(c2, p["w3"], p["b3"]))))
    d1 = elu(ln(tconv(c3, p["tw1"], p["tb1"])))
    d2 = elu(ln(tconv(jnp.concatenate([d1, c2], axis=1), p["tw2"], p["tb2"])))
    d3 = elu(ln(tconv(jnp.concatenate([d2, c1], axis=1), p["tw3"], p["tb3"])))
    return elu(ln(conv(jnp.concatenate([d3, x], axis=1), p["wo"], p["bo"])))


def init_params(key, num_ch):
    C = num_ch
    shapes = {
        "w1": (2 * C, C, 3), "b1": (2 * C,),
        "w2": (4 * C, 2 * C, 3), "b2": (4 * C,),
        "w3": (4 * C, 4 * C, 3), "b3": (4 * C,),
        "tw1": (4 * C, 4 * C, 4), "tb1": (4 * C,),
        "tw2": (8 * C, 2 * C, 4), "tb2": (2 * C,),
        "tw3": (4 * C, C, 4), "tb3": (C,),
        "wo": (C, 2 * C, 3), "bo": (C,),
    }
    params = {}
    keys = jax.random.split(key, len(shapes))
    for (name, shape), k in zip(shapes.items(), keys):
        if len(shape) == 3:
            scale = 1.0 / float(shape[1] * shape[2]) ** 0.5
        else:
            scale = 0.05
        params[name] = scale * jax.random.normal(k, shape, dtype=jnp.float32)
    return params


if __name__ == "__main__":
    B, num_ch, S = 2, 32, 64                  # module defaults: num_ch=32, S_=64

    key = jax.random.PRNGKey(0)
    kx, kp = jax.random.split(key)
    x = jax.random.normal(kx, (B, num_ch, S), dtype=jnp.float32)
    params = init_params(kp, num_ch)

    out = jax.block_until_ready(conv_autoencoder_forward(x, params))
    ref = jax.block_until_ready(_reference_forward(x, params))

    assert out.shape == ref.shape == (B, num_ch, S)
    err = jnp.abs(out - ref)
    max_err = float(jnp.max(err))
    mean_err = float(jnp.mean(err))
    # bf16 matmuls with f32 accumulation vs an f32 reference across 8 layers.
    assert max_err < 1e-1 and mean_err < 2.5e-2, (
        f"max abs error {max_err}, mean abs error {mean_err}")
    print("KERNEL_OK")
</pallas_src>

<mosaic_0001>
module attributes {stable_mosaic.version = 11 : i64} {
  func.func @_cae_kernel(%arg0: i32, %arg1: memref<2x64x32xf32, #tpu.memory_space<vmem>>, %arg2: memref<96x64xbf16, #tpu.memory_space<vmem>>, %arg3: memref<192x128xbf16, #tpu.memory_space<vmem>>, %arg4: memref<384x128xbf16, #tpu.memory_space<vmem>>, %arg5: memref<512x128xbf16, #tpu.memory_space<vmem>>, %arg6: memref<512x64xbf16, #tpu.memory_space<vmem>>, %arg7: memref<512x64xbf16, #tpu.memory_space<vmem>>, %arg8: memref<256x32xbf16, #tpu.memory_space<vmem>>, %arg9: memref<256x32xbf16, #tpu.memory_space<vmem>>, %arg10: memref<96x32xbf16, #tpu.memory_space<vmem>>, %arg11: memref<96x32xbf16, #tpu.memory_space<vmem>>, %arg12: memref<2x64x32xf32, #tpu.memory_space<vmem>>) attributes {dimension_semantics = [#tpu.dimension_semantics<parallel>], iteration_bounds = array<i64: 1>, scalar_prefetch = 0 : i64, scratch_operands = 0 : i64, tpu.core_type = #tpu.core_type<tc>, window_params = [{transform_indices = @transform_0, window_bounds = array<i64: 2, 64, 32>}, {pipeline_mode = #tpu.pipeline_mode<synchronous>, transform_indices = @transform_1, window_bounds = array<i64: 96, 64>}, {pipeline_mode = #tpu.pipeline_mode<synchronous>, transform_indices = @transform_2, window_bounds = array<i64: 192, 128>}, {pipeline_mode = #tpu.pipeline_mode<synchronous>, transform_indices = @transform_3, window_bounds = array<i64: 384, 128>}, {pipeline_mode = #tpu.pipeline_mode<synchronous>, transform_indices = @transform_4, window_bounds = array<i64: 512, 128>}, {pipeline_mode = #tpu.pipeline_mode<synchronous>, transform_indices = @transform_5, window_bounds = array<i64: 512, 64>}, {pipeline_mode = #tpu.pipeline_mode<synchronous>, transform_indices = @transform_6, window_bounds = array<i64: 512, 64>}, {pipeline_mode = #tpu.pipeline_mode<synchronous>, transform_indices = @transform_7, window_bounds = array<i64: 256, 32>}, {pipeline_mode = #tpu.pipeline_mode<synchronous>, transform_indices = @transform_8, window_bounds = array<i64: 256, 32>}, {pipeline_mode = #tpu.pipeline_mode<synchronous>, transform_indices = @transform_9, window_bounds = array<i64: 96, 32>}, {pipeline_mode = #tpu.pipeline_mode<synchronous>, transform_indices = @transform_10, window_bounds = array<i64: 96, 32>}, {transform_indices = @transform_11, window_bounds = array<i64: 2, 64, 32>}]} {
    %c0 = arith.constant 0 : index
    %c0_0 = arith.constant 0 : index
    %c0_1 = arith.constant 0 : index
    %0 = vector.load %arg1[%c0, %c0_0, %c0_1] : memref<2x64x32xf32, #tpu.memory_space<vmem>>, vector<2x64x32xf32>
    %1 = vector.shape_cast %0 : vector<2x64x32xf32> to vector<128x32xf32>
    %c1_i32 = arith.constant 1 : i32
    %2 = tpu.dynamic_rotate %1 by %c1_i32 dim 0 : vector<128x32xf32>, i32 -> vector<128x32xf32>
    %3 = vector.shape_cast %2 : vector<128x32xf32> to vector<2x64x32xf32>
    %c127_i32 = arith.constant 127 : i32
    %4 = tpu.dynamic_rotate %1 by %c127_i32 dim 0 : vector<128x32xf32>, i32 -> vector<128x32xf32>
    %5 = vector.shape_cast %4 : vector<128x32xf32> to vector<2x64x32xf32>
    %6 = tpu.iota {dimensions = array<i32: 1>} : vector<2x64x32xi32>
    %cst = arith.constant 0.000000e+00 : f32
    %7 = vector.broadcast %cst : f32 to vector<2x64x32xf32>
    %c0_i32 = arith.constant 0 : i32
    %8 = vector.broadcast %c0_i32 : i32 to vector<2x64x32xi32>
    %9 = arith.cmpi eq, %6, %8 : vector<2x64x32xi32>
    %10 = arith.select %9, %7, %3 : vector<2x64x32xi1>, vector<2x64x32xf32>
    %c63_i32 = arith.constant 63 : i32
    %11 = vector.broadcast %c63_i32 : i32 to vector<2x64x32xi32>
    %12 = arith.cmpi eq, %6, %11 : vector<2x64x32xi32>
    %13 = arith.select %12, %7, %5 : vector<2x64x32xi1>, vector<2x64x32xf32>
    %14 = vector.shape_cast %10 : vector<2x64x32xf32> to vector<128x32xf32>
    %15 = arith.truncf %14 : vector<128x32xf32> to vector<128x32xbf16>
    %c0_2 = arith.constant 0 : index
    %c0_3 = arith.constant 0 : index
    %16 = vector.load %arg2[%c0_2, %c0_3] : memref<96x64xbf16, #tpu.memory_space<vmem>>, vector<32x64xbf16>
    %cst_4 = arith.constant dense<0.000000e+00> : vector<128x64xf32>
    %17 = tpu.matmul %15, %16, %cst_4 {dimension_numbers = #tpu.dot_dimension_numbers<[1], [0], [0], [1], [0, 0, 1, 1], [], []>} : vector<128x32xbf16>, vector<32x64xbf16>, vector<128x64xf32> -> vector<128x64xf32>
    %18 = vector.shape_cast %0 : vector<2x64x32xf32> to vector<128x32xf32>
    %19 = arith.truncf %18 : vector<128x32xf32> to vector<128x32xbf16>
    %c32 = arith.constant 32 : index
    %c0_5 = arith.constant 0 : index
    %20 = vector.load %arg2[%c32, %c0_5] : memref<96x64xbf16, #tpu.memory_space<vmem>>, vector<32x64xbf16>
    %cst_6 = arith.constant dense<0.000000e+00> : vector<128x64xf32>
    %21 = tpu.matmul %19, %20, %cst_6 {dimension_numbers = #tpu.dot_dimension_numbers<[1], [0], [0], [1], [0, 0, 1, 1], [], []>} : vector<128x32xbf16>, vector<32x64xbf16>, vector<128x64xf32> -> vector<128x64xf32>
    %22 = arith.addf %17, %21 : vector<128x64xf32>
    %23 = vector.shape_cast %13 : vector<2x64x32xf32> to vector<128x32xf32>
    %24 = arith.truncf %23 : vector<128x32xf32> to vector<128x32xbf16>
    %c64 = arith.constant 64 : index
    %c0_7 = arith.constant 0 : index
    %25 = vector.load %arg2[%c64, %c0_7] : memref<96x64xbf16, #tpu.memory_space<vmem>>, vector<32x64xbf16>
    %cst_8 = arith.constant dense<0.000000e+00> : vector<128x64xf32>
    %26 = tpu.matmul %24, %25, %cst_8 {dimension_numbers = #tpu.dot_dimension_numbers<[1], [0], [0], [1], [0, 0, 1, 1], [], []>} : vector<128x32xbf16>, vector<32x64xbf16>, vector<128x64xf32> -> vector<128x64xf32>
    %27 = arith.addf %22, %26 : vector<128x64xf32>
    %28 = vector.shape_cast %27 : vector<128x64xf32> to vector<2x64x64xf32>
    %cst_9 = arith.constant dense<0.000000e+00> : vector<2x64xf32>
    %29 = vector.multi_reduction <add>, %28, %cst_9 [1] : vector<2x64x64xf32> to vector<2x64xf32>
    %30 = vector.shape_cast %29 : vector<2x64xf32> to vector<2x1x64xf32>
    %cst_10 = arith.constant 6.400000e+01 : f32
    %31 = vector.broadcast %cst_10 : f32 to vector<2x1x64xf32>
    %32 = arith.divf %30, %31 : vector<2x1x64xf32>
    %33 = vector.broadcast %32 : vector<2x1x64xf32> to vector<2x64x64xf32>
    %34 = arith.subf %28, %33 : vector<2x64x64xf32>
    %35 = arith.mulf %34, %34 : vector<2x64x64xf32>
    %cst_11 = arith.constant dense<0.000000e+00> : vector<2x64xf32>
    %36 = vector.multi_reduction <add>, %35, %cst_11 [1] : vector<2x64x64xf32> to vector<2x64xf32>
    %37 = vector.shape_cast %36 : vector<2x64xf32> to vector<2x1x64xf32>
    %cst_12 = arith.constant 6.400000e+01 : f32
    %38 = vector.broadcast %cst_12 : f32 to vector<2x1x64xf32>
    %39 = arith.divf %37, %38 : vector<2x1x64xf32>
    %cst_13 = arith.constant 9.99999974E-6 : f32
    %40 = vector.broadcast %cst_13 : f32 to vector<2x1x64xf32>
    %41 = arith.addf %39, %40 : vector<2x1x64xf32>
    %42 = math.rsqrt %41 : vector<2x1x64xf32>
    %43 = vector.broadcast %42 : vector<2x1x64xf32> to vector<2x64x64xf32>
    %44 = arith.mulf %34, %43 : vector<2x64x64xf32>
    %cst_14 = arith.constant 0.000000e+00 : f32
    %45 = vector.broadcast %cst_14 : f32 to vector<2x64x64xf32>
    %46 = arith.cmpf ogt, %44, %45 : vector<2x64x64xf32>
    %cst_15 = arith.constant 0.000000e+00 : f32
    %47 = vector.broadcast %cst_15 : f32 to vector<2x64x64xf32>
    %48 = arith.minimumf %44, %47 : vector<2x64x64xf32>
    %49 = math.exp %48 : vector<2x64x64xf32>
    %cst_16 = arith.constant 1.000000e+00 : f32
    %50 = vector.broadcast %cst_16 : f32 to vector<2x64x64xf32>
    %51 = arith.subf %49, %50 : vector<2x64x64xf32>
    %52 = arith.select %46, %44, %51 : vector<2x64x64xi1>, vector<2x64x64xf32>
    %53 = vector.shape_cast %52 : vector<2x64x64xf32> to vector<128x64xf32>
    %c127_i32_17 = arith.constant 127 : i32
    %54 = tpu.dynamic_rotate %53 by %c127_i32_17 dim 0 : vector<128x64xf32>, i32 -> vector<128x64xf32>
    %55 = arith.maximumf %53, %54 : vector<128x64xf32>
    %56 = vector.shape_cast %55 : vector<128x64xf32> to vector<2x64x64xf32>
    %57 = arith.truncf %56 : vector<2x64x64xf32> to vector<2x64x64xbf16>
    %58 = tpu.iota {dimensions = array<i32: 1>} : vector<2x32x64xi32>
    %59 = tpu.iota {dimensions = array<i32: 2>} : vector<2x32x64xi32>
    %c2_i32 = arith.constant 2 : i32
    %60 = vector.broadcast %c2_i32 : i32 to vector<2x32x64xi32>
    %61 = arith.muli %60, %58 : vector<2x32x64xi32>
    %62 = arith.cmpi eq, %59, %61 : vector<2x32x64xi32>
    %63 = arith.extui %62 : vector<2x32x64xi1> to vector<2x32x64xi32>
    %64 = arith.sitofp %63 : vector<2x32x64xi32> to vector<2x32x64xf32>
    %65 = arith.truncf %64 : vector<2x32x64xf32> to vector<2x32x64xbf16>
    "tpu.trace_start"() <{level = 10 : i32, message = "bml,bld->bmd"}> : () -> ()
    %cst_18 = arith.constant dense<0.000000e+00> : vector<2x32x64xf32>
    %66 = tpu.matmul %65, %57, %cst_18 {dimension_numbers = #tpu.dot_dimension_numbers<[2], [1], [1], [2], [0, 0, 0, 1, 1, 2], [0], [0]>} : vector<2x32x64xbf16>, vector<2x64x64xbf16>, vector<2x32x64xf32> -> vector<2x32x64xf32>
    "tpu.trace_stop"() : () -> ()
    %67 = vector.shape_cast %66 : vector<2x32x64xf32> to vector<64x64xf32>
    %c1_i32_19 = arith.constant 1 : i32
    %68 = tpu.dynamic_rotate %67 by %c1_i32_19 dim 0 : vector<64x64xf32>, i32 -> vector<64x64xf32>
    %69 = vector.shape_cast %68 : vector<64x64xf32> to vector<2x32x64xf32>
    %c63_i32_20 = arith.constant 63 : i32
    %70 = tpu.dynamic_rotate %67 by %c63_i32_20 dim 0 : vector<64x64xf32>, i32 -> vector<64x64xf32>
    %71 = vector.shape_cast %70 : vector<64x64xf32> to vector<2x32x64xf32>
    %72 = tpu.iota {dimensions = array<i32: 1>} : vector<2x32x64xi32>
    %cst_21 = arith.constant 0.000000e+00 : f32
    %73 = vector.broadcast %cst_21 : f32 to vector<2x32x64xf32>
    %c0_i32_22 = arith.constant 0 : i32
    %74 = vector.broadcast %c0_i32_22 : i32 to vector<2x32x64xi32>
    %75 = arith.cmpi eq, %72, %74 : vector<2x32x64xi32>
    %76 = arith.select %75, %73, %69 : vector<2x32x64xi1>, vector<2x32x64xf32>
    %c31_i32 = arith.constant 31 : i32
    %77 = vector.broadcast %c31_i32 : i32 to vector<2x32x64xi32>
    %78 = arith.cmpi eq, %72, %77 : vector<2x32x64xi32>
    %79 = arith.select %78, %73, %71 : vector<2x32x64xi1>, vector<2x32x64xf32>
    %80 = vector.shape_cast %76 : vector<2x32x64xf32> to vector<64x64xf32>
    %81 = arith.truncf %80 : vector<64x64xf32> to vector<64x64xbf16>
    %c0_23 = arith.constant 0 : index
    %c0_24 = arith.constant 0 : index
    %82 = vector.load %arg3[%c0_23, %c0_24] : memref<192x128xbf16, #tpu.memory_space<vmem>>, vector<64x128xbf16>
    %cst_25 = arith.constant dense<0.000000e+00> : vector<64x128xf32>
    %83 = tpu.matmul %81, %82, %cst_25 {dimension_numbers = #tpu.dot_dimension_numbers<[1], [0], [0], [1], [0, 0, 1, 1], [], []>} : vector<64x64xbf16>, vector<64x128xbf16>, vector<64x128xf32> -> vector<64x128xf32>
    %84 = vector.shape_cast %66 : vector<2x32x64xf32> to vector<64x64xf32>
    %85 = arith.truncf %84 : vector<64x64xf32> to vector<64x64xbf16>
    %c64_26 = arith.constant 64 : index
    %c0_27 = arith.constant 0 : index
    %86 = vector.load %arg3[%c64_26, %c0_27] : memref<192x128xbf16, #tpu.memory_space<vmem>>, vector<64x128xbf16>
    %cst_28 = arith.constant dense<0.000000e+00> : vector<64x128xf32>
    %87 = tpu.matmul %85, %86, %cst_28 {dimension_numbers = #tpu.dot_dimension_numbers<[1], [0], [0], [1], [0, 0, 1, 1], [], []>} : vector<64x64xbf16>, vector<64x128xbf16>, vector<64x128xf32> -> vector<64x128xf32>
    %88 = arith.addf %83, %87 : vector<64x128xf32>
    %89 = vector.shape_cast %79 : vector<2x32x64xf32> to vector<64x64xf32>
    %90 = arith.truncf %89 : vector<64x64xf32> to vector<64x64xbf16>
    %c128 = arith.constant 128 : index
    %c0_29 = arith.constant 0 : index
    %91 = vector.load %arg3[%c128, %c0_29] : memref<192x128xbf16, #tpu.memory_space<vmem>>, vector<64x128xbf16>
    %cst_30 = arith.constant dense<0.000000e+00> : vector<64x128xf32>
    %92 = tpu.matmul %90, %91, %cst_30 {dimension_numbers = #tpu.dot_dimension_numbers<[1], [0], [0], [1], [0, 0, 1, 1], [], []>} : vector<64x64xbf16>, vector<64x128xbf16>, vector<64x128xf32> -> vector<64x128xf32>
    %93 = arith.addf %88, %92 : vector<64x128xf32>
    %94 = vector.shape_cast %93 : vector<64x128xf32> to vector<2x32x128xf32>
    %cst_31 = arith.constant dense<0.000000e+00> : vector<2x128xf32>
    %95 = vector.multi_reduction <add>, %94, %cst_31 [1] : vector<2x32x128xf32> to vector<2x128xf32>
    %96 = vector.shape_cast %95 : vector<2x128xf32> to vector<2x1x128xf32>
    %cst_32 = arith.constant 3.200000e+01 : f32
    %97 = vector.broadcast %cst_32 : f32 to vector<2x1x128xf32>
    %98 = arith.divf %96, %97 : vector<2x1x128xf32>
    %99 = vector.broadcast %98 : vector<2x1x128xf32> to vector<2x32x128xf32>
    %100 = arith.subf %94, %99 : vector<2x32x128xf32>
    %101 = arith.mulf %100, %100 : vector<2x32x128xf32>
    %cst_33 = arith.constant dense<0.000000e+00> : vector<2x128xf32>
    %102 = vector.multi_reduction <add>, %101, %cst_33 [1] : vector<2x32x128xf32> to vector<2x128xf32>
    %103 = vector.shape_cast %102 : vector<2x128xf32> to vector<2x1x128xf32>
    %cst_34 = arith.constant 3.200000e+01 : f32
    %104 = vector.broadcast %cst_34 : f32 to vector<2x1x128xf32>
    %105 = arith.divf %103, %104 : vector<2x1x128xf32>
    %cst_35 = arith.constant 9.99999974E-6 : f32
    %106 = vector.broadcast %cst_35 : f32 to vector<2x1x128xf32>
    %107 = arith.addf %105, %106 : vector<2x1x128xf32>
    %108 = math.rsqrt %107 : vector<2x1x128xf32>
    %109 = vector.broadcast %108 : vector<2x1x128xf32> to vector<2x32x128xf32>
    %110 = arith.mulf %100, %109 : vector<2x32x128xf32>
    %cst_36 = arith.constant 0.000000e+00 : f32
    %111 = vector.broadcast %cst_36 : f32 to vector<2x32x128xf32>
    %112 = arith.cmpf ogt, %110, %111 : vector<2x32x128xf32>
    %cst_37 = arith.constant 0.000000e+00 : f32
    %113 = vector.broadcast %cst_37 : f32 to vector<2x32x128xf32>
    %114 = arith.minimumf %110, %113 : vector<2x32x128xf32>
    %115 = math.exp %114 : vector<2x32x128xf32>
    %cst_38 = arith.constant 1.000000e+00 : f32
    %116 = vector.broadcast %cst_38 : f32 to vector<2x32x128xf32>
    %117 = arith.subf %115, %116 : vector<2x32x128xf32>
    %118 = arith.select %112, %110, %117 : vector<2x32x128xi1>, vector<2x32x128xf32>
    %119 = vector.shape_cast %118 : vector<2x32x128xf32> to vector<64x128xf32>
    %c63_i32_39 = arith.constant 63 : i32
    %120 = tpu.dynamic_rotate %119 by %c63_i32_39 dim 0 : vector<64x128xf32>, i32 -> vector<64x128xf32>
    %121 = arith.maximumf %119, %120 : vector<64x128xf32>
    %122 = vector.shape_cast %121 : vector<64x128xf32> to vector<2x32x128xf32>
    %123 = arith.truncf %122 : vector<2x32x128xf32> to vector<2x32x128xbf16>
    %124 = tpu.iota {dimensions = array<i32: 1>} : vector<2x16x32xi32>
    %125 = tpu.iota {dimensions = array<i32: 2>} : vector<2x16x32xi32>
    %c2_i32_40 = arith.constant 2 : i32
    %126 = vector.broadcast %c2_i32_40 : i32 to vector<2x16x32xi32>
    %127 = arith.muli %126, %124 : vector<2x16x32xi32>
    %128 = arith.cmpi eq, %125, %127 : vector<2x16x32xi32>
    %129 = arith.extui %128 : vector<2x16x32xi1> to vector<2x16x32xi32>
    %130 = arith.sitofp %129 : vector<2x16x32xi32> to vector<2x16x32xf32>
    %131 = arith.truncf %130 : vector<2x16x32xf32> to vector<2x16x32xbf16>
    "tpu.trace_start"() <{level = 10 : i32, message = "bml,bld->bmd"}> : () -> ()
    %cst_41 = arith.constant dense<0.000000e+00> : vector<2x16x128xf32>
    %132 = tpu.matmul %131, %123, %cst_41 {dimension_numbers = #tpu.dot_dimension_numbers<[2], [1], [1], [2], [0, 0, 0, 1, 1, 2], [0], [0]>} : vector<2x16x32xbf16>, vector<2x32x128xbf16>, vector<2x16x128xf32> -> vector<2x16x128xf32>
    "tpu.trace_stop"() : () -> ()
    %133 = vector.shape_cast %132 : vector<2x16x128xf32> to vector<32x128xf32>
    %c1_i32_42 = arith.constant 1 : i32
    %134 = tpu.dynamic_rotate %133 by %c1_i32_42 dim 0 : vector<32x128xf32>, i32 -> vector<32x128xf32>
    %135 = vector.shape_cast %134 : vector<32x128xf32> to vector<2x16x128xf32>
    %c31_i32_43 = arith.constant 31 : i32
    %136 = tpu.dynamic_rotate %133 by %c31_i32_43 dim 0 : vector<32x128xf32>, i32 -> vector<32x128xf32>
    %137 = vector.shape_cast %136 : vector<32x128xf32> to vector<2x16x128xf32>
    %138 = tpu.iota {dimensions = array<i32: 1>} : vector<2x16x128xi32>
    %cst_44 = arith.constant 0.000000e+00 : f32
    %139 = vector.broadcast %cst_44 : f32 to vector<2x16x128xf32>
    %c0_i32_45 = arith.constant 0 : i32
    %140 = vector.broadcast %c0_i32_45 : i32 to vector<2x16x128xi32>
    %141 = arith.cmpi eq, %138, %140 : vector<2x16x128xi32>
    %142 = arith.select %141, %139, %135 : vector<2x16x128xi1>, vector<2x16x128xf32>
    %c15_i32 = arith.constant 15 : i32
    %143 = vector.broadcast %c15_i32 : i32 to vector<2x16x128xi32>
    %144 = arith.cmpi eq, %138, %143 : vector<2x16x128xi32>
    %145 = arith.select %144, %139, %137 : vector<2x16x128xi1>, vector<2x16x128xf32>
    %146 = vector.shape_cast %142 : vector<2x16x128xf32> to vector<32x128xf32>
    %147 = arith.truncf %146 : vector<32x128xf32> to vector<32x128xbf16>
    %c0_46 = arith.constant 0 : index
    %c0_47 = arith.constant 0 : index
    %148 = vector.load %arg4[%c0_46, %c0_47] : memref<384x128xbf16, #tpu.memory_space<vmem>>, vector<128x128xbf16>
    %cst_48 = arith.constant dense<0.000000e+00> : vector<32x128xf32>
    %149 = tpu.matmul %147, %148, %cst_48 {dimension_numbers = #tpu.dot_dimension_numbers<[1], [0], [0], [1], [0, 0, 1, 1], [], []>} : vector<32x128xbf16>, vector<128x128xbf16>, vector<32x128xf32> -> vector<32x128xf32>
    %150 = vector.shape_cast %132 : vector<2x16x128xf32> to vector<32x128xf32>
    %151 = arith.truncf %150 : vector<32x128xf32> to vector<32x128xbf16>
    %c128_49 = arith.constant 128 : index
    %c0_50 = arith.constant 0 : index
    %152 = vector.load %arg4[%c128_49, %c0_50] : memref<384x128xbf16, #tpu.memory_space<vmem>>, vector<128x128xbf16>
    %cst_51 = arith.constant dense<0.000000e+00> : vector<32x128xf32>
    %153 = tpu.matmul %151, %152, %cst_51 {dimension_numbers = #tpu.dot_dimension_numbers<[1], [0], [0], [1], [0, 0, 1, 1], [], []>} : vector<32x128xbf16>, vector<128x128xbf16>, vector<32x128xf32> -> vector<32x128xf32>
    %154 = arith.addf %149, %153 : vector<32x128xf32>
    %155 = vector.shape_cast %145 : vector<2x16x128xf32> to vector<32x128xf32>
    %156 = arith.truncf %155 : vector<32x128xf32> to vector<32x128xbf16>
    %c256 = arith.constant 256 : index
    %c0_52 = arith.constant 0 : index
    %157 = vector.load %arg4[%c256, %c0_52] : memref<384x128xbf16, #tpu.memory_space<vmem>>, vector<128x128xbf16>
    %cst_53 = arith.constant dense<0.000000e+00> : vector<32x128xf32>
    %158 = tpu.matmul %156, %157, %cst_53 {dimension_numbers = #tpu.dot_dimension_numbers<[1], [0], [0], [1], [0, 0, 1, 1], [], []>} : vector<32x128xbf16>, vector<128x128xbf16>, vector<32x128xf32> -> vector<32x128xf32>
    %159 = arith.addf %154, %158 : vector<32x128xf32>
    %160 = vector.shape_cast %159 : vector<32x128xf32> to vector<2x16x128xf32>
    %cst_54 = arith.constant dense<0.000000e+00> : vector<2x128xf32>
    %161 = vector.multi_reduction <add>, %160, %cst_54 [1] : vector<2x16x128xf32> to vector<2x128xf32>
    %162 = vector.shape_cast %161 : vector<2x128xf32> to vector<2x1x128xf32>
    %cst_55 = arith.constant 1.600000e+01 : f32
    %163 = vector.broadcast %cst_55 : f32 to vector<2x1x128xf32>
    %164 = arith.divf %162, %163 : vector<2x1x128xf32>
    %165 = vector.broadcast %164 : vector<2x1x128xf32> to vector<2x16x128xf32>
    %166 = arith.subf %160, %165 : vector<2x16x128xf32>
    %167 = arith.mulf %166, %166 : vector<2x16x128xf32>
    %cst_56 = arith.constant dense<0.000000e+00> : vector<2x128xf32>
    %168 = vector.multi_reduction <add>, %167, %cst_56 [1] : vector<2x16x128xf32> to vector<2x128xf32>
    %169 = vector.shape_cast %168 : vector<2x128xf32> to vector<2x1x128xf32>
    %cst_57 = arith.constant 1.600000e+01 : f32
    %170 = vector.broadcast %cst_57 : f32 to vector<2x1x128xf32>
    %171 = arith.divf %169, %170 : vector<2x1x128xf32>
    %cst_58 = arith.constant 9.99999974E-6 : f32
    %172 = vector.broadcast %cst_58 : f32 to vector<2x1x128xf32>
    %173 = arith.addf %171, %172 : vector<2x1x128xf32>
    %174 = math.rsqrt %173 : vector<2x1x128xf32>
    %175 = vector.broadcast %174 : vector<2x1x128xf32> to vector<2x16x128xf32>
    %176 = arith.mulf %166, %175 : vector<2x16x128xf32>
    %cst_59 = arith.constant 0.000000e+00 : f32
    %177 = vector.broadcast %cst_59 : f32 to vector<2x16x128xf32>
    %178 = arith.cmpf ogt, %176, %177 : vector<2x16x128xf32>
    %cst_60 = arith.constant 0.000000e+00 : f32
    %179 = vector.broadcast %cst_60 : f32 to vector<2x16x128xf32>
    %180 = arith.minimumf %176, %179 : vector<2x16x128xf32>
    %181 = math.exp %180 : vector<2x16x128xf32>
    %cst_61 = arith.constant 1.000000e+00 : f32
    %182 = vector.broadcast %cst_61 : f32 to vector<2x16x128xf32>
    %183 = arith.subf %181, %182 : vector<2x16x128xf32>
    %184 = arith.select %178, %176, %183 : vector<2x16x128xi1>, vector<2x16x128xf32>
    %185 = vector.shape_cast %184 : vector<2x16x128xf32> to vector<32x128xf32>
    %c31_i32_62 = arith.constant 31 : i32
    %186 = tpu.dynamic_rotate %185 by %c31_i32_62 dim 0 : vector<32x128xf32>, i32 -> vector<32x128xf32>
    %187 = arith.maximumf %185, %186 : vector<32x128xf32>
    %188 = vector.shape_cast %187 : vector<32x128xf32> to vector<2x16x128xf32>
    %189 = arith.truncf %188 : vector<2x16x128xf32> to vector<2x16x128xbf16>
    %190 = tpu.iota {dimensions = array<i32: 1>} : vector<2x8x16xi32>
    %191 = tpu.iota {dimensions = array<i32: 2>} : vector<2x8x16xi32>
    %c2_i32_63 = arith.constant 2 : i32
    %192 = vector.broadcast %c2_i32_63 : i32 to vector<2x8x16xi32>
    %193 = arith.muli %192, %190 : vector<2x8x16xi32>
    %194 = arith.cmpi eq, %191, %193 : vector<2x8x16xi32>
    %195 = arith.extui %194 : vector<2x8x16xi1> to vector<2x8x16xi32>
    %196 = arith.sitofp %195 : vector<2x8x16xi32> to vector<2x8x16xf32>
    %197 = arith.truncf %196 : vector<2x8x16xf32> to vector<2x8x16xbf16>
    "tpu.trace_start"() <{level = 10 : i32, message = "bml,bld->bmd"}> : () -> ()
    %cst_64 = arith.constant dense<0.000000e+00> : vector<2x8x128xf32>
    %198 = tpu.matmul %197, %189, %cst_64 {dimension_numbers = #tpu.dot_dimension_numbers<[2], [1], [1], [2], [0, 0, 0, 1, 1, 2], [0], [0]>} : vector<2x8x16xbf16>, vector<2x16x128xbf16>, vector<2x8x128xf32> -> vector<2x8x128xf32>
    "tpu.trace_stop"() : () -> ()
    %199 = vector.shape_cast %198 : vector<2x8x128xf32> to vector<16x128xf32>
    %c1_i32_65 = arith.constant 1 : i32
    %200 = tpu.dynamic_rotate %199 by %c1_i32_65 dim 0 : vector<16x128xf32>, i32 -> vector<16x128xf32>
    %201 = vector.shape_cast %200 : vector<16x128xf32> to vector<2x8x128xf32>
    %c15_i32_66 = arith.constant 15 : i32
    %202 = tpu.dynamic_rotate %199 by %c15_i32_66 dim 0 : vector<16x128xf32>, i32 -> vector<16x128xf32>
    %203 = vector.shape_cast %202 : vector<16x128xf32> to vector<2x8x128xf32>
    %204 = tpu.iota {dimensions = array<i32: 1>} : vector<2x8x128xi32>
    %cst_67 = arith.constant 0.000000e+00 : f32
    %205 = vector.broadcast %cst_67 : f32 to vector<2x8x128xf32>
    %c0_i32_68 = arith.constant 0 : i32
    %206 = vector.broadcast %c0_i32_68 : i32 to vector<2x8x128xi32>
    %207 = arith.cmpi eq, %204, %206 : vector<2x8x128xi32>
    %208 = arith.select %207, %205, %201 : vector<2x8x128xi1>, vector<2x8x128xf32>
    %c7_i32 = arith.constant 7 : i32
    %209 = vector.broadcast %c7_i32 : i32 to vector<2x8x128xi32>
    %210 = arith.cmpi eq, %204, %209 : vector<2x8x128xi32>
    %211 = arith.select %210, %205, %203 : vector<2x8x128xi1>, vector<2x8x128xf32>
    %212 = vector.shape_cast %198 : vector<2x8x128xf32> to vector<16x128xf32>
    %213 = arith.truncf %212 : vector<16x128xf32> to vector<16x128xbf16>
    %214 = vector.shape_cast %208 : vector<2x8x128xf32> to vector<16x128xf32>
    %215 = arith.truncf %214 : vector<16x128xf32> to vector<16x128xbf16>
    %216 = vector.shape_cast %211 : vector<2x8x128xf32> to vector<16x128xf32>
    %217 = arith.truncf %216 : vector<16x128xf32> to vector<16x128xbf16>
    %c0_69 = arith.constant 0 : index
    %c0_70 = arith.constant 0 : index
    %218 = vector.load %arg5[%c0_69, %c0_70] : memref<512x128xbf16, #tpu.memory_space<vmem>>, vector<128x128xbf16>
    %cst_71 = arith.constant dense<0.000000e+00> : vector<16x128xf32>
    %219 = tpu.matmul %213, %218, %cst_71 {dimension_numbers = #tpu.dot_dimension_numbers<[1], [0], [0], [1], [0, 0, 1, 1], [], []>} : vector<16x128xbf16>, vector<128x128xbf16>, vector<16x128xf32> -> vector<16x128xf32>
    %c128_72 = arith.constant 128 : index
    %c0_73 = arith.constant 0 : index
    %220 = vector.load %arg5[%c128_72, %c0_73] : memref<512x128xbf16, #tpu.memory_space<vmem>>, vector<128x128xbf16>
    %cst_74 = arith.constant dense<0.000000e+00> : vector<16x128xf32>
    %221 = tpu.matmul %215, %220, %cst_74 {dimension_numbers = #tpu.dot_dimension_numbers<[1], [0], [0], [1], [0, 0, 1, 1], [], []>} : vector<16x128xbf16>, vector<128x128xbf16>, vector<16x128xf32> -> vector<16x128xf32>
    %222 = arith.addf %219, %221 : vector<16x128xf32>
    %c256_75 = arith.constant 256 : index
    %c0_76 = arith.constant 0 : index
    %223 = vector.load %arg5[%c256_75, %c0_76] : memref<512x128xbf16, #tpu.memory_space<vmem>>, vector<128x128xbf16>
    %cst_77 = arith.constant dense<0.000000e+00> : vector<16x128xf32>
    %224 = tpu.matmul %217, %223, %cst_77 {dimension_numbers = #tpu.dot_dimension_numbers<[1], [0], [0], [1], [0, 0, 1, 1], [], []>} : vector<16x128xbf16>, vector<128x128xbf16>, vector<16x128xf32> -> vector<16x128xf32>
    %c384 = arith.constant 384 : index
    %c0_78 = arith.constant 0 : index
    %225 = vector.load %arg5[%c384, %c0_78] : memref<512x128xbf16, #tpu.memory_space<vmem>>, vector<128x128xbf16>
    %cst_79 = arith.constant dense<0.000000e+00> : vector<16x128xf32>
    %226 = tpu.matmul %213, %225, %cst_79 {dimension_numbers = #tpu.dot_dimension_numbers<[1], [0], [0], [1], [0, 0, 1, 1], [], []>} : vector<16x128xbf16>, vector<128x128xbf16>, vector<16x128xf32> -> vector<16x128xf32>
    %227 = arith.addf %224, %226 : vector<16x128xf32>
    %228 = vector.shape_cast %222 : vector<16x128xf32> to vector<2x8x128xf32>
    %229 = arith.truncf %228 : vector<2x8x128xf32> to vector<2x8x128xbf16>
    %230 = vector.shape_cast %227 : vector<16x128xf32> to vector<2x8x128xf32>
    %231 = arith.truncf %230 : vector<2x8x128xf32> to vector<2x8x128xbf16>
    %232 = tpu.iota {dimensions = array<i32: 1>} : vector<2x16x8xi32>
    %233 = tpu.iota {dimensions = array<i32: 2>} : vector<2x16x8xi32>
    %c2_i32_80 = arith.constant 2 : i32
    %234 = vector.broadcast %c2_i32_80 : i32 to vector<2x16x8xi32>
    %235 = arith.muli %234, %233 : vector<2x16x8xi32>
    %236 = arith.cmpi eq, %232, %235 : vector<2x16x8xi32>
    %237 = arith.extui %236 : vector<2x16x8xi1> to vector<2x16x8xi32>
    %238 = arith.sitofp %237 : vector<2x16x8xi32> to vector<2x16x8xf32>
    %239 = arith.truncf %238 : vector<2x16x8xf32> to vector<2x16x8xbf16>
    %240 = tpu.iota {dimensions = array<i32: 1>} : vector<2x16x8xi32>
    %241 = tpu.iota {dimensions = array<i32: 2>} : vector<2x16x8xi32>
    %c2_i32_81 = arith.constant 2 : i32
    %242 = vector.broadcast %c2_i32_81 : i32 to vector<2x16x8xi32>
    %243 = arith.muli %242, %241 : vector<2x16x8xi32>
    %c1_i32_82 = arith.constant 1 : i32
    %244 = vector.broadcast %c1_i32_82 : i32 to vector<2x16x8xi32>
    %245 = arith.addi %243, %244 : vector<2x16x8xi32>
    %246 = arith.cmpi eq, %240, %245 : vector<2x16x8xi32>
    %247 = arith.extui %246 : vector<2x16x8xi1> to vector<2x16x8xi32>
    %248 = arith.sitofp %247 : vector<2x16x8xi32> to vector<2x16x8xf32>
    %249 = arith.truncf %248 : vector<2x16x8xf32> to vector<2x16x8xbf16>
    "tpu.trace_start"() <{level = 10 : i32, message = "bml,bld->bmd"}> : () -> ()
    %cst_83 = arith.constant dense<0.000000e+00> : vector<2x16x128xf32>
    %250 = tpu.matmul %239, %229, %cst_83 {dimension_numbers = #tpu.dot_dimension_numbers<[2], [1], [1], [2], [0, 0, 0, 1, 1, 2], [0], [0]>} : vector<2x16x8xbf16>, vector<2x8x128xbf16>, vector<2x16x128xf32> -> vector<2x16x128xf32>
    %cst_84 = arith.constant dense<0.000000e+00> : vector<2x16x128xf32>
    %251 = tpu.matmul %249, %231, %cst_84 {dimension_numbers = #tpu.dot_dimension_numbers<[2], [1], [1], [2], [0, 0, 0, 1, 1, 2], [0], [0]>} : vector<2x16x8xbf16>, vector<2x8x128xbf16>, vector<2x16x128xf32> -> vector<2x16x128xf32>
    "tpu.trace_stop"() : () -> ()
    %252 = arith.addf %250, %251 : vector<2x16x128xf32>
    %cst_85 = arith.constant dense<0.000000e+00> : vector<2x128xf32>
    %253 = vector.multi_reduction <add>, %252, %cst_85 [1] : vector<2x16x128xf32> to vector<2x128xf32>
    %254 = vector.shape_cast %253 : vector<2x128xf32> to vector<2x1x128xf32>
    %cst_86 = arith.constant 1.600000e+01 : f32
    %255 = vector.broadcast %cst_86 : f32 to vector<2x1x128xf32>
    %256 = arith.divf %254, %255 : vector<2x1x128xf32>
    %257 = vector.broadcast %256 : vector<2x1x128xf32> to vector<2x16x128xf32>
    %258 = arith.subf %252, %257 : vector<2x16x128xf32>
    %259 = arith.mulf %258, %258 : vector<2x16x128xf32>
    %cst_87 = arith.constant dense<0.000000e+00> : vector<2x128xf32>
    %260 = vector.multi_reduction <add>, %259, %cst_87 [1] : vector<2x16x128xf32> to vector<2x128xf32>
    %261 = vector.shape_cast %260 : vector<2x128xf32> to vector<2x1x128xf32>
    %cst_88 = arith.constant 1.600000e+01 : f32
    %262 = vector.broadcast %cst_88 : f32 to vector<2x1x128xf32>
    %263 = arith.divf %261, %262 : vector<2x1x128xf32>
    %cst_89 = arith.constant 9.99999974E-6 : f32
    %264 = vector.broadcast %cst_89 : f32 to vector<2x1x128xf32>
    %265 = arith.addf %263, %264 : vector<2x1x128xf32>
    %266 = math.rsqrt %265 : vector<2x1x128xf32>
    %267 = vector.broadcast %266 : vector<2x1x128xf32> to vector<2x16x128xf32>
    %268 = arith.mulf %258, %267 : vector<2x16x128xf32>
    %cst_90 = arith.constant 0.000000e+00 : f32
    %269 = vector.broadcast %cst_90 : f32 to vector<2x16x128xf32>
    %270 = arith.cmpf ogt, %268, %269 : vector<2x16x128xf32>
    %cst_91 = arith.constant 0.000000e+00 : f32
    %271 = vector.broadcast %cst_91 : f32 to vector<2x16x128xf32>
    %272 = arith.minimumf %268, %271 : vector<2x16x128xf32>
    %273 = math.exp %272 : vector<2x16x128xf32>
    %cst_92 = arith.constant 1.000000e+00 : f32
    %274 = vector.broadcast %cst_92 : f32 to vector<2x16x128xf32>
    %275 = arith.subf %273, %274 : vector<2x16x128xf32>
    %276 = arith.select %270, %268, %275 : vector<2x16x128xi1>, vector<2x16x128xf32>
    %277 = vector.shape_cast %276 : vector<2x16x128xf32> to vector<32x128xf32>
    %c1_i32_93 = arith.constant 1 : i32
    %278 = tpu.dynamic_rotate %277 by %c1_i32_93 dim 0 : vector<32x128xf32>, i32 -> vector<32x128xf32>
    %279 = vector.shape_cast %278 : vector<32x128xf32> to vector<2x16x128xf32>
    %c31_i32_94 = arith.constant 31 : i32
    %280 = tpu.dynamic_rotate %277 by %c31_i32_94 dim 0 : vector<32x128xf32>, i32 -> vector<32x128xf32>
    %281 = vector.shape_cast %280 : vector<32x128xf32> to vector<2x16x128xf32>
    %282 = tpu.iota {dimensions = array<i32: 1>} : vector<2x16x128xi32>
    %cst_95 = arith.constant 0.000000e+00 : f32
    %283 = vector.broadcast %cst_95 : f32 to vector<2x16x128xf32>
    %c0_i32_96 = arith.constant 0 : i32
    %284 = vector.broadcast %c0_i32_96 : i32 to vector<2x16x128xi32>
    %285 = arith.cmpi eq, %282, %284 : vector<2x16x128xi32>
    %286 = arith.select %285, %283, %279 : vector<2x16x128xi1>, vector<2x16x128xf32>
    %c15_i32_97 = arith.constant 15 : i32
    %287 = vector.broadcast %c15_i32_97 : i32 to vector<2x16x128xi32>
    %288 = arith.cmpi eq, %282, %287 : vector<2x16x128xi32>
    %289 = arith.select %288, %283, %281 : vector<2x16x128xi1>, vector<2x16x128xf32>
    %290 = vector.shape_cast %276 : vector<2x16x128xf32> to vector<32x128xf32>
    %291 = arith.truncf %290 : vector<32x128xf32> to vector<32x128xbf16>
    %292 = vector.shape_cast %286 : vector<2x16x128xf32> to vector<32x128xf32>
    %293 = arith.truncf %292 : vector<32x128xf32> to vector<32x128xbf16>
    %294 = vector.shape_cast %289 : vector<2x16x128xf32> to vector<32x128xf32>
    %295 = arith.truncf %294 : vector<32x128xf32> to vector<32x128xbf16>
    %c0_98 = arith.constant 0 : index
    %c0_99 = arith.constant 0 : index
    %296 = vector.load %arg6[%c0_98, %c0_99] : memref<512x64xbf16, #tpu.memory_space<vmem>>, vector<128x64xbf16>
    %cst_100 = arith.constant dense<0.000000e+00> : vector<32x64xf32>
    %297 = tpu.matmul %291, %296, %cst_100 {dimension_numbers = #tpu.dot_dimension_numbers<[1], [0], [0], [1], [0, 0, 1, 1], [], []>} : vector<32x128xbf16>, vector<128x64xbf16>, vector<32x64xf32> -> vector<32x64xf32>
    %c128_101 = arith.constant 128 : index
    %c0_102 = arith.constant 0 : index
    %298 = vector.load %arg6[%c128_101, %c0_102] : memref<512x64xbf16, #tpu.memory_space<vmem>>, vector<128x64xbf16>
    %cst_103 = arith.constant dense<0.000000e+00> : vector<32x64xf32>
    %299 = tpu.matmul %293, %298, %cst_103 {dimension_numbers = #tpu.dot_dimension_numbers<[1], [0], [0], [1], [0, 0, 1, 1], [], []>} : vector<32x128xbf16>, vector<128x64xbf16>, vector<32x64xf32> -> vector<32x64xf32>
    %300 = arith.addf %297, %299 : vector<32x64xf32>
    %c256_104 = arith.constant 256 : index
    %c0_105 = arith.constant 0 : index
    %301 = vector.load %arg6[%c256_104, %c0_105] : memref<512x64xbf16, #tpu.memory_space<vmem>>, vector<128x64xbf16>
    %cst_106 = arith.constant dense<0.000000e+00> : vector<32x64xf32>
    %302 = tpu.matmul %295, %301, %cst_106 {dimension_numbers = #tpu.dot_dimension_numbers<[1], [0], [0], [1], [0, 0, 1, 1], [], []>} : vector<32x128xbf16>, vector<128x64xbf16>, vector<32x64xf32> -> vector<32x64xf32>
    %c384_107 = arith.constant 384 : index
    %c0_108 = arith.constant 0 : index
    %303 = vector.load %arg6[%c384_107, %c0_108] : memref<512x64xbf16, #tpu.memory_space<vmem>>, vector<128x64xbf16>
    %cst_109 = arith.constant dense<0.000000e+00> : vector<32x64xf32>
    %304 = tpu.matmul %291, %303, %cst_109 {dimension_numbers = #tpu.dot_dimension_numbers<[1], [0], [0], [1], [0, 0, 1, 1], [], []>} : vector<32x128xbf16>, vector<128x64xbf16>, vector<32x64xf32> -> vector<32x64xf32>
    %305 = arith.addf %302, %304 : vector<32x64xf32>
    %306 = vector.shape_cast %132 : vector<2x16x128xf32> to vector<32x128xf32>
    %c1_i32_110 = arith.constant 1 : i32
    %307 = tpu.dynamic_rotate %306 by %c1_i32_110 dim 0 : vector<32x128xf32>, i32 -> vector<32x128xf32>
    %308 = vector.shape_cast %307 : vector<32x128xf32> to vector<2x16x128xf32>
    %c31_i32_111 = arith.constant 31 : i32
    %309 = tpu.dynamic_rotate %306 by %c31_i32_111 dim 0 : vector<32x128xf32>, i32 -> vector<32x128xf32>
    %310 = vector.shape_cast %309 : vector<32x128xf32> to vector<2x16x128xf32>
    %311 = tpu.iota {dimensions = array<i32: 1>} : vector<2x16x128xi32>
    %cst_112 = arith.constant 0.000000e+00 : f32
    %312 = vector.broadcast %cst_112 : f32 to vector<2x16x128xf32>
    %c0_i32_113 = arith.constant 0 : i32
    %313 = vector.broadcast %c0_i32_113 : i32 to vector<2x16x128xi32>
    %314 = arith.cmpi eq, %311, %313 : vector<2x16x128xi32>
    %315 = arith.select %314, %312, %308 : vector<2x16x128xi1>, vector<2x16x128xf32>
    %c15_i32_114 = arith.constant 15 : i32
    %316 = vector.broadcast %c15_i32_114 : i32 to vector<2x16x128xi32>
    %317 = arith.cmpi eq, %311, %316 : vector<2x16x128xi32>
    %318 = arith.select %317, %312, %310 : vector<2x16x128xi1>, vector<2x16x128xf32>
    %319 = vector.shape_cast %132 : vector<2x16x128xf32> to vector<32x128xf32>
    %320 = arith.truncf %319 : vector<32x128xf32> to vector<32x128xbf16>
    %321 = vector.shape_cast %315 : vector<2x16x128xf32> to vector<32x128xf32>
    %322 = arith.truncf %321 : vector<32x128xf32> to vector<32x128xbf16>
    %323 = vector.shape_cast %318 : vector<2x16x128xf32> to vector<32x128xf32>
    %324 = arith.truncf %323 : vector<32x128xf32> to vector<32x128xbf16>
    %c0_115 = arith.constant 0 : index
    %c0_116 = arith.constant 0 : index
    %325 = vector.load %arg7[%c0_115, %c0_116] : memref<512x64xbf16, #tpu.memory_space<vmem>>, vector<128x64xbf16>
    %cst_117 = arith.constant dense<0.000000e+00> : vector<32x64xf32>
    %326 = tpu.matmul %320, %325, %cst_117 {dimension_numbers = #tpu.dot_dimension_numbers<[1], [0], [0], [1], [0, 0, 1, 1], [], []>} : vector<32x128xbf16>, vector<128x64xbf16>, vector<32x64xf32> -> vector<32x64xf32>
    %c128_118 = arith.constant 128 : index
    %c0_119 = arith.constant 0 : index
    %327 = vector.load %arg7[%c128_118, %c0_119] : memref<512x64xbf16, #tpu.memory_space<vmem>>, vector<128x64xbf16>
    %cst_120 = arith.constant dense<0.000000e+00> : vector<32x64xf32>
    %328 = tpu.matmul %322, %327, %cst_120 {dimension_numbers = #tpu.dot_dimension_numbers<[1], [0], [0], [1], [0, 0, 1, 1], [], []>} : vector<32x128xbf16>, vector<128x64xbf16>, vector<32x64xf32> -> vector<32x64xf32>
    %329 = arith.addf %326, %328 : vector<32x64xf32>
    %c256_121 = arith.constant 256 : index
    %c0_122 = arith.constant 0 : index
    %330 = vector.load %arg7[%c256_121, %c0_122] : memref<512x64xbf16, #tpu.memory_space<vmem>>, vector<128x64xbf16>
    %cst_123 = arith.constant dense<0.000000e+00> : vector<32x64xf32>
    %331 = tpu.matmul %324, %330, %cst_123 {dimension_numbers = #tpu.dot_dimension_numbers<[1], [0], [0], [1], [0, 0, 1, 1], [], []>} : vector<32x128xbf16>, vector<128x64xbf16>, vector<32x64xf32> -> vector<32x64xf32>
    %c384_124 = arith.constant 384 : index
    %c0_125 = arith.constant 0 : index
    %332 = vector.load %arg7[%c384_124, %c0_125] : memref<512x64xbf16, #tpu.memory_space<vmem>>, vector<128x64xbf16>
    %cst_126 = arith.constant dense<0.000000e+00> : vector<32x64xf32>
    %333 = tpu.matmul %320, %332, %cst_126 {dimension_numbers = #tpu.dot_dimension_numbers<[1], [0], [0], [1], [0, 0, 1, 1], [], []>} : vector<32x128xbf16>, vector<128x64xbf16>, vector<32x64xf32> -> vector<32x64xf32>
    %334 = arith.addf %331, %333 : vector<32x64xf32>
    %335 = arith.addf %300, %329 : vector<32x64xf32>
    %336 = arith.addf %305, %334 : vector<32x64xf32>
    %337 = vector.shape_cast %335 : vector<32x64xf32> to vector<2x16x64xf32>
    %338 = arith.truncf %337 : vector<2x16x64xf32> to vector<2x16x64xbf16>
    %339 = vector.shape_cast %336 : vector<32x64xf32> to vector<2x16x64xf32>
    %340 = arith.truncf %339 : vector<2x16x64xf32> to vector<2x16x64xbf16>
    %341 = tpu.iota {dimensions = array<i32: 1>} : vector<2x32x16xi32>
    %342 = tpu.iota {dimensions = array<i32: 2>} : vector<2x32x16xi32>
    %c2_i32_127 = arith.constant 2 : i32
    %343 = vector.broadcast %c2_i32_127 : i32 to vector<2x32x16xi32>
    %344 = arith.muli %343, %342 : vector<2x32x16xi32>
    %345 = arith.cmpi eq, %341, %344 : vector<2x32x16xi32>
    %346 = arith.extui %345 : vector<2x32x16xi1> to vector<2x32x16xi32>
    %347 = arith.sitofp %346 : vector<2x32x16xi32> to vector<2x32x16xf32>
    %348 = arith.truncf %347 : vector<2x32x16xf32> to vector<2x32x16xbf16>
    %349 = tpu.iota {dimensions = array<i32: 1>} : vector<2x32x16xi32>
    %350 = tpu.iota {dimensions = array<i32: 2>} : vector<2x32x16xi32>
    %c2_i32_128 = arith.constant 2 : i32
    %351 = vector.broadcast %c2_i32_128 : i32 to vector<2x32x16xi32>
    %352 = arith.muli %351, %350 : vector<2x32x16xi32>
    %c1_i32_129 = arith.constant 1 : i32
    %353 = vector.broadcast %c1_i32_129 : i32 to vector<2x32x16xi32>
    %354 = arith.addi %352, %353 : vector<2x32x16xi32>
    %355 = arith.cmpi eq, %349, %354 : vector<2x32x16xi32>
    %356 = arith.extui %355 : vector<2x32x16xi1> to vector<2x32x16xi32>
    %357 = arith.sitofp %356 : vector<2x32x16xi32> to vector<2x32x16xf32>
    %358 = arith.truncf %357 : vector<2x32x16xf32> to vector<2x32x16xbf16>
    "tpu.trace_start"() <{level = 10 : i32, message = "bml,bld->bmd"}> : () -> ()
    %cst_130 = arith.constant dense<0.000000e+00> : vector<2x32x64xf32>
    %359 = tpu.matmul %348, %338, %cst_130 {dimension_numbers = #tpu.dot_dimension_numbers<[2], [1], [1], [2], [0, 0, 0, 1, 1, 2], [0], [0]>} : vector<2x32x16xbf16>, vector<2x16x64xbf16>, vector<2x32x64xf32> -> vector<2x32x64xf32>
    %cst_131 = arith.constant dense<0.000000e+00> : vector<2x32x64xf32>
    %360 = tpu.matmul %358, %340, %cst_131 {dimension_numbers = #tpu.dot_dimension_numbers<[2], [1], [1], [2], [0, 0, 0, 1, 1, 2], [0], [0]>} : vector<2x32x16xbf16>, vector<2x16x64xbf16>, vector<2x32x64xf32> -> vector<2x32x64xf32>
    "tpu.trace_stop"() : () -> ()
    %361 = arith.addf %359, %360 : vector<2x32x64xf32>
    %cst_132 = arith.constant dense<0.000000e+00> : vector<2x64xf32>
    %362 = vector.multi_reduction <add>, %361, %cst_132 [1] : vector<2x32x64xf32> to vector<2x64xf32>
    %363 = vector.shape_cast %362 : vector<2x64xf32> to vector<2x1x64xf32>
    %cst_133 = arith.constant 3.200000e+01 : f32
    %364 = vector.broadcast %cst_133 : f32 to vector<2x1x64xf32>
    %365 = arith.divf %363, %364 : vector<2x1x64xf32>
    %366 = vector.broadcast %365 : vector<2x1x64xf32> to vector<2x32x64xf32>
    %367 = arith.subf %361, %366 : vector<2x32x64xf32>
    %368 = arith.mulf %367, %367 : vector<2x32x64xf32>
    %cst_134 = arith.constant dense<0.000000e+00> : vector<2x64xf32>
    %369 = vector.multi_reduction <add>, %368, %cst_134 [1] : vector<2x32x64xf32> to vector<2x64xf32>
    %370 = vector.shape_cast %369 : vector<2x64xf32> to vector<2x1x64xf32>
    %cst_135 = arith.constant 3.200000e+01 : f32
    %371 = vector.broadcast %cst_135 : f32 to vector<2x1x64xf32>
    %372 = arith.divf %370, %371 : vector<2x1x64xf32>
    %cst_136 = arith.constant 9.99999974E-6 : f32
    %373 = vector.broadcast %cst_136 : f32 to vector<2x1x64xf32>
    %374 = arith.addf %372, %373 : vector<2x1x64xf32>
    %375 = math.rsqrt %374 : vector<2x1x64xf32>
    %376 = vector.broadcast %375 : vector<2x1x64xf32> to vector<2x32x64xf32>
    %377 = arith.mulf %367, %376 : vector<2x32x64xf32>
    %cst_137 = arith.constant 0.000000e+00 : f32
    %378 = vector.broadcast %cst_137 : f32 to vector<2x32x64xf32>
    %379 = arith.cmpf ogt, %377, %378 : vector<2x32x64xf32>
    %cst_138 = arith.constant 0.000000e+00 : f32
    %380 = vector.broadcast %cst_138 : f32 to vector<2x32x64xf32>
    %381 = arith.minimumf %377, %380 : vector<2x32x64xf32>
    %382 = math.exp %381 : vector<2x32x64xf32>
    %cst_139 = arith.constant 1.000000e+00 : f32
    %383 = vector.broadcast %cst_139 : f32 to vector<2x32x64xf32>
    %384 = arith.subf %382, %383 : vector<2x32x64xf32>
    %385 = arith.select %379, %377, %384 : vector<2x32x64xi1>, vector<2x32x64xf32>
    %386 = vector.shape_cast %385 : vector<2x32x64xf32> to vector<64x64xf32>
    %c1_i32_140 = arith.constant 1 : i32
    %387 = tpu.dynamic_rotate %386 by %c1_i32_140 dim 0 : vector<64x64xf32>, i32 -> vector<64x64xf32>
    %388 = vector.shape_cast %387 : vector<64x64xf32> to vector<2x32x64xf32>
    %c63_i32_141 = arith.constant 63 : i32
    %389 = tpu.dynamic_rotate %386 by %c63_i32_141 dim 0 : vector<64x64xf32>, i32 -> vector<64x64xf32>
    %390 = vector.shape_cast %389 : vector<64x64xf32> to vector<2x32x64xf32>
    %391 = tpu.iota {dimensions = array<i32: 1>} : vector<2x32x64xi32>
    %cst_142 = arith.constant 0.000000e+00 : f32
    %392 = vector.broadcast %cst_142 : f32 to vector<2x32x64xf32>
    %c0_i32_143 = arith.constant 0 : i32
    %393 = vector.broadcast %c0_i32_143 : i32 to vector<2x32x64xi32>
    %394 = arith.cmpi eq, %391, %393 : vector<2x32x64xi32>
    %395 = arith.select %394, %392, %388 : vector<2x32x64xi1>, vector<2x32x64xf32>
    %c31_i32_144 = arith.constant 31 : i32
    %396 = vector.broadcast %c31_i32_144 : i32 to vector<2x32x64xi32>
    %397 = arith.cmpi eq, %391, %396 : vector<2x32x64xi32>
    %398 = arith.select %397, %392, %390 : vector<2x32x64xi1>, vector<2x32x64xf32>
    %399 = vector.shape_cast %385 : vector<2x32x64xf32> to vector<64x64xf32>
    %400 = arith.truncf %399 : vector<64x64xf32> to vector<64x64xbf16>
    %401 = vector.shape_cast %395 : vector<2x32x64xf32> to vector<64x64xf32>
    %402 = arith.truncf %401 : vector<64x64xf32> to vector<64x64xbf16>
    %403 = vector.shape_cast %398 : vector<2x32x64xf32> to vector<64x64xf32>
    %404 = arith.truncf %403 : vector<64x64xf32> to vector<64x64xbf16>
    %c0_145 = arith.constant 0 : index
    %c0_146 = arith.constant 0 : index
    %405 = vector.load %arg8[%c0_145, %c0_146] : memref<256x32xbf16, #tpu.memory_space<vmem>>, vector<64x32xbf16>
    %cst_147 = arith.constant dense<0.000000e+00> : vector<64x32xf32>
    %406 = tpu.matmul %400, %405, %cst_147 {dimension_numbers = #tpu.dot_dimension_numbers<[1], [0], [0], [1], [0, 0, 1, 1], [], []>} : vector<64x64xbf16>, vector<64x32xbf16>, vector<64x32xf32> -> vector<64x32xf32>
    %c64_148 = arith.constant 64 : index
    %c0_149 = arith.constant 0 : index
    %407 = vector.load %arg8[%c64_148, %c0_149] : memref<256x32xbf16, #tpu.memory_space<vmem>>, vector<64x32xbf16>
    %cst_150 = arith.constant dense<0.000000e+00> : vector<64x32xf32>
    %408 = tpu.matmul %402, %407, %cst_150 {dimension_numbers = #tpu.dot_dimension_numbers<[1], [0], [0], [1], [0, 0, 1, 1], [], []>} : vector<64x64xbf16>, vector<64x32xbf16>, vector<64x32xf32> -> vector<64x32xf32>
    %409 = arith.addf %406, %408 : vector<64x32xf32>
    %c128_151 = arith.constant 128 : index
    %c0_152 = arith.constant 0 : index
    %410 = vector.load %arg8[%c128_151, %c0_152] : memref<256x32xbf16, #tpu.memory_space<vmem>>, vector<64x32xbf16>
    %cst_153 = arith.constant dense<0.000000e+00> : vector<64x32xf32>
    %411 = tpu.matmul %404, %410, %cst_153 {dimension_numbers = #tpu.dot_dimension_numbers<[1], [0], [0], [1], [0, 0, 1, 1], [], []>} : vector<64x64xbf16>, vector<64x32xbf16>, vector<64x32xf32> -> vector<64x32xf32>
    %c192 = arith.constant 192 : index
    %c0_154 = arith.constant 0 : index
    %412 = vector.load %arg8[%c192, %c0_154] : memref<256x32xbf16, #tpu.memory_space<vmem>>, vector<64x32xbf16>
    %cst_155 = arith.constant dense<0.000000e+00> : vector<64x32xf32>
    %413 = tpu.matmul %400, %412, %cst_155 {dimension_numbers = #tpu.dot_dimension_numbers<[1], [0], [0], [1], [0, 0, 1, 1], [], []>} : vector<64x64xbf16>, vector<64x32xbf16>, vector<64x32xf32> -> vector<64x32xf32>
    %414 = arith.addf %411, %413 : vector<64x32xf32>
    %415 = vector.shape_cast %66 : vector<2x32x64xf32> to vector<64x64xf32>
    %c1_i32_156 = arith.constant 1 : i32
    %416 = tpu.dynamic_rotate %415 by %c1_i32_156 dim 0 : vector<64x64xf32>, i32 -> vector<64x64xf32>
    %417 = vector.shape_cast %416 : vector<64x64xf32> to vector<2x32x64xf32>
    %c63_i32_157 = arith.constant 63 : i32
    %418 = tpu.dynamic_rotate %415 by %c63_i32_157 dim 0 : vector<64x64xf32>, i32 -> vector<64x64xf32>
    %419 = vector.shape_cast %418 : vector<64x64xf32> to vector<2x32x64xf32>
    %420 = tpu.iota {dimensions = array<i32: 1>} : vector<2x32x64xi32>
    %cst_158 = arith.constant 0.000000e+00 : f32
    %421 = vector.broadcast %cst_158 : f32 to vector<2x32x64xf32>
    %c0_i32_159 = arith.constant 0 : i32
    %422 = vector.broadcast %c0_i32_159 : i32 to vector<2x32x64xi32>
    %423 = arith.cmpi eq, %420, %422 : vector<2x32x64xi32>
    %424 = arith.select %423, %421, %417 : vector<2x32x64xi1>, vector<2x32x64xf32>
    %c31_i32_160 = arith.constant 31 : i32
    %425 = vector.broadcast %c31_i32_160 : i32 to vector<2x32x64xi32>
    %426 = arith.cmpi eq, %420, %425 : vector<2x32x64xi32>
    %427 = arith.select %426, %421, %419 : vector<2x32x64xi1>, vector<2x32x64xf32>
    %428 = vector.shape_cast %66 : vector<2x32x64xf32> to vector<64x64xf32>
    %429 = arith.truncf %428 : vector<64x64xf32> to vector<64x64xbf16>
    %430 = vector.shape_cast %424 : vector<2x32x64xf32> to vector<64x64xf32>
    %431 = arith.truncf %430 : vector<64x64xf32> to vector<64x64xbf16>
    %432 = vector.shape_cast %427 : vector<2x32x64xf32> to vector<64x64xf32>
    %433 = arith.truncf %432 : vector<64x64xf32> to vector<64x64xbf16>
    %c0_161 = arith.constant 0 : index
    %c0_162 = arith.constant 0 : index
    %434 = vector.load %arg9[%c0_161, %c0_162] : memref<256x32xbf16, #tpu.memory_space<vmem>>, vector<64x32xbf16>
    %cst_163 = arith.constant dense<0.000000e+00> : vector<64x32xf32>
    %435 = tpu.matmul %429, %434, %cst_163 {dimension_numbers = #tpu.dot_dimension_numbers<[1], [0], [0], [1], [0, 0, 1, 1], [], []>} : vector<64x64xbf16>, vector<64x32xbf16>, vector<64x32xf32> -> vector<64x32xf32>
    %c64_164 = arith.constant 64 : index
    %c0_165 = arith.constant 0 : index
    %436 = vector.load %arg9[%c64_164, %c0_165] : memref<256x32xbf16, #tpu.memory_space<vmem>>, vector<64x32xbf16>
    %cst_166 = arith.constant dense<0.000000e+00> : vector<64x32xf32>
    %437 = tpu.matmul %431, %436, %cst_166 {dimension_numbers = #tpu.dot_dimension_numbers<[1], [0], [0], [1], [0, 0, 1, 1], [], []>} : vector<64x64xbf16>, vector<64x32xbf16>, vector<64x32xf32> -> vector<64x32xf32>
    %438 = arith.addf %435, %437 : vector<64x32xf32>
    %c128_167 = arith.constant 128 : index
    %c0_168 = arith.constant 0 : index
    %439 = vector.load %arg9[%c128_167, %c0_168] : memref<256x32xbf16, #tpu.memory_space<vmem>>, vector<64x32xbf16>
    %cst_169 = arith.constant dense<0.000000e+00> : vector<64x32xf32>
    %440 = tpu.matmul %433, %439, %cst_169 {dimension_numbers = #tpu.dot_dimension_numbers<[1], [0], [0], [1], [0, 0, 1, 1], [], []>} : vector<64x64xbf16>, vector<64x32xbf16>, vector<64x32xf32> -> vector<64x32xf32>
    %c192_170 = arith.constant 192 : index
    %c0_171 = arith.constant 0 : index
    %441 = vector.load %arg9[%c192_170, %c0_171] : memref<256x32xbf16, #tpu.memory_space<vmem>>, vector<64x32xbf16>
    %cst_172 = arith.constant dense<0.000000e+00> : vector<64x32xf32>
    %442 = tpu.matmul %429, %441, %cst_172 {dimension_numbers = #tpu.dot_dimension_numbers<[1], [0], [0], [1], [0, 0, 1, 1], [], []>} : vector<64x64xbf16>, vector<64x32xbf16>, vector<64x32xf32> -> vector<64x32xf32>
    %443 = arith.addf %440, %442 : vector<64x32xf32>
    %444 = arith.addf %409, %438 : vector<64x32xf32>
    %445 = arith.addf %414, %443 : vector<64x32xf32>
    %446 = vector.shape_cast %444 : vector<64x32xf32> to vector<2x32x32xf32>
    %447 = arith.truncf %446 : vector<2x32x32xf32> to vector<2x32x32xbf16>
    %448 = vector.shape_cast %445 : vector<64x32xf32> to vector<2x32x32xf32>
    %449 = arith.truncf %448 : vector<2x32x32xf32> to vector<2x32x32xbf16>
    %450 = tpu.iota {dimensions = array<i32: 1>} : vector<2x64x32xi32>
    %451 = tpu.iota {dimensions = array<i32: 2>} : vector<2x64x32xi32>
    %c2_i32_173 = arith.constant 2 : i32
    %452 = vector.broadcast %c2_i32_173 : i32 to vector<2x64x32xi32>
    %453 = arith.muli %452, %451 : vector<2x64x32xi32>
    %454 = arith.cmpi eq, %450, %453 : vector<2x64x32xi32>
    %455 = arith.extui %454 : vector<2x64x32xi1> to vector<2x64x32xi32>
    %456 = arith.sitofp %455 : vector<2x64x32xi32> to vector<2x64x32xf32>
    %457 = arith.truncf %456 : vector<2x64x32xf32> to vector<2x64x32xbf16>
    %458 = tpu.iota {dimensions = array<i32: 1>} : vector<2x64x32xi32>
    %459 = tpu.iota {dimensions = array<i32: 2>} : vector<2x64x32xi32>
    %c2_i32_174 = arith.constant 2 : i32
    %460 = vector.broadcast %c2_i32_174 : i32 to vector<2x64x32xi32>
    %461 = arith.muli %460, %459 : vector<2x64x32xi32>
    %c1_i32_175 = arith.constant 1 : i32
    %462 = vector.broadcast %c1_i32_175 : i32 to vector<2x64x32xi32>
    %463 = arith.addi %461, %462 : vector<2x64x32xi32>
    %464 = arith.cmpi eq, %458, %463 : vector<2x64x32xi32>
    %465 = arith.extui %464 : vector<2x64x32xi1> to vector<2x64x32xi32>
    %466 = arith.sitofp %465 : vector<2x64x32xi32> to vector<2x64x32xf32>
    %467 = arith.truncf %466 : vector<2x64x32xf32> to vector<2x64x32xbf16>
    "tpu.trace_start"() <{level = 10 : i32, message = "bml,bld->bmd"}> : () -> ()
    %cst_176 = arith.constant dense<0.000000e+00> : vector<2x64x32xf32>
    %468 = tpu.matmul %457, %447, %cst_176 {dimension_numbers = #tpu.dot_dimension_numbers<[2], [1], [1], [2], [0, 0, 0, 1, 1, 2], [0], [0]>} : vector<2x64x32xbf16>, vector<2x32x32xbf16>, vector<2x64x32xf32> -> vector<2x64x32xf32>
    %cst_177 = arith.constant dense<0.000000e+00> : vector<2x64x32xf32>
    %469 = tpu.matmul %467, %449, %cst_177 {dimension_numbers = #tpu.dot_dimension_numbers<[2], [1], [1], [2], [0, 0, 0, 1, 1, 2], [0], [0]>} : vector<2x64x32xbf16>, vector<2x32x32xbf16>, vector<2x64x32xf32> -> vector<2x64x32xf32>
    "tpu.trace_stop"() : () -> ()
    %470 = arith.addf %468, %469 : vector<2x64x32xf32>
    %cst_178 = arith.constant dense<0.000000e+00> : vector<2x32xf32>
    %471 = vector.multi_reduction <add>, %470, %cst_178 [1] : vector<2x64x32xf32> to vector<2x32xf32>
    %472 = vector.shape_cast %471 : vector<2x32xf32> to vector<2x1x32xf32>
    %cst_179 = arith.constant 6.400000e+01 : f32
    %473 = vector.broadcast %cst_179 : f32 to vector<2x1x32xf32>
    %474 = arith.divf %472, %473 : vector<2x1x32xf32>
    %475 = vector.broadcast %474 : vector<2x1x32xf32> to vector<2x64x32xf32>
    %476 = arith.subf %470, %475 : vector<2x64x32xf32>
    %477 = arith.mulf %476, %476 : vector<2x64x32xf32>
    %cst_180 = arith.constant dense<0.000000e+00> : vector<2x32xf32>
    %478 = vector.multi_reduction <add>, %477, %cst_180 [1] : vector<2x64x32xf32> to vector<2x32xf32>
    %479 = vector.shape_cast %478 : vector<2x32xf32> to vector<2x1x32xf32>
    %cst_181 = arith.constant 6.400000e+01 : f32
    %480 = vector.broadcast %cst_181 : f32 to vector<2x1x32xf32>
    %481 = arith.divf %479, %480 : vector<2x1x32xf32>
    %cst_182 = arith.constant 9.99999974E-6 : f32
    %482 = vector.broadcast %cst_182 : f32 to vector<2x1x32xf32>
    %483 = arith.addf %481, %482 : vector<2x1x32xf32>
    %484 = math.rsqrt %483 : vector<2x1x32xf32>
    %485 = vector.broadcast %484 : vector<2x1x32xf32> to vector<2x64x32xf32>
    %486 = arith.mulf %476, %485 : vector<2x64x32xf32>
    %cst_183 = arith.constant 0.000000e+00 : f32
    %487 = vector.broadcast %cst_183 : f32 to vector<2x64x32xf32>
    %488 = arith.cmpf ogt, %486, %487 : vector<2x64x32xf32>
    %cst_184 = arith.constant 0.000000e+00 : f32
    %489 = vector.broadcast %cst_184 : f32 to vector<2x64x32xf32>
    %490 = arith.minimumf %486, %489 : vector<2x64x32xf32>
    %491 = math.exp %490 : vector<2x64x32xf32>
    %cst_185 = arith.constant 1.000000e+00 : f32
    %492 = vector.broadcast %cst_185 : f32 to vector<2x64x32xf32>
    %493 = arith.subf %491, %492 : vector<2x64x32xf32>
    %494 = arith.select %488, %486, %493 : vector<2x64x32xi1>, vector<2x64x32xf32>
    %495 = vector.shape_cast %494 : vector<2x64x32xf32> to vector<128x32xf32>
    %c1_i32_186 = arith.constant 1 : i32
    %496 = tpu.dynamic_rotate %495 by %c1_i32_186 dim 0 : vector<128x32xf32>, i32 -> vector<128x32xf32>
    %497 = vector.shape_cast %496 : vector<128x32xf32> to vector<2x64x32xf32>
    %c127_i32_187 = arith.constant 127 : i32
    %498 = tpu.dynamic_rotate %495 by %c127_i32_187 dim 0 : vector<128x32xf32>, i32 -> vector<128x32xf32>
    %499 = vector.shape_cast %498 : vector<128x32xf32> to vector<2x64x32xf32>
    %500 = tpu.iota {dimensions = array<i32: 1>} : vector<2x64x32xi32>
    %cst_188 = arith.constant 0.000000e+00 : f32
    %501 = vector.broadcast %cst_188 : f32 to vector<2x64x32xf32>
    %c0_i32_189 = arith.constant 0 : i32
    %502 = vector.broadcast %c0_i32_189 : i32 to vector<2x64x32xi32>
    %503 = arith.cmpi eq, %500, %502 : vector<2x64x32xi32>
    %504 = arith.select %503, %501, %497 : vector<2x64x32xi1>, vector<2x64x32xf32>
    %c63_i32_190 = arith.constant 63 : i32
    %505 = vector.broadcast %c63_i32_190 : i32 to vector<2x64x32xi32>
    %506 = arith.cmpi eq, %500, %505 : vector<2x64x32xi32>
    %507 = arith.select %506, %501, %499 : vector<2x64x32xi1>, vector<2x64x32xf32>
    %508 = vector.shape_cast %504 : vector<2x64x32xf32> to vector<128x32xf32>
    %509 = arith.truncf %508 : vector<128x32xf32> to vector<128x32xbf16>
    %c0_191 = arith.constant 0 : index
    %c0_192 = arith.constant 0 : index
    %510 = vector.load %arg10[%c0_191, %c0_192] : memref<96x32xbf16, #tpu.memory_space<vmem>>, vector<32x32xbf16>
    %cst_193 = arith.constant dense<0.000000e+00> : vector<128x32xf32>
    %511 = tpu.matmul %509, %510, %cst_193 {dimension_numbers = #tpu.dot_dimension_numbers<[1], [0], [0], [1], [0, 0, 1, 1], [], []>} : vector<128x32xbf16>, vector<32x32xbf16>, vector<128x32xf32> -> vector<128x32xf32>
    %512 = vector.shape_cast %494 : vector<2x64x32xf32> to vector<128x32xf32>
    %513 = arith.truncf %512 : vector<128x32xf32> to vector<128x32xbf16>
    %c32_194 = arith.constant 32 : index
    %c0_195 = arith.constant 0 : index
    %514 = vector.load %arg10[%c32_194, %c0_195] : memref<96x32xbf16, #tpu.memory_space<vmem>>, vector<32x32xbf16>
    %cst_196 = arith.constant dense<0.000000e+00> : vector<128x32xf32>
    %515 = tpu.matmul %513, %514, %cst_196 {dimension_numbers = #tpu.dot_dimension_numbers<[1], [0], [0], [1], [0, 0, 1, 1], [], []>} : vector<128x32xbf16>, vector<32x32xbf16>, vector<128x32xf32> -> vector<128x32xf32>
    %516 = arith.addf %511, %515 : vector<128x32xf32>
    %517 = vector.shape_cast %507 : vector<2x64x32xf32> to vector<128x32xf32>
    %518 = arith.truncf %517 : vector<128x32xf32> to vector<128x32xbf16>
    %c64_197 = arith.constant 64 : index
    %c0_198 = arith.constant 0 : index
    %519 = vector.load %arg10[%c64_197, %c0_198] : memref<96x32xbf16, #tpu.memory_space<vmem>>, vector<32x32xbf16>
    %cst_199 = arith.constant dense<0.000000e+00> : vector<128x32xf32>
    %520 = tpu.matmul %518, %519, %cst_199 {dimension_numbers = #tpu.dot_dimension_numbers<[1], [0], [0], [1], [0, 0, 1, 1], [], []>} : vector<128x32xbf16>, vector<32x32xbf16>, vector<128x32xf32> -> vector<128x32xf32>
    %521 = arith.addf %516, %520 : vector<128x32xf32>
    %522 = vector.shape_cast %0 : vector<2x64x32xf32> to vector<128x32xf32>
    %c1_i32_200 = arith.constant 1 : i32
    %523 = tpu.dynamic_rotate %522 by %c1_i32_200 dim 0 : vector<128x32xf32>, i32 -> vector<128x32xf32>
    %524 = vector.shape_cast %523 : vector<128x32xf32> to vector<2x64x32xf32>
    %c127_i32_201 = arith.constant 127 : i32
    %525 = tpu.dynamic_rotate %522 by %c127_i32_201 dim 0 : vector<128x32xf32>, i32 -> vector<128x32xf32>
    %526 = vector.shape_cast %525 : vector<128x32xf32> to vector<2x64x32xf32>
    %527 = tpu.iota {dimensions = array<i32: 1>} : vector<2x64x32xi32>
    %cst_202 = arith.constant 0.000000e+00 : f32
    %528 = vector.broadcast %cst_202 : f32 to vector<2x64x32xf32>
    %c0_i32_203 = arith.constant 0 : i32
    %529 = vector.broadcast %c0_i32_203 : i32 to vector<2x64x32xi32>
    %530 = arith.cmpi eq, %527, %529 : vector<2x64x32xi32>
    %531 = arith.select %530, %528, %524 : vector<2x64x32xi1>, vector<2x64x32xf32>
    %c63_i32_204 = arith.constant 63 : i32
    %532 = vector.broadcast %c63_i32_204 : i32 to vector<2x64x32xi32>
    %533 = arith.cmpi eq, %527, %532 : vector<2x64x32xi32>
    %534 = arith.select %533, %528, %526 : vector<2x64x32xi1>, vector<2x64x32xf32>
    %535 = vector.shape_cast %531 : vector<2x64x32xf32> to vector<128x32xf32>
    %536 = arith.truncf %535 : vector<128x32xf32> to vector<128x32xbf16>
    %c0_205 = arith.constant 0 : index
    %c0_206 = arith.constant 0 : index
    %537 = vector.load %arg11[%c0_205, %c0_206] : memref<96x32xbf16, #tpu.memory_space<vmem>>, vector<32x32xbf16>
    %cst_207 = arith.constant dense<0.000000e+00> : vector<128x32xf32>
    %538 = tpu.matmul %536, %537, %cst_207 {dimension_numbers = #tpu.dot_dimension_numbers<[1], [0], [0], [1], [0, 0, 1, 1], [], []>} : vector<128x32xbf16>, vector<32x32xbf16>, vector<128x32xf32> -> vector<128x32xf32>
    %539 = vector.shape_cast %0 : vector<2x64x32xf32> to vector<128x32xf32>
    %540 = arith.truncf %539 : vector<128x32xf32> to vector<128x32xbf16>
    %c32_208 = arith.constant 32 : index
    %c0_209 = arith.constant 0 : index
    %541 = vector.load %arg11[%c32_208, %c0_209] : memref<96x32xbf16, #tpu.memory_space<vmem>>, vector<32x32xbf16>
    %cst_210 = arith.constant dense<0.000000e+00> : vector<128x32xf32>
    %542 = tpu.matmul %540, %541, %cst_210 {dimension_numbers = #tpu.dot_dimension_numbers<[1], [0], [0], [1], [0, 0, 1, 1], [], []>} : vector<128x32xbf16>, vector<32x32xbf16>, vector<128x32xf32> -> vector<128x32xf32>
    %543 = arith.addf %538, %542 : vector<128x32xf32>
    %544 = vector.shape_cast %534 : vector<2x64x32xf32> to vector<128x32xf32>
    %545 = arith.truncf %544 : vector<128x32xf32> to vector<128x32xbf16>
    %c64_211 = arith.constant 64 : index
    %c0_212 = arith.constant 0 : index
    %546 = vector.load %arg11[%c64_211, %c0_212] : memref<96x32xbf16, #tpu.memory_space<vmem>>, vector<32x32xbf16>
    %cst_213 = arith.constant dense<0.000000e+00> : vector<128x32xf32>
    %547 = tpu.matmul %545, %546, %cst_213 {dimension_numbers = #tpu.dot_dimension_numbers<[1], [0], [0], [1], [0, 0, 1, 1], [], []>} : vector<128x32xbf16>, vector<32x32xbf16>, vector<128x32xf32> -> vector<128x32xf32>
    %548 = arith.addf %543, %547 : vector<128x32xf32>
    %549 = arith.addf %521, %548 : vector<128x32xf32>
    %550 = vector.shape_cast %549 : vector<128x32xf32> to vector<2x64x32xf32>
    %cst_214 = arith.constant dense<0.000000e+00> : vector<2x32xf32>
    %551 = vector.multi_reduction <add>, %550, %cst_214 [1] : vector<2x64x32xf32> to vector<2x32xf32>
    %552 = vector.shape_cast %551 : vector<2x32xf32> to vector<2x1x32xf32>
    %cst_215 = arith.constant 6.400000e+01 : f32
    %553 = vector.broadcast %cst_215 : f32 to vector<2x1x32xf32>
    %554 = arith.divf %552, %553 : vector<2x1x32xf32>
    %555 = vector.broadcast %554 : vector<2x1x32xf32> to vector<2x64x32xf32>
    %556 = arith.subf %550, %555 : vector<2x64x32xf32>
    %557 = arith.mulf %556, %556 : vector<2x64x32xf32>
    %cst_216 = arith.constant dense<0.000000e+00> : vector<2x32xf32>
    %558 = vector.multi_reduction <add>, %557, %cst_216 [1] : vector<2x64x32xf32> to vector<2x32xf32>
    %559 = vector.shape_cast %558 : vector<2x32xf32> to vector<2x1x32xf32>
    %cst_217 = arith.constant 6.400000e+01 : f32
    %560 = vector.broadcast %cst_217 : f32 to vector<2x1x32xf32>
    %561 = arith.divf %559, %560 : vector<2x1x32xf32>
    %cst_218 = arith.constant 9.99999974E-6 : f32
    %562 = vector.broadcast %cst_218 : f32 to vector<2x1x32xf32>
    %563 = arith.addf %561, %562 : vector<2x1x32xf32>
    %564 = math.rsqrt %563 : vector<2x1x32xf32>
    %565 = vector.broadcast %564 : vector<2x1x32xf32> to vector<2x64x32xf32>
    %566 = arith.mulf %556, %565 : vector<2x64x32xf32>
    %cst_219 = arith.constant 0.000000e+00 : f32
    %567 = vector.broadcast %cst_219 : f32 to vector<2x64x32xf32>
    %568 = arith.cmpf ogt, %566, %567 : vector<2x64x32xf32>
    %cst_220 = arith.constant 0.000000e+00 : f32
    %569 = vector.broadcast %cst_220 : f32 to vector<2x64x32xf32>
    %570 = arith.minimumf %566, %569 : vector<2x64x32xf32>
    %571 = math.exp %570 : vector<2x64x32xf32>
    %cst_221 = arith.constant 1.000000e+00 : f32
    %572 = vector.broadcast %cst_221 : f32 to vector<2x64x32xf32>
    %573 = arith.subf %571, %572 : vector<2x64x32xf32>
    %574 = arith.select %568, %566, %573 : vector<2x64x32xi1>, vector<2x64x32xf32>
    %c0_222 = arith.constant 0 : index
    %c0_223 = arith.constant 0 : index
    %c0_224 = arith.constant 0 : index
    %575 = vector.load %arg12[%c0_222, %c0_223, %c0_224] : memref<2x64x32xf32, #tpu.memory_space<vmem>>, vector<2x64x32xf32>
    tpu.vector_store %arg12[%c0_222, %c0_223, %c0_224], %574 {strides = array<i32>} : memref<2x64x32xf32, #tpu.memory_space<vmem>>, vector<2x64x32xf32>,
    return
  }
  func.func @transform_0(%arg0: i32) -> (i32, i32, i32) {
    %c0_i32 = arith.constant 0 : i32
    %c0_i32_0 = arith.constant 0 : i32
    %c0_i32_1 = arith.constant 0 : i32
    return %arg0, %c0_i32, %c0_i32_0 : i32, i32, i32
  }
  func.func @transform_1(%arg0: i32) -> (i32, i32) {
    %c0_i32 = arith.constant 0 : i32
    %c0_i32_0 = arith.constant 0 : i32
    %c0_i32_1 = arith.constant 0 : i32
    return %c0_i32, %c0_i32_0 : i32, i32
  }
  func.func @transform_2(%arg0: i32) -> (i32, i32) {
    %c0_i32 = arith.constant 0 : i32
    %c0_i32_0 = arith.constant 0 : i32
    %c0_i32_1 = arith.constant 0 : i32
    return %c0_i32, %c0_i32_0 : i32, i32
  }
  func.func @transform_3(%arg0: i32) -> (i32, i32) {
    %c0_i32 = arith.constant 0 : i32
    %c0_i32_0 = arith.constant 0 : i32
    %c0_i32_1 = arith.constant 0 : i32
    return %c0_i32, %c0_i32_0 : i32, i32
  }
  func.func @transform_4(%arg0: i32) -> (i32, i32) {
    %c0_i32 = arith.constant 0 : i32
    %c0_i32_0 = arith.constant 0 : i32
    %c0_i32_1 = arith.constant 0 : i32
    return %c0_i32, %c0_i32_0 : i32, i32
  }
  func.func @transform_5(%arg0: i32) -> (i32, i32) {
    %c0_i32 = arith.constant 0 : i32
    %c0_i32_0 = arith.constant 0 : i32
    %c0_i32_1 = arith.constant 0 : i32
    return %c0_i32, %c0_i32_0 : i32, i32
  }
  func.func @transform_6(%arg0: i32) -> (i32, i32) {
    %c0_i32 = arith.constant 0 : i32
    %c0_i32_0 = arith.constant 0 : i32
    %c0_i32_1 = arith.constant 0 : i32
    return %c0_i32, %c0_i32_0 : i32, i32
  }
  func.func @transform_7(%arg0: i32) -> (i32, i32) {
    %c0_i32 = arith.constant 0 : i32
    %c0_i32_0 = arith.constant 0 : i32
    %c0_i32_1 = arith.constant 0 : i32
    return %c0_i32, %c0_i32_0 : i32, i32
  }
  func.func @transform_8(%arg0: i32) -> (i32, i32) {
    %c0_i32 = arith.constant 0 : i32
    %c0_i32_0 = arith.constant 0 : i32
    %c0_i32_1 = arith.constant 0 : i32
    return %c0_i32, %c0_i32_0 : i32, i32
  }
  func.func @transform_9(%arg0: i32) -> (i32, i32) {
    %c0_i32 = arith.constant 0 : i32
    %c0_i32_0 = arith.constant 0 : i32
    %c0_i32_1 = arith.constant 0 : i32
    return %c0_i32, %c0_i32_0 : i32, i32
  }
  func.func @transform_10(%arg0: i32) -> (i32, i32) {
    %c0_i32 = arith.constant 0 : i32
    %c0_i32_0 = arith.constant 0 : i32
    %c0_i32_1 = arith.constant 0 : i32
    return %c0_i32, %c0_i32_0 : i32, i32
  }
  func.func @transform_11(%arg0: i32) -> (i32, i32, i32) {
    %c0_i32 = arith.constant 0 : i32
    %c0_i32_0 = arith.constant 0 : i32
    %c0_i32_1 = arith.constant 0 : i32
    return %arg0, %c0_i32, %c0_i32_0 : i32, i32, i32
  }
}

</mosaic_0001>

<llo_original>
// kernel: tpu_custom_call.1
$region0: #{tpu_custom_call.1}
  #allocation0 [shape = 'u32[]', space=smem, size = 0x4, offset = 0x4, fixed_abs, tag = 'smem constant byte address 0x4 - core index']
  #allocation1 [shape = 'u32[144,128]{1,0:T(1,128)}', space=vmem, size = 0x12000, scoped, tag = 'internal scratch']
  %s0 = inlined_call_operand.vmem [shape: f32[2,64,32], index: 0, kind: input, shape index: {}]
  %s1 = inlined_call_operand.vmem [shape: bf16[96,64], index: 1, kind: input, shape index: {}]
  %s2 = inlined_call_operand.vmem [shape: bf16[192,128], index: 2, kind: input, shape index: {}]
  %s3 = inlined_call_operand.vmem [shape: bf16[384,128], index: 3, kind: input, shape index: {}]
  %s4 = inlined_call_operand.vmem [shape: bf16[512,128], index: 4, kind: input, shape index: {}]
  %s5 = inlined_call_operand.vmem [shape: bf16[512,64], index: 5, kind: input, shape index: {}]
  %s6 = inlined_call_operand.vmem [shape: bf16[512,64], index: 6, kind: input, shape index: {}]
  %s7 = inlined_call_operand.vmem [shape: bf16[256,32], index: 7, kind: input, shape index: {}]
  %s8 = inlined_call_operand.vmem [shape: bf16[256,32], index: 8, kind: input, shape index: {}]
  %s9 = inlined_call_operand.vmem [shape: bf16[96,32], index: 9, kind: input, shape index: {}]
  %s10 = inlined_call_operand.vmem [shape: bf16[96,32], index: 10, kind: input, shape index: {}]
  %s11 = inlined_call_operand.vmem [shape: f32[2,64,32], index: 11, kind: output, shape index: {}]
  %s12 = sld [smem:[#allocation0]]
  $region54: #{tpu_custom_call.1} parent=0
    _
  %s14 = ssub.s32 1, %s12
  %s15 = scalar_select 0, %s14, %s12
  // Predicated region
  $region2: #{tpu_custom_call.1} parent=0 // pred_check
    _
  $region3: #{tpu_custom_call.1} parent=0 // pred_check_branch
    %17 = sbr.rel (0) target = $region5
  $region4: #{tpu_custom_call.1} parent=0 // pred_region
    _
  $region5: #{tpu_custom_call.1} parent=0 // pred_fallthru
    _
  // Predicated region
  $region6: #{tpu_custom_call.1} parent=0 // pred_check
    _
  $region7: #{tpu_custom_call.1} parent=0 // pred_check_branch
    %19 = sbr.rel (0) target = $region9
  $region8: #{tpu_custom_call.1} parent=0 // pred_region
    _
  $region9: #{tpu_custom_call.1} parent=0 // pred_fallthru
    _
  // Predicated region
  $region10: #{tpu_custom_call.1} parent=0 // pred_check
    _
  $region11: #{tpu_custom_call.1} parent=0 // pred_check_branch
    %21 = sbr.rel (0) target = $region13
  $region12: #{tpu_custom_call.1} parent=0 // pred_region
    _
  $region13: #{tpu_custom_call.1} parent=0 // pred_fallthru
    _
  // Predicated region
  $region14: #{tpu_custom_call.1} parent=0 // pred_check
    _
  $region15: #{tpu_custom_call.1} parent=0 // pred_check_branch
    %23 = sbr.rel (0) target = $region17
  $region16: #{tpu_custom_call.1} parent=0 // pred_region
    _
  $region17: #{tpu_custom_call.1} parent=0 // pred_fallthru
    _
  // Predicated region
  $region18: #{tpu_custom_call.1} parent=0 // pred_check
    _
  $region19: #{tpu_custom_call.1} parent=0 // pred_check_branch
    %25 = sbr.rel (0) target = $region21
  $region20: #{tpu_custom_call.1} parent=0 // pred_region
    _
  $region21: #{tpu_custom_call.1} parent=0 // pred_fallthru
    _
  // Predicated region
  $region22: #{tpu_custom_call.1} parent=0 // pred_check
    _
  $region23: #{tpu_custom_call.1} parent=0 // pred_check_branch
    %27 = sbr.rel (0) target = $region25
  $region24: #{tpu_custom_call.1} parent=0 // pred_region
    _
  $region25: #{tpu_custom_call.1} parent=0 // pred_fallthru
    _
  // Predicated region
  $region26: #{tpu_custom_call.1} parent=0 // pred_check
    _
  $region27: #{tpu_custom_call.1} parent=0 // pred_check_branch
    %29 = sbr.rel (0) target = $region29
  $region28: #{tpu_custom_call.1} parent=0 // pred_region
    _
  $region29: #{tpu_custom_call.1} parent=0 // pred_fallthru
    _
  // Predicated region
  $region30: #{tpu_custom_call.1} parent=0 // pred_check
    _
  $region31: #{tpu_custom_call.1} parent=0 // pred_check_branch
    %31 = sbr.rel (0) target = $region33
  $region32: #{tpu_custom_call.1} parent=0 // pred_region
    _
  $region33: #{tpu_custom_call.1} parent=0 // pred_fallthru
    _
  // Predicated region
  $region34: #{tpu_custom_call.1} parent=0 // pred_check
    _
  $region35: #{tpu_custom_call.1} parent=0 // pred_check_branch
    %33 = sbr.rel (0) target = $region37
  $region36: #{tpu_custom_call.1} parent=0 // pred_region
    _
  $region37: #{tpu_custom_call.1} parent=0 // pred_fallthru
    _
  // Predicated region
  $region38: #{tpu_custom_call.1} parent=0 // pred_check
    _
  $region39: #{tpu_custom_call.1} parent=0 // pred_check_branch
    %35 = sbr.rel (0) target = $region41
  $region40: #{tpu_custom_call.1} parent=0 // pred_region
    _
  $region41: #{tpu_custom_call.1} parent=0 // pred_fallthru
    _
  // Predicated region
  $region42: #{tpu_custom_call.1} parent=0 // pred_check
    _
  $region43: #{tpu_custom_call.1} parent=0 // pred_check_branch
    %37 = sbr.rel (0) target = $region45
  $region44: #{tpu_custom_call.1} parent=0 // pred_region
    _
  $region45: #{tpu_custom_call.1} parent=0 // pred_fallthru
    _
  %v39 = vld [vmem:[%s0] sm:$0xff]
  %v40 = vld [vmem:[%s0 + $0x8] sm:$0xff]
  %v41 = vld [vmem:[%s0 + $0x10] sm:$0xff]
  %v42 = vld [vmem:[%s0 + $0x18] sm:$0xff]
  %v43 = vld [vmem:[%s0 + $0x20] sm:$0xff]
  %v44 = vld [vmem:[%s0 + $0x28] sm:$0xff]
  %v45 = vld [vmem:[%s0 + $0x30] sm:$0xff]
  %v46 = vld [vmem:[%s0 + $0x38] sm:$0xff]
  %v47 = vld [vmem:[%s0 + $0x40] sm:$0xff]
  %v48 = vld [vmem:[%s0 + $0x48] sm:$0xff]
  %v49 = vld [vmem:[%s0 + $0x50] sm:$0xff]
  %v50 = vld [vmem:[%s0 + $0x58] sm:$0xff]
  %v51 = vld [vmem:[%s0 + $0x60] sm:$0xff]
  %v52 = vld [vmem:[%s0 + $0x68] sm:$0xff]
  %v53 = vld [vmem:[%s0 + $0x70] sm:$0xff]
  %v54 = vld [vmem:[%s0 + $0x78] sm:$0xff]
  %v55 = vrot.slane %v39, 7
  %v56 = vrot.slane %v40, 7
  %v57 = vrot.slane %v41, 7
  %v58 = vrot.slane %v42, 7
  %v59 = vrot.slane %v43, 7
  %v60 = vrot.slane %v44, 7
  %v61 = vrot.slane %v45, 7
  %v62 = vrot.slane %v46, 7
  %v63 = vrot.slane %v47, 7
  %v64 = vrot.slane %v48, 7
  %v65 = vrot.slane %v49, 7
  %v66 = vrot.slane %v50, 7
  %v67 = vrot.slane %v51, 7
  %v68 = vrot.slane %v52, 7
  %v69 = vrot.slane %v53, 7
  %v70 = vrot.slane %v54, 7
  %v71 = vlaneseq
  %v72 = vshrl.u32 %v71, 7
  %vm73 = vcmp.lt.s32.totalorder %v72, 1
  %v74 = vsel %vm73, %v69, %v70
  %v75 = vsel %vm73, %v68, %v69
  %v76 = vsel %vm73, %v67, %v68
  %v77 = vsel %vm73, %v66, %v67
  %v78 = vsel %vm73, %v65, %v66
  %v79 = vsel %vm73, %v64, %v65
  %v80 = vsel %vm73, %v63, %v64
  %v81 = vsel %vm73, %v62, %v63
  %v82 = vsel %vm73, %v61, %v62
  %v83 = vsel %vm73, %v60, %v61
  %v84 = vsel %vm73, %v59, %v60
  %v85 = vsel %vm73, %v58, %v59
  %v86 = vsel %vm73, %v57, %v58
  %v87 = vsel %vm73, %v56, %v57
  %v88 = vsel %vm73, %v55, %v56
  %v89 = vsel %vm73, %v70, %v55
  %v90 = vrot.slane %v39, 1
  %v91 = vrot.slane %v40, 1
  %v92 = vrot.slane %v41, 1
  %v93 = vrot.slane %v42, 1
  %v94 = vrot.slane %v43, 1
  %v95 = vrot.slane %v44, 1
  %v96 = vrot.slane %v45, 1
  %v97 = vrot.slane %v46, 1
  %v98 = vrot.slane %v47, 1
  %v99 = vrot.slane %v48, 1
  %v100 = vrot.slane %v49, 1
  %v101 = vrot.slane %v50, 1
  %v102 = vrot.slane %v51, 1
  %v103 = vrot.slane %v52, 1
  %v104 = vrot.slane %v53, 1
  %v105 = vrot.slane %v54, 1
  %vm106 = vcmp.lt.s32.totalorder %v72, 7
  %v107 = vsel %vm106, %v104, %v105
  %v108 = vsel %vm106, %v103, %v104
  %v109 = vsel %vm106, %v102, %v103
  %v110 = vsel %vm106, %v101, %v102
  %v111 = vsel %vm106, %v100, %v101
  %v112 = vsel %vm106, %v99, %v100
  %v113 = vsel %vm106, %v98, %v99
  %v114 = vsel %vm106, %v97, %v98
  %v115 = vsel %vm106, %v96, %v97
  %v116 = vsel %vm106, %v95, %v96
  %v117 = vsel %vm106, %v94, %v95
  %v118 = vsel %vm106, %v93, %v94
  %v119 = vsel %vm106, %v92, %v93
  %v120 = vsel %vm106, %v91, %v92
  %v121 = vsel %vm106, %v90, %v91
  %v122 = vsel %vm106, %v105, %v90
  %v123 = vadd.s32 %v72, 8
  %v124 = vadd.s32 %v72, 16
  %v125 = vadd.s32 %v72, 24
  %v126 = vadd.s32 %v72, 32
  %v127 = vadd.s32 %v72, 40
  %v128 = vadd.s32 %v72, 48
  %v129 = vadd.s32 %v72, 56
  %vm130 = vcmp.eq.s32.totalorder %v72, 0
  %vm131 = vcmp.eq.s32.totalorder %v123, 0
  %vm132 = vcmp.eq.s32.totalorder %v124, 0
  %vm133 = vcmp.eq.s32.totalorder %v125, 0
  %vm134 = vcmp.eq.s32.totalorder %v126, 0
  %vm135 = vcmp.eq.s32.totalorder %v127, 0
  %vm136 = vcmp.eq.s32.totalorder %v128, 0
  %vm137 = vcmp.eq.s32.totalorder %v129, 0
  %v138 = vsel %vm130, 0.0, %v89
  %v139 = vsel %vm131, 0.0, %v88
  %v140 = vsel %vm132, 0.0, %v87
  %v141 = vsel %vm133, 0.0, %v86
  %v142 = vsel %vm134, 0.0, %v85
  %v143 = vsel %vm135, 0.0, %v84
  %v144 = vsel %vm136, 0.0, %v83
  %v145 = vsel %vm137, 0.0, %v82
  %v146 = vsel %vm130, 0.0, %v81
  %v147 = vsel %vm131, 0.0, %v80
  %v148 = vsel %vm132, 0.0, %v79
  %v149 = vsel %vm133, 0.0, %v78
  %v150 = vsel %vm134, 0.0, %v77
  %v151 = vsel %vm135, 0.0, %v76
  %v152 = vsel %vm136, 0.0, %v75
  %v153 = vsel %vm137, 0.0, %v74
  %vm154 = vcmp.eq.s32.totalorder %v72, 63
  %vm155 = vcmp.eq.s32.totalorder %v123, 63
  %vm156 = vcmp.eq.s32.totalorder %v124, 63
  %vm157 = vcmp.eq.s32.totalorder %v125, 63
  %vm158 = vcmp.eq.s32.totalorder %v126, 63
  %vm159 = vcmp.eq.s32.totalorder %v127, 63
  %vm160 = vcmp.eq.s32.totalorder %v128, 63
  %vm161 = vcmp.eq.s32.totalorder %v129, 63
  %v162 = vsel %vm154, 0.0, %v121
  %v163 = vsel %vm155, 0.0, %v120
  %v164 = vsel %vm156, 0.0, %v119
  %v165 = vsel %vm157, 0.0, %v118
  %v166 = vsel %vm158, 0.0, %v117
  %v167 = vsel %vm159, 0.0, %v116
  %v168 = vsel %vm160, 0.0, %v115
  %v169 = vsel %vm161, 0.0, %v114
  %v170 = vsel %vm154, 0.0, %v113
  %v171 = vsel %vm155, 0.0, %v112
  %v172 = vsel %vm156, 0.0, %v111
  %v173 = vsel %vm157, 0.0, %v110
  %v174 = vsel %vm158, 0.0, %v109
  %v175 = vsel %vm159, 0.0, %v108
  %v176 = vsel %vm160, 0.0, %v107
  %v177 = vsel %vm161, 0.0, %v122
  %v178 = vpack.c.bf16 %v139, %v138
  %v179 = vpack.c.bf16 %v141, %v140
  %v180 = vpack.c.bf16 %v143, %v142
  %v181 = vpack.c.bf16 %v145, %v144
  %v182 = vpack.c.bf16 %v147, %v146
  %v183 = vpack.c.bf16 %v149, %v148
  %v184 = vpack.c.bf16 %v151, %v150
  %v185 = vpack.c.bf16 %v153, %v152
  %v186 = vld [vmem:[%s1] sm:$0xf]
  %v187 = vld [vmem:[%s1 + $0x4] sm:$0xf]
  %v188 = vld [vmem:[%s1 + $0x8] sm:$0xf]
  %v189 = vld [vmem:[%s1 + $0xc] sm:$0xf]
  %v190 = vpack.c.bf16 %v40, %v39
  %v191 = vpack.c.bf16 %v42, %v41
  %v192 = vpack.c.bf16 %v44, %v43
  %v193 = vpack.c.bf16 %v46, %v45
  %v194 = vpack.c.bf16 %v48, %v47
  %v195 = vpack.c.bf16 %v50, %v49
  %v196 = vpack.c.bf16 %v52, %v51
  %v197 = vpack.c.bf16 %v54, %v53
  %v198 = vld [vmem:[%s1 + $0x10] sm:$0xf]
  %v199 = vld [vmem:[%s1 + $0x14] sm:$0xf]
  %v200 = vld [vmem:[%s1 + $0x18] sm:$0xf]
  %v201 = vld [vmem:[%s1 + $0x1c] sm:$0xf]
  %v206 = vunpack.c.l.b16 %v198
  %v207 = vunpack.c.l.b16 %v199
  %v208 = vunpack.c.l.b16 %v200
  %v209 = vunpack.c.l.b16 %v201
  %v210 = vpack.c.b16 %v207, %v206
  %v211 = vpack.c.b16 %v209, %v208
  %vm214 = vcmask 261120
  %v216 = vsel %vm214, %v190, 0
  %v219 = vsel %vm214, %v191, 0
  %v222 = vsel %vm214, %v192, 0
  %v225 = vsel %vm214, %v193, 0
  %v228 = vsel %vm214, %v194, 0
  %v231 = vsel %vm214, %v195, 0
  %v234 = vsel %vm214, %v196, 0
  %v237 = vsel %vm214, %v197, 0
  %239 = vmatprep.subr.bf16.mxu0 0
  %240 = vmatpush1.bf16.msra.mxu0 %v210
  %241 = vmatprep.subr.bf16.mxu0 0
  %242 = vmatpush1.bf16.msra.mxu0 %v211
  %243 = vmatprep.subr.bf16.mxu0 0
  %244 = vmatpush1.bf16.msra.mxu0 0
  %245 = vmatprep.subr.bf16.mxu0 0
  %246 = vmatpush1.bf16.msra.mxu0 0
  %247 = vmatprep.subr.bf16.mxu0 0
  %248 = vmatpush1.bf16.msra.mxu0 0
  %249 = vmatprep.subr.bf16.mxu0 0
  %250 = vmatpush1.bf16.msra.mxu0 0
  %251 = vmatprep.subr.bf16.mxu0 0
  %252 = vmatpush1.bf16.msra.mxu0 0
  %253 = vmatprep.subr.bf16.mxu0 0
  %254 = vmatpush1.bf16.msra.mxu0 0
  %255 = vmatprep.subr.bf16.mxu0 0
  %256 = vmatpush1.bf16.msra.mxu0 0
  %257 = vmatprep.subr.bf16.mxu0 0
  %258 = vmatpush1.bf16.msra.mxu0 0
  %259 = vmatprep.subr.bf16.mxu0 0
  %260 = vmatpush1.bf16.msra.mxu0 0
  %261 = vmatprep.subr.bf16.mxu0 0
  %262 = vmatpush1.bf16.msra.mxu0 0
  %263 = vmatprep.subr.bf16.mxu0 0
  %264 = vmatpush1.bf16.msra.mxu0 0
  %265 = vmatprep.subr.bf16.mxu0 0
  %266 = vmatpush1.bf16.msra.mxu0 0
  %267 = vmatprep.subr.bf16.mxu0 0
  %268 = vmatpush1.bf16.msra.mxu0 0
  %269 = vmatprep.subr.bf16.mxu0 0
  %270 = vmatpush1.bf16.msra.mxu0 0
  %271 = vmatprep.mubr.bf16.mxu0 0
  %272 = vmatmul.mubr.bf16.gmra.mrb[0].mxu0 %v216
  %v273 = vpop.f32.mrb[0].mxu0
  %v274 = vadd.f32 0.0, %v273
  %v275 = vpop.f32.mrb[0].mxu0
  %v276 = vpop.f32.mrb[0].mxu0
  %v277 = vadd.f32 0.0, %v276
  %v278 = vpop.f32.mrb[0].mxu0
  %279 = vmatprep.mubr.bf16.mxu0 0
  %280 = vmatmul.mubr.bf16.gmra.mrb[0].mxu0 %v219
  %v281 = vpop.f32.mrb[0].mxu0
  %v282 = vadd.f32 0.0, %v281
  %v283 = vpop.f32.mrb[0].mxu0
  %v284 = vpop.f32.mrb[0].mxu0
  %v285 = vadd.f32 0.0, %v284
  %v286 = vpop.f32.mrb[0].mxu0
  %287 = vmatprep.mubr.bf16.mxu0 0
  %288 = vmatmul.mubr.bf16.gmra.mrb[0].mxu0 %v222
  %v289 = vpop.f32.mrb[0].mxu0
  %v290 = vadd.f32 0.0, %v289
  %v291 = vpop.f32.mrb[0].mxu0
  %v292 = vpop.f32.mrb[0].mxu0
  %v293 = vadd.f32 0.0, %v292
  %v294 = vpop.f32.mrb[0].mxu0
  %295 = vmatprep.mubr.bf16.mxu0 0
  %296 = vmatmul.mubr.bf16.gmra.mrb[0].mxu0 %v225
  %v297 = vpop.f32.mrb[0].mxu0
  %v298 = vadd.f32 0.0, %v297
  %v299 = vpop.f32.mrb[0].mxu0
  %v300 = vpop.f32.mrb[0].mxu0
  %v301 = vadd.f32 0.0, %v300
  %v302 = vpop.f32.mrb[0].mxu0
  %303 = vmatprep.mubr.bf16.mxu0 0
  %304 = vmatmul.mubr.bf16.gmra.mrb[0].mxu0 %v228
  %v305 = vpop.f32.mrb[0].mxu0
  %v306 = vadd.f32 0.0, %v305
  %v307 = vpop.f32.mrb[0].mxu0
  %v308 = vpop.f32.mrb[0].mxu0
  %v309 = vadd.f32 0.0, %v308
  %v310 = vpop.f32.mrb[0].mxu0
  %311 = vmatprep.mubr.bf16.mxu0 0
  %312 = vmatmul.mubr.bf16.gmra.mrb[0].mxu0 %v231
  %v313 = vpop.f32.mrb[0].mxu0
  %v314 = vadd.f32 0.0, %v313
  %v315 = vpop.f32.mrb[0].mxu0
  %v316 = vpop.f32.mrb[0].mxu0
  %v317 = vadd.f32 0.0, %v316
  %v318 = vpop.f32.mrb[0].mxu0
  %319 = vmatprep.mubr.bf16.mxu0 0
  %320 = vmatmul.mubr.bf16.gmra.mrb[0].mxu0 %v234
  %v321 = vpop.f32.mrb[0].mxu0
  %v322 = vadd.f32 0.0, %v321
  %v323 = vpop.f32.mrb[0].mxu0
  %v324 = vpop.f32.mrb[0].mxu0
  %v325 = vadd.f32 0.0, %v324
  %v326 = vpop.f32.mrb[0].mxu0
  %327 = vmatprep.mubr.bf16.mxu0 0
  %328 = vmatmul.mubr.bf16.gmra.mrb[0].mxu0 %v237
  %v329 = vpop.f32.mrb[0].mxu0
  %v330 = vadd.f32 0.0, %v329
  %v331 = vpop.f32.mrb[0].mxu0
  %v332 = vpop.f32.mrb[0].mxu0
  %v333 = vadd.f32 0.0, %v332
  %v334 = vpop.f32.mrb[0].mxu0
  %335 = vdwg.mxu0
  %v340 = vunpack.c.l.b16 %v186
  %v341 = vunpack.c.l.b16 %v187
  %v342 = vunpack.c.l.b16 %v188
  %v343 = vunpack.c.l.b16 %v189
  %v344 = vpack.c.b16 %v341, %v340
  %v345 = vpack.c.b16 %v343, %v342
  %v349 = vsel %vm214, %v178, 0
  %v352 = vsel %vm214, %v179, 0
  %v355 = vsel %vm214, %v180, 0
  %v358 = vsel %vm214, %v181, 0
  %v361 = vsel %vm214, %v182, 0
  %v364 = vsel %vm214, %v183, 0
  %v367 = vsel %vm214, %v184, 0
  %v370 = vsel %vm214, %v185, 0
  %372 = vmatprep.subr.bf16.mxu0 0
  %373 = vmatpush1.bf16.msra.mxu0 %v344
  %374 = vmatprep.subr.bf16.mxu0 0
  %375 = vmatpush1.bf16.msra.mxu0 %v345
  %376 = vmatprep.subr.bf16.mxu0 0
  %377 = vmatpush1.bf16.msra.mxu0 0
  %378 = vmatprep.subr.bf16.mxu0 0
  %379 = vmatpush1.bf16.msra.mxu0 0
  %380 = vmatprep.subr.bf16.mxu0 0
  %381 = vmatpush1.bf16.msra.mxu0 0
  %382 = vmatprep.subr.bf16.mxu0 0
  %383 = vmatpush1.bf16.msra.mxu0 0
  %384 = vmatprep.subr.bf16.mxu0 0
  %385 = vmatpush1.bf16.msra.mxu0 0
  %386 = vmatprep.subr.bf16.mxu0 0
  %387 = vmatpush1.bf16.msra.mxu0 0
  %388 = vmatprep.subr.bf16.mxu0 0
  %389 = vmatpush1.bf16.msra.mxu0 0
  %390 = vmatprep.subr.bf16.mxu0 0
  %391 = vmatpush1.bf16.msra.mxu0 0
  %392 = vmatprep.subr.bf16.mxu0 0
  %393 = vmatpush1.bf16.msra.mxu0 0
  %394 = vmatprep.subr.bf16.mxu0 0
  %395 = vmatpush1.bf16.msra.mxu0 0
  %396 = vmatprep.subr.bf16.mxu0 0
  %397 = vmatpush1.bf16.msra.mxu0 0
  %398 = vmatprep.subr.bf16.mxu0 0
  %399 = vmatpush1.bf16.msra.mxu0 0
  %400 = vmatprep.subr.bf16.mxu0 0
  %401 = vmatpush1.bf16.msra.mxu0 0
  %402 = vmatprep.subr.bf16.mxu0 0
  %403 = vmatpush1.bf16.msra.mxu0 0
  %404 = vmatprep.mubr.bf16.mxu0 0
  %405 = vmatmul.mubr.bf16.gmra.mrb[0].mxu0 %v349
  %v406 = vpop.f32.mrb[0].mxu0
  %v407 = vadd.f32 %v274, %v406
  %v408 = vpop.f32.mrb[0].mxu0
  %v409 = vpop.f32.mrb[0].mxu0
  %v410 = vadd.f32 %v277, %v409
  %v411 = vpop.f32.mrb[0].mxu0
  %412 = vmatprep.mubr.bf16.mxu0 0
  %413 = vmatmul.mubr.bf16.gmra.mrb[0].mxu0 %v352
  %v414 = vpop.f32.mrb[0].mxu0
  %v415 = vadd.f32 %v282, %v414
  %v416 = vpop.f32.mrb[0].mxu0
  %v417 = vpop.f32.mrb[0].mxu0
  %v418 = vadd.f32 %v285, %v417
  %v419 = vpop.f32.mrb[0].mxu0
  %420 = vmatprep.mubr.bf16.mxu0 0
  %421 = vmatmul.mubr.bf16.gmra.mrb[0].mxu0 %v355
  %v422 = vpop.f32.mrb[0].mxu0
  %v423 = vadd.f32 %v290, %v422
  %v424 = vpop.f32.mrb[0].mxu0
  %v425 = vpop.f32.mrb[0].mxu0
  %v426 = vadd.f32 %v293, %v425
  %v427 = vpop.f32.mrb[0].mxu0
  %428 = vmatprep.mubr.bf16.mxu0 0
  %429 = vmatmul.mubr.bf16.gmra.mrb[0].mxu0 %v358
  %v430 = vpop.f32.mrb[0].mxu0
  %v431 = vadd.f32 %v298, %v430
  %v432 = vpop.f32.mrb[0].mxu0
  %v433 = vpop.f32.mrb[0].mxu0
  %v434 = vadd.f32 %v301, %v433
  %v435 = vpop.f32.mrb[0].mxu0
  %436 = vmatprep.mubr.bf16.mxu0 0
  %437 = vmatmul.mubr.bf16.gmra.mrb[0].mxu0 %v361
  %v438 = vpop.f32.mrb[0].mxu0
  %v439 = vadd.f32 %v306, %v438
  %v440 = vpop.f32.mrb[0].mxu0
  %v441 = vpop.f32.mrb[0].mxu0
  %v442 = vadd.f32 %v309, %v441
  %v443 = vpop.f32.mrb[0].mxu0
  %444 = vmatprep.mubr.bf16.mxu0 0
  %445 = vmatmul.mubr.bf16.gmra.mrb[0].mxu0 %v364
  %v446 = vpop.f32.mrb[0].mxu0
  %v447 = vadd.f32 %v314, %v446
  %v448 = vpop.f32.mrb[0].mxu0
  %v449 = vpop.f32.mrb[0].mxu0
  %v450 = vadd.f32 %v317, %v449
  %v451 = vpop.f32.mrb[0].mxu0
  %452 = vmatprep.mubr.bf16.mxu0 0
  %453 = vmatmul.mubr.bf16.gmra.mrb[0].mxu0 %v367
  %v454 = vpop.f32.mrb[0].mxu0
  %v455 = vadd.f32 %v322, %v454
  %v456 = vpop.f32.mrb[0].mxu0
  %v457 = vpop.f32.mrb[0].mxu0
  %v458 = vadd.f32 %v325, %v457
  %v459 = vpop.f32.mrb[0].mxu0
  %460 = vmatprep.mubr.bf16.mxu0 0
  %461 = vmatmul.mubr.bf16.gmra.mrb[0].mxu0 %v370
  %v462 = vpop.f32.mrb[0].mxu0
  %v463 = vadd.f32 %v330, %v462
  %v464 = vpop.f32.mrb[0].mxu0
  %v465 = vpop.f32.mrb[0].mxu0
  %v466 = vadd.f32 %v333, %v465
  %v467 = vpop.f32.mrb[0].mxu0
  %468 = vdwg.mxu0
  %v469 = vpack.c.bf16 %v163, %v162
  %v470 = vpack.c.bf16 %v165, %v164
  %v471 = vpack.c.bf16 %v167, %v166
  %v472 = vpack.c.bf16 %v169, %v168
  %v473 = vpack.c.bf16 %v171, %v170
  %v474 = vpack.c.bf16 %v173, %v172
  %v475 = vpack.c.bf16 %v175, %v174
  %v476 = vpack.c.bf16 %v177, %v176
  %v477 = vld [vmem:[%s1 + $0x20] sm:$0xf]
  %v478 = vld [vmem:[%s1 + $0x24] sm:$0xf]
  %v479 = vld [vmem:[%s1 + $0x28] sm:$0xf]
  %v480 = vld [vmem:[%s1 + $0x2c] sm:$0xf]
  %v485 = vunpack.c.l.b16 %v477
  %v486 = vunpack.c.l.b16 %v478
  %v487 = vunpack.c.l.b16 %v479
  %v488 = vunpack.c.l.b16 %v480
  %v489 = vpack.c.b16 %v486, %v485
  %v490 = vpack.c.b16 %v488, %v487
  %v494 = vsel %vm214, %v469, 0
  %v497 = vsel %vm214, %v470, 0
  %v500 = vsel %vm214, %v471, 0
  %v503 = vsel %vm214, %v472, 0
  %v506 = vsel %vm214, %v473, 0
  %v509 = vsel %vm214, %v474, 0
  %v512 = vsel %vm214, %v475, 0
  %v515 = vsel %vm214, %v476, 0
  %517 = vmatprep.subr.bf16.mxu0 0
  %518 = vmatpush1.bf16.msra.mxu0 %v489
  %519 = vmatprep.subr.bf16.mxu0 0
  %520 = vmatpush1.bf16.msra.mxu0 %v490
  %521 = vmatprep.subr.bf16.mxu0 0
  %522 = vmatpush1.bf16.msra.mxu0 0
  %523 = vmatprep.subr.bf16.mxu0 0
  %524 = vmatpush1.bf16.msra.mxu0 0
  %525 = vmatprep.subr.bf16.mxu0 0
  %526 = vmatpush1.bf16.msra.mxu0 0
  %527 = vmatprep.subr.bf16.mxu0 0
  %528 = vmatpush1.bf16.msra.mxu0 0
  %529 = vmatprep.subr.bf16.mxu0 0
  %530 = vmatpush1.bf16.msra.mxu0 0
  %531 = vmatprep.subr.bf16.mxu0 0
  %532 = vmatpush1.bf16.msra.mxu0 0
  %533 = vmatprep.subr.bf16.mxu0 0
  %534 = vmatpush1.bf16.msra.mxu0 0
  %535 = vmatprep.subr.bf16.mxu0 0
  %536 = vmatpush1.bf16.msra.mxu0 0
  %537 = vmatprep.subr.bf16.mxu0 0
  %538 = vmatpush1.bf16.msra.mxu0 0
  %539 = vmatprep.subr.bf16.mxu0 0
  %540 = vmatpush1.bf16.msra.mxu0 0
  %541 = vmatprep.subr.bf16.mxu0 0
  %542 = vmatpush1.bf16.msra.mxu0 0
  %543 = vmatprep.subr.bf16.mxu0 0
  %544 = vmatpush1.bf16.msra.mxu0 0
  %545 = vmatprep.subr.bf16.mxu0 0
  %546 = vmatpush1.bf16.msra.mxu0 0
  %547 = vmatprep.subr.bf16.mxu0 0
  %548 = vmatpush1.bf16.msra.mxu0 0
  %549 = vmatprep.mubr.bf16.mxu0 0
  %550 = vmatmul.mubr.bf16.gmra.mrb[0].mxu0 %v494
  %v551 = vpop.f32.mrb[0].mxu0
  %v552 = vadd.f32 0.0, %v551
  %v553 = vpop.f32.mrb[0].mxu0
  %v554 = vpop.f32.mrb[0].mxu0
  %v555 = vadd.f32 0.0, %v554
  %v556 = vpop.f32.mrb[0].mxu0
  %557 = vmatprep.mubr.bf16.mxu0 0
  %558 = vmatmul.mubr.bf16.gmra.mrb[0].mxu0 %v497
  %v559 = vpop.f32.mrb[0].mxu0
  %v560 = vadd.f32 0.0, %v559
  %v561 = vpop.f32.mrb[0].mxu0
  %v562 = vpop.f32.mrb[0].mxu0
  %v563 = vadd.f32 0.0, %v562
  %v564 = vpop.f32.mrb[0].mxu0
  %565 = vmatprep.mubr.bf16.mxu0 0
  %566 = vmatmul.mubr.bf16.gmra.mrb[0].mxu0 %v500
  %v567 = vpop.f32.mrb[0].mxu0
  %v568 = vadd.f32 0.0, %v567
  %v569 = vpop.f32.mrb[0].mxu0
  %v570 = vpop.f32.mrb[0].mxu0
  %v571 = vadd.f32 0.0, %v570
  %v572 = vpop.f32.mrb[0].mxu0
  %573 = vmatprep.mubr.bf16.mxu0 0
  %574 = vmatmul.mubr.bf16.gmra.mrb[0].mxu0 %v503
  %v575 = vpop.f32.mrb[0].mxu0
  %v576 = vadd.f32 0.0, %v575
  %v577 = vpop.f32.mrb[0].mxu0
  %v578 = vpop.f32.mrb[0].mxu0
  %v579 = vadd.f32 0.0, %v578
  %v580 = vpop.f32.mrb[0].mxu0
  %581 = vmatprep.mubr.bf16.mxu0 0
  %582 = vmatmul.mubr.bf16.gmra.mrb[0].mxu0 %v506
  %v583 = vpop.f32.mrb[0].mxu0
  %v584 = vadd.f32 0.0, %v583
  %v585 = vpop.f32.mrb[0].mxu0
  %v586 = vpop.f32.mrb[0].mxu0
  %v587 = vadd.f32 0.0, %v586
  %v588 = vpop.f32.mrb[0].mxu0
  %589 = vmatprep.mubr.bf16.mxu0 0
  %590 = vmatmul.mubr.bf16.gmra.mrb[0].mxu0 %v509
  %v591 = vpop.f32.mrb[0].mxu0
  %v592 = vadd.f32 0.0, %v591
  %v593 = vpop.f32.mrb[0].mxu0
  %v594 = vpop.f32.mrb[0].mxu0
  %v595 = vadd.f32 0.0, %v594
  %v596 = vpop.f32.mrb[0].mxu0
  %597 = vmatprep.mubr.bf16.mxu0 0
  %598 = vmatmul.mubr.bf16.gmra.mrb[0].mxu0 %v512
  %v599 = vpop.f32.mrb[0].mxu0
  %v600 = vadd.f32 0.0, %v599
  %v601 = vpop.f32.mrb[0].mxu0
  %v602 = vpop.f32.mrb[0].mxu0
  %v603 = vadd.f32 0.0, %v602
  %v604 = vpop.f32.mrb[0].mxu0
  %605 = vmatprep.mubr.bf16.mxu0 0
  %606 = vmatmul.mubr.bf16.gmra.mrb[0].mxu0 %v515
  %v607 = vpop.f32.mrb[0].mxu0
  %v608 = vadd.f32 0.0, %v607
  %v609 = vpop.f32.mrb[0].mxu0
  %v610 = vpop.f32.mrb[0].mxu0
  %v611 = vadd.f32 0.0, %v610
  %v612 = vpop.f32.mrb[0].mxu0
  %613 = vdwg.mxu0
  %v614 = vadd.f32 %v407, %v552
  %v615 = vadd.f32 %v410, %v555
  %v616 = vadd.f32 %v415, %v560
  %v617 = vadd.f32 %v418, %v563
  %v618 = vadd.f32 %v423, %v568
  %v619 = vadd.f32 %v426, %v571
  %v620 = vadd.f32 %v431, %v576
  %v621 = vadd.f32 %v434, %v579
  %v622 = vadd.f32 %v439, %v584
  %v623 = vadd.f32 %v442, %v587
  %v624 = vadd.f32 %v447, %v592
  %v625 = vadd.f32 %v450, %v595
  %v626 = vadd.f32 %v455, %v600
  %v627 = vadd.f32 %v458, %v603
  %v628 = vadd.f32 %v463, %v608
  %v629 = vadd.f32 %v466, %v611
  %vm630 = vcmask 523264
  %v631 = vsel %vm630, %v614, 0.0
  %v632 = vsel %vm630, %v615, 0.0
  %v633 = vadd.f32 %v631, %v632
  %v634 = vsel %vm630, %v616, 0.0
  %v635 = vadd.f32 %v633, %v634
  %v636 = vsel %vm630, %v617, 0.0
  %v637 = vadd.f32 %v635, %v636
  %v638 = vsel %vm630, %v618, 0.0
  %v639 = vadd.f32 %v637, %v638
  %v640 = vsel %vm630, %v619, 0.0
  %v641 = vadd.f32 %v639, %v640
  %v642 = vsel %vm630, %v620, 0.0
  %v643 = vadd.f32 %v641, %v642
  %v644 = vsel %vm630, %v621, 0.0
  %v645 = vadd.f32 %v643, %v644
  %v646 = vrot.slane %v645, 4
  %v647 = vadd.f32 %v645, %v646
  %v648 = vrot.slane %v647, 2
  %v649 = vadd.f32 %v647, %v648
  %v650 = vrot.slane %v649, 1
  %v651 = vadd.f32 %v649, %v650
  %v652 = vsel %vm630, %v622, 0.0
  %v653 = vsel %vm630, %v623, 0.0
  %v654 = vadd.f32 %v652, %v653
  %v655 = vsel %vm630, %v624, 0.0
  %v656 = vadd.f32 %v654, %v655
  %v657 = vsel %vm630, %v625, 0.0
  %v658 = vadd.f32 %v656, %v657
  %v659 = vsel %vm630, %v626, 0.0
  %v660 = vadd.f32 %v658, %v659
  %v661 = vsel %vm630, %v627, 0.0
  %v662 = vadd.f32 %v660, %v661
  %v663 = vsel %vm630, %v628, 0.0
  %v664 = vadd.f32 %v662, %v663
  %v665 = vsel %vm630, %v629, 0.0
  %v666 = vadd.f32 %v664, %v665
  %v667 = vrot.slane %v666, 4
  %v668 = vadd.f32 %v666, %v667
  %v669 = vrot.slane %v668, 2
  %v670 = vadd.f32 %v668, %v669
  %v671 = vrot.slane %v670, 1
  %v672 = vadd.f32 %v670, %v671
  %v673 = vrcp.pop 64.0
  %v674 = vmul.f32 %v651, %v673
  %v675 = vmul.f32 %v672, %v673
  %v676 = vsub.f32 %v614, %v674
  %v677 = vsub.f32 %v615, %v674
  %v678 = vsub.f32 %v616, %v674
  %v679 = vsub.f32 %v617, %v674
  %v680 = vsub.f32 %v618, %v674
  %v681 = vsub.f32 %v619, %v674
  %v682 = vsub.f32 %v620, %v674
  %v683 = vsub.f32 %v621, %v674
  %v684 = vsub.f32 %v622, %v675
  %v685 = vsub.f32 %v623, %v675
  %v686 = vsub.f32 %v624, %v675
  %v687 = vsub.f32 %v625, %v675
  %v688 = vsub.f32 %v626, %v675
  %v689 = vsub.f32 %v627, %v675
  %v690 = vsub.f32 %v628, %v675
  %v691 = vsub.f32 %v629, %v675
  %v692 = vmul.f32 %v676, %v676
  %v693 = vmul.f32 %v677, %v677
  %v694 = vmul.f32 %v678, %v678
  %v695 = vmul.f32 %v679, %v679
  %v696 = vmul.f32 %v680, %v680
  %v697 = vmul.f32 %v681, %v681
  %v698 = vmul.f32 %v682, %v682
  %v699 = vmul.f32 %v683, %v683
  %v700 = vmul.f32 %v684, %v684
  %v701 = vmul.f32 %v685, %v685
  %v702 = vmul.f32 %v686, %v686
  %v703 = vmul.f32 %v687, %v687
  %v704 = vmul.f32 %v688, %v688
  %v705 = vmul.f32 %v689, %v689
  %v706 = vmul.f32 %v690, %v690
  %v707 = vmul.f32 %v691, %v691
  %v708 = vsel %vm630, %v692, 0.0
  %v709 = vsel %vm630, %v693, 0.0
  %v710 = vadd.f32 %v708, %v709
  %v711 = vsel %vm630, %v694, 0.0
  %v712 = vadd.f32 %v710, %v711
  %v713 = vsel %vm630, %v695, 0.0
  %v714 = vadd.f32 %v712, %v713
  %v715 = vsel %vm630, %v696, 0.0
  %v716 = vadd.f32 %v714, %v715
  %v717 = vsel %vm630, %v697, 0.0
  %v718 = vadd.f32 %v716, %v717
  %v719 = vsel %vm630, %v698, 0.0
  %v720 = vadd.f32 %v718, %v719
  %v721 = vsel %vm630, %v699, 0.0
  %v722 = vadd.f32 %v720, %v721
  %v723 = vrot.slane %v722, 4
  %v724 = vadd.f32 %v722, %v723
  %v725 = vrot.slane %v724, 2
  %v726 = vadd.f32 %v724, %v725
  %v727 = vrot.slane %v726, 1
  %v728 = vadd.f32 %v726, %v727
  %v729 = vsel %vm630, %v700, 0.0
  %v730 = vsel %vm630, %v701, 0.0
  %v731 = vadd.f32 %v729, %v730
  %v732 = vsel %vm630, %v702, 0.0
  %v733 = vadd.f32 %v731, %v732
  %v734 = vsel %vm630, %v703, 0.0
  %v735 = vadd.f32 %v733, %v734
  %v736 = vsel %vm630, %v704, 0.0
  %v737 = vadd.f32 %v735, %v736
  %v738 = vsel %vm630, %v705, 0.0
  %v739 = vadd.f32 %v737, %v738
  %v740 = vsel %vm630, %v706, 0.0
  %v741 = vadd.f32 %v739, %v740
  %v742 = vsel %vm630, %v707, 0.0
  %v743 = vadd.f32 %v741, %v742
  %v744 = vrot.slane %v743, 4
  %v745 = vadd.f32 %v743, %v744
  %v746 = vrot.slane %v745, 2
  %v747 = vadd.f32 %v745, %v746
  %v748 = vrot.slane %v747, 1
  %v749 = vadd.f32 %v747, %v748
  %v750 = vmul.f32 %v728, %v673
  %v751 = vmul.f32 %v749, %v673
  %v752 = vadd.f32 %v750, 1e-05
  %v753 = vadd.f32 %v751, 1e-05
  %v754 = vrsqrt.pop %v752
  %v755 = vrsqrt.pop %v753
  %v756 = vmul.f32 %v676, %v754
  %v757 = vmul.f32 %v677, %v754
  %v758 = vmul.f32 %v678, %v754
  %v759 = vmul.f32 %v679, %v754
  %v760 = vmul.f32 %v680, %v754
  %v761 = vmul.f32 %v681, %v754
  %v762 = vmul.f32 %v682, %v754
  %v763 = vmul.f32 %v683, %v754
  %v764 = vmul.f32 %v684, %v755
  %v765 = vmul.f32 %v685, %v755
  %v766 = vmul.f32 %v686, %v755
  %v767 = vmul.f32 %v687, %v755
  %v768 = vmul.f32 %v688, %v755
  %v769 = vmul.f32 %v689, %v755
  %v770 = vmul.f32 %v690, %v755
  %v771 = vmul.f32 %v691, %v755
  %vm772 = vcmp.gt.f32.partialorder %v756, 0.0
  %vm773 = vcmp.gt.f32.partialorder %v757, 0.0
  %vm774 = vcmp.gt.f32.partialorder %v758, 0.0
  %vm775 = vcmp.gt.f32.partialorder %v759, 0.0
  %vm776 = vcmp.gt.f32.partialorder %v760, 0.0
  %vm777 = vcmp.gt.f32.partialorder %v761, 0.0
  %vm778 = vcmp.gt.f32.partialorder %v762, 0.0
  %vm779 = vcmp.gt.f32.partialorder %v763, 0.0
  %vm780 = vcmp.gt.f32.partialorder %v764, 0.0
  %vm781 = vcmp.gt.f32.partialorder %v765, 0.0
  %vm782 = vcmp.gt.f32.partialorder %v766, 0.0
  %vm783 = vcmp.gt.f32.partialorder %v767, 0.0
  %vm784 = vcmp.gt.f32.partialorder %v768, 0.0
  %vm785 = vcmp.gt.f32.partialorder %v769, 0.0
  %vm786 = vcmp.gt.f32.partialorder %v770, 0.0
  %vm787 = vcmp.gt.f32.partialorder %v771, 0.0
  %v788 = vmin.f32 %v756, 0.0
  %v789 = vmin.f32 %v757, 0.0
  %v790 = vmin.f32 %v758, 0.0
  %v791 = vmin.f32 %v759, 0.0
  %v792 = vmin.f32 %v760, 0.0
  %v793 = vmin.f32 %v761, 0.0
  %v794 = vmin.f32 %v762, 0.0
  %v795 = vmin.f32 %v763, 0.0
  %v796 = vmin.f32 %v764, 0.0
  %v797 = vmin.f32 %v765, 0.0
  %v798 = vmin.f32 %v766, 0.0
  %v799 = vmin.f32 %v767, 0.0
  %v800 = vmin.f32 %v768, 0.0
  %v801 = vmin.f32 %v769, 0.0
  %v802 = vmin.f32 %v770, 0.0
  %v803 = vmin.f32 %v771, 0.0
  %v804 = vmul.f32 %v788, 1.442695
  %v805 = vpow.pop %v804
  %v806 = vmul.f32 %v789, 1.442695
  %v807 = vpow.pop %v806
  %v808 = vmul.f32 %v790, 1.442695
  %v809 = vpow.pop %v808
  %v810 = vmul.f32 %v791, 1.442695
  %v811 = vpow.pop %v810
  %v812 = vmul.f32 %v792, 1.442695
  %v813 = vpow.pop %v812
  %v814 = vmul.f32 %v793, 1.442695
  %v815 = vpow.pop %v814
  %v816 = vmul.f32 %v794, 1.442695
  %v817 = vpow.pop %v816
  %v818 = vmul.f32 %v795, 1.442695
  %v819 = vpow.pop %v818
  %v820 = vmul.f32 %v796, 1.442695
  %v821 = vpow.pop %v820
  %v822 = vmul.f32 %v797, 1.442695
  %v823 = vpow.pop %v822
  %v824 = vmul.f32 %v798, 1.442695
  %v825 = vpow.pop %v824
  %v826 = vmul.f32 %v799, 1.442695
  %v827 = vpow.pop %v826
  %v828 = vmul.f32 %v800, 1.442695
  %v829 = vpow.pop %v828
  %v830 = vmul.f32 %v801, 1.442695
  %v831 = vpow.pop %v830
  %v832 = vmul.f32 %v802, 1.442695
  %v833 = vpow.pop %v832
  %v834 = vmul.f32 %v803, 1.442695
  %v835 = vpow.pop %v834
  %v836 = vsub.f32 %v805, 1.0
  %v837 = vsub.f32 %v807, 1.0
  %v838 = vsub.f32 %v809, 1.0
  %v839 = vsub.f32 %v811, 1.0
  %v840 = vsub.f32 %v813, 1.0
  %v841 = vsub.f32 %v815, 1.0
  %v842 = vsub.f32 %v817, 1.0
  %v843 = vsub.f32 %v819, 1.0
  %v844 = vsub.f32 %v821, 1.0
  %v845 = vsub.f32 %v823, 1.0
  %v846 = vsub.f32 %v825, 1.0
  %v847 = vsub.f32 %v827, 1.0
  %v848 = vsub.f32 %v829, 1.0
  %v849 = vsub.f32 %v831, 1.0
  %v850 = vsub.f32 %v833, 1.0
  %v851 = vsub.f32 %v835, 1.0
  %v852 = vsel %vm772, %v756, %v836
  %v853 = vsel %vm773, %v757, %v837
  %v854 = vsel %vm774, %v758, %v838
  %v855 = vsel %vm775, %v759, %v839
  %v856 = vsel %vm776, %v760, %v840
  %v857 = vsel %vm777, %v761, %v841
  %v858 = vsel %vm778, %v762, %v842
  %v859 = vsel %vm779, %v763, %v843
  %v860 = vsel %vm780, %v764, %v844
  %v861 = vsel %vm781, %v765, %v845
  %v862 = vsel %vm782, %v766, %v846
  %v863 = vsel %vm783, %v767, %v847
  %v864 = vsel %vm784, %v768, %v848
  %v865 = vsel %vm785, %v769, %v849
  %v866 = vsel %vm786, %v770, %v850
  %v867 = vsel %vm787, %v771, %v851
  %v868 = vrot.slane %v852, 1
  %v869 = vrot.slane %v853, 1
  %v870 = vrot.slane %v854, 1
  %v871 = vrot.slane %v855, 1
  %v872 = vrot.slane %v856, 1
  %v873 = vrot.slane %v857, 1
  %v874 = vrot.slane %v858, 1
  %v875 = vrot.slane %v859, 1
  %v876 = vrot.slane %v860, 1
  %v877 = vrot.slane %v861, 1
  %v878 = vrot.slane %v862, 1
  %v879 = vrot.slane %v863, 1
  %v880 = vrot.slane %v864, 1
  %v881 = vrot.slane %v865, 1
  %v882 = vrot.slane %v866, 1
  %v883 = vrot.slane %v867, 1
  %v884 = vsel %vm106, %v882, %v883
  %v885 = vsel %vm106, %v881, %v882
  %v886 = vsel %vm106, %v880, %v881
  %v887 = vsel %vm106, %v879, %v880
  %v888 = vsel %vm106, %v878, %v879
  %v889 = vsel %vm106, %v877, %v878
  %v890 = vsel %vm106, %v876, %v877
  %v891 = vsel %vm106, %v875, %v876
  %v892 = vsel %vm106, %v874, %v875
  %v893 = vsel %vm106, %v873, %v874
  %v894 = vsel %vm106, %v872, %v873
  %v895 = vsel %vm106, %v871, %v872
  %v896 = vsel %vm106, %v870, %v871
  %v897 = vsel %vm106, %v869, %v870
  %v898 = vsel %vm106, %v868, %v869
  %v899 = vsel %vm106, %v883, %v868
  %v900 = vmax.f32 %v852, %v898
  %v901 = vmax.f32 %v853, %v897
  %v902 = vmax.f32 %v854, %v896
  %v903 = vmax.f32 %v855, %v895
  %v904 = vmax.f32 %v856, %v894
  %v905 = vmax.f32 %v857, %v893
  %v906 = vmax.f32 %v858, %v892
  %v907 = vmax.f32 %v859, %v891
  %v908 = vmax.f32 %v860, %v890
  %v909 = vmax.f32 %v861, %v889
  %v910 = vmax.f32 %v862, %v888
  %v911 = vmax.f32 %v863, %v887
  %v912 = vmax.f32 %v864, %v886
  %v913 = vmax.f32 %v865, %v885
  %v914 = vmax.f32 %v866, %v884
  %v915 = vmax.f32 %v867, %v899
  %v916 = vpack.c.bf16 %v901, %v900
  %v917 = vpack.c.bf16 %v903, %v902
  %v918 = vpack.c.bf16 %v905, %v904
  %v919 = vpack.c.bf16 %v907, %v906
  %v920 = vpack.c.bf16 %v909, %v908
  %v921 = vpack.c.bf16 %v911, %v910
  %v922 = vpack.c.bf16 %v913, %v912
  %v923 = vpack.c.bf16 %v915, %v914
  %v924 = vlaneseq
  %v925 = vand.u32 %v924, 127
  %v926 = vmul.u32 %v72, 2
  %v927 = vmul.u32 %v123, 2
  %v928 = vmul.u32 %v124, 2
  %v929 = vmul.u32 %v125, 2
  %vm930 = vcmp.eq.s32.totalorder %v925, %v926
  %vm931 = vcmp.eq.s32.totalorder %v925, %v927
  %vm932 = vcmp.eq.s32.totalorder %v925, %v928
  %vm933 = vcmp.eq.s32.totalorder %v925, %v929
  %v934 = vsel %vm930, 1, 0
  %v935 = vsel %vm931, 1, 0
  %v936 = vsel %vm932, 1, 0
  %v937 = vsel %vm933, 1, 0
  %v938 = vcvt.s32.f32 %v934
  %v939 = vcvt.s32.f32 %v935
  %v940 = vcvt.s32.f32 %v936
  %v941 = vcvt.s32.f32 %v937
  %v942 = vpack.c.bf16 %v939, %v938
  %v943 = vpack.c.bf16 %v941, %v940
  %v945 = vsel %vm630, %v942, 0
  %v948 = vsel %vm630, %v943, 0
  %950 = vmatprep.subr.bf16.mxu0 0
  %951 = vmatpush1.bf16.msra.mxu0 %v916
  %952 = vmatprep.subr.bf16.mxu0 0
  %953 = vmatpush1.bf16.msra.mxu0 %v917
  %954 = vmatprep.subr.bf16.mxu0 0
  %955 = vmatpush1.bf16.msra.mxu0 %v918
  %956 = vmatprep.subr.bf16.mxu0 0
  %957 = vmatpush1.bf16.msra.mxu0 %v919
  %958 = vmatprep.subr.bf16.mxu0 0
  %959 = vmatpush1.bf16.msra.mxu0 0
  %960 = vmatprep.subr.bf16.mxu0 0
  %961 = vmatpush1.bf16.msra.mxu0 0
  %962 = vmatprep.subr.bf16.mxu0 0
  %963 = vmatpush1.bf16.msra.mxu0 0
  %964 = vmatprep.subr.bf16.mxu0 0
  %965 = vmatpush1.bf16.msra.mxu0 0
  %966 = vmatprep.subr.bf16.mxu0 0
  %967 = vmatpush1.bf16.msra.mxu0 0
  %968 = vmatprep.subr.bf16.mxu0 0
  %969 = vmatpush1.bf16.msra.mxu0 0
  %970 = vmatprep.subr.bf16.mxu0 0
  %971 = vmatpush1.bf16.msra.mxu0 0
  %972 = vmatprep.subr.bf16.mxu0 0
  %973 = vmatpush1.bf16.msra.mxu0 0
  %974 = vmatprep.subr.bf16.mxu0 0
  %975 = vmatpush1.bf16.msra.mxu0 0
  %976 = vmatprep.subr.bf16.mxu0 0
  %977 = vmatpush1.bf16.msra.mxu0 0
  %978 = vmatprep.subr.bf16.mxu0 0
  %979 = vmatpush1.bf16.msra.mxu0 0
  %980 = vmatprep.subr.bf16.mxu0 0
  %981 = vmatpush1.bf16.msra.mxu0 0
  %982 = vmatprep.mubr.bf16.mxu0 0
  %983 = vmatmul.mubr.bf16.gmra.mrb[0].mxu0 %v945
  %v984 = vpop.f32.mrb[0].mxu0
  %v985 = vadd.f32 0.0, %v984
  %v986 = vpop.f32.mrb[0].mxu0
  %v987 = vpop.f32.mrb[0].mxu0
  %v988 = vadd.f32 0.0, %v987
  %v989 = vpop.f32.mrb[0].mxu0
  %990 = vmatprep.mubr.bf16.mxu0 0
  %991 = vmatmul.mubr.bf16.gmra.mrb[0].mxu0 %v948
  %v992 = vpop.f32.mrb[0].mxu0
  %v993 = vadd.f32 0.0, %v992
  %v994 = vpop.f32.mrb[0].mxu0
  %v995 = vpop.f32.mrb[0].mxu0
  %v996 = vadd.f32 0.0, %v995
  %v997 = vpop.f32.mrb[0].mxu0
  %998 = vdwg.mxu0
  %999 = vmatprep.subr.bf16.mxu0 0
  %1000 = vmatpush1.bf16.msra.mxu0 %v920
  %1001 = vmatprep.subr.bf16.mxu0 0
  %1002 = vmatpush1.bf16.msra.mxu0 %v921
  %1003 = vmatprep.subr.bf16.mxu0 0
  %1004 = vmatpush1.bf16.msra.mxu0 %v922
  %1005 = vmatprep.subr.bf16.mxu0 0
  %1006 = vmatpush1.bf16.msra.mxu0 %v923
  %1007 = vmatprep.subr.bf16.mxu0 0
  %1008 = vmatpush1.bf16.msra.mxu0 0
  %1009 = vmatprep.subr.bf16.mxu0 0
  %1010 = vmatpush1.bf16.msra.mxu0 0
  %1011 = vmatprep.subr.bf16.mxu0 0
  %1012 = vmatpush1.bf16.msra.mxu0 0
  %1013 = vmatprep.subr.bf16.mxu0 0
  %1014 = vmatpush1.bf16.msra.mxu0 0
  %1015 = vmatprep.subr.bf16.mxu0 0
  %1016 = vmatpush1.bf16.msra.mxu0 0
  %1017 = vmatprep.subr.bf16.mxu0 0
  %1018 = vmatpush1.bf16.msra.mxu0 0
  %1019 = vmatprep.subr.bf16.mxu0 0
  %1020 = vmatpush1.bf16.msra.mxu0 0
  %1021 = vmatprep.subr.bf16.mxu0 0
  %1022 = vmatpush1.bf16.msra.mxu0 0
  %1023 = vmatprep.subr.bf16.mxu0 0
  %1024 = vmatpush1.bf16.msra.mxu0 0
  %1025 = vmatprep.subr.bf16.mxu0 0
  %1026 = vmatpush1.bf16.msra.mxu0 0
  %1027 = vmatprep.subr.bf16.mxu0 0
  %1028 = vmatpush1.bf16.msra.mxu0 0
  %1029 = vmatprep.subr.bf16.mxu0 0
  %1030 = vmatpush1.bf16.msra.mxu0 0
  %1031 = vmatprep.mubr.bf16.mxu0 0
  %1032 = vmatmul.mubr.bf16.gmra.mrb[0].mxu0 %v945
  %v1033 = vpop.f32.mrb[0].mxu0
  %v1034 = vadd.f32 0.0, %v1033
  %v1035 = vpop.f32.mrb[0].mxu0
  %v1036 = vpop.f32.mrb[0].mxu0
  %v1037 = vadd.f32 0.0, %v1036
  %v1038 = vpop.f32.mrb[0].mxu0
  %1039 = vmatprep.mubr.bf16.mxu0 0
  %1040 = vmatmul.mubr.bf16.gmra.mrb[0].mxu0 %v948
  %v1041 = vpop.f32.mrb[0].mxu0
  %v1042 = vadd.f32 0.0, %v1041
  %v1043 = vpop.f32.mrb[0].mxu0
  %v1044 = vpop.f32.mrb[0].mxu0
  %v1045 = vadd.f32 0.0, %v1044
  %v1046 = vpop.f32.mrb[0].mxu0
  %1047 = vdwg.mxu0
  %v1048 = vrot.slane %v985, 7
  %v1049 = vrot.slane %v988, 7
  %v1050 = vrot.slane %v993, 7
  %v1051 = vrot.slane %v996, 7
  %v1052 = vrot.slane %v1034, 7
  %v1053 = vrot.slane %v1037, 7
  %v1054 = vrot.slane %v1042, 7
  %v1055 = vrot.slane %v1045, 7
  %v1056 = vsel %vm73, %v1054, %v1055
  %v1057 = vsel %vm73, %v1053, %v1054
  %v1058 = vsel %vm73, %v1052, %v1053
  %v1059 = vsel %vm73, %v1051, %v1052
  %v1060 = vsel %vm73, %v1050, %v1051
  %v1061 = vsel %vm73, %v1049, %v1050
  %v1062 = vsel %vm73, %v1048, %v1049
  %v1063 = vsel %vm73, %v1055, %v1048
  %v1064 = vrot.slane %v985, 1
  %v1065 = vrot.slane %v988, 1
  %v1066 = vrot.slane %v993, 1
  %v1067 = vrot.slane %v996, 1
  %v1068 = vrot.slane %v1034, 1
  %v1069 = vrot.slane %v1037, 1
  %v1070 = vrot.slane %v1042, 1
  %v1071 = vrot.slane %v1045, 1
  %v1072 = vsel %vm106, %v1070, %v1071
  %v1073 = vsel %vm106, %v1069, %v1070
  %v1074 = vsel %vm106, %v1068, %v1069
  %v1075 = vsel %vm106, %v1067, %v1068
  %v1076 = vsel %vm106, %v1066, %v1067
  %v1077 = vsel %vm106, %v1065, %v1066
  %v1078 = vsel %vm106, %v1064, %v1065
  %v1079 = vsel %vm106, %v1071, %v1064
  %v1080 = vsel %vm130, 0.0, %v1063
  %v1081 = vsel %vm131, 0.0, %v1062
  %v1082 = vsel %vm132, 0.0, %v1061
  %v1083 = vsel %vm133, 0.0, %v1060
  %v1084 = vsel %vm130, 0.0, %v1059
  %v1085 = vsel %vm131, 0.0, %v1058
  %v1086 = vsel %vm132, 0.0, %v1057
  %v1087 = vsel %vm133, 0.0, %v1056
  %vm1088 = vcmp.eq.s32.totalorder %v72, 31
  %vm1089 = vcmp.eq.s32.totalorder %v123, 31
  %vm1090 = vcmp.eq.s32.totalorder %v124, 31
  %vm1091 = vcmp.eq.s32.totalorder %v125, 31
  %v1092 = vsel %vm1088, 0.0, %v1078
  %v1093 = vsel %vm1089, 0.0, %v1077
  %v1094 = vsel %vm1090, 0.0, %v1076
  %v1095 = vsel %vm1091, 0.0, %v1075
  %v1096 = vsel %vm1088, 0.0, %v1074
  %v1097 = vsel %vm1089, 0.0, %v1073
  %v1098 = vsel %vm1090, 0.0, %v1072
  %v1099 = vsel %vm1091, 0.0, %v1079
  %v1100 = vpack.c.bf16 %v1081, %v1080
  %v1101 = vpack.c.bf16 %v1083, %v1082
  %v1102 = vpack.c.bf16 %v1085, %v1084
  %v1103 = vpack.c.bf16 %v1087, %v1086
  %v1104 = vld [vmem:[%s2] sm:$0xf]
  %v1105 = vld [vmem:[%s2 + $0x4] sm:$0xf]
  %v1106 = vld [vmem:[%s2 + $0x8] sm:$0xf]
  %v1107 = vld [vmem:[%s2 + $0xc] sm:$0xf]
  %v1108 = vld [vmem:[%s2 + $0x10] sm:$0xf]
  %v1109 = vld [vmem:[%s2 + $0x14] sm:$0xf]
  %v1110 = vld [vmem:[%s2 + $0x18] sm:$0xf]
  %v1111 = vld [vmem:[%s2 + $0x1c] sm:$0xf]
  %v1112 = vpack.c.bf16 %v988, %v985
  %v1113 = vpack.c.bf16 %v996, %v993
  %v1114 = vpack.c.bf16 %v1037, %v1034
  %v1115 = vpack.c.bf16 %v1045, %v1042
  %v1116 = vld [vmem:[%s2 + $0x20] sm:$0xf]
  %v1117 = vld [vmem:[%s2 + $0x24] sm:$0xf]
  %v1118 = vld [vmem:[%s2 + $0x28] sm:$0xf]
  %v1119 = vld [vmem:[%s2 + $0x2c] sm:$0xf]
  %v1120 = vld [vmem:[%s2 + $0x30] sm:$0xf]
  %v1121 = vld [vmem:[%s2 + $0x34] sm:$0xf]
  %v1122 = vld [vmem:[%s2 + $0x38] sm:$0xf]
  %v1123 = vld [vmem:[%s2 + $0x3c] sm:$0xf]
  %v1132 = vunpack.c.l.b16 %v1116
  %v1133 = vunpack.c.l.b16 %v1117
  %v1134 = vunpack.c.l.b16 %v1118
  %v1135 = vunpack.c.l.b16 %v1119
  %v1136 = vunpack.c.l.b16 %v1120
  %v1137 = vunpack.c.l.b16 %v1121
  %v1138 = vunpack.c.l.b16 %v1122
  %v1139 = vunpack.c.l.b16 %v1123
  %v1140 = vpack.c.b16 %v1133, %v1132
  %v1141 = vpack.c.b16 %v1135, %v1134
  %v1142 = vpack.c.b16 %v1137, %v1136
  %v1143 = vpack.c.b16 %v1139, %v1138
  %v1149 = vsel %vm630, %v1112, 0
  %v1152 = vsel %vm630, %v1113, 0
  %v1155 = vsel %vm630, %v1114, 0
  %v1158 = vsel %vm630, %v1115, 0
  %1160 = vmatprep.subr.bf16.mxu0 0
  %1161 = vmatpush1.bf16.msra.mxu0 %v1140
  %1162 = vmatprep.subr.bf16.mxu0 0
  %1163 = vmatpush1.bf16.msra.mxu0 %v1141
  %1164 = vmatprep.subr.bf16.mxu0 0
  %1165 = vmatpush1.bf16.msra.mxu0 %v1142
  %1166 = vmatprep.subr.bf16.mxu0 0
  %1167 = vmatpush1.bf16.msra.mxu0 %v1143
  %1168 = vmatprep.subr.bf16.mxu0 0
  %1169 = vmatpush1.bf16.msra.mxu0 0
  %1170 = vmatprep.subr.bf16.mxu0 0
  %1171 = vmatpush1.bf16.msra.mxu0 0
  %1172 = vmatprep.subr.bf16.mxu0 0
  %1173 = vmatpush1.bf16.msra.mxu0 0
  %1174 = vmatprep.subr.bf16.mxu0 0
  %1175 = vmatpush1.bf16.msra.mxu0 0
  %1176 = vmatprep.subr.bf16.mxu0 0
  %1177 = vmatpush1.bf16.msra.mxu0 0
  %1178 = vmatprep.subr.bf16.mxu0 0
  %1179 = vmatpush1.bf16.msra.mxu0 0
  %1180 = vmatprep.subr.bf16.mxu0 0
  %1181 = vmatpush1.bf16.msra.mxu0 0
  %1182 = vmatprep.subr.bf16.mxu0 0
  %1183 = vmatpush1.bf16.msra.mxu0 0
  %1184 = vmatprep.subr.bf16.mxu0 0
  %1185 = vmatpush1.bf16.msra.mxu0 0
  %1186 = vmatprep.subr.bf16.mxu0 0
  %1187 = vmatpush1.bf16.msra.mxu0 0
  %1188 = vmatprep.subr.bf16.mxu0 0
  %1189 = vmatpush1.bf16.msra.mxu0 0
  %1190 = vmatprep.subr.bf16.mxu0 0
  %1191 = vmatpush1.bf16.msra.mxu0 0
  %1192 = vmatprep.mubr.bf16.mxu0 0
  %1193 = vmatmul.mubr.bf16.gmra.mrb[0].mxu0 %v1149
  %v1194 = vpop.f32.mrb[0].mxu0
  %v1195 = vadd.f32 0.0, %v1194
  %v1196 = vpop.f32.mrb[0].mxu0
  %v1197 = vpop.f32.mrb[0].mxu0
  %v1198 = vadd.f32 0.0, %v1197
  %v1199 = vpop.f32.mrb[0].mxu0
  %1200 = vmatprep.mubr.bf16.mxu0 0
  %1201 = vmatmul.mubr.bf16.gmra.mrb[0].mxu0 %v1152
  %v1202 = vpop.f32.mrb[0].mxu0
  %v1203 = vadd.f32 0.0, %v1202
  %v1204 = vpop.f32.mrb[0].mxu0
  %v1205 = vpop.f32.mrb[0].mxu0
  %v1206 = vadd.f32 0.0, %v1205
  %v1207 = vpop.f32.mrb[0].mxu0
  %1208 = vmatprep.mubr.bf16.mxu0 0
  %1209 = vmatmul.mubr.bf16.gmra.mrb[0].mxu0 %v1155
  %v1210 = vpop.f32.mrb[0].mxu0
  %v1211 = vadd.f32 0.0, %v1210
  %v1212 = vpop.f32.mrb[0].mxu0
  %v1213 = vpop.f32.mrb[0].mxu0
  %v1214 = vadd.f32 0.0, %v1213
  %v1215 = vpop.f32.mrb[0].mxu0
  %1216 = vmatprep.mubr.bf16.mxu0 0
  %1217 = vmatmul.mubr.bf16.gmra.mrb[0].mxu0 %v1158
  %v1218 = vpop.f32.mrb[0].mxu0
  %v1219 = vadd.f32 0.0, %v1218
  %v1220 = vpop.f32.mrb[0].mxu0
  %v1221 = vpop.f32.mrb[0].mxu0
  %v1222 = vadd.f32 0.0, %v1221
  %v1223 = vpop.f32.mrb[0].mxu0
  %1224 = vdwg.mxu0
  %v1233 = vunpack.c.l.b16 %v1104
  %v1234 = vunpack.c.l.b16 %v1105
  %v1235 = vunpack.c.l.b16 %v1106
  %v1236 = vunpack.c.l.b16 %v1107
  %v1237 = vunpack.c.l.b16 %v1108
  %v1238 = vunpack.c.l.b16 %v1109
  %v1239 = vunpack.c.l.b16 %v1110
  %v1240 = vunpack.c.l.b16 %v1111
  %v1241 = vpack.c.b16 %v1234, %v1233
  %v1242 = vpack.c.b16 %v1236, %v1235
  %v1243 = vpack.c.b16 %v1238, %v1237
  %v1244 = vpack.c.b16 %v1240, %v1239
  %v1250 = vsel %vm630, %v1100, 0
  %v1253 = vsel %vm630, %v1101, 0
  %v1256 = vsel %vm630, %v1102, 0
  %v1259 = vsel %vm630, %v1103, 0
  %1261 = vmatprep.subr.bf16.mxu0 0
  %1262 = vmatpush1.bf16.msra.mxu0 %v1241
  %1263 = vmatprep.subr.bf16.mxu0 0
  %1264 = vmatpush1.bf16.msra.mxu0 %v1242
  %1265 = vmatprep.subr.bf16.mxu0 0
  %1266 = vmatpush1.bf16.msra.mxu0 %v1243
  %1267 = vmatprep.subr.bf16.mxu0 0
  %1268 = vmatpush1.bf16.msra.mxu0 %v1244
  %1269 = vmatprep.subr.bf16.mxu0 0
  %1270 = vmatpush1.bf16.msra.mxu0 0
  %1271 = vmatprep.subr.bf16.mxu0 0
  %1272 = vmatpush1.bf16.msra.mxu0 0
  %1273 = vmatprep.subr.bf16.mxu0 0
  %1274 = vmatpush1.bf16.msra.mxu0 0
  %1275 = vmatprep.subr.bf16.mxu0 0
  %1276 = vmatpush1.bf16.msra.mxu0 0
  %1277 = vmatprep.subr.bf16.mxu0 0
  %1278 = vmatpush1.bf16.msra.mxu0 0
  %1279 = vmatprep.subr.bf16.mxu0 0
  %1280 = vmatpush1.bf16.msra.mxu0 0
  %1281 = vmatprep.subr.bf16.mxu0 0
  %1282 = vmatpush1.bf16.msra.mxu0 0
  %1283 = vmatprep.subr.bf16.mxu0 0
  %1284 = vmatpush1.bf16.msra.mxu0 0
  %1285 = vmatprep.subr.bf16.mxu0 0
  %1286 = vmatpush1.bf16.msra.mxu0 0
  %1287 = vmatprep.subr.bf16.mxu0 0
  %1288 = vmatpush1.bf16.msra.mxu0 0
  %1289 = vmatprep.subr.bf16.mxu0 0
  %1290 = vmatpush1.bf16.msra.mxu0 0
  %1291 = vmatprep.subr.bf16.mxu0 0
  %1292 = vmatpush1.bf16.msra.mxu0 0
  %1293 = vmatprep.mubr.bf16.mxu0 0
  %1294 = vmatmul.mubr.bf16.gmra.mrb[0].mxu0 %v1250
  %v1295 = vpop.f32.mrb[0].mxu0
  %v1296 = vadd.f32 %v1195, %v1295
  %v1297 = vpop.f32.mrb[0].mxu0
  %v1298 = vpop.f32.mrb[0].mxu0
  %v1299 = vadd.f32 %v1198, %v1298
  %v1300 = vpop.f32.mrb[0].mxu0
  %1301 = vmatprep.mubr.bf16.mxu0 0
  %1302 = vmatmul.mubr.bf16.gmra.mrb[0].mxu0 %v1253
  %v1303 = vpop.f32.mrb[0].mxu0
  %v1304 = vadd.f32 %v1203, %v1303
  %v1305 = vpop.f32.mrb[0].mxu0
  %v1306 = vpop.f32.mrb[0].mxu0
  %v1307 = vadd.f32 %v1206, %v1306
  %v1308 = vpop.f32.mrb[0].mxu0
  %1309 = vmatprep.mubr.bf16.mxu0 0
  %1310 = vmatmul.mubr.bf16.gmra.mrb[0].mxu0 %v1256
  %v1311 = vpop.f32.mrb[0].mxu0
  %v1312 = vadd.f32 %v1211, %v1311
  %v1313 = vpop.f32.mrb[0].mxu0
  %v1314 = vpop.f32.mrb[0].mxu0
  %v1315 = vadd.f32 %v1214, %v1314
  %v1316 = vpop.f32.mrb[0].mxu0
  %1317 = vmatprep.mubr.bf16.mxu0 0
  %1318 = vmatmul.mubr.bf16.gmra.mrb[0].mxu0 %v1259
  %v1319 = vpop.f32.mrb[0].mxu0
  %v1320 = vadd.f32 %v1219, %v1319
  %v1321 = vpop.f32.mrb[0].mxu0
  %v1322 = vpop.f32.mrb[0].mxu0
  %v1323 = vadd.f32 %v1222, %v1322
  %v1324 = vpop.f32.mrb[0].mxu0
  %1325 = vdwg.mxu0
  %v1326 = vpack.c.bf16 %v1093, %v1092
  %v1327 = vpack.c.bf16 %v1095, %v1094
  %v1328 = vpack.c.bf16 %v1097, %v1096
  %v1329 = vpack.c.bf16 %v1099, %v1098
  %v1330 = vld [vmem:[%s2 + $0x40] sm:$0xf]
  %v1331 = vld [vmem:[%s2 + $0x44] sm:$0xf]
  %v1332 = vld [vmem:[%s2 + $0x48] sm:$0xf]
  %v1333 = vld [vmem:[%s2 + $0x4c] sm:$0xf]
  %v1334 = vld [vmem:[%s2 + $0x50] sm:$0xf]
  %v1335 = vld [vmem:[%s2 + $0x54] sm:$0xf]
  %v1336 = vld [vmem:[%s2 + $0x58] sm:$0xf]
  %v1337 = vld [vmem:[%s2 + $0x5c] sm:$0xf]
  %v1346 = vunpack.c.l.b16 %v1330
  %v1347 = vunpack.c.l.b16 %v1331
  %v1348 = vunpack.c.l.b16 %v1332
  %v1349 = vunpack.c.l.b16 %v1333
  %v1350 = vunpack.c.l.b16 %v1334
  %v1351 = vunpack.c.l.b16 %v1335
  %v1352 = vunpack.c.l.b16 %v1336
  %v1353 = vunpack.c.l.b16 %v1337
  %v1354 = vpack.c.b16 %v1347, %v1346
  %v1355 = vpack.c.b16 %v1349, %v1348
  %v1356 = vpack.c.b16 %v1351, %v1350
  %v1357 = vpack.c.b16 %v1353, %v1352
  %v1363 = vsel %vm630, %v1326, 0
  %v1366 = vsel %vm630, %v1327, 0
  %v1369 = vsel %vm630, %v1328, 0
  %v1372 = vsel %vm630, %v1329, 0
  %1374 = vmatprep.subr.bf16.mxu0 0
  %1375 = vmatpush1.bf16.msra.mxu0 %v1354
  %1376 = vmatprep.subr.bf16.mxu0 0
  %1377 = vmatpush1.bf16.msra.mxu0 %v1355
  %1378 = vmatprep.subr.bf16.mxu0 0
  %1379 = vmatpush1.bf16.msra.mxu0 %v1356
  %1380 = vmatprep.subr.bf16.mxu0 0
  %1381 = vmatpush1.bf16.msra.mxu0 %v1357
  %1382 = vmatprep.subr.bf16.mxu0 0
  %1383 = vmatpush1.bf16.msra.mxu0 0
  %1384 = vmatprep.subr.bf16.mxu0 0
  %1385 = vmatpush1.bf16.msra.mxu0 0
  %1386 = vmatprep.subr.bf16.mxu0 0
  %1387 = vmatpush1.bf16.msra.mxu0 0
  %1388 = vmatprep.subr.bf16.mxu0 0
  %1389 = vmatpush1.bf16.msra.mxu0 0
  %1390 = vmatprep.subr.bf16.mxu0 0
  %1391 = vmatpush1.bf16.msra.mxu0 0
  %1392 = vmatprep.subr.bf16.mxu0 0
  %1393 = vmatpush1.bf16.msra.mxu0 0
  %1394 = vmatprep.subr.bf16.mxu0 0
  %1395 = vmatpush1.bf16.msra.mxu0 0
  %1396 = vmatprep.subr.bf16.mxu0 0
  %1397 = vmatpush1.bf16.msra.mxu0 0
  %1398 = vmatprep.subr.bf16.mxu0 0
  %1399 = vmatpush1.bf16.msra.mxu0 0
  %1400 = vmatprep.subr.bf16.mxu0 0
  %1401 = vmatpush1.bf16.msra.mxu0 0
  %1402 = vmatprep.subr.bf16.mxu0 0
  %1403 = vmatpush1.bf16.msra.mxu0 0
  %1404 = vmatprep.subr.bf16.mxu0 0
  %1405 = vmatpush1.bf16.msra.mxu0 0
  %1406 = vmatprep.mubr.bf16.mxu0 0
  %1407 = vmatmul.mubr.bf16.gmra.mrb[0].mxu0 %v1363
  %v1408 = vpop.f32.mrb[0].mxu0
  %v1409 = vadd.f32 0.0, %v1408
  %v1410 = vpop.f32.mrb[0].mxu0
  %v1411 = vpop.f32.mrb[0].mxu0
  %v1412 = vadd.f32 0.0, %v1411
  %v1413 = vpop.f32.mrb[0].mxu0
  %1414 = vmatprep.mubr.bf16.mxu0 0
  %1415 = vmatmul.mubr.bf16.gmra.mrb[0].mxu0 %v1366
  %v1416 = vpop.f32.mrb[0].mxu0
  %v1417 = vadd.f32 0.0, %v1416
  %v1418 = vpop.f32.mrb[0].mxu0
  %v1419 = vpop.f32.mrb[0].mxu0
  %v1420 = vadd.f32 0.0, %v1419
  %v1421 = vpop.f32.mrb[0].mxu0
  %1422 = vmatprep.mubr.bf16.mxu0 0
  %1423 = vmatmul.mubr.bf16.gmra.mrb[0].mxu0 %v1369
  %v1424 = vpop.f32.mrb[0].mxu0
  %v1425 = vadd.f32 0.0, %v1424
  %v1426 = vpop.f32.mrb[0].mxu0
  %v1427 = vpop.f32.mrb[0].mxu0
  %v1428 = vadd.f32 0.0, %v1427
  %v1429 = vpop.f32.mrb[0].mxu0
  %1430 = vmatprep.mubr.bf16.mxu0 0
  %1431 = vmatmul.mubr.bf16.gmra.mrb[0].mxu0 %v1372
  %v1432 = vpop.f32.mrb[0].mxu0
  %v1433 = vadd.f32 0.0, %v1432
  %v1434 = vpop.f32.mrb[0].mxu0
  %v1435 = vpop.f32.mrb[0].mxu0
  %v1436 = vadd.f32 0.0, %v1435
  %v1437 = vpop.f32.mrb[0].mxu0
  %1438 = vdwg.mxu0
  %v1439 = vadd.f32 %v1296, %v1409
  %v1440 = vadd.f32 %v1299, %v1412
  %v1441 = vadd.f32 %v1304, %v1417
  %v1442 = vadd.f32 %v1307, %v1420
  %v1443 = vadd.f32 %v1312, %v1425
  %v1444 = vadd.f32 %v1315, %v1428
  %v1445 = vadd.f32 %v1320, %v1433
  %v1446 = vadd.f32 %v1323, %v1436
  %v1447 = vadd.f32 %v1439, %v1440
  %v1448 = vadd.f32 %v1447, %v1441
  %v1449 = vadd.f32 %v1448, %v1442
  %v1450 = vrot.slane %v1449, 4
  %v1451 = vadd.f32 %v1449, %v1450
  %v1452 = vrot.slane %v1451, 2
  %v1453 = vadd.f32 %v1451, %v1452
  %v1454 = vrot.slane %v1453, 1
  %v1455 = vadd.f32 %v1453, %v1454
  %v1456 = vadd.f32 %v1443, %v1444
  %v1457 = vadd.f32 %v1456, %v1445
  %v1458 = vadd.f32 %v1457, %v1446
  %v1459 = vrot.slane %v1458, 4
  %v1460 = vadd.f32 %v1458, %v1459
  %v1461 = vrot.slane %v1460, 2
  %v1462 = vadd.f32 %v1460, %v1461
  %v1463 = vrot.slane %v1462, 1
  %v1464 = vadd.f32 %v1462, %v1463
  %v1465 = vrcp.pop 32.0
  %v1466 = vmul.f32 %v1455, %v1465
  %v1467 = vmul.f32 %v1464, %v1465
  %v1468 = vsub.f32 %v1439, %v1466
  %v1469 = vsub.f32 %v1440, %v1466
  %v1470 = vsub.f32 %v1441, %v1466
  %v1471 = vsub.f32 %v1442, %v1466
  %v1472 = vsub.f32 %v1443, %v1467
  %v1473 = vsub.f32 %v1444, %v1467
  %v1474 = vsub.f32 %v1445, %v1467
  %v1475 = vsub.f32 %v1446, %v1467
  %v1476 = vmul.f32 %v1468, %v1468
  %v1477 = vmul.f32 %v1469, %v1469
  %v1478 = vmul.f32 %v1470, %v1470
  %v1479 = vmul.f32 %v1471, %v1471
  %v1480 = vmul.f32 %v1472, %v1472
  %v1481 = vmul.f32 %v1473, %v1473
  %v1482 = vmul.f32 %v1474, %v1474
  %v1483 = vmul.f32 %v1475, %v1475
  %v1484 = vadd.f32 %v1476, %v1477
  %v1485 = vadd.f32 %v1484, %v1478
  %v1486 = vadd.f32 %v1485, %v1479
  %v1487 = vrot.slane %v1486, 4
  %v1488 = vadd.f32 %v1486, %v1487
  %v1489 = vrot.slane %v1488, 2
  %v1490 = vadd.f32 %v1488, %v1489
  %v1491 = vrot.slane %v1490, 1
  %v1492 = vadd.f32 %v1490, %v1491
  %v1493 = vadd.f32 %v1480, %v1481
  %v1494 = vadd.f32 %v1493, %v1482
  %v1495 = vadd.f32 %v1494, %v1483
  %v1496 = vrot.slane %v1495, 4
  %v1497 = vadd.f32 %v1495, %v1496
  %v1498 = vrot.slane %v1497, 2
  %v1499 = vadd.f32 %v1497, %v1498
  %v1500 = vrot.slane %v1499, 1
  %v1501 = vadd.f32 %v1499, %v1500
  %v1502 = vmul.f32 %v1492, %v1465
  %v1503 = vmul.f32 %v1501, %v1465
  %v1504 = vadd.f32 %v1502, 1e-05
  %v1505 = vadd.f32 %v1503, 1e-05
  %v1506 = vrsqrt.pop %v1504
  %v1507 = vrsqrt.pop %v1505
  %v1508 = vmul.f32 %v1468, %v1506
  %v1509 = vmul.f32 %v1469, %v1506
  %v1510 = vmul.f32 %v1470, %v1506
  %v1511 = vmul.f32 %v1471, %v1506
  %v1512 = vmul.f32 %v1472, %v1507
  %v1513 = vmul.f32 %v1473, %v1507
  %v1514 = vmul.f32 %v1474, %v1507
  %v1515 = vmul.f32 %v1475, %v1507
  %vm1516 = vcmp.gt.f32.partialorder %v1508, 0.0
  %vm1517 = vcmp.gt.f32.partialorder %v1509, 0.0
  %vm1518 = vcmp.gt.f32.partialorder %v1510, 0.0
  %vm1519 = vcmp.gt.f32.partialorder %v1511, 0.0
  %vm1520 = vcmp.gt.f32.partialorder %v1512, 0.0
  %vm1521 = vcmp.gt.f32.partialorder %v1513, 0.0
  %vm1522 = vcmp.gt.f32.partialorder %v1514, 0.0
  %vm1523 = vcmp.gt.f32.partialorder %v1515, 0.0
  %v1524 = vmin.f32 %v1508, 0.0
  %v1525 = vmin.f32 %v1509, 0.0
  %v1526 = vmin.f32 %v1510, 0.0
  %v1527 = vmin.f32 %v1511, 0.0
  %v1528 = vmin.f32 %v1512, 0.0
  %v1529 = vmin.f32 %v1513, 0.0
  %v1530 = vmin.f32 %v1514, 0.0
  %v1531 = vmin.f32 %v1515, 0.0
  %v1532 = vmul.f32 %v1524, 1.442695
  %v1533 = vpow.pop %v1532
  %v1534 = vmul.f32 %v1525, 1.442695
  %v1535 = vpow.pop %v1534
  %v1536 = vmul.f32 %v1526, 1.442695
  %v1537 = vpow.pop %v1536
  %v1538 = vmul.f32 %v1527, 1.442695
  %v1539 = vpow.pop %v1538
  %v1540 = vmul.f32 %v1528, 1.442695
  %v1541 = vpow.pop %v1540
  %v1542 = vmul.f32 %v1529, 1.442695
  %v1543 = vpow.pop %v1542
  %v1544 = vmul.f32 %v1530, 1.442695
  %v1545 = vpow.pop %v1544
  %v1546 = vmul.f32 %v1531, 1.442695
  %v1547 = vpow.pop %v1546
  %v1548 = vsub.f32 %v1533, 1.0
  %v1549 = vsub.f32 %v1535, 1.0
  %v1550 = vsub.f32 %v1537, 1.0
  %v1551 = vsub.f32 %v1539, 1.0
  %v1552 = vsub.f32 %v1541, 1.0
  %v1553 = vsub.f32 %v1543, 1.0
  %v1554 = vsub.f32 %v1545, 1.0
  %v1555 = vsub.f32 %v1547, 1.0
  %v1556 = vsel %vm1516, %v1508, %v1548
  %v1557 = vsel %vm1517, %v1509, %v1549
  %v1558 = vsel %vm1518, %v1510, %v1550
  %v1559 = vsel %vm1519, %v1511, %v1551
  %v1560 = vsel %vm1520, %v1512, %v1552
  %v1561 = vsel %vm1521, %v1513, %v1553
  %v1562 = vsel %vm1522, %v1514, %v1554
  %v1563 = vsel %vm1523, %v1515, %v1555
  %v1564 = vrot.slane %v1556, 1
  %v1565 = vrot.slane %v1557, 1
  %v1566 = vrot.slane %v1558, 1
  %v1567 = vrot.slane %v1559, 1
  %v1568 = vrot.slane %v1560, 1
  %v1569 = vrot.slane %v1561, 1
  %v1570 = vrot.slane %v1562, 1
  %v1571 = vrot.slane %v1563, 1
  %v1572 = vsel %vm106, %v1570, %v1571
  %v1573 = vsel %vm106, %v1569, %v1570
  %v1574 = vsel %vm106, %v1568, %v1569
  %v1575 = vsel %vm106, %v1567, %v1568
  %v1576 = vsel %vm106, %v1566, %v1567
  %v1577 = vsel %vm106, %v1565, %v1566
  %v1578 = vsel %vm106, %v1564, %v1565
  %v1579 = vsel %vm106, %v1571, %v1564
  %v1580 = vmax.f32 %v1556, %v1578
  %v1581 = vmax.f32 %v1557, %v1577
  %v1582 = vmax.f32 %v1558, %v1576
  %v1583 = vmax.f32 %v1559, %v1575
  %v1584 = vmax.f32 %v1560, %v1574
  %v1585 = vmax.f32 %v1561, %v1573
  %v1586 = vmax.f32 %v1562, %v1572
  %v1587 = vmax.f32 %v1563, %v1579
  %v1588 = vpack.c.bf16 %v1581, %v1580
  %v1589 = vpack.c.bf16 %v1583, %v1582
  %v1590 = vpack.c.bf16 %v1585, %v1584
  %v1591 = vpack.c.bf16 %v1587, %v1586
  %v1592 = vsel %vm214, %v942, 0
  %1594 = vmatprep.subr.bf16.mxu0 0
  %1595 = vmatpush1.bf16.msra.mxu0 %v1588
  %1596 = vmatprep.subr.bf16.mxu0 0
  %1597 = vmatpush1.bf16.msra.mxu0 %v1589
  %1598 = vmatprep.subr.bf16.mxu0 0
  %1599 = vmatpush1.bf16.msra.mxu0 0
  %1600 = vmatprep.subr.bf16.mxu0 0
  %1601 = vmatpush1.bf16.msra.mxu0 0
  %1602 = vmatprep.subr.bf16.mxu0 0
  %1603 = vmatpush1.bf16.msra.mxu0 0
  %1604 = vmatprep.subr.bf16.mxu0 0
  %1605 = vmatpush1.bf16.msra.mxu0 0
  %1606 = vmatprep.subr.bf16.mxu0 0
  %1607 = vmatpush1.bf16.msra.mxu0 0
  %1608 = vmatprep.subr.bf16.mxu0 0
  %1609 = vmatpush1.bf16.msra.mxu0 0
  %1610 = vmatprep.subr.bf16.mxu0 0
  %1611 = vmatpush1.bf16.msra.mxu0 0
  %1612 = vmatprep.subr.bf16.mxu0 0
  %1613 = vmatpush1.bf16.msra.mxu0 0
  %1614 = vmatprep.subr.bf16.mxu0 0
  %1615 = vmatpush1.bf16.msra.mxu0 0
  %1616 = vmatprep.subr.bf16.mxu0 0
  %1617 = vmatpush1.bf16.msra.mxu0 0
  %1618 = vmatprep.subr.bf16.mxu0 0
  %1619 = vmatpush1.bf16.msra.mxu0 0
  %1620 = vmatprep.subr.bf16.mxu0 0
  %1621 = vmatpush1.bf16.msra.mxu0 0
  %1622 = vmatprep.subr.bf16.mxu0 0
  %1623 = vmatpush1.bf16.msra.mxu0 0
  %1624 = vmatprep.subr.bf16.mxu0 0
  %1625 = vmatpush1.bf16.msra.mxu0 0
  %1626 = vmatprep.mubr.bf16.mxu0 0
  %1627 = vmatmul.mubr.bf16.gmra.mrb[0].mxu0 %v1592
  %v1628 = vpop.f32.mrb[0].mxu0
  %v1629 = vadd.f32 0.0, %v1628
  %v1630 = vpop.f32.mrb[0].mxu0
  %v1631 = vpop.f32.mrb[0].mxu0
  %v1632 = vadd.f32 0.0, %v1631
  %v1633 = vpop.f32.mrb[0].mxu0
  %1634 = vdwg.mxu0
  %1635 = vmatprep.subr.bf16.mxu0 0
  %1636 = vmatpush1.bf16.msra.mxu0 %v1590
  %1637 = vmatprep.subr.bf16.mxu0 0
  %1638 = vmatpush1.bf16.msra.mxu0 %v1591
  %1639 = vmatprep.subr.bf16.mxu0 0
  %1640 = vmatpush1.bf16.msra.mxu0 0
  %1641 = vmatprep.subr.bf16.mxu0 0
  %1642 = vmatpush1.bf16.msra.mxu0 0
  %1643 = vmatprep.subr.bf16.mxu0 0
  %1644 = vmatpush1.bf16.msra.mxu0 0
  %1645 = vmatprep.subr.bf16.mxu0 0
  %1646 = vmatpush1.bf16.msra.mxu0 0
  %1647 = vmatprep.subr.bf16.mxu0 0
  %1648 = vmatpush1.bf16.msra.mxu0 0
  %1649 = vmatprep.subr.bf16.mxu0 0
  %1650 = vmatpush1.bf16.msra.mxu0 0
  %1651 = vmatprep.subr.bf16.mxu0 0
  %1652 = vmatpush1.bf16.msra.mxu0 0
  %1653 = vmatprep.subr.bf16.mxu0 0
  %1654 = vmatpush1.bf16.msra.mxu0 0
  %1655 = vmatprep.subr.bf16.mxu0 0
  %1656 = vmatpush1.bf16.msra.mxu0 0
  %1657 = vmatprep.subr.bf16.mxu0 0
  %1658 = vmatpush1.bf16.msra.mxu0 0
  %1659 = vmatprep.subr.bf16.mxu0 0
  %1660 = vmatpush1.bf16.msra.mxu0 0
  %1661 = vmatprep.subr.bf16.mxu0 0
  %1662 = vmatpush1.bf16.msra.mxu0 0
  %1663 = vmatprep.subr.bf16.mxu0 0
  %1664 = vmatpush1.bf16.msra.mxu0 0
  %1665 = vmatprep.subr.bf16.mxu0 0
  %1666 = vmatpush1.bf16.msra.mxu0 0
  %1667 = vmatprep.mubr.bf16.mxu0 0
  %1668 = vmatmul.mubr.bf16.gmra.mrb[0].mxu0 %v1592
  %v1669 = vpop.f32.mrb[0].mxu0
  %v1670 = vadd.f32 0.0, %v1669
  %v1671 = vpop.f32.mrb[0].mxu0
  %v1672 = vpop.f32.mrb[0].mxu0
  %v1673 = vadd.f32 0.0, %v1672
  %v1674 = vpop.f32.mrb[0].mxu0
  %1675 = vdwg.mxu0
  %v1676 = vrot.slane %v1629, 7
  %v1677 = vrot.slane %v1632, 7
  %v1678 = vrot.slane %v1670, 7
  %v1679 = vrot.slane %v1673, 7
  %v1680 = vsel %vm73, %v1678, %v1679
  %v1681 = vsel %vm73, %v1677, %v1678
  %v1682 = vsel %vm73, %v1676, %v1677
  %v1683 = vsel %vm73, %v1679, %v1676
  %v1684 = vrot.slane %v1629, 1
  %v1685 = vrot.slane %v1632, 1
  %v1686 = vrot.slane %v1670, 1
  %v1687 = vrot.slane %v1673, 1
  %v1688 = vsel %vm106, %v1686, %v1687
  %v1689 = vsel %vm106, %v1685, %v1686
  %v1690 = vsel %vm106, %v1684, %v1685
  %v1691 = vsel %vm106, %v1687, %v1684
  %v1692 = vsel %vm130, 0.0, %v1683
  %v1693 = vsel %vm131, 0.0, %v1682
  %v1694 = vsel %vm130, 0.0, %v1681
  %v1695 = vsel %vm131, 0.0, %v1680
  %vm1696 = vcmp.eq.s32.totalorder %v72, 15
  %vm1697 = vcmp.eq.s32.totalorder %v123, 15
  %v1698 = vsel %vm1696, 0.0, %v1690
  %v1699 = vsel %vm1697, 0.0, %v1689
  %v1700 = vsel %vm1696, 0.0, %v1688
  %v1701 = vsel %vm1697, 0.0, %v1691
  %v1702 = vpack.c.bf16 %v1693, %v1692
  %v1703 = vpack.c.bf16 %v1695, %v1694
  %v1704 = vld [vmem:[%s3] sm:$0xf]
  %v1705 = vld [vmem:[%s3 + $0x4] sm:$0xf]
  %v1706 = vld [vmem:[%s3 + $0x8] sm:$0xf]
  %v1707 = vld [vmem:[%s3 + $0xc] sm:$0xf]
  %v1708 = vld [vmem:[%s3 + $0x10] sm:$0xf]
  %v1709 = vld [vmem:[%s3 + $0x14] sm:$0xf]
  %v1710 = vld [vmem:[%s3 + $0x18] sm:$0xf]
  %v1711 = vld [vmem:[%s3 + $0x1c] sm:$0xf]
  %v1712 = vld [vmem:[%s3 + $0x20] sm:$0xf]
  %v1713 = vld [vmem:[%s3 + $0x24] sm:$0xf]
  %v1714 = vld [vmem:[%s3 + $0x28] sm:$0xf]
  %v1715 = vld [vmem:[%s3 + $0x2c] sm:$0xf]
  %v1716 = vld [vmem:[%s3 + $0x30] sm:$0xf]
  %v1717 = vld [vmem:[%s3 + $0x34] sm:$0xf]
  %v1718 = vld [vmem:[%s3 + $0x38] sm:$0xf]
  %v1719 = vld [vmem:[%s3 + $0x3c] sm:$0xf]
  %v1720 = vpack.c.bf16 %v1632, %v1629
  %v1721 = vpack.c.bf16 %v1673, %v1670
  %v1722 = vld [vmem:[%s3 + $0x40] sm:$0xf]
  %v1723 = vld [vmem:[%s3 + $0x44] sm:$0xf]
  %v1724 = vld [vmem:[%s3 + $0x48] sm:$0xf]
  %v1725 = vld [vmem:[%s3 + $0x4c] sm:$0xf]
  %v1726 = vld [vmem:[%s3 + $0x50] sm:$0xf]
  %v1727 = vld [vmem:[%s3 + $0x54] sm:$0xf]
  %v1728 = vld [vmem:[%s3 + $0x58] sm:$0xf]
  %v1729 = vld [vmem:[%s3 + $0x5c] sm:$0xf]
  %v1730 = vld [vmem:[%s3 + $0x60] sm:$0xf]
  %v1731 = vld [vmem:[%s3 + $0x64] sm:$0xf]
  %v1732 = vld [vmem:[%s3 + $0x68] sm:$0xf]
  %v1733 = vld [vmem:[%s3 + $0x6c] sm:$0xf]
  %v1734 = vld [vmem:[%s3 + $0x70] sm:$0xf]
  %v1735 = vld [vmem:[%s3 + $0x74] sm:$0xf]
  %v1736 = vld [vmem:[%s3 + $0x78] sm:$0xf]
  %v1737 = vld [vmem:[%s3 + $0x7c] sm:$0xf]
  %v1754 = vunpack.c.l.b16 %v1722
  %v1755 = vunpack.c.l.b16 %v1723
  %v1756 = vunpack.c.l.b16 %v1724
  %v1757 = vunpack.c.l.b16 %v1725
  %v1758 = vunpack.c.l.b16 %v1726
  %v1759 = vunpack.c.l.b16 %v1727
  %v1760 = vunpack.c.l.b16 %v1728
  %v1761 = vunpack.c.l.b16 %v1729
  %v1762 = vunpack.c.l.b16 %v1730
  %v1763 = vunpack.c.l.b16 %v1731
  %v1764 = vunpack.c.l.b16 %v1732
  %v1765 = vunpack.c.l.b16 %v1733
  %v1766 = vunpack.c.l.b16 %v1734
  %v1767 = vunpack.c.l.b16 %v1735
  %v1768 = vunpack.c.l.b16 %v1736
  %v1769 = vunpack.c.l.b16 %v1737
  %v1770 = vpack.c.b16 %v1755, %v1754
  %v1771 = vpack.c.b16 %v1757, %v1756
  %v1772 = vpack.c.b16 %v1759, %v1758
  %v1773 = vpack.c.b16 %v1761, %v1760
  %v1774 = vpack.c.b16 %v1763, %v1762
  %v1775 = vpack.c.b16 %v1765, %v1764
  %v1776 = vpack.c.b16 %v1767, %v1766
  %v1777 = vpack.c.b16 %v1769, %v1768
  %1786 = vmatprep.subr.bf16.mxu0 0
  %1787 = vmatpush1.bf16.msra.mxu0 %v1770
  %1788 = vmatprep.subr.bf16.mxu0 0
  %1789 = vmatpush1.bf16.msra.mxu0 %v1771
  %1790 = vmatprep.subr.bf16.mxu0 0
  %1791 = vmatpush1.bf16.msra.mxu0 %v1772
  %1792 = vmatprep.subr.bf16.mxu0 0
  %1793 = vmatpush1.bf16.msra.mxu0 %v1773
  %1794 = vmatprep.subr.bf16.mxu0 0
  %1795 = vmatpush1.bf16.msra.mxu0 %v1774
  %1796 = vmatprep.subr.bf16.mxu0 0
  %1797 = vmatpush1.bf16.msra.mxu0 %v1775
  %1798 = vmatprep.subr.bf16.mxu0 0
  %1799 = vmatpush1.bf16.msra.mxu0 %v1776
  %1800 = vmatprep.subr.bf16.mxu0 0
  %1801 = vmatpush1.bf16.msra.mxu0 %v1777
  %1802 = vmatprep.subr.bf16.mxu0 0
  %1803 = vmatpush1.bf16.msra.mxu0 0
  %1804 = vmatprep.subr.bf16.mxu0 0
  %1805 = vmatpush1.bf16.msra.mxu0 0
  %1806 = vmatprep.subr.bf16.mxu0 0
  %1807 = vmatpush1.bf16.msra.mxu0 0
  %1808 = vmatprep.subr.bf16.mxu0 0
  %1809 = vmatpush1.bf16.msra.mxu0 0
  %1810 = vmatprep.subr.bf16.mxu0 0
  %1811 = vmatpush1.bf16.msra.mxu0 0
  %1812 = vmatprep.subr.bf16.mxu0 0
  %1813 = vmatpush1.bf16.msra.mxu0 0
  %1814 = vmatprep.subr.bf16.mxu0 0
  %1815 = vmatpush1.bf16.msra.mxu0 0
  %1816 = vmatprep.subr.bf16.mxu0 0
  %1817 = vmatpush1.bf16.msra.mxu0 0
  %1818 = vmatprep.mubr.bf16.mxu0 0
  %1819 = vmatmul.mubr.bf16.gmra.mrb[0].mxu0 %v1720
  %v1820 = vpop.f32.mrb[0].mxu0
  %v1821 = vadd.f32 0.0, %v1820
  %v1822 = vpop.f32.mrb[0].mxu0
  %v1823 = vpop.f32.mrb[0].mxu0
  %v1824 = vadd.f32 0.0, %v1823
  %v1825 = vpop.f32.mrb[0].mxu0
  %1826 = vmatprep.mubr.bf16.mxu0 0
  %1827 = vmatmul.mubr.bf16.gmra.mrb[0].mxu0 %v1721
  %v1828 = vpop.f32.mrb[0].mxu0
  %v1829 = vadd.f32 0.0, %v1828
  %v1830 = vpop.f32.mrb[0].mxu0
  %v1831 = vpop.f32.mrb[0].mxu0
  %v1832 = vadd.f32 0.0, %v1831
  %v1833 = vpop.f32.mrb[0].mxu0
  %1834 = vdwg.mxu0
  %v1851 = vunpack.c.l.b16 %v1704
  %v1852 = vunpack.c.l.b16 %v1705
  %v1853 = vunpack.c.l.b16 %v1706
  %v1854 = vunpack.c.l.b16 %v1707
  %v1855 = vunpack.c.l.b16 %v1708
  %v1856 = vunpack.c.l.b16 %v1709
  %v1857 = vunpack.c.l.b16 %v1710
  %v1858 = vunpack.c.l.b16 %v1711
  %v1859 = vunpack.c.l.b16 %v1712
  %v1860 = vunpack.c.l.b16 %v1713
  %v1861 = vunpack.c.l.b16 %v1714
  %v1862 = vunpack.c.l.b16 %v1715
  %v1863 = vunpack.c.l.b16 %v1716
  %v1864 = vunpack.c.l.b16 %v1717
  %v1865 = vunpack.c.l.b16 %v1718
  %v1866 = vunpack.c.l.b16 %v1719
  %v1867 = vpack.c.b16 %v1852, %v1851
  %v1868 = vpack.c.b16 %v1854, %v1853
  %v1869 = vpack.c.b16 %v1856, %v1855
  %v1870 = vpack.c.b16 %v1858, %v1857
  %v1871 = vpack.c.b16 %v1860, %v1859
  %v1872 = vpack.c.b16 %v1862, %v1861
  %v1873 = vpack.c.b16 %v1864, %v1863
  %v1874 = vpack.c.b16 %v1866, %v1865
  %1883 = vmatprep.subr.bf16.mxu0 0
  %1884 = vmatpush1.bf16.msra.mxu0 %v1867
  %1885 = vmatprep.subr.bf16.mxu0 0
  %1886 = vmatpush1.bf16.msra.mxu0 %v1868
  %1887 = vmatprep.subr.bf16.mxu0 0
  %1888 = vmatpush1.bf16.msra.mxu0 %v1869
  %1889 = vmatprep.subr.bf16.mxu0 0
  %1890 = vmatpush1.bf16.msra.mxu0 %v1870
  %1891 = vmatprep.subr.bf16.mxu0 0
  %1892 = vmatpush1.bf16.msra.mxu0 %v1871
  %1893 = vmatprep.subr.bf16.mxu0 0
  %1894 = vmatpush1.bf16.msra.mxu0 %v1872
  %1895 = vmatprep.subr.bf16.mxu0 0
  %1896 = vmatpush1.bf16.msra.mxu0 %v1873
  %1897 = vmatprep.subr.bf16.mxu0 0
  %1898 = vmatpush1.bf16.msra.mxu0 %v1874
  %1899 = vmatprep.subr.bf16.mxu0 0
  %1900 = vmatpush1.bf16.msra.mxu0 0
  %1901 = vmatprep.subr.bf16.mxu0 0
  %1902 = vmatpush1.bf16.msra.mxu0 0
  %1903 = vmatprep.subr.bf16.mxu0 0
  %1904 = vmatpush1.bf16.msra.mxu0 0
  %1905 = vmatprep.subr.bf16.mxu0 0
  %1906 = vmatpush1.bf16.msra.mxu0 0
  %1907 = vmatprep.subr.bf16.mxu0 0
  %1908 = vmatpush1.bf16.msra.mxu0 0
  %1909 = vmatprep.subr.bf16.mxu0 0
  %1910 = vmatpush1.bf16.msra.mxu0 0
  %1911 = vmatprep.subr.bf16.mxu0 0
  %1912 = vmatpush1.bf16.msra.mxu0 0
  %1913 = vmatprep.subr.bf16.mxu0 0
  %1914 = vmatpush1.bf16.msra.mxu0 0
  %1915 = vmatprep.mubr.bf16.mxu0 0
  %1916 = vmatmul.mubr.bf16.gmra.mrb[0].mxu0 %v1702
  %v1917 = vpop.f32.mrb[0].mxu0
  %v1918 = vadd.f32 %v1821, %v1917
  %v1919 = vpop.f32.mrb[0].mxu0
  %v1920 = vpop.f32.mrb[0].mxu0
  %v1921 = vadd.f32 %v1824, %v1920
  %v1922 = vpop.f32.mrb[0].mxu0
  %1923 = vmatprep.mubr.bf16.mxu0 0
  %1924 = vmatmul.mubr.bf16.gmra.mrb[0].mxu0 %v1703
  %v1925 = vpop.f32.mrb[0].mxu0
  %v1926 = vadd.f32 %v1829, %v1925
  %v1927 = vpop.f32.mrb[0].mxu0
  %v1928 = vpop.f32.mrb[0].mxu0
  %v1929 = vadd.f32 %v1832, %v1928
  %v1930 = vpop.f32.mrb[0].mxu0
  %1931 = vdwg.mxu0
  %v1932 = vpack.c.bf16 %v1699, %v1698
  %v1933 = vpack.c.bf16 %v1701, %v1700
  %v1934 = vld [vmem:[%s3 + $0x80] sm:$0xf]
  %v1935 = vld [vmem:[%s3 + $0x84] sm:$0xf]
  %v1936 = vld [vmem:[%s3 + $0x88] sm:$0xf]
  %v1937 = vld [vmem:[%s3 + $0x8c] sm:$0xf]
  %v1938 = vld [vmem:[%s3 + $0x90] sm:$0xf]
  %v1939 = vld [vmem:[%s3 + $0x94] sm:$0xf]
  %v1940 = vld [vmem:[%s3 + $0x98] sm:$0xf]
  %v1941 = vld [vmem:[%s3 + $0x9c] sm:$0xf]
  %v1942 = vld [vmem:[%s3 + $0xa0] sm:$0xf]
  %v1943 = vld [vmem:[%s3 + $0xa4] sm:$0xf]
  %v1944 = vld [vmem:[%s3 + $0xa8] sm:$0xf]
  %v1945 = vld [vmem:[%s3 + $0xac] sm:$0xf]
  %v1946 = vld [vmem:[%s3 + $0xb0] sm:$0xf]
  %v1947 = vld [vmem:[%s3 + $0xb4] sm:$0xf]
  %v1948 = vld [vmem:[%s3 + $0xb8] sm:$0xf]
  %v1949 = vld [vmem:[%s3 + $0xbc] sm:$0xf]
  %v1966 = vunpack.c.l.b16 %v1934
  %v1967 = vunpack.c.l.b16 %v1935
  %v1968 = vunpack.c.l.b16 %v1936
  %v1969 = vunpack.c.l.b16 %v1937
  %v1970 = vunpack.c.l.b16 %v1938
  %v1971 = vunpack.c.l.b16 %v1939
  %v1972 = vunpack.c.l.b16 %v1940
  %v1973 = vunpack.c.l.b16 %v1941
  %v1974 = vunpack.c.l.b16 %v1942
  %v1975 = vunpack.c.l.b16 %v1943
  %v1976 = vunpack.c.l.b16 %v1944
  %v1977 = vunpack.c.l.b16 %v1945
  %v1978 = vunpack.c.l.b16 %v1946
  %v1979 = vunpack.c.l.b16 %v1947
  %v1980 = vunpack.c.l.b16 %v1948
  %v1981 = vunpack.c.l.b16 %v1949
  %v1982 = vpack.c.b16 %v1967, %v1966
  %v1983 = vpack.c.b16 %v1969, %v1968
  %v1984 = vpack.c.b16 %v1971, %v1970
  %v1985 = vpack.c.b16 %v1973, %v1972
  %v1986 = vpack.c.b16 %v1975, %v1974
  %v1987 = vpack.c.b16 %v1977, %v1976
  %v1988 = vpack.c.b16 %v1979, %v1978
  %v1989 = vpack.c.b16 %v1981, %v1980
  %1998 = vmatprep.subr.bf16.mxu0 0
  %1999 = vmatpush1.bf16.msra.mxu0 %v1982
  %2000 = vmatprep.subr.bf16.mxu0 0
  %2001 = vmatpush1.bf16.msra.mxu0 %v1983
  %2002 = vmatprep.subr.bf16.mxu0 0
  %2003 = vmatpush1.bf16.msra.mxu0 %v1984
  %2004 = vmatprep.subr.bf16.mxu0 0
  %2005 = vmatpush1.bf16.msra.mxu0 %v1985
  %2006 = vmatprep.subr.bf16.mxu0 0
  %2007 = vmatpush1.bf16.msra.mxu0 %v1986
  %2008 = vmatprep.subr.bf16.mxu0 0
  %2009 = vmatpush1.bf16.msra.mxu0 %v1987
  %2010 = vmatprep.subr.bf16.mxu0 0
  %2011 = vmatpush1.bf16.msra.mxu0 %v1988
  %2012 = vmatprep.subr.bf16.mxu0 0
  %2013 = vmatpush1.bf16.msra.mxu0 %v1989
  %2014 = vmatprep.subr.bf16.mxu0 0
  %2015 = vmatpush1.bf16.msra.mxu0 0
  %2016 = vmatprep.subr.bf16.mxu0 0
  %2017 = vmatpush1.bf16.msra.mxu0 0
  %2018 = vmatprep.subr.bf16.mxu0 0
  %2019 = vmatpush1.bf16.msra.mxu0 0
  %2020 = vmatprep.subr.bf16.mxu0 0
  %2021 = vmatpush1.bf16.msra.mxu0 0
  %2022 = vmatprep.subr.bf16.mxu0 0
  %2023 = vmatpush1.bf16.msra.mxu0 0
  %2024 = vmatprep.subr.bf16.mxu0 0
  %2025 = vmatpush1.bf16.msra.mxu0 0
  %2026 = vmatprep.subr.bf16.mxu0 0
  %2027 = vmatpush1.bf16.msra.mxu0 0
  %2028 = vmatprep.subr.bf16.mxu0 0
  %2029 = vmatpush1.bf16.msra.mxu0 0
  %2030 = vmatprep.mubr.bf16.mxu0 0
  %2031 = vmatmul.mubr.bf16.gmra.mrb[0].mxu0 %v1932
  %v2032 = vpop.f32.mrb[0].mxu0
  %v2033 = vadd.f32 0.0, %v2032
  %v2034 = vpop.f32.mrb[0].mxu0
  %v2035 = vpop.f32.mrb[0].mxu0
  %v2036 = vadd.f32 0.0, %v2035
  %v2037 = vpop.f32.mrb[0].mxu0
  %2038 = vmatprep.mubr.bf16.mxu0 0
  %2039 = vmatmul.mubr.bf16.gmra.mrb[0].mxu0 %v1933
  %v2040 = vpop.f32.mrb[0].mxu0
  %v2041 = vadd.f32 0.0, %v2040
  %v2042 = vpop.f32.mrb[0].mxu0
  %v2043 = vpop.f32.mrb[0].mxu0
  %v2044 = vadd.f32 0.0, %v2043
  %v2045 = vpop.f32.mrb[0].mxu0
  %2046 = vdwg.mxu0
  %v2047 = vadd.f32 %v1918, %v2033
  %v2048 = vadd.f32 %v1921, %v2036
  %v2049 = vadd.f32 %v1926, %v2041
  %v2050 = vadd.f32 %v1929, %v2044
  %v2051 = vadd.f32 %v2047, %v2048
  %v2052 = vrot.slane %v2051, 4
  %v2053 = vadd.f32 %v2051, %v2052
  %v2054 = vrot.slane %v2053, 2
  %v2055 = vadd.f32 %v2053, %v2054
  %v2056 = vrot.slane %v2055, 1
  %v2057 = vadd.f32 %v2055, %v2056
  %v2058 = vadd.f32 %v2049, %v2050
  %v2059 = vrot.slane %v2058, 4
  %v2060 = vadd.f32 %v2058, %v2059
  %v2061 = vrot.slane %v2060, 2
  %v2062 = vadd.f32 %v2060, %v2061
  %v2063 = vrot.slane %v2062, 1
  %v2064 = vadd.f32 %v2062, %v2063
  %v2065 = vrcp.pop 16.0
  %v2066 = vmul.f32 %v2057, %v2065
  %v2067 = vmul.f32 %v2064, %v2065
  %v2068 = vsub.f32 %v2047, %v2066
  %v2069 = vsub.f32 %v2048, %v2066
  %v2070 = vsub.f32 %v2049, %v2067
  %v2071 = vsub.f32 %v2050, %v2067
  %v2072 = vmul.f32 %v2068, %v2068
  %v2073 = vmul.f32 %v2069, %v2069
  %v2074 = vmul.f32 %v2070, %v2070
  %v2075 = vmul.f32 %v2071, %v2071
  %v2076 = vadd.f32 %v2072, %v2073
  %v2077 = vrot.slane %v2076, 4
  %v2078 = vadd.f32 %v2076, %v2077
  %v2079 = vrot.slane %v2078, 2
  %v2080 = vadd.f32 %v2078, %v2079
  %v2081 = vrot.slane %v2080, 1
  %v2082 = vadd.f32 %v2080, %v2081
  %v2083 = vadd.f32 %v2074, %v2075
  %v2084 = vrot.slane %v2083, 4
  %v2085 = vadd.f32 %v2083, %v2084
  %v2086 = vrot.slane %v2085, 2
  %v2087 = vadd.f32 %v2085, %v2086
  %v2088 = vrot.slane %v2087, 1
  %v2089 = vadd.f32 %v2087, %v2088
  %v2090 = vmul.f32 %v2082, %v2065
  %v2091 = vmul.f32 %v2089, %v2065
  %v2092 = vadd.f32 %v2090, 1e-05
  %v2093 = vadd.f32 %v2091, 1e-05
  %v2094 = vrsqrt.pop %v2092
  %v2095 = vrsqrt.pop %v2093
  %v2096 = vmul.f32 %v2068, %v2094
  %v2097 = vmul.f32 %v2069, %v2094
  %v2098 = vmul.f32 %v2070, %v2095
  %v2099 = vmul.f32 %v2071, %v2095
  %vm2100 = vcmp.gt.f32.partialorder %v2096, 0.0
  %vm2101 = vcmp.gt.f32.partialorder %v2097, 0.0
  %vm2102 = vcmp.gt.f32.partialorder %v2098, 0.0
  %vm2103 = vcmp.gt.f32.partialorder %v2099, 0.0
  %v2104 = vmin.f32 %v2096, 0.0
  %v2105 = vmin.f32 %v2097, 0.0
  %v2106 = vmin.f32 %v2098, 0.0
  %v2107 = vmin.f32 %v2099, 0.0
  %v2108 = vmul.f32 %v2104, 1.442695
  %v2109 = vpow.pop %v2108
  %v2110 = vmul.f32 %v2105, 1.442695
  %v2111 = vpow.pop %v2110
  %v2112 = vmul.f32 %v2106, 1.442695
  %v2113 = vpow.pop %v2112
  %v2114 = vmul.f32 %v2107, 1.442695
  %v2115 = vpow.pop %v2114
  %v2116 = vsub.f32 %v2109, 1.0
  %v2117 = vsub.f32 %v2111, 1.0
  %v2118 = vsub.f32 %v2113, 1.0
  %v2119 = vsub.f32 %v2115, 1.0
  %v2120 = vsel %vm2100, %v2096, %v2116
  %v2121 = vsel %vm2101, %v2097, %v2117
  %v2122 = vsel %vm2102, %v2098, %v2118
  %v2123 = vsel %vm2103, %v2099, %v2119
  %v2124 = vrot.slane %v2120, 1
  %v2125 = vrot.slane %v2121, 1
  %v2126 = vrot.slane %v2122, 1
  %v2127 = vrot.slane %v2123, 1
  %v2128 = vsel %vm106, %v2126, %v2127
  %v2129 = vsel %vm106, %v2125, %v2126
  %v2130 = vsel %vm106, %v2124, %v2125
  %v2131 = vsel %vm106, %v2127, %v2124
  %v2132 = vmax.f32 %v2120, %v2130
  %v2133 = vmax.f32 %v2121, %v2129
  %v2134 = vmax.f32 %v2122, %v2128
  %v2135 = vmax.f32 %v2123, %v2131
  %v2136 = vpack.c.bf16 %v2133, %v2132
  %v2137 = vpack.c.bf16 %v2135, %v2134
  %v2138 = vpack.c.bf16 %v938, %v938
  %vm2139 = vcmask 130048
  %v2141 = vsel %vm2139, %v2138, 0
  %2143 = vmatprep.subr.bf16.mxu0 0
  %2144 = vmatpush1.bf16.msra.mxu0 %v2136
  %2145 = vmatprep.subr.bf16.mxu0 0
  %2146 = vmatpush1.bf16.msra.mxu0 0
  %2147 = vmatprep.subr.bf16.mxu0 0
  %2148 = vmatpush1.bf16.msra.mxu0 0
  %2149 = vmatprep.subr.bf16.mxu0 0
  %2150 = vmatpush1.bf16.msra.mxu0 0
  %2151 = vmatprep.subr.bf16.mxu0 0
  %2152 = vmatpush1.bf16.msra.mxu0 0
  %2153 = vmatprep.subr.bf16.mxu0 0
  %2154 = vmatpush1.bf16.msra.mxu0 0
  %2155 = vmatprep.subr.bf16.mxu0 0
  %2156 = vmatpush1.bf16.msra.mxu0 0
  %2157 = vmatprep.subr.bf16.mxu0 0
  %2158 = vmatpush1.bf16.msra.mxu0 0
  %2159 = vmatprep.subr.bf16.mxu0 0
  %2160 = vmatpush1.bf16.msra.mxu0 0
  %2161 = vmatprep.subr.bf16.mxu0 0
  %2162 = vmatpush1.bf16.msra.mxu0 0
  %2163 = vmatprep.subr.bf16.mxu0 0
  %2164 = vmatpush1.bf16.msra.mxu0 0
  %2165 = vmatprep.subr.bf16.mxu0 0
  %2166 = vmatpush1.bf16.msra.mxu0 0
  %2167 = vmatprep.subr.bf16.mxu0 0
  %2168 = vmatpush1.bf16.msra.mxu0 0
  %2169 = vmatprep.subr.bf16.mxu0 0
  %2170 = vmatpush1.bf16.msra.mxu0 0
  %2171 = vmatprep.subr.bf16.mxu0 0
  %2172 = vmatpush1.bf16.msra.mxu0 0
  %2173 = vmatprep.subr.bf16.mxu0 0
  %2174 = vmatpush1.bf16.msra.mxu0 0
  %2175 = vmatprep.mubr.bf16.mxu0 0
  %2176 = vmatmul.mubr.bf16.gmra.mrb[0].mxu0 %v2141
  %v2177 = vpop.f32.mrb[0].mxu0
  %v2178 = vadd.f32 0.0, %v2177
  %v2179 = vpop.f32.mrb[0].mxu0
  %v2180 = vpop.f32.mrb[0].mxu0
  %v2181 = vpop.f32.mrb[0].mxu0
  %2182 = vdwg.mxu0
  %2183 = vmatprep.subr.bf16.mxu0 0
  %2184 = vmatpush1.bf16.msra.mxu0 %v2137
  %2185 = vmatprep.subr.bf16.mxu0 0
  %2186 = vmatpush1.bf16.msra.mxu0 0
  %2187 = vmatprep.subr.bf16.mxu0 0
  %2188 = vmatpush1.bf16.msra.mxu0 0
  %2189 = vmatprep.subr.bf16.mxu0 0
  %2190 = vmatpush1.bf16.msra.mxu0 0
  %2191 = vmatprep.subr.bf16.mxu0 0
  %2192 = vmatpush1.bf16.msra.mxu0 0
  %2193 = vmatprep.subr.bf16.mxu0 0
  %2194 = vmatpush1.bf16.msra.mxu0 0
  %2195 = vmatprep.subr.bf16.mxu0 0
  %2196 = vmatpush1.bf16.msra.mxu0 0
  %2197 = vmatprep.subr.bf16.mxu0 0
  %2198 = vmatpush1.bf16.msra.mxu0 0
  %2199 = vmatprep.subr.bf16.mxu0 0
  %2200 = vmatpush1.bf16.msra.mxu0 0
  %2201 = vmatprep.subr.bf16.mxu0 0
  %2202 = vmatpush1.bf16.msra.mxu0 0
  %2203 = vmatprep.subr.bf16.mxu0 0
  %2204 = vmatpush1.bf16.msra.mxu0 0
  %2205 = vmatprep.subr.bf16.mxu0 0
  %2206 = vmatpush1.bf16.msra.mxu0 0
  %2207 = vmatprep.subr.bf16.mxu0 0
  %2208 = vmatpush1.bf16.msra.mxu0 0
  %2209 = vmatprep.subr.bf16.mxu0 0
  %2210 = vmatpush1.bf16.msra.mxu0 0
  %2211 = vmatprep.subr.bf16.mxu0 0
  %2212 = vmatpush1.bf16.msra.mxu0 0
  %2213 = vmatprep.subr.bf16.mxu0 0
  %2214 = vmatpush1.bf16.msra.mxu0 0
  %2215 = vmatprep.mubr.bf16.mxu0 0
  %2216 = vmatmul.mubr.bf16.gmra.mrb[0].mxu0 %v2141
  %v2217 = vpop.f32.mrb[0].mxu0
  %v2218 = vadd.f32 0.0, %v2217
  %v2219 = vpop.f32.mrb[0].mxu0
  %v2220 = vpop.f32.mrb[0].mxu0
  %v2221 = vpop.f32.mrb[0].mxu0
  %2222 = vdwg.mxu0
  %v2223 = vrot.slane %v2178, 7
  %v2224 = vrot.slane %v2218, 7
  %v2225 = vsel %vm73, %v2223, %v2224
  %v2226 = vsel %vm73, %v2224, %v2223
  %v2227 = vrot.slane %v2178, 1
  %v2228 = vrot.slane %v2218, 1
  %v2229 = vsel %vm106, %v2227, %v2228
  %v2230 = vsel %vm106, %v2228, %v2227
  %v2231 = vsel %vm130, 0.0, %v2226
  %v2232 = vsel %vm130, 0.0, %v2225
  %vm2233 = vcmp.eq.s32.totalorder %v72, 7
  %v2234 = vsel %vm2233, 0.0, %v2229
  %v2235 = vsel %vm2233, 0.0, %v2230
  %v2236 = vpack.c.bf16 %v2218, %v2178
  %v2237 = vpack.c.bf16 %v2232, %v2231
  %v2238 = vpack.c.bf16 %v2235, %v2234
  %v2239 = vld [vmem:[%s4] sm:$0xf]
  %v2240 = vld [vmem:[%s4 + $0x4] sm:$0xf]
  %v2241 = vld [vmem:[%s4 + $0x8] sm:$0xf]
  %v2242 = vld [vmem:[%s4 + $0xc] sm:$0xf]
  %v2243 = vld [vmem:[%s4 + $0x10] sm:$0xf]
  %v2244 = vld [vmem:[%s4 + $0x14] sm:$0xf]
  %v2245 = vld [vmem:[%s4 + $0x18] sm:$0xf]
  %v2246 = vld [vmem:[%s4 + $0x1c] sm:$0xf]
  %v2247 = vld [vmem:[%s4 + $0x20] sm:$0xf]
  %v2248 = vld [vmem:[%s4 + $0x24] sm:$0xf]
  %v2249 = vld [vmem:[%s4 + $0x28] sm:$0xf]
  %v2250 = vld [vmem:[%s4 + $0x2c] sm:$0xf]
  %v2251 = vld [vmem:[%s4 + $0x30] sm:$0xf]
  %v2252 = vld [vmem:[%s4 + $0x34] sm:$0xf]
  %v2253 = vld [vmem:[%s4 + $0x38] sm:$0xf]
  %v2254 = vld [vmem:[%s4 + $0x3c] sm:$0xf]
  %v2255 = vld [vmem:[%s4 + $0x40] sm:$0xf]
  %v2256 = vld [vmem:[%s4 + $0x44] sm:$0xf]
  %v2257 = vld [vmem:[%s4 + $0x48] sm:$0xf]
  %v2258 = vld [vmem:[%s4 + $0x4c] sm:$0xf]
  %v2259 = vld [vmem:[%s4 + $0x50] sm:$0xf]
  %v2260 = vld [vmem:[%s4 + $0x54] sm:$0xf]
  %v2261 = vld [vmem:[%s4 + $0x58] sm:$0xf]
  %v2262 = vld [vmem:[%s4 + $0x5c] sm:$0xf]
  %v2263 = vld [vmem:[%s4 + $0x60] sm:$0xf]
  %v2264 = vld [vmem:[%s4 + $0x64] sm:$0xf]
  %v2265 = vld [vmem:[%s4 + $0x68] sm:$0xf]
  %v2266 = vld [vmem:[%s4 + $0x6c] sm:$0xf]
  %v2267 = vld [vmem:[%s4 + $0x70] sm:$0xf]
  %v2268 = vld [vmem:[%s4 + $0x74] sm:$0xf]
  %v2269 = vld [vmem:[%s4 + $0x78] sm:$0xf]
  %v2270 = vld [vmem:[%s4 + $0x7c] sm:$0xf]
  %v2287 = vunpack.c.l.b16 %v2255
  %v2288 = vunpack.c.l.b16 %v2256
  %v2289 = vunpack.c.l.b16 %v2257
  %v2290 = vunpack.c.l.b16 %v2258
  %v2291 = vunpack.c.l.b16 %v2259
  %v2292 = vunpack.c.l.b16 %v2260
  %v2293 = vunpack.c.l.b16 %v2261
  %v2294 = vunpack.c.l.b16 %v2262
  %v2295 = vunpack.c.l.b16 %v2263
  %v2296 = vunpack.c.l.b16 %v2264
  %v2297 = vunpack.c.l.b16 %v2265
  %v2298 = vunpack.c.l.b16 %v2266
  %v2299 = vunpack.c.l.b16 %v2267
  %v2300 = vunpack.c.l.b16 %v2268
  %v2301 = vunpack.c.l.b16 %v2269
  %v2302 = vunpack.c.l.b16 %v2270
  %v2303 = vpack.c.b16 %v2288, %v2287
  %v2304 = vpack.c.b16 %v2290, %v2289
  %v2305 = vpack.c.b16 %v2292, %v2291
  %v2306 = vpack.c.b16 %v2294, %v2293
  %v2307 = vpack.c.b16 %v2296, %v2295
  %v2308 = vpack.c.b16 %v2298, %v2297
  %v2309 = vpack.c.b16 %v2300, %v2299
  %v2310 = vpack.c.b16 %v2302, %v2301
  %2319 = vmatprep.subr.bf16.mxu0 0
  %2320 = vmatpush1.bf16.msra.mxu0 %v2303
  %2321 = vmatprep.subr.bf16.mxu0 0
  %2322 = vmatpush1.bf16.msra.mxu0 %v2304
  %2323 = vmatprep.subr.bf16.mxu0 0
  %2324 = vmatpush1.bf16.msra.mxu0 %v2305
  %2325 = vmatprep.subr.bf16.mxu0 0
  %2326 = vmatpush1.bf16.msra.mxu0 %v2306
  %2327 = vmatprep.subr.bf16.mxu0 0
  %2328 = vmatpush1.bf16.msra.mxu0 %v2307
  %2329 = vmatprep.subr.bf16.mxu0 0
  %2330 = vmatpush1.bf16.msra.mxu0 %v2308
  %2331 = vmatprep.subr.bf16.mxu0 0
  %2332 = vmatpush1.bf16.msra.mxu0 %v2309
  %2333 = vmatprep.subr.bf16.mxu0 0
  %2334 = vmatpush1.bf16.msra.mxu0 %v2310
  %2335 = vmatprep.subr.bf16.mxu0 0
  %2336 = vmatpush1.bf16.msra.mxu0 0
  %2337 = vmatprep.subr.bf16.mxu0 0
  %2338 = vmatpush1.bf16.msra.mxu0 0
  %2339 = vmatprep.subr.bf16.mxu0 0
  %2340 = vmatpush1.bf16.msra.mxu0 0
  %2341 = vmatprep.subr.bf16.mxu0 0
  %2342 = vmatpush1.bf16.msra.mxu0 0
  %2343 = vmatprep.subr.bf16.mxu0 0
  %2344 = vmatpush1.bf16.msra.mxu0 0
  %2345 = vmatprep.subr.bf16.mxu0 0
  %2346 = vmatpush1.bf16.msra.mxu0 0
  %2347 = vmatprep.subr.bf16.mxu0 0
  %2348 = vmatpush1.bf16.msra.mxu0 0
  %2349 = vmatprep.subr.bf16.mxu0 0
  %2350 = vmatpush1.bf16.msra.mxu0 0
  %2351 = vmatprep.mubr.bf16.mxu0 0
  %2352 = vmatmul.mubr.bf16.gmra.mrb[0].mxu0 %v2237
  %v2353 = vpop.f32.mrb[0].mxu0
  %v2354 = vadd.f32 0.0, %v2353
  %v2355 = vpop.f32.mrb[0].mxu0
  %v2356 = vpop.f32.mrb[0].mxu0
  %v2357 = vadd.f32 0.0, %v2356
  %v2358 = vpop.f32.mrb[0].mxu0
  %2359 = vdwg.mxu0
  %v2376 = vunpack.c.l.b16 %v2239
  %v2377 = vunpack.c.l.b16 %v2240
  %v2378 = vunpack.c.l.b16 %v2241
  %v2379 = vunpack.c.l.b16 %v2242
  %v2380 = vunpack.c.l.b16 %v2243
  %v2381 = vunpack.c.l.b16 %v2244
  %v2382 = vunpack.c.l.b16 %v2245
  %v2383 = vunpack.c.l.b16 %v2246
  %v2384 = vunpack.c.l.b16 %v2247
  %v2385 = vunpack.c.l.b16 %v2248
  %v2386 = vunpack.c.l.b16 %v2249
  %v2387 = vunpack.c.l.b16 %v2250
  %v2388 = vunpack.c.l.b16 %v2251
  %v2389 = vunpack.c.l.b16 %v2252
  %v2390 = vunpack.c.l.b16 %v2253
  %v2391 = vunpack.c.l.b16 %v2254
  %v2392 = vpack.c.b16 %v2377, %v2376
  %v2393 = vpack.c.b16 %v2379, %v2378
  %v2394 = vpack.c.b16 %v2381, %v2380
  %v2395 = vpack.c.b16 %v2383, %v2382
  %v2396 = vpack.c.b16 %v2385, %v2384
  %v2397 = vpack.c.b16 %v2387, %v2386
  %v2398 = vpack.c.b16 %v2389, %v2388
  %v2399 = vpack.c.b16 %v2391, %v2390
  %2408 = vmatprep.subr.bf16.mxu0 0
  %2409 = vmatpush1.bf16.msra.mxu0 %v2392
  %2410 = vmatprep.subr.bf16.mxu0 0
  %2411 = vmatpush1.bf16.msra.mxu0 %v2393
  %2412 = vmatprep.subr.bf16.mxu0 0
  %2413 = vmatpush1.bf16.msra.mxu0 %v2394
  %2414 = vmatprep.subr.bf16.mxu0 0
  %2415 = vmatpush1.bf16.msra.mxu0 %v2395
  %2416 = vmatprep.subr.bf16.mxu0 0
  %2417 = vmatpush1.bf16.msra.mxu0 %v2396
  %2418 = vmatprep.subr.bf16.mxu0 0
  %2419 = vmatpush1.bf16.msra.mxu0 %v2397
  %2420 = vmatprep.subr.bf16.mxu0 0
  %2421 = vmatpush1.bf16.msra.mxu0 %v2398
  %2422 = vmatprep.subr.bf16.mxu0 0
  %2423 = vmatpush1.bf16.msra.mxu0 %v2399
  %2424 = vmatprep.subr.bf16.mxu0 0
  %2425 = vmatpush1.bf16.msra.mxu0 0
  %2426 = vmatprep.subr.bf16.mxu0 0
  %2427 = vmatpush1.bf16.msra.mxu0 0
  %2428 = vmatprep.subr.bf16.mxu0 0
  %2429 = vmatpush1.bf16.msra.mxu0 0
  %2430 = vmatprep.subr.bf16.mxu0 0
  %2431 = vmatpush1.bf16.msra.mxu0 0
  %2432 = vmatprep.subr.bf16.mxu0 0
  %2433 = vmatpush1.bf16.msra.mxu0 0
  %2434 = vmatprep.subr.bf16.mxu0 0
  %2435 = vmatpush1.bf16.msra.mxu0 0
  %2436 = vmatprep.subr.bf16.mxu0 0
  %2437 = vmatpush1.bf16.msra.mxu0 0
  %2438 = vmatprep.subr.bf16.mxu0 0
  %2439 = vmatpush1.bf16.msra.mxu0 0
  %2440 = vmatprep.mubr.bf16.mxu0 0
  %2441 = vmatmul.mubr.bf16.gmra.mrb[0].mxu0 %v2236
  %v2442 = vpop.f32.mrb[0].mxu0
  %v2443 = vadd.f32 %v2354, %v2442
  %v2444 = vpop.f32.mrb[0].mxu0
  %v2445 = vpop.f32.mrb[0].mxu0
  %v2446 = vadd.f32 %v2357, %v2445
  %v2447 = vpop.f32.mrb[0].mxu0
  %2448 = vdwg.mxu0
  %v2449 = vld [vmem:[%s4 + $0x80] sm:$0xf]
  %v2450 = vld [vmem:[%s4 + $0x84] sm:$0xf]
  %v2451 = vld [vmem:[%s4 + $0x88] sm:$0xf]
  %v2452 = vld [vmem:[%s4 + $0x8c] sm:$0xf]
  %v2453 = vld [vmem:[%s4 + $0x90] sm:$0xf]
  %v2454 = vld [vmem:[%s4 + $0x94] sm:$0xf]
  %v2455 = vld [vmem:[%s4 + $0x98] sm:$0xf]
  %v2456 = vld [vmem:[%s4 + $0x9c] sm:$0xf]
  %v2457 = vld [vmem:[%s4 + $0xa0] sm:$0xf]
  %v2458 = vld [vmem:[%s4 + $0xa4] sm:$0xf]
  %v2459 = vld [vmem:[%s4 + $0xa8] sm:$0xf]
  %v2460 = vld [vmem:[%s4 + $0xac] sm:$0xf]
  %v2461 = vld [vmem:[%s4 + $0xb0] sm:$0xf]
  %v2462 = vld [vmem:[%s4 + $0xb4] sm:$0xf]
  %v2463 = vld [vmem:[%s4 + $0xb8] sm:$0xf]
  %v2464 = vld [vmem:[%s4 + $0xbc] sm:$0xf]
  %v2465 = vld [vmem:[%s4 + $0xc0] sm:$0xf]
  %v2466 = vld [vmem:[%s4 + $0xc4] sm:$0xf]
  %v2467 = vld [vmem:[%s4 + $0xc8] sm:$0xf]
  %v2468 = vld [vmem:[%s4 + $0xcc] sm:$0xf]
  %v2469 = vld [vmem:[%s4 + $0xd0] sm:$0xf]
  %v2470 = vld [vmem:[%s4 + $0xd4] sm:$0xf]
  %v2471 = vld [vmem:[%s4 + $0xd8] sm:$0xf]
  %v2472 = vld [vmem:[%s4 + $0xdc] sm:$0xf]
  %v2473 = vld [vmem:[%s4 + $0xe0] sm:$0xf]
  %v2474 = vld [vmem:[%s4 + $0xe4] sm:$0xf]
  %v2475 = vld [vmem:[%s4 + $0xe8] sm:$0xf]
  %v2476 = vld [vmem:[%s4 + $0xec] sm:$0xf]
  %v2477 = vld [vmem:[%s4 + $0xf0] sm:$0xf]
  %v2478 = vld [vmem:[%s4 + $0xf4] sm:$0xf]
  %v2479 = vld [vmem:[%s4 + $0xf8] sm:$0xf]
  %v2480 = vld [vmem:[%s4 + $0xfc] sm:$0xf]
  %v2497 = vunpack.c.l.b16 %v2465
  %v2498 = vunpack.c.l.b16 %v2466
  %v2499 = vunpack.c.l.b16 %v2467
  %v2500 = vunpack.c.l.b16 %v2468
  %v2501 = vunpack.c.l.b16 %v2469
  %v2502 = vunpack.c.l.b16 %v2470
  %v2503 = vunpack.c.l.b16 %v2471
  %v2504 = vunpack.c.l.b16 %v2472
  %v2505 = vunpack.c.l.b16 %v2473
  %v2506 = vunpack.c.l.b16 %v2474
  %v2507 = vunpack.c.l.b16 %v2475
  %v2508 = vunpack.c.l.b16 %v2476
  %v2509 = vunpack.c.l.b16 %v2477
  %v2510 = vunpack.c.l.b16 %v2478
  %v2511 = vunpack.c.l.b16 %v2479
  %v2512 = vunpack.c.l.b16 %v2480
  %v2513 = vpack.c.b16 %v2498, %v2497
  %v2514 = vpack.c.b16 %v2500, %v2499
  %v2515 = vpack.c.b16 %v2502, %v2501
  %v2516 = vpack.c.b16 %v2504, %v2503
  %v2517 = vpack.c.b16 %v2506, %v2505
  %v2518 = vpack.c.b16 %v2508, %v2507
  %v2519 = vpack.c.b16 %v2510, %v2509
  %v2520 = vpack.c.b16 %v2512, %v2511
  %2529 = vmatprep.subr.bf16.mxu0 0
  %2530 = vmatpush1.bf16.msra.mxu0 %v2513
  %2531 = vmatprep.subr.bf16.mxu0 0
  %2532 = vmatpush1.bf16.msra.mxu0 %v2514
  %2533 = vmatprep.subr.bf16.mxu0 0
  %2534 = vmatpush1.bf16.msra.mxu0 %v2515
  %2535 = vmatprep.subr.bf16.mxu0 0
  %2536 = vmatpush1.bf16.msra.mxu0 %v2516
  %2537 = vmatprep.subr.bf16.mxu0 0
  %2538 = vmatpush1.bf16.msra.mxu0 %v2517
  %2539 = vmatprep.subr.bf16.mxu0 0
  %2540 = vmatpush1.bf16.msra.mxu0 %v2518
  %2541 = vmatprep.subr.bf16.mxu0 0
  %2542 = vmatpush1.bf16.msra.mxu0 %v2519
  %2543 = vmatprep.subr.bf16.mxu0 0
  %2544 = vmatpush1.bf16.msra.mxu0 %v2520
  %2545 = vmatprep.subr.bf16.mxu0 0
  %2546 = vmatpush1.bf16.msra.mxu0 0
  %2547 = vmatprep.subr.bf16.mxu0 0
  %2548 = vmatpush1.bf16.msra.mxu0 0
  %2549 = vmatprep.subr.bf16.mxu0 0
  %2550 = vmatpush1.bf16.msra.mxu0 0
  %2551 = vmatprep.subr.bf16.mxu0 0
  %2552 = vmatpush1.bf16.msra.mxu0 0
  %2553 = vmatprep.subr.bf16.mxu0 0
  %2554 = vmatpush1.bf16.msra.mxu0 0
  %2555 = vmatprep.subr.bf16.mxu0 0
  %2556 = vmatpush1.bf16.msra.mxu0 0
  %2557 = vmatprep.subr.bf16.mxu0 0
  %2558 = vmatpush1.bf16.msra.mxu0 0
  %2559 = vmatprep.subr.bf16.mxu0 0
  %2560 = vmatpush1.bf16.msra.mxu0 0
  %2561 = vmatprep.mubr.bf16.mxu0 0
  %2562 = vmatmul.mubr.bf16.gmra.mrb[0].mxu0 %v2236
  %v2563 = vpop.f32.mrb[0].mxu0
  %v2564 = vadd.f32 0.0, %v2563
  %v2565 = vpop.f32.mrb[0].mxu0
  %v2566 = vpop.f32.mrb[0].mxu0
  %v2567 = vadd.f32 0.0, %v2566
  %v2568 = vpop.f32.mrb[0].mxu0
  %2569 = vdwg.mxu0
  %v2586 = vunpack.c.l.b16 %v2449
  %v2587 = vunpack.c.l.b16 %v2450
  %v2588 = vunpack.c.l.b16 %v2451
  %v2589 = vunpack.c.l.b16 %v2452
  %v2590 = vunpack.c.l.b16 %v2453
  %v2591 = vunpack.c.l.b16 %v2454
  %v2592 = vunpack.c.l.b16 %v2455
  %v2593 = vunpack.c.l.b16 %v2456
  %v2594 = vunpack.c.l.b16 %v2457
  %v2595 = vunpack.c.l.b16 %v2458
  %v2596 = vunpack.c.l.b16 %v2459
  %v2597 = vunpack.c.l.b16 %v2460
  %v2598 = vunpack.c.l.b16 %v2461
  %v2599 = vunpack.c.l.b16 %v2462
  %v2600 = vunpack.c.l.b16 %v2463
  %v2601 = vunpack.c.l.b16 %v2464
  %v2602 = vpack.c.b16 %v2587, %v2586
  %v2603 = vpack.c.b16 %v2589, %v2588
  %v2604 = vpack.c.b16 %v2591, %v2590
  %v2605 = vpack.c.b16 %v2593, %v2592
  %v2606 = vpack.c.b16 %v2595, %v2594
  %v2607 = vpack.c.b16 %v2597, %v2596
  %v2608 = vpack.c.b16 %v2599, %v2598
  %v2609 = vpack.c.b16 %v2601, %v2600
  %2618 = vmatprep.subr.bf16.mxu0 0
  %2619 = vmatpush1.bf16.msra.mxu0 %v2602
  %2620 = vmatprep.subr.bf16.mxu0 0
  %2621 = vmatpush1.bf16.msra.mxu0 %v2603
  %2622 = vmatprep.subr.bf16.mxu0 0
  %2623 = vmatpush1.bf16.msra.mxu0 %v2604
  %2624 = vmatprep.subr.bf16.mxu0 0
  %2625 = vmatpush1.bf16.msra.mxu0 %v2605
  %2626 = vmatprep.subr.bf16.mxu0 0
  %2627 = vmatpush1.bf16.msra.mxu0 %v2606
  %2628 = vmatprep.subr.bf16.mxu0 0
  %2629 = vmatpush1.bf16.msra.mxu0 %v2607
  %2630 = vmatprep.subr.bf16.mxu0 0
  %2631 = vmatpush1.bf16.msra.mxu0 %v2608
  %2632 = vmatprep.subr.bf16.mxu0 0
  %2633 = vmatpush1.bf16.msra.mxu0 %v2609
  %2634 = vmatprep.subr.bf16.mxu0 0
  %2635 = vmatpush1.bf16.msra.mxu0 0
  %2636 = vmatprep.subr.bf16.mxu0 0
  %2637 = vmatpush1.bf16.msra.mxu0 0
  %2638 = vmatprep.subr.bf16.mxu0 0
  %2639 = vmatpush1.bf16.msra.mxu0 0
  %2640 = vmatprep.subr.bf16.mxu0 0
  %2641 = vmatpush1.bf16.msra.mxu0 0
  %2642 = vmatprep.subr.bf16.mxu0 0
  %2643 = vmatpush1.bf16.msra.mxu0 0
  %2644 = vmatprep.subr.bf16.mxu0 0
  %2645 = vmatpush1.bf16.msra.mxu0 0
  %2646 = vmatprep.subr.bf16.mxu0 0
  %2647 = vmatpush1.bf16.msra.mxu0 0
  %2648 = vmatprep.subr.bf16.mxu0 0
  %2649 = vmatpush1.bf16.msra.mxu0 0
  %2650 = vmatprep.mubr.bf16.mxu0 0
  %2651 = vmatmul.mubr.bf16.gmra.mrb[0].mxu0 %v2238
  %v2652 = vpop.f32.mrb[0].mxu0
  %v2653 = vadd.f32 %v2564, %v2652
  %v2654 = vpop.f32.mrb[0].mxu0
  %v2655 = vpop.f32.mrb[0].mxu0
  %v2656 = vadd.f32 %v2567, %v2655
  %v2657 = vpop.f32.mrb[0].mxu0
  %2658 = vdwg.mxu0
  %v2659 = vpack.c.bf16 %v2443, %v2443
  %v2660 = vpack.c.bf16 %v2446, %v2446
  %v2661 = vpack.c.bf16 %v2653, %v2653
  %v2662 = vpack.c.bf16 %v2656, %v2656
  %v2663 = vmul.u32 %v925, 2
  %vm2664 = vcmp.eq.s32.totalorder %v72, %v2663
  %vm2665 = vcmp.eq.s32.totalorder %v123, %v2663
  %v2666 = vsel %vm2664, 1, 0
  %v2667 = vsel %vm2665, 1, 0
  %v2668 = vcvt.s32.f32 %v2666
  %v2669 = vcvt.s32.f32 %v2667
  %v2670 = vpack.c.bf16 %v2669, %v2668
  %v2671 = vadd.s32 %v2663, 1
  %vm2672 = vcmp.eq.s32.totalorder %v72, %v2671
  %vm2673 = vcmp.eq.s32.totalorder %v123, %v2671
  %v2674 = vsel %vm2672, 1, 0
  %v2675 = vsel %vm2673, 1, 0
  %v2676 = vcvt.s32.f32 %v2674
  %v2677 = vcvt.s32.f32 %v2675
  %v2678 = vpack.c.bf16 %v2677, %v2676
  %vm2679 = vcmask 64512
  %v2681 = vsel %vm2679, %v2678, 0
  %vm2683 = vcmask 1043456
  %v2685 = vsel %vm2683, %v2661, 0
  %2687 = vmatprep.subr.bf16.mxu0 0
  %2688 = vmatpush1.bf16.msra.mxu0 %v2685
  %2689 = vmatprep.subr.bf16.mxu0 0
  %2690 = vmatpush1.bf16.msra.mxu0 0
  %2691 = vmatprep.subr.bf16.mxu0 0
  %2692 = vmatpush1.bf16.msra.mxu0 0
  %2693 = vmatprep.subr.bf16.mxu0 0
  %2694 = vmatpush1.bf16.msra.mxu0 0
  %2695 = vmatprep.subr.bf16.mxu0 0
  %2696 = vmatpush1.bf16.msra.mxu0 0
  %2697 = vmatprep.subr.bf16.mxu0 0
  %2698 = vmatpush1.bf16.msra.mxu0 0
  %2699 = vmatprep.subr.bf16.mxu0 0
  %2700 = vmatpush1.bf16.msra.mxu0 0
  %2701 = vmatprep.subr.bf16.mxu0 0
  %2702 = vmatpush1.bf16.msra.mxu0 0
  %2703 = vmatprep.subr.bf16.mxu0 0
  %2704 = vmatpush1.bf16.msra.mxu0 0
  %2705 = vmatprep.subr.bf16.mxu0 0
  %2706 = vmatpush1.bf16.msra.mxu0 0
  %2707 = vmatprep.subr.bf16.mxu0 0
  %2708 = vmatpush1.bf16.msra.mxu0 0
  %2709 = vmatprep.subr.bf16.mxu0 0
  %2710 = vmatpush1.bf16.msra.mxu0 0
  %2711 = vmatprep.subr.bf16.mxu0 0
  %2712 = vmatpush1.bf16.msra.mxu0 0
  %2713 = vmatprep.subr.bf16.mxu0 0
  %2714 = vmatpush1.bf16.msra.mxu0 0
  %2715 = vmatprep.subr.bf16.mxu0 0
  %2716 = vmatpush1.bf16.msra.mxu0 0
  %2717 = vmatprep.subr.bf16.mxu0 0
  %2718 = vmatpush1.bf16.msra.mxu0 0
  %2719 = vmatprep.mubr.bf16.mxu0 0
  %2720 = vmatmul.mubr.bf16.gmra.mrb[0].mxu0 %v2681
  %v2721 = vpop.f32.mrb[0].mxu0
  %v2722 = vadd.f32 0.0, %v2721
  %v2723 = vpop.f32.mrb[0].mxu0
  %v2724 = vpop.f32.mrb[0].mxu0
  %v2725 = vadd.f32 0.0, %v2724
  %v2726 = vpop.f32.mrb[0].mxu0
  %2727 = vdwg.mxu0
  %v2729 = vsel %vm2683, %v2662, 0
  %2731 = vmatprep.subr.bf16.mxu0 0
  %2732 = vmatpush1.bf16.msra.mxu0 %v2729
  %2733 = vmatprep.subr.bf16.mxu0 0
  %2734 = vmatpush1.bf16.msra.mxu0 0
  %2735 = vmatprep.subr.bf16.mxu0 0
  %2736 = vmatpush1.bf16.msra.mxu0 0
  %2737 = vmatprep.subr.bf16.mxu0 0
  %2738 = vmatpush1.bf16.msra.mxu0 0
  %2739 = vmatprep.subr.bf16.mxu0 0
  %2740 = vmatpush1.bf16.msra.mxu0 0
  %2741 = vmatprep.subr.bf16.mxu0 0
  %2742 = vmatpush1.bf16.msra.mxu0 0
  %2743 = vmatprep.subr.bf16.mxu0 0
  %2744 = vmatpush1.bf16.msra.mxu0 0
  %2745 = vmatprep.subr.bf16.mxu0 0
  %2746 = vmatpush1.bf16.msra.mxu0 0
  %2747 = vmatprep.subr.bf16.mxu0 0
  %2748 = vmatpush1.bf16.msra.mxu0 0
  %2749 = vmatprep.subr.bf16.mxu0 0
  %2750 = vmatpush1.bf16.msra.mxu0 0
  %2751 = vmatprep.subr.bf16.mxu0 0
  %2752 = vmatpush1.bf16.msra.mxu0 0
  %2753 = vmatprep.subr.bf16.mxu0 0
  %2754 = vmatpush1.bf16.msra.mxu0 0
  %2755 = vmatprep.subr.bf16.mxu0 0
  %2756 = vmatpush1.bf16.msra.mxu0 0
  %2757 = vmatprep.subr.bf16.mxu0 0
  %2758 = vmatpush1.bf16.msra.mxu0 0
  %2759 = vmatprep.subr.bf16.mxu0 0
  %2760 = vmatpush1.bf16.msra.mxu0 0
  %2761 = vmatprep.subr.bf16.mxu0 0
  %2762 = vmatpush1.bf16.msra.mxu0 0
  %2763 = vmatprep.mubr.bf16.mxu0 0
  %2764 = vmatmul.mubr.bf16.gmra.mrb[0].mxu0 %v2681
  %v2765 = vpop.f32.mrb[0].mxu0
  %v2766 = vadd.f32 0.0, %v2765
  %v2767 = vpop.f32.mrb[0].mxu0
  %v2768 = vpop.f32.mrb[0].mxu0
  %v2769 = vadd.f32 0.0, %v2768
  %v2770 = vpop.f32.mrb[0].mxu0
  %2771 = vdwg.mxu0
  %v2773 = vsel %vm2679, %v2670, 0
  %v2776 = vsel %vm2683, %v2659, 0
  %2778 = vmatprep.subr.bf16.mxu0 0
  %2779 = vmatpush1.bf16.msra.mxu0 %v2776
  %2780 = vmatprep.subr.bf16.mxu0 0
  %2781 = vmatpush1.bf16.msra.mxu0 0
  %2782 = vmatprep.subr.bf16.mxu0 0
  %2783 = vmatpush1.bf16.msra.mxu0 0
  %2784 = vmatprep.subr.bf16.mxu0 0
  %2785 = vmatpush1.bf16.msra.mxu0 0
  %2786 = vmatprep.subr.bf16.mxu0 0
  %2787 = vmatpush1.bf16.msra.mxu0 0
  %2788 = vmatprep.subr.bf16.mxu0 0
  %2789 = vmatpush1.bf16.msra.mxu0 0
  %2790 = vmatprep.subr.bf16.mxu0 0
  %2791 = vmatpush1.bf16.msra.mxu0 0
  %2792 = vmatprep.subr.bf16.mxu0 0
  %2793 = vmatpush1.bf16.msra.mxu0 0
  %2794 = vmatprep.subr.bf16.mxu0 0
  %2795 = vmatpush1.bf16.msra.mxu0 0
  %2796 = vmatprep.subr.bf16.mxu0 0
  %2797 = vmatpush1.bf16.msra.mxu0 0
  %2798 = vmatprep.subr.bf16.mxu0 0
  %2799 = vmatpush1.bf16.msra.mxu0 0
  %2800 = vmatprep.subr.bf16.mxu0 0
  %2801 = vmatpush1.bf16.msra.mxu0 0
  %2802 = vmatprep.subr.bf16.mxu0 0
  %2803 = vmatpush1.bf16.msra.mxu0 0
  %2804 = vmatprep.subr.bf16.mxu0 0
  %2805 = vmatpush1.bf16.msra.mxu0 0
  %2806 = vmatprep.subr.bf16.mxu0 0
  %2807 = vmatpush1.bf16.msra.mxu0 0
  %2808 = vmatprep.subr.bf16.mxu0 0
  %2809 = vmatpush1.bf16.msra.mxu0 0
  %2810 = vmatprep.mubr.bf16.mxu0 0
  %2811 = vmatmul.mubr.bf16.gmra.mrb[0].mxu0 %v2773
  %v2812 = vpop.f32.mrb[0].mxu0
  %v2813 = vadd.f32 %v2722, %v2812
  %v2814 = vpop.f32.mrb[0].mxu0
  %v2815 = vpop.f32.mrb[0].mxu0
  %v2816 = vadd.f32 %v2725, %v2815
  %v2817 = vpop.f32.mrb[0].mxu0
  %2818 = vdwg.mxu0
  %v2820 = vsel %vm2683, %v2660, 0
  %2822 = vmatprep.subr.bf16.mxu0 0
  %2823 = vmatpush1.bf16.msra.mxu0 %v2820
  %2824 = vmatprep.subr.bf16.mxu0 0
  %2825 = vmatpush1.bf16.msra.mxu0 0
  %2826 = vmatprep.subr.bf16.mxu0 0
  %2827 = vmatpush1.bf16.msra.mxu0 0
  %2828 = vmatprep.subr.bf16.mxu0 0
  %2829 = vmatpush1.bf16.msra.mxu0 0
  %2830 = vmatprep.subr.bf16.mxu0 0
  %2831 = vmatpush1.bf16.msra.mxu0 0
  %2832 = vmatprep.subr.bf16.mxu0 0
  %2833 = vmatpush1.bf16.msra.mxu0 0
  %2834 = vmatprep.subr.bf16.mxu0 0
  %2835 = vmatpush1.bf16.msra.mxu0 0
  %2836 = vmatprep.subr.bf16.mxu0 0
  %2837 = vmatpush1.bf16.msra.mxu0 0
  %2838 = vmatprep.subr.bf16.mxu0 0
  %2839 = vmatpush1.bf16.msra.mxu0 0
  %2840 = vmatprep.subr.bf16.mxu0 0
  %2841 = vmatpush1.bf16.msra.mxu0 0
  %2842 = vmatprep.subr.bf16.mxu0 0
  %2843 = vmatpush1.bf16.msra.mxu0 0
  %2844 = vmatprep.subr.bf16.mxu0 0
  %2845 = vmatpush1.bf16.msra.mxu0 0
  %2846 = vmatprep.subr.bf16.mxu0 0
  %2847 = vmatpush1.bf16.msra.mxu0 0
  %2848 = vmatprep.subr.bf16.mxu0 0
  %2849 = vmatpush1.bf16.msra.mxu0 0
  %2850 = vmatprep.subr.bf16.mxu0 0
  %2851 = vmatpush1.bf16.msra.mxu0 0
  %2852 = vmatprep.subr.bf16.mxu0 0
  %2853 = vmatpush1.bf16.msra.mxu0 0
  %2854 = vmatprep.mubr.bf16.mxu0 0
  %2855 = vmatmul.mubr.bf16.gmra.mrb[0].mxu0 %v2773
  %v2856 = vpop.f32.mrb[0].mxu0
  %v2857 = vadd.f32 %v2766, %v2856
  %v2858 = vpop.f32.mrb[0].mxu0
  %v2859 = vpop.f32.mrb[0].mxu0
  %v2860 = vadd.f32 %v2769, %v2859
  %v2861 = vpop.f32.mrb[0].mxu0
  %2862 = vdwg.mxu0
  %v2863 = vadd.f32 %v2813, %v2816
  %v2864 = vrot.slane %v2863, 4
  %v2865 = vadd.f32 %v2863, %v2864
  %v2866 = vrot.slane %v2865, 2
  %v2867 = vadd.f32 %v2865, %v2866
  %v2868 = vrot.slane %v2867, 1
  %v2869 = vadd.f32 %v2867, %v2868
  %v2870 = vadd.f32 %v2857, %v2860
  %v2871 = vrot.slane %v2870, 4
  %v2872 = vadd.f32 %v2870, %v2871
  %v2873 = vrot.slane %v2872, 2
  %v2874 = vadd.f32 %v2872, %v2873
  %v2875 = vrot.slane %v2874, 1
  %v2876 = vadd.f32 %v2874, %v2875
  %v2877 = vmul.f32 %v2869, %v2065
  %v2878 = vmul.f32 %v2876, %v2065
  %v2879 = vsub.f32 %v2813, %v2877
  %v2880 = vsub.f32 %v2816, %v2877
  %v2881 = vsub.f32 %v2857, %v2878
  %v2882 = vsub.f32 %v2860, %v2878
  %v2883 = vmul.f32 %v2879, %v2879
  %v2884 = vmul.f32 %v2880, %v2880
  %v2885 = vmul.f32 %v2881, %v2881
  %v2886 = vmul.f32 %v2882, %v2882
  %v2887 = vadd.f32 %v2883, %v2884
  %v2888 = vrot.slane %v2887, 4
  %v2889 = vadd.f32 %v2887, %v2888
  %v2890 = vrot.slane %v2889, 2
  %v2891 = vadd.f32 %v2889, %v2890
  %v2892 = vrot.slane %v2891, 1
  %v2893 = vadd.f32 %v2891, %v2892
  %v2894 = vadd.f32 %v2885, %v2886
  %v2895 = vrot.slane %v2894, 4
  %v2896 = vadd.f32 %v2894, %v2895
  %v2897 = vrot.slane %v2896, 2
  %v2898 = vadd.f32 %v2896, %v2897
  %v2899 = vrot.slane %v2898, 1
  %v2900 = vadd.f32 %v2898, %v2899
  %v2901 = vmul.f32 %v2893, %v2065
  %v2902 = vmul.f32 %v2900, %v2065
  %v2903 = vadd.f32 %v2901, 1e-05
  %v2904 = vadd.f32 %v2902, 1e-05
  %v2905 = vrsqrt.pop %v2903
  %v2906 = vrsqrt.pop %v2904
  %v2907 = vmul.f32 %v2879, %v2905
  %v2908 = vmul.f32 %v2880, %v2905
  %v2909 = vmul.f32 %v2881, %v2906
  %v2910 = vmul.f32 %v2882, %v2906
  %vm2911 = vcmp.gt.f32.partialorder %v2907, 0.0
  %vm2912 = vcmp.gt.f32.partialorder %v2908, 0.0
  %vm2913 = vcmp.gt.f32.partialorder %v2909, 0.0
  %vm2914 = vcmp.gt.f32.partialorder %v2910, 0.0
  %v2915 = vmin.f32 %v2907, 0.0
  %v2916 = vmin.f32 %v2908, 0.0
  %v2917 = vmin.f32 %v2909, 0.0
  %v2918 = vmin.f32 %v2910, 0.0
  %v2919 = vmul.f32 %v2915, 1.442695
  %v2920 = vpow.pop %v2919
  %v2921 = vmul.f32 %v2916, 1.442695
  %v2922 = vpow.pop %v2921
  %v2923 = vmul.f32 %v2917, 1.442695
  %v2924 = vpow.pop %v2923
  %v2925 = vmul.f32 %v2918, 1.442695
  %v2926 = vpow.pop %v2925
  %v2927 = vsub.f32 %v2920, 1.0
  %v2928 = vsub.f32 %v2922, 1.0
  %v2929 = vsub.f32 %v2924, 1.0
  %v2930 = vsub.f32 %v2926, 1.0
  %v2931 = vsel %vm2911, %v2907, %v2927
  %v2932 = vsel %vm2912, %v2908, %v2928
  %v2933 = vsel %vm2913, %v2909, %v2929
  %v2934 = vsel %vm2914, %v2910, %v2930
  %v2935 = vrot.slane %v2931, 7
  %v2936 = vrot.slane %v2932, 7
  %v2937 = vrot.slane %v2933, 7
  %v2938 = vrot.slane %v2934, 7
  %v2939 = vsel %vm73, %v2937, %v2938
  %v2940 = vsel %vm73, %v2936, %v2937
  %v2941 = vsel %vm73, %v2935, %v2936
  %v2942 = vsel %vm73, %v2938, %v2935
  %v2943 = vrot.slane %v2931, 1
  %v2944 = vrot.slane %v2932, 1
  %v2945 = vrot.slane %v2933, 1
  %v2946 = vrot.slane %v2934, 1
  %v2947 = vsel %vm106, %v2945, %v2946
  %v2948 = vsel %vm106, %v2944, %v2945
  %v2949 = vsel %vm106, %v2943, %v2944
  %v2950 = vsel %vm106, %v2946, %v2943
  %v2951 = vsel %vm130, 0.0, %v2942
  %v2952 = vsel %vm131, 0.0, %v2941
  %v2953 = vsel %vm130, 0.0, %v2940
  %v2954 = vsel %vm131, 0.0, %v2939
  %v2955 = vsel %vm1696, 0.0, %v2949
  %v2956 = vsel %vm1697, 0.0, %v2948
  %v2957 = vsel %vm1696, 0.0, %v2947
  %v2958 = vsel %vm1697, 0.0, %v2950
  %v2959 = vpack.c.bf16 %v2932, %v2931
  %v2960 = vpack.c.bf16 %v2934, %v2933
  %v2961 = vpack.c.bf16 %v2952, %v2951
  %v2962 = vpack.c.bf16 %v2954, %v2953
  %v2963 = vpack.c.bf16 %v2956, %v2955
  %v2964 = vpack.c.bf16 %v2958, %v2957
  %v2965 = vld [vmem:[%s5] sm:$0xf]
  %v2966 = vld [vmem:[%s5 + $0x4] sm:$0xf]
  %v2967 = vld [vmem:[%s5 + $0x8] sm:$0xf]
  %v2968 = vld [vmem:[%s5 + $0xc] sm:$0xf]
  %v2969 = vld [vmem:[%s5 + $0x10] sm:$0xf]
  %v2970 = vld [vmem:[%s5 + $0x14] sm:$0xf]
  %v2971 = vld [vmem:[%s5 + $0x18] sm:$0xf]
  %v2972 = vld [vmem:[%s5 + $0x1c] sm:$0xf]
  %v2973 = vld [vmem:[%s5 + $0x20] sm:$0xf]
  %v2974 = vld [vmem:[%s5 + $0x24] sm:$0xf]
  %v2975 = vld [vmem:[%s5 + $0x28] sm:$0xf]
  %v2976 = vld [vmem:[%s5 + $0x2c] sm:$0xf]
  %v2977 = vld [vmem:[%s5 + $0x30] sm:$0xf]
  %v2978 = vld [vmem:[%s5 + $0x34] sm:$0xf]
  %v2979 = vld [vmem:[%s5 + $0x38] sm:$0xf]
  %v2980 = vld [vmem:[%s5 + $0x3c] sm:$0xf]
  %v2981 = vld [vmem:[%s5 + $0x40] sm:$0xf]
  %v2982 = vld [vmem:[%s5 + $0x44] sm:$0xf]
  %v2983 = vld [vmem:[%s5 + $0x48] sm:$0xf]
  %v2984 = vld [vmem:[%s5 + $0x4c] sm:$0xf]
  %v2985 = vld [vmem:[%s5 + $0x50] sm:$0xf]
  %v2986 = vld [vmem:[%s5 + $0x54] sm:$0xf]
  %v2987 = vld [vmem:[%s5 + $0x58] sm:$0xf]
  %v2988 = vld [vmem:[%s5 + $0x5c] sm:$0xf]
  %v2989 = vld [vmem:[%s5 + $0x60] sm:$0xf]
  %v2990 = vld [vmem:[%s5 + $0x64] sm:$0xf]
  %v2991 = vld [vmem:[%s5 + $0x68] sm:$0xf]
  %v2992 = vld [vmem:[%s5 + $0x6c] sm:$0xf]
  %v2993 = vld [vmem:[%s5 + $0x70] sm:$0xf]
  %v2994 = vld [vmem:[%s5 + $0x74] sm:$0xf]
  %v2995 = vld [vmem:[%s5 + $0x78] sm:$0xf]
  %v2996 = vld [vmem:[%s5 + $0x7c] sm:$0xf]
  %v3013 = vunpack.c.l.b16 %v2981
  %v3014 = vunpack.c.l.b16 %v2982
  %v3015 = vunpack.c.l.b16 %v2983
  %v3016 = vunpack.c.l.b16 %v2984
  %v3017 = vunpack.c.l.b16 %v2985
  %v3018 = vunpack.c.l.b16 %v2986
  %v3019 = vunpack.c.l.b16 %v2987
  %v3020 = vunpack.c.l.b16 %v2988
  %v3021 = vunpack.c.l.b16 %v2989
  %v3022 = vunpack.c.l.b16 %v2990
  %v3023 = vunpack.c.l.b16 %v2991
  %v3024 = vunpack.c.l.b16 %v2992
  %v3025 = vunpack.c.l.b16 %v2993
  %v3026 = vunpack.c.l.b16 %v2994
  %v3027 = vunpack.c.l.b16 %v2995
  %v3028 = vunpack.c.l.b16 %v2996
  %v3029 = vpack.c.b16 %v3014, %v3013
  %v3030 = vpack.c.b16 %v3016, %v3015
  %v3031 = vpack.c.b16 %v3018, %v3017
  %v3032 = vpack.c.b16 %v3020, %v3019
  %v3033 = vpack.c.b16 %v3022, %v3021
  %v3034 = vpack.c.b16 %v3024, %v3023
  %v3035 = vpack.c.b16 %v3026, %v3025
  %v3036 = vpack.c.b16 %v3028, %v3027
  %3045 = vmatprep.subr.bf16.mxu0 0
  %3046 = vmatpush1.bf16.msra.mxu0 %v3029
  %3047 = vmatprep.subr.bf16.mxu0 0
  %3048 = vmatpush1.bf16.msra.mxu0 %v3030
  %3049 = vmatprep.subr.bf16.mxu0 0
  %3050 = vmatpush1.bf16.msra.mxu0 %v3031
  %3051 = vmatprep.subr.bf16.mxu0 0
  %3052 = vmatpush1.bf16.msra.mxu0 %v3032
  %3053 = vmatprep.subr.bf16.mxu0 0
  %3054 = vmatpush1.bf16.msra.mxu0 %v3033
  %3055 = vmatprep.subr.bf16.mxu0 0
  %3056 = vmatpush1.bf16.msra.mxu0 %v3034
  %3057 = vmatprep.subr.bf16.mxu0 0
  %3058 = vmatpush1.bf16.msra.mxu0 %v3035
  %3059 = vmatprep.subr.bf16.mxu0 0
  %3060 = vmatpush1.bf16.msra.mxu0 %v3036
  %3061 = vmatprep.subr.bf16.mxu0 0
  %3062 = vmatpush1.bf16.msra.mxu0 0
  %3063 = vmatprep.subr.bf16.mxu0 0
  %3064 = vmatpush1.bf16.msra.mxu0 0
  %3065 = vmatprep.subr.bf16.mxu0 0
  %3066 = vmatpush1.bf16.msra.mxu0 0
  %3067 = vmatprep.subr.bf16.mxu0 0
  %3068 = vmatpush1.bf16.msra.mxu0 0
  %3069 = vmatprep.subr.bf16.mxu0 0
  %3070 = vmatpush1.bf16.msra.mxu0 0
  %3071 = vmatprep.subr.bf16.mxu0 0
  %3072 = vmatpush1.bf16.msra.mxu0 0
  %3073 = vmatprep.subr.bf16.mxu0 0
  %3074 = vmatpush1.bf16.msra.mxu0 0
  %3075 = vmatprep.subr.bf16.mxu0 0
  %3076 = vmatpush1.bf16.msra.mxu0 0
  %3077 = vmatprep.mubr.bf16.mxu0 0
  %3078 = vmatmul.mubr.bf16.gmra.mrb[0].mxu0 %v2961
  %v3079 = vpop.f32.mrb[0].mxu0
  %v3080 = vadd.f32 0.0, %v3079
  %v3081 = vpop.f32.mrb[0].mxu0
  %v3082 = vpop.f32.mrb[0].mxu0
  %v3083 = vadd.f32 0.0, %v3082
  %v3084 = vpop.f32.mrb[0].mxu0
  %3085 = vmatprep.mubr.bf16.mxu0 0
  %3086 = vmatmul.mubr.bf16.gmra.mrb[0].mxu0 %v2962
  %v3087 = vpop.f32.mrb[0].mxu0
  %v3088 = vadd.f32 0.0, %v3087
  %v3089 = vpop.f32.mrb[0].mxu0
  %v3090 = vpop.f32.mrb[0].mxu0
  %v3091 = vadd.f32 0.0, %v3090
  %v3092 = vpop.f32.mrb[0].mxu0
  %3093 = vdwg.mxu0
  %v3110 = vunpack.c.l.b16 %v2965
  %v3111 = vunpack.c.l.b16 %v2966
  %v3112 = vunpack.c.l.b16 %v2967
  %v3113 = vunpack.c.l.b16 %v2968
  %v3114 = vunpack.c.l.b16 %v2969
  %v3115 = vunpack.c.l.b16 %v2970
  %v3116 = vunpack.c.l.b16 %v2971
  %v3117 = vunpack.c.l.b16 %v2972
  %v3118 = vunpack.c.l.b16 %v2973
  %v3119 = vunpack.c.l.b16 %v2974
  %v3120 = vunpack.c.l.b16 %v2975
  %v3121 = vunpack.c.l.b16 %v2976
  %v3122 = vunpack.c.l.b16 %v2977
  %v3123 = vunpack.c.l.b16 %v2978
  %v3124 = vunpack.c.l.b16 %v2979
  %v3125 = vunpack.c.l.b16 %v2980
  %v3126 = vpack.c.b16 %v3111, %v3110
  %v3127 = vpack.c.b16 %v3113, %v3112
  %v3128 = vpack.c.b16 %v3115, %v3114
  %v3129 = vpack.c.b16 %v3117, %v3116
  %v3130 = vpack.c.b16 %v3119, %v3118
  %v3131 = vpack.c.b16 %v3121, %v3120
  %v3132 = vpack.c.b16 %v3123, %v3122
  %v3133 = vpack.c.b16 %v3125, %v3124
  %3142 = vmatprep.subr.bf16.mxu0 0
  %3143 = vmatpush1.bf16.msra.mxu0 %v3126
  %3144 = vmatprep.subr.bf16.mxu0 0
  %3145 = vmatpush1.bf16.msra.mxu0 %v3127
  %3146 = vmatprep.subr.bf16.mxu0 0
  %3147 = vmatpush1.bf16.msra.mxu0 %v3128
  %3148 = vmatprep.subr.bf16.mxu0 0
  %3149 = vmatpush1.bf16.msra.mxu0 %v3129
  %3150 = vmatprep.subr.bf16.mxu0 0
  %3151 = vmatpush1.bf16.msra.mxu0 %v3130
  %3152 = vmatprep.subr.bf16.mxu0 0
  %3153 = vmatpush1.bf16.msra.mxu0 %v3131
  %3154 = vmatprep.subr.bf16.mxu0 0
  %3155 = vmatpush1.bf16.msra.mxu0 %v3132
  %3156 = vmatprep.subr.bf16.mxu0 0
  %3157 = vmatpush1.bf16.msra.mxu0 %v3133
  %3158 = vmatprep.subr.bf16.mxu0 0
  %3159 = vmatpush1.bf16.msra.mxu0 0
  %3160 = vmatprep.subr.bf16.mxu0 0
  %3161 = vmatpush1.bf16.msra.mxu0 0
  %3162 = vmatprep.subr.bf16.mxu0 0
  %3163 = vmatpush1.bf16.msra.mxu0 0
  %3164 = vmatprep.subr.bf16.mxu0 0
  %3165 = vmatpush1.bf16.msra.mxu0 0
  %3166 = vmatprep.subr.bf16.mxu0 0
  %3167 = vmatpush1.bf16.msra.mxu0 0
  %3168 = vmatprep.subr.bf16.mxu0 0
  %3169 = vmatpush1.bf16.msra.mxu0 0
  %3170 = vmatprep.subr.bf16.mxu0 0
  %3171 = vmatpush1.bf16.msra.mxu0 0
  %3172 = vmatprep.subr.bf16.mxu0 0
  %3173 = vmatpush1.bf16.msra.mxu0 0
  %3174 = vmatprep.mubr.bf16.mxu0 0
  %3175 = vmatmul.mubr.bf16.gmra.mrb[0].mxu0 %v2959
  %v3176 = vpop.f32.mrb[0].mxu0
  %v3177 = vadd.f32 %v3080, %v3176
  %v3178 = vpop.f32.mrb[0].mxu0
  %v3179 = vpop.f32.mrb[0].mxu0
  %v3180 = vadd.f32 %v3083, %v3179
  %v3181 = vpop.f32.mrb[0].mxu0
  %3182 = vmatprep.mubr.bf16.mxu0 0
  %3183 = vmatmul.mubr.bf16.gmra.mrb[0].mxu0 %v2960
  %v3184 = vpop.f32.mrb[0].mxu0
  %v3185 = vadd.f32 %v3088, %v3184
  %v3186 = vpop.f32.mrb[0].mxu0
  %v3187 = vpop.f32.mrb[0].mxu0
  %v3188 = vadd.f32 %v3091, %v3187
  %v3189 = vpop.f32.mrb[0].mxu0
  %3190 = vdwg.mxu0
  %v3191 = vld [vmem:[%s5 + $0x80] sm:$0xf]
  %v3192 = vld [vmem:[%s5 + $0x84] sm:$0xf]
  %v3193 = vld [vmem:[%s5 + $0x88] sm:$0xf]
  %v3194 = vld [vmem:[%s5 + $0x8c] sm:$0xf]
  %v3195 = vld [vmem:[%s5 + $0x90] sm:$0xf]
  %v3196 = vld [vmem:[%s5 + $0x94] sm:$0xf]
  %v3197 = vld [vmem:[%s5 + $0x98] sm:$0xf]
  %v3198 = vld [vmem:[%s5 + $0x9c] sm:$0xf]
  %v3199 = vld [vmem:[%s5 + $0xa0] sm:$0xf]
  %v3200 = vld [vmem:[%s5 + $0xa4] sm:$0xf]
  %v3201 = vld [vmem:[%s5 + $0xa8] sm:$0xf]
  %v3202 = vld [vmem:[%s5 + $0xac] sm:$0xf]
  %v3203 = vld [vmem:[%s5 + $0xb0] sm:$0xf]
  %v3204 = vld [vmem:[%s5 + $0xb4] sm:$0xf]
  %v3205 = vld [vmem:[%s5 + $0xb8] sm:$0xf]
  %v3206 = vld [vmem:[%s5 + $0xbc] sm:$0xf]
  %v3207 = vld [vmem:[%s5 + $0xc0] sm:$0xf]
  %v3208 = vld [vmem:[%s5 + $0xc4] sm:$0xf]
  %v3209 = vld [vmem:[%s5 + $0xc8] sm:$0xf]
  %v3210 = vld [vmem:[%s5 + $0xcc] sm:$0xf]
  %v3211 = vld [vmem:[%s5 + $0xd0] sm:$0xf]
  %v3212 = vld [vmem:[%s5 + $0xd4] sm:$0xf]
  %v3213 = vld [vmem:[%s5 + $0xd8] sm:$0xf]
  %v3214 = vld [vmem:[%s5 + $0xdc] sm:$0xf]
  %v3215 = vld [vmem:[%s5 + $0xe0] sm:$0xf]
  %v3216 = vld [vmem:[%s5 + $0xe4] sm:$0xf]
  %v3217 = vld [vmem:[%s5 + $0xe8] sm:$0xf]
  %v3218 = vld [vmem:[%s5 + $0xec] sm:$0xf]
  %v3219 = vld [vmem:[%s5 + $0xf0] sm:$0xf]
  %v3220 = vld [vmem:[%s5 + $0xf4] sm:$0xf]
  %v3221 = vld [vmem:[%s5 + $0xf8] sm:$0xf]
  %v3222 = vld [vmem:[%s5 + $0xfc] sm:$0xf]
  %v3239 = vunpack.c.l.b16 %v3207
  %v3240 = vunpack.c.l.b16 %v3208
  %v3241 = vunpack.c.l.b16 %v3209
  %v3242 = vunpack.c.l.b16 %v3210
  %v3243 = vunpack.c.l.b16 %v3211
  %v3244 = vunpack.c.l.b16 %v3212
  %v3245 = vunpack.c.l.b16 %v3213
  %v3246 = vunpack.c.l.b16 %v3214
  %v3247 = vunpack.c.l.b16 %v3215
  %v3248 = vunpack.c.l.b16 %v3216
  %v3249 = vunpack.c.l.b16 %v3217
  %v3250 = vunpack.c.l.b16 %v3218
  %v3251 = vunpack.c.l.b16 %v3219
  %v3252 = vunpack.c.l.b16 %v3220
  %v3253 = vunpack.c.l.b16 %v3221
  %v3254 = vunpack.c.l.b16 %v3222
  %v3255 = vpack.c.b16 %v3240, %v3239
  %v3256 = vpack.c.b16 %v3242, %v3241
  %v3257 = vpack.c.b16 %v3244, %v3243
  %v3258 = vpack.c.b16 %v3246, %v3245
  %v3259 = vpack.c.b16 %v3248, %v3247
  %v3260 = vpack.c.b16 %v3250, %v3249
  %v3261 = vpack.c.b16 %v3252, %v3251
  %v3262 = vpack.c.b16 %v3254, %v3253
  %3271 = vmatprep.subr.bf16.mxu0 0
  %3272 = vmatpush1.bf16.msra.mxu0 %v3255
  %3273 = vmatprep.subr.bf16.mxu0 0
  %3274 = vmatpush1.bf16.msra.mxu0 %v3256
  %3275 = vmatprep.subr.bf16.mxu0 0
  %3276 = vmatpush1.bf16.msra.mxu0 %v3257
  %3277 = vmatprep.subr.bf16.mxu0 0
  %3278 = vmatpush1.bf16.msra.mxu0 %v3258
  %3279 = vmatprep.subr.bf16.mxu0 0
  %3280 = vmatpush1.bf16.msra.mxu0 %v3259
  %3281 = vmatprep.subr.bf16.mxu0 0
  %3282 = vmatpush1.bf16.msra.mxu0 %v3260
  %3283 = vmatprep.subr.bf16.mxu0 0
  %3284 = vmatpush1.bf16.msra.mxu0 %v3261
  %3285 = vmatprep.subr.bf16.mxu0 0
  %3286 = vmatpush1.bf16.msra.mxu0 %v3262
  %3287 = vmatprep.subr.bf16.mxu0 0
  %3288 = vmatpush1.bf16.msra.mxu0 0
  %3289 = vmatprep.subr.bf16.mxu0 0
  %3290 = vmatpush1.bf16.msra.mxu0 0
  %3291 = vmatprep.subr.bf16.mxu0 0
  %3292 = vmatpush1.bf16.msra.mxu0 0
  %3293 = vmatprep.subr.bf16.mxu0 0
  %3294 = vmatpush1.bf16.msra.mxu0 0
  %3295 = vmatprep.subr.bf16.mxu0 0
  %3296 = vmatpush1.bf16.msra.mxu0 0
  %3297 = vmatprep.subr.bf16.mxu0 0
  %3298 = vmatpush1.bf16.msra.mxu0 0
  %3299 = vmatprep.subr.bf16.mxu0 0
  %3300 = vmatpush1.bf16.msra.mxu0 0
  %3301 = vmatprep.subr.bf16.mxu0 0
  %3302 = vmatpush1.bf16.msra.mxu0 0
  %3303 = vmatprep.mubr.bf16.mxu0 0
  %3304 = vmatmul.mubr.bf16.gmra.mrb[0].mxu0 %v2959
  %v3305 = vpop.f32.mrb[0].mxu0
  %v3306 = vadd.f32 0.0, %v3305
  %v3307 = vpop.f32.mrb[0].mxu0
  %v3308 = vpop.f32.mrb[0].mxu0
  %v3309 = vadd.f32 0.0, %v3308
  %v3310 = vpop.f32.mrb[0].mxu0
  %3311 = vmatprep.mubr.bf16.mxu0 0
  %3312 = vmatmul.mubr.bf16.gmra.mrb[0].mxu0 %v2960
  %v3313 = vpop.f32.mrb[0].mxu0
  %v3314 = vadd.f32 0.0, %v3313
  %v3315 = vpop.f32.mrb[0].mxu0
  %v3316 = vpop.f32.mrb[0].mxu0
  %v3317 = vadd.f32 0.0, %v3316
  %v3318 = vpop.f32.mrb[0].mxu0
  %3319 = vdwg.mxu0
  %v3336 = vunpack.c.l.b16 %v3191
  %v3337 = vunpack.c.l.b16 %v3192
  %v3338 = vunpack.c.l.b16 %v3193
  %v3339 = vunpack.c.l.b16 %v3194
  %v3340 = vunpack.c.l.b16 %v3195
  %v3341 = vunpack.c.l.b16 %v3196
  %v3342 = vunpack.c.l.b16 %v3197
  %v3343 = vunpack.c.l.b16 %v3198
  %v3344 = vunpack.c.l.b16 %v3199
  %v3345 = vunpack.c.l.b16 %v3200
  %v3346 = vunpack.c.l.b16 %v3201
  %v3347 = vunpack.c.l.b16 %v3202
  %v3348 = vunpack.c.l.b16 %v3203
  %v3349 = vunpack.c.l.b16 %v3204
  %v3350 = vunpack.c.l.b16 %v3205
  %v3351 = vunpack.c.l.b16 %v3206
  %v3352 = vpack.c.b16 %v3337, %v3336
  %v3353 = vpack.c.b16 %v3339, %v3338
  %v3354 = vpack.c.b16 %v3341, %v3340
  %v3355 = vpack.c.b16 %v3343, %v3342
  %v3356 = vpack.c.b16 %v3345, %v3344
  %v3357 = vpack.c.b16 %v3347, %v3346
  %v3358 = vpack.c.b16 %v3349, %v3348
  %v3359 = vpack.c.b16 %v3351, %v3350
  %3368 = vmatprep.subr.bf16.mxu0 0
  %3369 = vmatpush1.bf16.msra.mxu0 %v3352
  %3370 = vmatprep.subr.bf16.mxu0 0
  %3371 = vmatpush1.bf16.msra.mxu0 %v3353
  %3372 = vmatprep.subr.bf16.mxu0 0
  %3373 = vmatpush1.bf16.msra.mxu0 %v3354
  %3374 = vmatprep.subr.bf16.mxu0 0
  %3375 = vmatpush1.bf16.msra.mxu0 %v3355
  %3376 = vmatprep.subr.bf16.mxu0 0
  %3377 = vmatpush1.bf16.msra.mxu0 %v3356
  %3378 = vmatprep.subr.bf16.mxu0 0
  %3379 = vmatpush1.bf16.msra.mxu0 %v3357
  %3380 = vmatprep.subr.bf16.mxu0 0
  %3381 = vmatpush1.bf16.msra.mxu0 %v3358
  %3382 = vmatprep.subr.bf16.mxu0 0
  %3383 = vmatpush1.bf16.msra.mxu0 %v3359
  %3384 = vmatprep.subr.bf16.mxu0 0
  %3385 = vmatpush1.bf16.msra.mxu0 0
  %3386 = vmatprep.subr.bf16.mxu0 0
  %3387 = vmatpush1.bf16.msra.mxu0 0
  %3388 = vmatprep.subr.bf16.mxu0 0
  %3389 = vmatpush1.bf16.msra.mxu0 0
  %3390 = vmatprep.subr.bf16.mxu0 0
  %3391 = vmatpush1.bf16.msra.mxu0 0
  %3392 = vmatprep.subr.bf16.mxu0 0
  %3393 = vmatpush1.bf16.msra.mxu0 0
  %3394 = vmatprep.subr.bf16.mxu0 0
  %3395 = vmatpush1.bf16.msra.mxu0 0
  %3396 = vmatprep.subr.bf16.mxu0 0
  %3397 = vmatpush1.bf16.msra.mxu0 0
  %3398 = vmatprep.subr.bf16.mxu0 0
  %3399 = vmatpush1.bf16.msra.mxu0 0
  %3400 = vmatprep.mubr.bf16.mxu0 0
  %3401 = vmatmul.mubr.bf16.gmra.mrb[0].mxu0 %v2963
  %v3402 = vpop.f32.mrb[0].mxu0
  %v3403 = vadd.f32 %v3306, %v3402
  %v3404 = vpop.f32.mrb[0].mxu0
  %v3405 = vpop.f32.mrb[0].mxu0
  %v3406 = vadd.f32 %v3309, %v3405
  %v3407 = vpop.f32.mrb[0].mxu0
  %3408 = vmatprep.mubr.bf16.mxu0 0
  %3409 = vmatmul.mubr.bf16.gmra.mrb[0].mxu0 %v2964
  %v3410 = vpop.f32.mrb[0].mxu0
  %v3411 = vadd.f32 %v3314, %v3410
  %v3412 = vpop.f32.mrb[0].mxu0
  %v3413 = vpop.f32.mrb[0].mxu0
  %v3414 = vadd.f32 %v3317, %v3413
  %v3415 = vpop.f32.mrb[0].mxu0
  %3416 = vdwg.mxu0
  %v3417 = vld [vmem:[%s6] sm:$0xf]
  %v3418 = vld [vmem:[%s6 + $0x4] sm:$0xf]
  %v3419 = vld [vmem:[%s6 + $0x8] sm:$0xf]
  %v3420 = vld [vmem:[%s6 + $0xc] sm:$0xf]
  %v3421 = vld [vmem:[%s6 + $0x10] sm:$0xf]
  %v3422 = vld [vmem:[%s6 + $0x14] sm:$0xf]
  %v3423 = vld [vmem:[%s6 + $0x18] sm:$0xf]
  %v3424 = vld [vmem:[%s6 + $0x1c] sm:$0xf]
  %v3425 = vld [vmem:[%s6 + $0x20] sm:$0xf]
  %v3426 = vld [vmem:[%s6 + $0x24] sm:$0xf]
  %v3427 = vld [vmem:[%s6 + $0x28] sm:$0xf]
  %v3428 = vld [vmem:[%s6 + $0x2c] sm:$0xf]
  %v3429 = vld [vmem:[%s6 + $0x30] sm:$0xf]
  %v3430 = vld [vmem:[%s6 + $0x34] sm:$0xf]
  %v3431 = vld [vmem:[%s6 + $0x38] sm:$0xf]
  %v3432 = vld [vmem:[%s6 + $0x3c] sm:$0xf]
  %v3433 = vld [vmem:[%s6 + $0x40] sm:$0xf]
  %v3434 = vld [vmem:[%s6 + $0x44] sm:$0xf]
  %v3435 = vld [vmem:[%s6 + $0x48] sm:$0xf]
  %v3436 = vld [vmem:[%s6 + $0x4c] sm:$0xf]
  %v3437 = vld [vmem:[%s6 + $0x50] sm:$0xf]
  %v3438 = vld [vmem:[%s6 + $0x54] sm:$0xf]
  %v3439 = vld [vmem:[%s6 + $0x58] sm:$0xf]
  %v3440 = vld [vmem:[%s6 + $0x5c] sm:$0xf]
  %v3441 = vld [vmem:[%s6 + $0x60] sm:$0xf]
  %v3442 = vld [vmem:[%s6 + $0x64] sm:$0xf]
  %v3443 = vld [vmem:[%s6 + $0x68] sm:$0xf]
  %v3444 = vld [vmem:[%s6 + $0x6c] sm:$0xf]
  %v3445 = vld [vmem:[%s6 + $0x70] sm:$0xf]
  %v3446 = vld [vmem:[%s6 + $0x74] sm:$0xf]
  %v3447 = vld [vmem:[%s6 + $0x78] sm:$0xf]
  %v3448 = vld [vmem:[%s6 + $0x7c] sm:$0xf]
  %v3465 = vunpack.c.l.b16 %v3433
  %v3466 = vunpack.c.l.b16 %v3434
  %v3467 = vunpack.c.l.b16 %v3435
  %v3468 = vunpack.c.l.b16 %v3436
  %v3469 = vunpack.c.l.b16 %v3437
  %v3470 = vunpack.c.l.b16 %v3438
  %v3471 = vunpack.c.l.b16 %v3439
  %v3472 = vunpack.c.l.b16 %v3440
  %v3473 = vunpack.c.l.b16 %v3441
  %v3474 = vunpack.c.l.b16 %v3442
  %v3475 = vunpack.c.l.b16 %v3443
  %v3476 = vunpack.c.l.b16 %v3444
  %v3477 = vunpack.c.l.b16 %v3445
  %v3478 = vunpack.c.l.b16 %v3446
  %v3479 = vunpack.c.l.b16 %v3447
  %v3480 = vunpack.c.l.b16 %v3448
  %v3481 = vpack.c.b16 %v3466, %v3465
  %v3482 = vpack.c.b16 %v3468, %v3467
  %v3483 = vpack.c.b16 %v3470, %v3469
  %v3484 = vpack.c.b16 %v3472, %v3471
  %v3485 = vpack.c.b16 %v3474, %v3473
  %v3486 = vpack.c.b16 %v3476, %v3475
  %v3487 = vpack.c.b16 %v3478, %v3477
  %v3488 = vpack.c.b16 %v3480, %v3479
  %3497 = vmatprep.subr.bf16.mxu0 0
  %3498 = vmatpush1.bf16.msra.mxu0 %v3481
  %3499 = vmatprep.subr.bf16.mxu0 0
  %3500 = vmatpush1.bf16.msra.mxu0 %v3482
  %3501 = vmatprep.subr.bf16.mxu0 0
  %3502 = vmatpush1.bf16.msra.mxu0 %v3483
  %3503 = vmatprep.subr.bf16.mxu0 0
  %3504 = vmatpush1.bf16.msra.mxu0 %v3484
  %3505 = vmatprep.subr.bf16.mxu0 0
  %3506 = vmatpush1.bf16.msra.mxu0 %v3485
  %3507 = vmatprep.subr.bf16.mxu0 0
  %3508 = vmatpush1.bf16.msra.mxu0 %v3486
  %3509 = vmatprep.subr.bf16.mxu0 0
  %3510 = vmatpush1.bf16.msra.mxu0 %v3487
  %3511 = vmatprep.subr.bf16.mxu0 0
  %3512 = vmatpush1.bf16.msra.mxu0 %v3488
  %3513 = vmatprep.subr.bf16.mxu0 0
  %3514 = vmatpush1.bf16.msra.mxu0 0
  %3515 = vmatprep.subr.bf16.mxu0 0
  %3516 = vmatpush1.bf16.msra.mxu0 0
  %3517 = vmatprep.subr.bf16.mxu0 0
  %3518 = vmatpush1.bf16.msra.mxu0 0
  %3519 = vmatprep.subr.bf16.mxu0 0
  %3520 = vmatpush1.bf16.msra.mxu0 0
  %3521 = vmatprep.subr.bf16.mxu0 0
  %3522 = vmatpush1.bf16.msra.mxu0 0
  %3523 = vmatprep.subr.bf16.mxu0 0
  %3524 = vmatpush1.bf16.msra.mxu0 0
  %3525 = vmatprep.subr.bf16.mxu0 0
  %3526 = vmatpush1.bf16.msra.mxu0 0
  %3527 = vmatprep.subr.bf16.mxu0 0
  %3528 = vmatpush1.bf16.msra.mxu0 0
  %3529 = vmatprep.mubr.bf16.mxu0 0
  %3530 = vmatmul.mubr.bf16.gmra.mrb[0].mxu0 %v1702
  %v3531 = vpop.f32.mrb[0].mxu0
  %v3532 = vadd.f32 0.0, %v3531
  %v3533 = vpop.f32.mrb[0].mxu0
  %v3534 = vpop.f32.mrb[0].mxu0
  %v3535 = vadd.f32 0.0, %v3534
  %v3536 = vpop.f32.mrb[0].mxu0
  %3537 = vmatprep.mubr.bf16.mxu0 0
  %3538 = vmatmul.mubr.bf16.gmra.mrb[0].mxu0 %v1703
  %v3539 = vpop.f32.mrb[0].mxu0
  %v3540 = vadd.f32 0.0, %v3539
  %v3541 = vpop.f32.mrb[0].mxu0
  %v3542 = vpop.f32.mrb[0].mxu0
  %v3543 = vadd.f32 0.0, %v3542
  %v3544 = vpop.f32.mrb[0].mxu0
  %3545 = vdwg.mxu0
  %v3562 = vunpack.c.l.b16 %v3417
  %v3563 = vunpack.c.l.b16 %v3418
  %v3564 = vunpack.c.l.b16 %v3419
  %v3565 = vunpack.c.l.b16 %v3420
  %v3566 = vunpack.c.l.b16 %v3421
  %v3567 = vunpack.c.l.b16 %v3422
  %v3568 = vunpack.c.l.b16 %v3423
  %v3569 = vunpack.c.l.b16 %v3424
  %v3570 = vunpack.c.l.b16 %v3425
  %v3571 = vunpack.c.l.b16 %v3426
  %v3572 = vunpack.c.l.b16 %v3427
  %v3573 = vunpack.c.l.b16 %v3428
  %v3574 = vunpack.c.l.b16 %v3429
  %v3575 = vunpack.c.l.b16 %v3430
  %v3576 = vunpack.c.l.b16 %v3431
  %v3577 = vunpack.c.l.b16 %v3432
  %v3578 = vpack.c.b16 %v3563, %v3562
  %v3579 = vpack.c.b16 %v3565, %v3564
  %v3580 = vpack.c.b16 %v3567, %v3566
  %v3581 = vpack.c.b16 %v3569, %v3568
  %v3582 = vpack.c.b16 %v3571, %v3570
  %v3583 = vpack.c.b16 %v3573, %v3572
  %v3584 = vpack.c.b16 %v3575, %v3574
  %v3585 = vpack.c.b16 %v3577, %v3576
  %3594 = vmatprep.subr.bf16.mxu0 0
  %3595 = vmatpush1.bf16.msra.mxu0 %v3578
  %3596 = vmatprep.subr.bf16.mxu0 0
  %3597 = vmatpush1.bf16.msra.mxu0 %v3579
  %3598 = vmatprep.subr.bf16.mxu0 0
  %3599 = vmatpush1.bf16.msra.mxu0 %v3580
  %3600 = vmatprep.subr.bf16.mxu0 0
  %3601 = vmatpush1.bf16.msra.mxu0 %v3581
  %3602 = vmatprep.subr.bf16.mxu0 0
  %3603 = vmatpush1.bf16.msra.mxu0 %v3582
  %3604 = vmatprep.subr.bf16.mxu0 0
  %3605 = vmatpush1.bf16.msra.mxu0 %v3583
  %3606 = vmatprep.subr.bf16.mxu0 0
  %3607 = vmatpush1.bf16.msra.mxu0 %v3584
  %3608 = vmatprep.subr.bf16.mxu0 0
  %3609 = vmatpush1.bf16.msra.mxu0 %v3585
  %3610 = vmatprep.subr.bf16.mxu0 0
  %3611 = vmatpush1.bf16.msra.mxu0 0
  %3612 = vmatprep.subr.bf16.mxu0 0
  %3613 = vmatpush1.bf16.msra.mxu0 0
  %3614 = vmatprep.subr.bf16.mxu0 0
  %3615 = vmatpush1.bf16.msra.mxu0 0
  %3616 = vmatprep.subr.bf16.mxu0 0
  %3617 = vmatpush1.bf16.msra.mxu0 0
  %3618 = vmatprep.subr.bf16.mxu0 0
  %3619 = vmatpush1.bf16.msra.mxu0 0
  %3620 = vmatprep.subr.bf16.mxu0 0
  %3621 = vmatpush1.bf16.msra.mxu0 0
  %3622 = vmatprep.subr.bf16.mxu0 0
  %3623 = vmatpush1.bf16.msra.mxu0 0
  %3624 = vmatprep.subr.bf16.mxu0 0
  %3625 = vmatpush1.bf16.msra.mxu0 0
  %3626 = vmatprep.mubr.bf16.mxu0 0
  %3627 = vmatmul.mubr.bf16.gmra.mrb[0].mxu0 %v1720
  %v3628 = vpop.f32.mrb[0].mxu0
  %v3629 = vadd.f32 %v3532, %v3628
  %v3630 = vpop.f32.mrb[0].mxu0
  %v3631 = vpop.f32.mrb[0].mxu0
  %v3632 = vadd.f32 %v3535, %v3631
  %v3633 = vpop.f32.mrb[0].mxu0
  %3634 = vmatprep.mubr.bf16.mxu0 0
  %3635 = vmatmul.mubr.bf16.gmra.mrb[0].mxu0 %v1721
  %v3636 = vpop.f32.mrb[0].mxu0
  %v3637 = vadd.f32 %v3540, %v3636
  %v3638 = vpop.f32.mrb[0].mxu0
  %v3639 = vpop.f32.mrb[0].mxu0
  %v3640 = vadd.f32 %v3543, %v3639
  %v3641 = vpop.f32.mrb[0].mxu0
  %3642 = vdwg.mxu0
  %v3643 = vld [vmem:[%s6 + $0x80] sm:$0xf]
  %v3644 = vld [vmem:[%s6 + $0x84] sm:$0xf]
  %v3645 = vld [vmem:[%s6 + $0x88] sm:$0xf]
  %v3646 = vld [vmem:[%s6 + $0x8c] sm:$0xf]
  %v3647 = vld [vmem:[%s6 + $0x90] sm:$0xf]
  %v3648 = vld [vmem:[%s6 + $0x94] sm:$0xf]
  %v3649 = vld [vmem:[%s6 + $0x98] sm:$0xf]
  %v3650 = vld [vmem:[%s6 + $0x9c] sm:$0xf]
  %v3651 = vld [vmem:[%s6 + $0xa0] sm:$0xf]
  %v3652 = vld [vmem:[%s6 + $0xa4] sm:$0xf]
  %v3653 = vld [vmem:[%s6 + $0xa8] sm:$0xf]
  %v3654 = vld [vmem:[%s6 + $0xac] sm:$0xf]
  %v3655 = vld [vmem:[%s6 + $0xb0] sm:$0xf]
  %v3656 = vld [vmem:[%s6 + $0xb4] sm:$0xf]
  %v3657 = vld [vmem:[%s6 + $0xb8] sm:$0xf]
  %v3658 = vld [vmem:[%s6 + $0xbc] sm:$0xf]
  %v3659 = vld [vmem:[%s6 + $0xc0] sm:$0xf]
  %v3660 = vld [vmem:[%s6 + $0xc4] sm:$0xf]
  %v3661 = vld [vmem:[%s6 + $0xc8] sm:$0xf]
  %v3662 = vld [vmem:[%s6 + $0xcc] sm:$0xf]
  %v3663 = vld [vmem:[%s6 + $0xd0] sm:$0xf]
  %v3664 = vld [vmem:[%s6 + $0xd4] sm:$0xf]
  %v3665 = vld [vmem:[%s6 + $0xd8] sm:$0xf]
  %v3666 = vld [vmem:[%s6 + $0xdc] sm:$0xf]
  %v3667 = vld [vmem:[%s6 + $0xe0] sm:$0xf]
  %v3668 = vld [vmem:[%s6 + $0xe4] sm:$0xf]
  %v3669 = vld [vmem:[%s6 + $0xe8] sm:$0xf]
  %v3670 = vld [vmem:[%s6 + $0xec] sm:$0xf]
  %v3671 = vld [vmem:[%s6 + $0xf0] sm:$0xf]
  %v3672 = vld [vmem:[%s6 + $0xf4] sm:$0xf]
  %v3673 = vld [vmem:[%s6 + $0xf8] sm:$0xf]
  %v3674 = vld [vmem:[%s6 + $0xfc] sm:$0xf]
  %v3691 = vunpack.c.l.b16 %v3659
  %v3692 = vunpack.c.l.b16 %v3660
  %v3693 = vunpack.c.l.b16 %v3661
  %v3694 = vunpack.c.l.b16 %v3662
  %v3695 = vunpack.c.l.b16 %v3663
  %v3696 = vunpack.c.l.b16 %v3664
  %v3697 = vunpack.c.l.b16 %v3665
  %v3698 = vunpack.c.l.b16 %v3666
  %v3699 = vunpack.c.l.b16 %v3667
  %v3700 = vunpack.c.l.b16 %v3668
  %v3701 = vunpack.c.l.b16 %v3669
  %v3702 = vunpack.c.l.b16 %v3670
  %v3703 = vunpack.c.l.b16 %v3671
  %v3704 = vunpack.c.l.b16 %v3672
  %v3705 = vunpack.c.l.b16 %v3673
  %v3706 = vunpack.c.l.b16 %v3674
  %v3707 = vpack.c.b16 %v3692, %v3691
  %v3708 = vpack.c.b16 %v3694, %v3693
  %v3709 = vpack.c.b16 %v3696, %v3695
  %v3710 = vpack.c.b16 %v3698, %v3697
  %v3711 = vpack.c.b16 %v3700, %v3699
  %v3712 = vpack.c.b16 %v3702, %v3701
  %v3713 = vpack.c.b16 %v3704, %v3703
  %v3714 = vpack.c.b16 %v3706, %v3705
  %3723 = vmatprep.subr.bf16.mxu0 0
  %3724 = vmatpush1.bf16.msra.mxu0 %v3707
  %3725 = vmatprep.subr.bf16.mxu0 0
  %3726 = vmatpush1.bf16.msra.mxu0 %v3708
  %3727 = vmatprep.subr.bf16.mxu0 0
  %3728 = vmatpush1.bf16.msra.mxu0 %v3709
  %3729 = vmatprep.subr.bf16.mxu0 0
  %3730 = vmatpush1.bf16.msra.mxu0 %v3710
  %3731 = vmatprep.subr.bf16.mxu0 0
  %3732 = vmatpush1.bf16.msra.mxu0 %v3711
  %3733 = vmatprep.subr.bf16.mxu0 0
  %3734 = vmatpush1.bf16.msra.mxu0 %v3712
  %3735 = vmatprep.subr.bf16.mxu0 0
  %3736 = vmatpush1.bf16.msra.mxu0 %v3713
  %3737 = vmatprep.subr.bf16.mxu0 0
  %3738 = vmatpush1.bf16.msra.mxu0 %v3714
  %3739 = vmatprep.subr.bf16.mxu0 0
  %3740 = vmatpush1.bf16.msra.mxu0 0
  %3741 = vmatprep.subr.bf16.mxu0 0
  %3742 = vmatpush1.bf16.msra.mxu0 0
  %3743 = vmatprep.subr.bf16.mxu0 0
  %3744 = vmatpush1.bf16.msra.mxu0 0
  %3745 = vmatprep.subr.bf16.mxu0 0
  %3746 = vmatpush1.bf16.msra.mxu0 0
  %3747 = vmatprep.subr.bf16.mxu0 0
  %3748 = vmatpush1.bf16.msra.mxu0 0
  %3749 = vmatprep.subr.bf16.mxu0 0
  %3750 = vmatpush1.bf16.msra.mxu0 0
  %3751 = vmatprep.subr.bf16.mxu0 0
  %3752 = vmatpush1.bf16.msra.mxu0 0
  %3753 = vmatprep.subr.bf16.mxu0 0
  %3754 = vmatpush1.bf16.msra.mxu0 0
  %3755 = vmatprep.mubr.bf16.mxu0 0
  %3756 = vmatmul.mubr.bf16.gmra.mrb[0].mxu0 %v1720
  %v3757 = vpop.f32.mrb[0].mxu0
  %v3758 = vadd.f32 0.0, %v3757
  %v3759 = vpop.f32.mrb[0].mxu0
  %v3760 = vpop.f32.mrb[0].mxu0
  %v3761 = vadd.f32 0.0, %v3760
  %v3762 = vpop.f32.mrb[0].mxu0
  %3763 = vmatprep.mubr.bf16.mxu0 0
  %3764 = vmatmul.mubr.bf16.gmra.mrb[0].mxu0 %v1721
  %v3765 = vpop.f32.mrb[0].mxu0
  %v3766 = vadd.f32 0.0, %v3765
  %v3767 = vpop.f32.mrb[0].mxu0
  %v3768 = vpop.f32.mrb[0].mxu0
  %v3769 = vadd.f32 0.0, %v3768
  %v3770 = vpop.f32.mrb[0].mxu0
  %3771 = vdwg.mxu0
  %v3788 = vunpack.c.l.b16 %v3643
  %v3789 = vunpack.c.l.b16 %v3644
  %v3790 = vunpack.c.l.b16 %v3645
  %v3791 = vunpack.c.l.b16 %v3646
  %v3792 = vunpack.c.l.b16 %v3647
  %v3793 = vunpack.c.l.b16 %v3648
  %v3794 = vunpack.c.l.b16 %v3649
  %v3795 = vunpack.c.l.b16 %v3650
  %v3796 = vunpack.c.l.b16 %v3651
  %v3797 = vunpack.c.l.b16 %v3652
  %v3798 = vunpack.c.l.b16 %v3653
  %v3799 = vunpack.c.l.b16 %v3654
  %v3800 = vunpack.c.l.b16 %v3655
  %v3801 = vunpack.c.l.b16 %v3656
  %v3802 = vunpack.c.l.b16 %v3657
  %v3803 = vunpack.c.l.b16 %v3658
  %v3804 = vpack.c.b16 %v3789, %v3788
  %v3805 = vpack.c.b16 %v3791, %v3790
  %v3806 = vpack.c.b16 %v3793, %v3792
  %v3807 = vpack.c.b16 %v3795, %v3794
  %v3808 = vpack.c.b16 %v3797, %v3796
  %v3809 = vpack.c.b16 %v3799, %v3798
  %v3810 = vpack.c.b16 %v3801, %v3800
  %v3811 = vpack.c.b16 %v3803, %v3802
  %3820 = vmatprep.subr.bf16.mxu0 0
  %3821 = vmatpush1.bf16.msra.mxu0 %v3804
  %3822 = vmatprep.subr.bf16.mxu0 0
  %3823 = vmatpush1.bf16.msra.mxu0 %v3805
  %3824 = vmatprep.subr.bf16.mxu0 0
  %3825 = vmatpush1.bf16.msra.mxu0 %v3806
  %3826 = vmatprep.subr.bf16.mxu0 0
  %3827 = vmatpush1.bf16.msra.mxu0 %v3807
  %3828 = vmatprep.subr.bf16.mxu0 0
  %3829 = vmatpush1.bf16.msra.mxu0 %v3808
  %3830 = vmatprep.subr.bf16.mxu0 0
  %3831 = vmatpush1.bf16.msra.mxu0 %v3809
  %3832 = vmatprep.subr.bf16.mxu0 0
  %3833 = vmatpush1.bf16.msra.mxu0 %v3810
  %3834 = vmatprep.subr.bf16.mxu0 0
  %3835 = vmatpush1.bf16.msra.mxu0 %v3811
  %3836 = vmatprep.subr.bf16.mxu0 0
  %3837 = vmatpush1.bf16.msra.mxu0 0
  %3838 = vmatprep.subr.bf16.mxu0 0
  %3839 = vmatpush1.bf16.msra.mxu0 0
  %3840 = vmatprep.subr.bf16.mxu0 0
  %3841 = vmatpush1.bf16.msra.mxu0 0
  %3842 = vmatprep.subr.bf16.mxu0 0
  %3843 = vmatpush1.bf16.msra.mxu0 0
  %3844 = vmatprep.subr.bf16.mxu0 0
  %3845 = vmatpush1.bf16.msra.mxu0 0
  %3846 = vmatprep.subr.bf16.mxu0 0
  %3847 = vmatpush1.bf16.msra.mxu0 0
  %3848 = vmatprep.subr.bf16.mxu0 0
  %3849 = vmatpush1.bf16.msra.mxu0 0
  %3850 = vmatprep.subr.bf16.mxu0 0
  %3851 = vmatpush1.bf16.msra.mxu0 0
  %3852 = vmatprep.mubr.bf16.mxu0 0
  %3853 = vmatmul.mubr.bf16.gmra.mrb[0].mxu0 %v1932
  %v3854 = vpop.f32.mrb[0].mxu0
  %v3855 = vadd.f32 %v3758, %v3854
  %v3856 = vpop.f32.mrb[0].mxu0
  %v3857 = vpop.f32.mrb[0].mxu0
  %v3858 = vadd.f32 %v3761, %v3857
  %v3859 = vpop.f32.mrb[0].mxu0
  %3860 = vmatprep.mubr.bf16.mxu0 0
  %3861 = vmatmul.mubr.bf16.gmra.mrb[0].mxu0 %v1933
  %v3862 = vpop.f32.mrb[0].mxu0
  %v3863 = vadd.f32 %v3766, %v3862
  %v3864 = vpop.f32.mrb[0].mxu0
  %v3865 = vpop.f32.mrb[0].mxu0
  %v3866 = vadd.f32 %v3769, %v3865
  %v3867 = vpop.f32.mrb[0].mxu0
  %3868 = vdwg.mxu0
  %v3869 = vadd.f32 %v3177, %v3629
  %v3870 = vadd.f32 %v3180, %v3632
  %v3871 = vadd.f32 %v3185, %v3637
  %v3872 = vadd.f32 %v3188, %v3640
  %v3873 = vadd.f32 %v3403, %v3855
  %v3874 = vadd.f32 %v3406, %v3858
  %v3875 = vadd.f32 %v3411, %v3863
  %v3876 = vadd.f32 %v3414, %v3866
  %v3877 = vpack.c.bf16 %v3870, %v3869
  %v3878 = vpack.c.bf16 %v3872, %v3871
  %v3879 = vpack.c.bf16 %v3874, %v3873
  %v3880 = vpack.c.bf16 %v3876, %v3875
  %vm3881 = vcmp.eq.s32.totalorder %v124, %v2663
  %vm3882 = vcmp.eq.s32.totalorder %v125, %v2663
  %v3883 = vsel %vm3881, 1, 0
  %v3884 = vsel %vm3882, 1, 0
  %v3885 = vcvt.s32.f32 %v3883
  %v3886 = vcvt.s32.f32 %v3884
  %v3887 = vpack.c.bf16 %v3886, %v3885
  %vm3888 = vcmp.eq.s32.totalorder %v124, %v2671
  %vm3889 = vcmp.eq.s32.totalorder %v125, %v2671
  %v3890 = vsel %vm3888, 1, 0
  %v3891 = vsel %vm3889, 1, 0
  %v3892 = vcvt.s32.f32 %v3890
  %v3893 = vcvt.s32.f32 %v3891
  %v3894 = vpack.c.bf16 %v3893, %v3892
  %v3895 = vsel %vm2139, %v2678, 0
  %v3898 = vsel %vm2139, %v3894, 0
  %3900 = vmatprep.subr.bf16.mxu0 0
  %3901 = vmatpush1.bf16.msra.mxu0 %v3879
  %3902 = vmatprep.subr.bf16.mxu0 0
  %3903 = vmatpush1.bf16.msra.mxu0 0
  %3904 = vmatprep.subr.bf16.mxu0 0
  %3905 = vmatpush1.bf16.msra.mxu0 0
  %3906 = vmatprep.subr.bf16.mxu0 0
  %3907 = vmatpush1.bf16.msra.mxu0 0
  %3908 = vmatprep.subr.bf16.mxu0 0
  %3909 = vmatpush1.bf16.msra.mxu0 0
  %3910 = vmatprep.subr.bf16.mxu0 0
  %3911 = vmatpush1.bf16.msra.mxu0 0
  %3912 = vmatprep.subr.bf16.mxu0 0
  %3913 = vmatpush1.bf16.msra.mxu0 0
  %3914 = vmatprep.subr.bf16.mxu0 0
  %3915 = vmatpush1.bf16.msra.mxu0 0
  %3916 = vmatprep.subr.bf16.mxu0 0
  %3917 = vmatpush1.bf16.msra.mxu0 0
  %3918 = vmatprep.subr.bf16.mxu0 0
  %3919 = vmatpush1.bf16.msra.mxu0 0
  %3920 = vmatprep.subr.bf16.mxu0 0
  %3921 = vmatpush1.bf16.msra.mxu0 0
  %3922 = vmatprep.subr.bf16.mxu0 0
  %3923 = vmatpush1.bf16.msra.mxu0 0
  %3924 = vmatprep.subr.bf16.mxu0 0
  %3925 = vmatpush1.bf16.msra.mxu0 0
  %3926 = vmatprep.subr.bf16.mxu0 0
  %3927 = vmatpush1.bf16.msra.mxu0 0
  %3928 = vmatprep.subr.bf16.mxu0 0
  %3929 = vmatpush1.bf16.msra.mxu0 0
  %3930 = vmatprep.subr.bf16.mxu0 0
  %3931 = vmatpush1.bf16.msra.mxu0 0
  %3932 = vmatprep.mubr.bf16.mxu0 0
  %3933 = vmatmul.mubr.bf16.gmra.mrb[0].mxu0 %v3895
  %v3934 = vpop.f32.mrb[0].mxu0
  %v3935 = vadd.f32 0.0, %v3934
  %v3936 = vpop.f32.mrb[0].mxu0
  %v3937 = vpop.f32.mrb[0].mxu0
  %v3938 = vadd.f32 0.0, %v3937
  %v3939 = vpop.f32.mrb[0].mxu0
  %3940 = vmatprep.mubr.bf16.mxu0 0
  %3941 = vmatmul.mubr.bf16.gmra.mrb[0].mxu0 %v3898
  %v3942 = vpop.f32.mrb[0].mxu0
  %v3943 = vadd.f32 0.0, %v3942
  %v3944 = vpop.f32.mrb[0].mxu0
  %v3945 = vpop.f32.mrb[0].mxu0
  %v3946 = vadd.f32 0.0, %v3945
  %v3947 = vpop.f32.mrb[0].mxu0
  %3948 = vdwg.mxu0
  %3949 = vmatprep.subr.bf16.mxu0 0
  %3950 = vmatpush1.bf16.msra.mxu0 %v3880
  %3951 = vmatprep.subr.bf16.mxu0 0
  %3952 = vmatpush1.bf16.msra.mxu0 0
  %3953 = vmatprep.subr.bf16.mxu0 0
  %3954 = vmatpush1.bf16.msra.mxu0 0
  %3955 = vmatprep.subr.bf16.mxu0 0
  %3956 = vmatpush1.bf16.msra.mxu0 0
  %3957 = vmatprep.subr.bf16.mxu0 0
  %3958 = vmatpush1.bf16.msra.mxu0 0
  %3959 = vmatprep.subr.bf16.mxu0 0
  %3960 = vmatpush1.bf16.msra.mxu0 0
  %3961 = vmatprep.subr.bf16.mxu0 0
  %3962 = vmatpush1.bf16.msra.mxu0 0
  %3963 = vmatprep.subr.bf16.mxu0 0
  %3964 = vmatpush1.bf16.msra.mxu0 0
  %3965 = vmatprep.subr.bf16.mxu0 0
  %3966 = vmatpush1.bf16.msra.mxu0 0
  %3967 = vmatprep.subr.bf16.mxu0 0
  %3968 = vmatpush1.bf16.msra.mxu0 0
  %3969 = vmatprep.subr.bf16.mxu0 0
  %3970 = vmatpush1.bf16.msra.mxu0 0
  %3971 = vmatprep.subr.bf16.mxu0 0
  %3972 = vmatpush1.bf16.msra.mxu0 0
  %3973 = vmatprep.subr.bf16.mxu0 0
  %3974 = vmatpush1.bf16.msra.mxu0 0
  %3975 = vmatprep.subr.bf16.mxu0 0
  %3976 = vmatpush1.bf16.msra.mxu0 0
  %3977 = vmatprep.subr.bf16.mxu0 0
  %3978 = vmatpush1.bf16.msra.mxu0 0
  %3979 = vmatprep.subr.bf16.mxu0 0
  %3980 = vmatpush1.bf16.msra.mxu0 0
  %3981 = vmatprep.mubr.bf16.mxu0 0
  %3982 = vmatmul.mubr.bf16.gmra.mrb[0].mxu0 %v3895
  %v3983 = vpop.f32.mrb[0].mxu0
  %v3984 = vadd.f32 0.0, %v3983
  %v3985 = vpop.f32.mrb[0].mxu0
  %v3986 = vpop.f32.mrb[0].mxu0
  %v3987 = vadd.f32 0.0, %v3986
  %v3988 = vpop.f32.mrb[0].mxu0
  %3989 = vmatprep.mubr.bf16.mxu0 0
  %3990 = vmatmul.mubr.bf16.gmra.mrb[0].mxu0 %v3898
  %v3991 = vpop.f32.mrb[0].mxu0
  %v3992 = vadd.f32 0.0, %v3991
  %v3993 = vpop.f32.mrb[0].mxu0
  %v3994 = vpop.f32.mrb[0].mxu0
  %v3995 = vadd.f32 0.0, %v3994
  %v3996 = vpop.f32.mrb[0].mxu0
  %3997 = vdwg.mxu0
  %v3998 = vsel %vm2139, %v2670, 0
  %v4001 = vsel %vm2139, %v3887, 0
  %4003 = vmatprep.subr.bf16.mxu0 0
  %4004 = vmatpush1.bf16.msra.mxu0 %v3877
  %4005 = vmatprep.subr.bf16.mxu0 0
  %4006 = vmatpush1.bf16.msra.mxu0 0
  %4007 = vmatprep.subr.bf16.mxu0 0
  %4008 = vmatpush1.bf16.msra.mxu0 0
  %4009 = vmatprep.subr.bf16.mxu0 0
  %4010 = vmatpush1.bf16.msra.mxu0 0
  %4011 = vmatprep.subr.bf16.mxu0 0
  %4012 = vmatpush1.bf16.msra.mxu0 0
  %4013 = vmatprep.subr.bf16.mxu0 0
  %4014 = vmatpush1.bf16.msra.mxu0 0
  %4015 = vmatprep.subr.bf16.mxu0 0
  %4016 = vmatpush1.bf16.msra.mxu0 0
  %4017 = vmatprep.subr.bf16.mxu0 0
  %4018 = vmatpush1.bf16.msra.mxu0 0
  %4019 = vmatprep.subr.bf16.mxu0 0
  %4020 = vmatpush1.bf16.msra.mxu0 0
  %4021 = vmatprep.subr.bf16.mxu0 0
  %4022 = vmatpush1.bf16.msra.mxu0 0
  %4023 = vmatprep.subr.bf16.mxu0 0
  %4024 = vmatpush1.bf16.msra.mxu0 0
  %4025 = vmatprep.subr.bf16.mxu0 0
  %4026 = vmatpush1.bf16.msra.mxu0 0
  %4027 = vmatprep.subr.bf16.mxu0 0
  %4028 = vmatpush1.bf16.msra.mxu0 0
  %4029 = vmatprep.subr.bf16.mxu0 0
  %4030 = vmatpush1.bf16.msra.mxu0 0
  %4031 = vmatprep.subr.bf16.mxu0 0
  %4032 = vmatpush1.bf16.msra.mxu0 0
  %4033 = vmatprep.subr.bf16.mxu0 0
  %4034 = vmatpush1.bf16.msra.mxu0 0
  %4035 = vmatprep.mubr.bf16.mxu0 0
  %4036 = vmatmul.mubr.bf16.gmra.mrb[0].mxu0 %v3998
  %v4037 = vpop.f32.mrb[0].mxu0
  %v4038 = vadd.f32 %v3935, %v4037
  %v4039 = vpop.f32.mrb[0].mxu0
  %v4040 = vpop.f32.mrb[0].mxu0
  %v4041 = vadd.f32 %v3938, %v4040
  %v4042 = vpop.f32.mrb[0].mxu0
  %4043 = vmatprep.mubr.bf16.mxu0 0
  %4044 = vmatmul.mubr.bf16.gmra.mrb[0].mxu0 %v4001
  %v4045 = vpop.f32.mrb[0].mxu0
  %v4046 = vadd.f32 %v3943, %v4045
  %v4047 = vpop.f32.mrb[0].mxu0
  %v4048 = vpop.f32.mrb[0].mxu0
  %v4049 = vadd.f32 %v3946, %v4048
  %v4050 = vpop.f32.mrb[0].mxu0
  %4051 = vdwg.mxu0
  %4052 = vmatprep.subr.bf16.mxu0 0
  %4053 = vmatpush1.bf16.msra.mxu0 %v3878
  %4054 = vmatprep.subr.bf16.mxu0 0
  %4055 = vmatpush1.bf16.msra.mxu0 0
  %4056 = vmatprep.subr.bf16.mxu0 0
  %4057 = vmatpush1.bf16.msra.mxu0 0
  %4058 = vmatprep.subr.bf16.mxu0 0
  %4059 = vmatpush1.bf16.msra.mxu0 0
  %4060 = vmatprep.subr.bf16.mxu0 0
  %4061 = vmatpush1.bf16.msra.mxu0 0
  %4062 = vmatprep.subr.bf16.mxu0 0
  %4063 = vmatpush1.bf16.msra.mxu0 0
  %4064 = vmatprep.subr.bf16.mxu0 0
  %4065 = vmatpush1.bf16.msra.mxu0 0
  %4066 = vmatprep.subr.bf16.mxu0 0
  %4067 = vmatpush1.bf16.msra.mxu0 0
  %4068 = vmatprep.subr.bf16.mxu0 0
  %4069 = vmatpush1.bf16.msra.mxu0 0
  %4070 = vmatprep.subr.bf16.mxu0 0
  %4071 = vmatpush1.bf16.msra.mxu0 0
  %4072 = vmatprep.subr.bf16.mxu0 0
  %4073 = vmatpush1.bf16.msra.mxu0 0
  %4074 = vmatprep.subr.bf16.mxu0 0
  %4075 = vmatpush1.bf16.msra.mxu0 0
  %4076 = vmatprep.subr.bf16.mxu0 0
  %4077 = vmatpush1.bf16.msra.mxu0 0
  %4078 = vmatprep.subr.bf16.mxu0 0
  %4079 = vmatpush1.bf16.msra.mxu0 0
  %4080 = vmatprep.subr.bf16.mxu0 0
  %4081 = vmatpush1.bf16.msra.mxu0 0
  %4082 = vmatprep.subr.bf16.mxu0 0
  %4083 = vmatpush1.bf16.msra.mxu0 0
  %4084 = vmatprep.mubr.bf16.mxu0 0
  %4085 = vmatmul.mubr.bf16.gmra.mrb[0].mxu0 %v3998
  %v4086 = vpop.f32.mrb[0].mxu0
  %v4087 = vadd.f32 %v3984, %v4086
  %v4088 = vpop.f32.mrb[0].mxu0
  %v4089 = vpop.f32.mrb[0].mxu0
  %v4090 = vadd.f32 %v3987, %v4089
  %v4091 = vpop.f32.mrb[0].mxu0
  %4092 = vmatprep.mubr.bf16.mxu0 0
  %4093 = vmatmul.mubr.bf16.gmra.mrb[0].mxu0 %v4001
  %v4094 = vpop.f32.mrb[0].mxu0
  %v4095 = vadd.f32 %v3992, %v4094
  %v4096 = vpop.f32.mrb[0].mxu0
  %v4097 = vpop.f32.mrb[0].mxu0
  %v4098 = vadd.f32 %v3995, %v4097
  %v4099 = vpop.f32.mrb[0].mxu0
  %4100 = vdwg.mxu0
  %v4101 = vsel %vm630, %v4038, 0.0
  %v4102 = vsel %vm630, %v4041, 0.0
  %v4103 = vadd.f32 %v4101, %v4102
  %v4104 = vsel %vm630, %v4046, 0.0
  %v4105 = vadd.f32 %v4103, %v4104
  %v4106 = vsel %vm630, %v4049, 0.0
  %v4107 = vadd.f32 %v4105, %v4106
  %v4108 = vrot.slane %v4107, 4
  %v4109 = vadd.f32 %v4107, %v4108
  %v4110 = vrot.slane %v4109, 2
  %v4111 = vadd.f32 %v4109, %v4110
  %v4112 = vrot.slane %v4111, 1
  %v4113 = vadd.f32 %v4111, %v4112
  %v4114 = vsel %vm630, %v4087, 0.0
  %v4115 = vsel %vm630, %v4090, 0.0
  %v4116 = vadd.f32 %v4114, %v4115
  %v4117 = vsel %vm630, %v4095, 0.0
  %v4118 = vadd.f32 %v4116, %v4117
  %v4119 = vsel %vm630, %v4098, 0.0
  %v4120 = vadd.f32 %v4118, %v4119
  %v4121 = vrot.slane %v4120, 4
  %v4122 = vadd.f32 %v4120, %v4121
  %v4123 = vrot.slane %v4122, 2
  %v4124 = vadd.f32 %v4122, %v4123
  %v4125 = vrot.slane %v4124, 1
  %v4126 = vadd.f32 %v4124, %v4125
  %v4127 = vmul.f32 %v4113, %v1465
  %v4128 = vmul.f32 %v4126, %v1465
  %v4129 = vsub.f32 %v4038, %v4127
  %v4130 = vsub.f32 %v4041, %v4127
  %v4131 = vsub.f32 %v4046, %v4127
  %v4132 = vsub.f32 %v4049, %v4127
  %v4133 = vsub.f32 %v4087, %v4128
  %v4134 = vsub.f32 %v4090, %v4128
  %v4135 = vsub.f32 %v4095, %v4128
  %v4136 = vsub.f32 %v4098, %v4128
  %v4137 = vmul.f32 %v4129, %v4129
  %v4138 = vmul.f32 %v4130, %v4130
  %v4139 = vmul.f32 %v4131, %v4131
  %v4140 = vmul.f32 %v4132, %v4132
  %v4141 = vmul.f32 %v4133, %v4133
  %v4142 = vmul.f32 %v4134, %v4134
  %v4143 = vmul.f32 %v4135, %v4135
  %v4144 = vmul.f32 %v4136, %v4136
  %v4145 = vsel %vm630, %v4137, 0.0
  %v4146 = vsel %vm630, %v4138, 0.0
  %v4147 = vadd.f32 %v4145, %v4146
  %v4148 = vsel %vm630, %v4139, 0.0
  %v4149 = vadd.f32 %v4147, %v4148
  %v4150 = vsel %vm630, %v4140, 0.0
  %v4151 = vadd.f32 %v4149, %v4150
  %v4152 = vrot.slane %v4151, 4
  %v4153 = vadd.f32 %v4151, %v4152
  %v4154 = vrot.slane %v4153, 2
  %v4155 = vadd.f32 %v4153, %v4154
  %v4156 = vrot.slane %v4155, 1
  %v4157 = vadd.f32 %v4155, %v4156
  %v4158 = vsel %vm630, %v4141, 0.0
  %v4159 = vsel %vm630, %v4142, 0.0
  %v4160 = vadd.f32 %v4158, %v4159
  %v4161 = vsel %vm630, %v4143, 0.0
  %v4162 = vadd.f32 %v4160, %v4161
  %v4163 = vsel %vm630, %v4144, 0.0
  %v4164 = vadd.f32 %v4162, %v4163
  %v4165 = vrot.slane %v4164, 4
  %v4166 = vadd.f32 %v4164, %v4165
  %v4167 = vrot.slane %v4166, 2
  %v4168 = vadd.f32 %v4166, %v4167
  %v4169 = vrot.slane %v4168, 1
  %v4170 = vadd.f32 %v4168, %v4169
  %v4171 = vmul.f32 %v4157, %v1465
  %v4172 = vmul.f32 %v4170, %v1465
  %v4173 = vadd.f32 %v4171, 1e-05
  %v4174 = vadd.f32 %v4172, 1e-05
  %v4175 = vrsqrt.pop %v4173
  %v4176 = vrsqrt.pop %v4174
  %v4177 = vmul.f32 %v4129, %v4175
  %v4178 = vmul.f32 %v4130, %v4175
  %v4179 = vmul.f32 %v4131, %v4175
  %v4180 = vmul.f32 %v4132, %v4175
  %v4181 = vmul.f32 %v4133, %v4176
  %v4182 = vmul.f32 %v4134, %v4176
  %v4183 = vmul.f32 %v4135, %v4176
  %v4184 = vmul.f32 %v4136, %v4176
  %vm4185 = vcmp.gt.f32.partialorder %v4177, 0.0
  %vm4186 = vcmp.gt.f32.partialorder %v4178, 0.0
  %vm4187 = vcmp.gt.f32.partialorder %v4179, 0.0
  %vm4188 = vcmp.gt.f32.partialorder %v4180, 0.0
  %vm4189 = vcmp.gt.f32.partialorder %v4181, 0.0
  %vm4190 = vcmp.gt.f32.partialorder %v4182, 0.0
  %vm4191 = vcmp.gt.f32.partialorder %v4183, 0.0
  %vm4192 = vcmp.gt.f32.partialorder %v4184, 0.0
  %v4193 = vmin.f32 %v4177, 0.0
  %v4194 = vmin.f32 %v4178, 0.0
  %v4195 = vmin.f32 %v4179, 0.0
  %v4196 = vmin.f32 %v4180, 0.0
  %v4197 = vmin.f32 %v4181, 0.0
  %v4198 = vmin.f32 %v4182, 0.0
  %v4199 = vmin.f32 %v4183, 0.0
  %v4200 = vmin.f32 %v4184, 0.0
  %v4201 = vmul.f32 %v4193, 1.442695
  %v4202 = vpow.pop %v4201
  %v4203 = vmul.f32 %v4194, 1.442695
  %v4204 = vpow.pop %v4203
  %v4205 = vmul.f32 %v4195, 1.442695
  %v4206 = vpow.pop %v4205
  %v4207 = vmul.f32 %v4196, 1.442695
  %v4208 = vpow.pop %v4207
  %v4209 = vmul.f32 %v4197, 1.442695
  %v4210 = vpow.pop %v4209
  %v4211 = vmul.f32 %v4198, 1.442695
  %v4212 = vpow.pop %v4211
  %v4213 = vmul.f32 %v4199, 1.442695
  %v4214 = vpow.pop %v4213
  %v4215 = vmul.f32 %v4200, 1.442695
  %v4216 = vpow.pop %v4215
  %v4217 = vsub.f32 %v4202, 1.0
  %v4218 = vsub.f32 %v4204, 1.0
  %v4219 = vsub.f32 %v4206, 1.0
  %v4220 = vsub.f32 %v4208, 1.0
  %v4221 = vsub.f32 %v4210, 1.0
  %v4222 = vsub.f32 %v4212, 1.0
  %v4223 = vsub.f32 %v4214, 1.0
  %v4224 = vsub.f32 %v4216, 1.0
  %v4225 = vsel %vm4185, %v4177, %v4217
  %v4226 = vsel %vm4186, %v4178, %v4218
  %v4227 = vsel %vm4187, %v4179, %v4219
  %v4228 = vsel %vm4188, %v4180, %v4220
  %v4229 = vsel %vm4189, %v4181, %v4221
  %v4230 = vsel %vm4190, %v4182, %v4222
  %v4231 = vsel %vm4191, %v4183, %v4223
  %v4232 = vsel %vm4192, %v4184, %v4224
  %v4233 = vrot.slane %v4225, 7
  %v4234 = vrot.slane %v4226, 7
  %v4235 = vrot.slane %v4227, 7
  %v4236 = vrot.slane %v4228, 7
  %v4237 = vrot.slane %v4229, 7
  %v4238 = vrot.slane %v4230, 7
  %v4239 = vrot.slane %v4231, 7
  %v4240 = vrot.slane %v4232, 7
  %v4241 = vsel %vm73, %v4239, %v4240
  %v4242 = vsel %vm73, %v4238, %v4239
  %v4243 = vsel %vm73, %v4237, %v4238
  %v4244 = vsel %vm73, %v4236, %v4237
  %v4245 = vsel %vm73, %v4235, %v4236
  %v4246 = vsel %vm73, %v4234, %v4235
  %v4247 = vsel %vm73, %v4233, %v4234
  %v4248 = vsel %vm73, %v4240, %v4233
  %v4249 = vrot.slane %v4225, 1
  %v4250 = vrot.slane %v4226, 1
  %v4251 = vrot.slane %v4227, 1
  %v4252 = vrot.slane %v4228, 1
  %v4253 = vrot.slane %v4229, 1
  %v4254 = vrot.slane %v4230, 1
  %v4255 = vrot.slane %v4231, 1
  %v4256 = vrot.slane %v4232, 1
  %v4257 = vsel %vm106, %v4255, %v4256
  %v4258 = vsel %vm106, %v4254, %v4255
  %v4259 = vsel %vm106, %v4253, %v4254
  %v4260 = vsel %vm106, %v4252, %v4253
  %v4261 = vsel %vm106, %v4251, %v4252
  %v4262 = vsel %vm106, %v4250, %v4251
  %v4263 = vsel %vm106, %v4249, %v4250
  %v4264 = vsel %vm106, %v4256, %v4249
  %v4265 = vsel %vm130, 0.0, %v4248
  %v4266 = vsel %vm131, 0.0, %v4247
  %v4267 = vsel %vm132, 0.0, %v4246
  %v4268 = vsel %vm133, 0.0, %v4245
  %v4269 = vsel %vm130, 0.0, %v4244
  %v4270 = vsel %vm131, 0.0, %v4243
  %v4271 = vsel %vm132, 0.0, %v4242
  %v4272 = vsel %vm133, 0.0, %v4241
  %v4273 = vsel %vm1088, 0.0, %v4263
  %v4274 = vsel %vm1089, 0.0, %v4262
  %v4275 = vsel %vm1090, 0.0, %v4261
  %v4276 = vsel %vm1091, 0.0, %v4260
  %v4277 = vsel %vm1088, 0.0, %v4259
  %v4278 = vsel %vm1089, 0.0, %v4258
  %v4279 = vsel %vm1090, 0.0, %v4257
  %v4280 = vsel %vm1091, 0.0, %v4264
  %v4281 = vpack.c.bf16 %v4226, %v4225
  %v4282 = vpack.c.bf16 %v4228, %v4227
  %v4283 = vpack.c.bf16 %v4230, %v4229
  %v4284 = vpack.c.bf16 %v4232, %v4231
  %v4285 = vpack.c.bf16 %v4266, %v4265
  %v4286 = vpack.c.bf16 %v4268, %v4267
  %v4287 = vpack.c.bf16 %v4270, %v4269
  %v4288 = vpack.c.bf16 %v4272, %v4271
  %v4289 = vpack.c.bf16 %v4274, %v4273
  %v4290 = vpack.c.bf16 %v4276, %v4275
  %v4291 = vpack.c.bf16 %v4278, %v4277
  %v4292 = vpack.c.bf16 %v4280, %v4279
  %v4293 = vld [vmem:[%s7] sm:$0xf]
  %v4294 = vld [vmem:[%s7 + $0x4] sm:$0xf]
  %v4295 = vld [vmem:[%s7 + $0x8] sm:$0xf]
  %v4296 = vld [vmem:[%s7 + $0xc] sm:$0xf]
  %v4297 = vld [vmem:[%s7 + $0x10] sm:$0xf]
  %v4298 = vld [vmem:[%s7 + $0x14] sm:$0xf]
  %v4299 = vld [vmem:[%s7 + $0x18] sm:$0xf]
  %v4300 = vld [vmem:[%s7 + $0x1c] sm:$0xf]
  %v4301 = vld [vmem:[%s7 + $0x20] sm:$0xf]
  %v4302 = vld [vmem:[%s7 + $0x24] sm:$0xf]
  %v4303 = vld [vmem:[%s7 + $0x28] sm:$0xf]
  %v4304 = vld [vmem:[%s7 + $0x2c] sm:$0xf]
  %v4305 = vld [vmem:[%s7 + $0x30] sm:$0xf]
  %v4306 = vld [vmem:[%s7 + $0x34] sm:$0xf]
  %v4307 = vld [vmem:[%s7 + $0x38] sm:$0xf]
  %v4308 = vld [vmem:[%s7 + $0x3c] sm:$0xf]
  %v4317 = vunpack.c.l.b16 %v4301
  %v4318 = vunpack.c.l.b16 %v4302
  %v4319 = vunpack.c.l.b16 %v4303
  %v4320 = vunpack.c.l.b16 %v4304
  %v4321 = vunpack.c.l.b16 %v4305
  %v4322 = vunpack.c.l.b16 %v4306
  %v4323 = vunpack.c.l.b16 %v4307
  %v4324 = vunpack.c.l.b16 %v4308
  %v4325 = vpack.c.b16 %v4318, %v4317
  %v4326 = vpack.c.b16 %v4320, %v4319
  %v4327 = vpack.c.b16 %v4322, %v4321
  %v4328 = vpack.c.b16 %v4324, %v4323
  %v4334 = vsel %vm630, %v4285, 0
  %v4337 = vsel %vm630, %v4286, 0
  %v4340 = vsel %vm630, %v4287, 0
  %v4343 = vsel %vm630, %v4288, 0
  %4345 = vmatprep.subr.bf16.mxu0 0
  %4346 = vmatpush1.bf16.msra.mxu0 %v4325
  %4347 = vmatprep.subr.bf16.mxu0 0
  %4348 = vmatpush1.bf16.msra.mxu0 %v4326
  %4349 = vmatprep.subr.bf16.mxu0 0
  %4350 = vmatpush1.bf16.msra.mxu0 %v4327
  %4351 = vmatprep.subr.bf16.mxu0 0
  %4352 = vmatpush1.bf16.msra.mxu0 %v4328
  %4353 = vmatprep.subr.bf16.mxu0 0
  %4354 = vmatpush1.bf16.msra.mxu0 0
  %4355 = vmatprep.subr.bf16.mxu0 0
  %4356 = vmatpush1.bf16.msra.mxu0 0
  %4357 = vmatprep.subr.bf16.mxu0 0
  %4358 = vmatpush1.bf16.msra.mxu0 0
  %4359 = vmatprep.subr.bf16.mxu0 0
  %4360 = vmatpush1.bf16.msra.mxu0 0
  %4361 = vmatprep.subr.bf16.mxu0 0
  %4362 = vmatpush1.bf16.msra.mxu0 0
  %4363 = vmatprep.subr.bf16.mxu0 0
  %4364 = vmatpush1.bf16.msra.mxu0 0
  %4365 = vmatprep.subr.bf16.mxu0 0
  %4366 = vmatpush1.bf16.msra.mxu0 0
  %4367 = vmatprep.subr.bf16.mxu0 0
  %4368 = vmatpush1.bf16.msra.mxu0 0
  %4369 = vmatprep.subr.bf16.mxu0 0
  %4370 = vmatpush1.bf16.msra.mxu0 0
  %4371 = vmatprep.subr.bf16.mxu0 0
  %4372 = vmatpush1.bf16.msra.mxu0 0
  %4373 = vmatprep.subr.bf16.mxu0 0
  %4374 = vmatpush1.bf16.msra.mxu0 0
  %4375 = vmatprep.subr.bf16.mxu0 0
  %4376 = vmatpush1.bf16.msra.mxu0 0
  %4377 = vmatprep.mubr.bf16.mxu0 0
  %4378 = vmatmul.mubr.bf16.gmra.mrb[0].mxu0 %v4334
  %v4379 = vpop.f32.mrb[0].mxu0
  %v4380 = vadd.f32 0.0, %v4379
  %v4381 = vpop.f32.mrb[0].mxu0
  %v4382 = vpop.f32.mrb[0].mxu0
  %v4383 = vadd.f32 0.0, %v4382
  %v4384 = vpop.f32.mrb[0].mxu0
  %4385 = vmatprep.mubr.bf16.mxu0 0
  %4386 = vmatmul.mubr.bf16.gmra.mrb[0].mxu0 %v4337
  %v4387 = vpop.f32.mrb[0].mxu0
  %v4388 = vadd.f32 0.0, %v4387
  %v4389 = vpop.f32.mrb[0].mxu0
  %v4390 = vpop.f32.mrb[0].mxu0
  %v4391 = vadd.f32 0.0, %v4390
  %v4392 = vpop.f32.mrb[0].mxu0
  %4393 = vmatprep.mubr.bf16.mxu0 0
  %4394 = vmatmul.mubr.bf16.gmra.mrb[0].mxu0 %v4340
  %v4395 = vpop.f32.mrb[0].mxu0
  %v4396 = vadd.f32 0.0, %v4395
  %v4397 = vpop.f32.mrb[0].mxu0
  %v4398 = vpop.f32.mrb[0].mxu0
  %v4399 = vadd.f32 0.0, %v4398
  %v4400 = vpop.f32.mrb[0].mxu0
  %4401 = vmatprep.mubr.bf16.mxu0 0
  %4402 = vmatmul.mubr.bf16.gmra.mrb[0].mxu0 %v4343
  %v4403 = vpop.f32.mrb[0].mxu0
  %v4404 = vadd.f32 0.0, %v4403
  %v4405 = vpop.f32.mrb[0].mxu0
  %v4406 = vpop.f32.mrb[0].mxu0
  %v4407 = vadd.f32 0.0, %v4406
  %v4408 = vpop.f32.mrb[0].mxu0
  %4409 = vdwg.mxu0
  %v4418 = vunpack.c.l.b16 %v4293
  %v4419 = vunpack.c.l.b16 %v4294
  %v4420 = vunpack.c.l.b16 %v4295
  %v4421 = vunpack.c.l.b16 %v4296
  %v4422 = vunpack.c.l.b16 %v4297
  %v4423 = vunpack.c.l.b16 %v4298
  %v4424 = vunpack.c.l.b16 %v4299
  %v4425 = vunpack.c.l.b16 %v4300
  %v4426 = vpack.c.b16 %v4419, %v4418
  %v4427 = vpack.c.b16 %v4421, %v4420
  %v4428 = vpack.c.b16 %v4423, %v4422
  %v4429 = vpack.c.b16 %v4425, %v4424
  %v4435 = vsel %vm630, %v4281, 0
  %v4438 = vsel %vm630, %v4282, 0
  %v4441 = vsel %vm630, %v4283, 0
  %v4444 = vsel %vm630, %v4284, 0
  %4446 = vmatprep.subr.bf16.mxu0 0
  %4447 = vmatpush1.bf16.msra.mxu0 %v4426
  %4448 = vmatprep.subr.bf16.mxu0 0
  %4449 = vmatpush1.bf16.msra.mxu0 %v4427
  %4450 = vmatprep.subr.bf16.mxu0 0
  %4451 = vmatpush1.bf16.msra.mxu0 %v4428
  %4452 = vmatprep.subr.bf16.mxu0 0
  %4453 = vmatpush1.bf16.msra.mxu0 %v4429
  %4454 = vmatprep.subr.bf16.mxu0 0
  %4455 = vmatpush1.bf16.msra.mxu0 0
  %4456 = vmatprep.subr.bf16.mxu0 0
  %4457 = vmatpush1.bf16.msra.mxu0 0
  %4458 = vmatprep.subr.bf16.mxu0 0
  %4459 = vmatpush1.bf16.msra.mxu0 0
  %4460 = vmatprep.subr.bf16.mxu0 0
  %4461 = vmatpush1.bf16.msra.mxu0 0
  %4462 = vmatprep.subr.bf16.mxu0 0
  %4463 = vmatpush1.bf16.msra.mxu0 0
  %4464 = vmatprep.subr.bf16.mxu0 0
  %4465 = vmatpush1.bf16.msra.mxu0 0
  %4466 = vmatprep.subr.bf16.mxu0 0
  %4467 = vmatpush1.bf16.msra.mxu0 0
  %4468 = vmatprep.subr.bf16.mxu0 0
  %4469 = vmatpush1.bf16.msra.mxu0 0
  %4470 = vmatprep.subr.bf16.mxu0 0
  %4471 = vmatpush1.bf16.msra.mxu0 0
  %4472 = vmatprep.subr.bf16.mxu0 0
  %4473 = vmatpush1.bf16.msra.mxu0 0
  %4474 = vmatprep.subr.bf16.mxu0 0
  %4475 = vmatpush1.bf16.msra.mxu0 0
  %4476 = vmatprep.subr.bf16.mxu0 0
  %4477 = vmatpush1.bf16.msra.mxu0 0
  %4478 = vmatprep.mubr.bf16.mxu0 0
  %4479 = vmatmul.mubr.bf16.gmra.mrb[0].mxu0 %v4435
  %v4480 = vpop.f32.mrb[0].mxu0
  %v4481 = vadd.f32 %v4380, %v4480
  %v4482 = vpop.f32.mrb[0].mxu0
  %v4483 = vpop.f32.mrb[0].mxu0
  %v4484 = vadd.f32 %v4383, %v4483
  %v4485 = vpop.f32.mrb[0].mxu0
  %4486 = vmatprep.mubr.bf16.mxu0 0
  %4487 = vmatmul.mubr.bf16.gmra.mrb[0].mxu0 %v4438
  %v4488 = vpop.f32.mrb[0].mxu0
  %v4489 = vadd.f32 %v4388, %v4488
  %v4490 = vpop.f32.mrb[0].mxu0
  %v4491 = vpop.f32.mrb[0].mxu0
  %v4492 = vadd.f32 %v4391, %v4491
  %v4493 = vpop.f32.mrb[0].mxu0
  %4494 = vmatprep.mubr.bf16.mxu0 0
  %4495 = vmatmul.mubr.bf16.gmra.mrb[0].mxu0 %v4441
  %v4496 = vpop.f32.mrb[0].mxu0
  %v4497 = vadd.f32 %v4396, %v4496
  %v4498 = vpop.f32.mrb[0].mxu0
  %v4499 = vpop.f32.mrb[0].mxu0
  %v4500 = vadd.f32 %v4399, %v4499
  %v4501 = vpop.f32.mrb[0].mxu0
  %4502 = vmatprep.mubr.bf16.mxu0 0
  %4503 = vmatmul.mubr.bf16.gmra.mrb[0].mxu0 %v4444
  %v4504 = vpop.f32.mrb[0].mxu0
  %v4505 = vadd.f32 %v4404, %v4504
  %v4506 = vpop.f32.mrb[0].mxu0
  %v4507 = vpop.f32.mrb[0].mxu0
  %v4508 = vadd.f32 %v4407, %v4507
  %v4509 = vpop.f32.mrb[0].mxu0
  %4510 = vdwg.mxu0
  %v4511 = vld [vmem:[%s7 + $0x40] sm:$0xf]
  %v4512 = vld [vmem:[%s7 + $0x44] sm:$0xf]
  %v4513 = vld [vmem:[%s7 + $0x48] sm:$0xf]
  %v4514 = vld [vmem:[%s7 + $0x4c] sm:$0xf]
  %v4515 = vld [vmem:[%s7 + $0x50] sm:$0xf]
  %v4516 = vld [vmem:[%s7 + $0x54] sm:$0xf]
  %v4517 = vld [vmem:[%s7 + $0x58] sm:$0xf]
  %v4518 = vld [vmem:[%s7 + $0x5c] sm:$0xf]
  %v4519 = vld [vmem:[%s7 + $0x60] sm:$0xf]
  %v4520 = vld [vmem:[%s7 + $0x64] sm:$0xf]
  %v4521 = vld [vmem:[%s7 + $0x68] sm:$0xf]
  %v4522 = vld [vmem:[%s7 + $0x6c] sm:$0xf]
  %v4523 = vld [vmem:[%s7 + $0x70] sm:$0xf]
  %v4524 = vld [vmem:[%s7 + $0x74] sm:$0xf]
  %v4525 = vld [vmem:[%s7 + $0x78] sm:$0xf]
  %v4526 = vld [vmem:[%s7 + $0x7c] sm:$0xf]
  %v4535 = vunpack.c.l.b16 %v4519
  %v4536 = vunpack.c.l.b16 %v4520
  %v4537 = vunpack.c.l.b16 %v4521
  %v4538 = vunpack.c.l.b16 %v4522
  %v4539 = vunpack.c.l.b16 %v4523
  %v4540 = vunpack.c.l.b16 %v4524
  %v4541 = vunpack.c.l.b16 %v4525
  %v4542 = vunpack.c.l.b16 %v4526
  %v4543 = vpack.c.b16 %v4536, %v4535
  %v4544 = vpack.c.b16 %v4538, %v4537
  %v4545 = vpack.c.b16 %v4540, %v4539
  %v4546 = vpack.c.b16 %v4542, %v4541
  %4551 = vmatprep.subr.bf16.mxu0 0
  %4552 = vmatpush1.bf16.msra.mxu0 %v4543
  %4553 = vmatprep.subr.bf16.mxu0 0
  %4554 = vmatpush1.bf16.msra.mxu0 %v4544
  %4555 = vmatprep.subr.bf16.mxu0 0
  %4556 = vmatpush1.bf16.msra.mxu0 %v4545
  %4557 = vmatprep.subr.bf16.mxu0 0
  %4558 = vmatpush1.bf16.msra.mxu0 %v4546
  %4559 = vmatprep.subr.bf16.mxu0 0
  %4560 = vmatpush1.bf16.msra.mxu0 0
  %4561 = vmatprep.subr.bf16.mxu0 0
  %4562 = vmatpush1.bf16.msra.mxu0 0
  %4563 = vmatprep.subr.bf16.mxu0 0
  %4564 = vmatpush1.bf16.msra.mxu0 0
  %4565 = vmatprep.subr.bf16.mxu0 0
  %4566 = vmatpush1.bf16.msra.mxu0 0
  %4567 = vmatprep.subr.bf16.mxu0 0
  %4568 = vmatpush1.bf16.msra.mxu0 0
  %4569 = vmatprep.subr.bf16.mxu0 0
  %4570 = vmatpush1.bf16.msra.mxu0 0
  %4571 = vmatprep.subr.bf16.mxu0 0
  %4572 = vmatpush1.bf16.msra.mxu0 0
  %4573 = vmatprep.subr.bf16.mxu0 0
  %4574 = vmatpush1.bf16.msra.mxu0 0
  %4575 = vmatprep.subr.bf16.mxu0 0
  %4576 = vmatpush1.bf16.msra.mxu0 0
  %4577 = vmatprep.subr.bf16.mxu0 0
  %4578 = vmatpush1.bf16.msra.mxu0 0
  %4579 = vmatprep.subr.bf16.mxu0 0
  %4580 = vmatpush1.bf16.msra.mxu0 0
  %4581 = vmatprep.subr.bf16.mxu0 0
  %4582 = vmatpush1.bf16.msra.mxu0 0
  %4583 = vmatprep.mubr.bf16.mxu0 0
  %4584 = vmatmul.mubr.bf16.gmra.mrb[0].mxu0 %v4435
  %v4585 = vpop.f32.mrb[0].mxu0
  %v4586 = vadd.f32 0.0, %v4585
  %v4587 = vpop.f32.mrb[0].mxu0
  %v4588 = vpop.f32.mrb[0].mxu0
  %v4589 = vadd.f32 0.0, %v4588
  %v4590 = vpop.f32.mrb[0].mxu0
  %4591 = vmatprep.mubr.bf16.mxu0 0
  %4592 = vmatmul.mubr.bf16.gmra.mrb[0].mxu0 %v4438
  %v4593 = vpop.f32.mrb[0].mxu0
  %v4594 = vadd.f32 0.0, %v4593
  %v4595 = vpop.f32.mrb[0].mxu0
  %v4596 = vpop.f32.mrb[0].mxu0
  %v4597 = vadd.f32 0.0, %v4596
  %v4598 = vpop.f32.mrb[0].mxu0
  %4599 = vmatprep.mubr.bf16.mxu0 0
  %4600 = vmatmul.mubr.bf16.gmra.mrb[0].mxu0 %v4441
  %v4601 = vpop.f32.mrb[0].mxu0
  %v4602 = vadd.f32 0.0, %v4601
  %v4603 = vpop.f32.mrb[0].mxu0
  %v4604 = vpop.f32.mrb[0].mxu0
  %v4605 = vadd.f32 0.0, %v4604
  %v4606 = vpop.f32.mrb[0].mxu0
  %4607 = vmatprep.mubr.bf16.mxu0 0
  %4608 = vmatmul.mubr.bf16.gmra.mrb[0].mxu0 %v4444
  %v4609 = vpop.f32.mrb[0].mxu0
  %v4610 = vadd.f32 0.0, %v4609
  %v4611 = vpop.f32.mrb[0].mxu0
  %v4612 = vpop.f32.mrb[0].mxu0
  %v4613 = vadd.f32 0.0, %v4612
  %v4614 = vpop.f32.mrb[0].mxu0
  %4615 = vdwg.mxu0
  %v4624 = vunpack.c.l.b16 %v4511
  %v4625 = vunpack.c.l.b16 %v4512
  %v4626 = vunpack.c.l.b16 %v4513
  %v4627 = vunpack.c.l.b16 %v4514
  %v4628 = vunpack.c.l.b16 %v4515
  %v4629 = vunpack.c.l.b16 %v4516
  %v4630 = vunpack.c.l.b16 %v4517
  %v4631 = vunpack.c.l.b16 %v4518
  %v4632 = vpack.c.b16 %v4625, %v4624
  %v4633 = vpack.c.b16 %v4627, %v4626
  %v4634 = vpack.c.b16 %v4629, %v4628
  %v4635 = vpack.c.b16 %v4631, %v4630
  %v4641 = vsel %vm630, %v4289, 0
  %v4644 = vsel %vm630, %v4290, 0
  %v4647 = vsel %vm630, %v4291, 0
  %v4650 = vsel %vm630, %v4292, 0
  %4652 = vmatprep.subr.bf16.mxu0 0
  %4653 = vmatpush1.bf16.msra.mxu0 %v4632
  %4654 = vmatprep.subr.bf16.mxu0 0
  %4655 = vmatpush1.bf16.msra.mxu0 %v4633
  %4656 = vmatprep.subr.bf16.mxu0 0
  %4657 = vmatpush1.bf16.msra.mxu0 %v4634
  %4658 = vmatprep.subr.bf16.mxu0 0
  %4659 = vmatpush1.bf16.msra.mxu0 %v4635
  %4660 = vmatprep.subr.bf16.mxu0 0
  %4661 = vmatpush1.bf16.msra.mxu0 0
  %4662 = vmatprep.subr.bf16.mxu0 0
  %4663 = vmatpush1.bf16.msra.mxu0 0
  %4664 = vmatprep.subr.bf16.mxu0 0
  %4665 = vmatpush1.bf16.msra.mxu0 0
  %4666 = vmatprep.subr.bf16.mxu0 0
  %4667 = vmatpush1.bf16.msra.mxu0 0
  %4668 = vmatprep.subr.bf16.mxu0 0
  %4669 = vmatpush1.bf16.msra.mxu0 0
  %4670 = vmatprep.subr.bf16.mxu0 0
  %4671 = vmatpush1.bf16.msra.mxu0 0
  %4672 = vmatprep.subr.bf16.mxu0 0
  %4673 = vmatpush1.bf16.msra.mxu0 0
  %4674 = vmatprep.subr.bf16.mxu0 0
  %4675 = vmatpush1.bf16.msra.mxu0 0
  %4676 = vmatprep.subr.bf16.mxu0 0
  %4677 = vmatpush1.bf16.msra.mxu0 0
  %4678 = vmatprep.subr.bf16.mxu0 0
  %4679 = vmatpush1.bf16.msra.mxu0 0
  %4680 = vmatprep.subr.bf16.mxu0 0
  %4681 = vmatpush1.bf16.msra.mxu0 0
  %4682 = vmatprep.subr.bf16.mxu0 0
  %4683 = vmatpush1.bf16.msra.mxu0 0
  %4684 = vmatprep.mubr.bf16.mxu0 0
  %4685 = vmatmul.mubr.bf16.gmra.mrb[0].mxu0 %v4641
  %v4686 = vpop.f32.mrb[0].mxu0
  %v4687 = vadd.f32 %v4586, %v4686
  %v4688 = vpop.f32.mrb[0].mxu0
  %v4689 = vpop.f32.mrb[0].mxu0
  %v4690 = vadd.f32 %v4589, %v4689
  %v4691 = vpop.f32.mrb[0].mxu0
  %4692 = vmatprep.mubr.bf16.mxu0 0
  %4693 = vmatmul.mubr.bf16.gmra.mrb[0].mxu0 %v4644
  %v4694 = vpop.f32.mrb[0].mxu0
  %v4695 = vadd.f32 %v4594, %v4694
  %v4696 = vpop.f32.mrb[0].mxu0
  %v4697 = vpop.f32.mrb[0].mxu0
  %v4698 = vadd.f32 %v4597, %v4697
  %v4699 = vpop.f32.mrb[0].mxu0
  %4700 = vmatprep.mubr.bf16.mxu0 0
  %4701 = vmatmul.mubr.bf16.gmra.mrb[0].mxu0 %v4647
  %v4702 = vpop.f32.mrb[0].mxu0
  %v4703 = vadd.f32 %v4602, %v4702
  %v4704 = vpop.f32.mrb[0].mxu0
  %v4705 = vpop.f32.mrb[0].mxu0
  %v4706 = vadd.f32 %v4605, %v4705
  %v4707 = vpop.f32.mrb[0].mxu0
  %4708 = vmatprep.mubr.bf16.mxu0 0
  %4709 = vmatmul.mubr.bf16.gmra.mrb[0].mxu0 %v4650
  %v4710 = vpop.f32.mrb[0].mxu0
  %v4711 = vadd.f32 %v4610, %v4710
  %v4712 = vpop.f32.mrb[0].mxu0
  %v4713 = vpop.f32.mrb[0].mxu0
  %v4714 = vadd.f32 %v4613, %v4713
  %v4715 = vpop.f32.mrb[0].mxu0
  %4716 = vdwg.mxu0
  %v4717 = vld [vmem:[%s8] sm:$0xf]
  %v4718 = vld [vmem:[%s8 + $0x4] sm:$0xf]
  %v4719 = vld [vmem:[%s8 + $0x8] sm:$0xf]
  %v4720 = vld [vmem:[%s8 + $0xc] sm:$0xf]
  %v4721 = vld [vmem:[%s8 + $0x10] sm:$0xf]
  %v4722 = vld [vmem:[%s8 + $0x14] sm:$0xf]
  %v4723 = vld [vmem:[%s8 + $0x18] sm:$0xf]
  %v4724 = vld [vmem:[%s8 + $0x1c] sm:$0xf]
  %v4725 = vld [vmem:[%s8 + $0x20] sm:$0xf]
  %v4726 = vld [vmem:[%s8 + $0x24] sm:$0xf]
  %v4727 = vld [vmem:[%s8 + $0x28] sm:$0xf]
  %v4728 = vld [vmem:[%s8 + $0x2c] sm:$0xf]
  %v4729 = vld [vmem:[%s8 + $0x30] sm:$0xf]
  %v4730 = vld [vmem:[%s8 + $0x34] sm:$0xf]
  %v4731 = vld [vmem:[%s8 + $0x38] sm:$0xf]
  %v4732 = vld [vmem:[%s8 + $0x3c] sm:$0xf]
  %v4741 = vunpack.c.l.b16 %v4725
  %v4742 = vunpack.c.l.b16 %v4726
  %v4743 = vunpack.c.l.b16 %v4727
  %v4744 = vunpack.c.l.b16 %v4728
  %v4745 = vunpack.c.l.b16 %v4729
  %v4746 = vunpack.c.l.b16 %v4730
  %v4747 = vunpack.c.l.b16 %v4731
  %v4748 = vunpack.c.l.b16 %v4732
  %v4749 = vpack.c.b16 %v4742, %v4741
  %v4750 = vpack.c.b16 %v4744, %v4743
  %v4751 = vpack.c.b16 %v4746, %v4745
  %v4752 = vpack.c.b16 %v4748, %v4747
  %4757 = vmatprep.subr.bf16.mxu0 0
  %4758 = vmatpush1.bf16.msra.mxu0 %v4749
  %4759 = vmatprep.subr.bf16.mxu0 0
  %4760 = vmatpush1.bf16.msra.mxu0 %v4750
  %4761 = vmatprep.subr.bf16.mxu0 0
  %4762 = vmatpush1.bf16.msra.mxu0 %v4751
  %4763 = vmatprep.subr.bf16.mxu0 0
  %4764 = vmatpush1.bf16.msra.mxu0 %v4752
  %4765 = vmatprep.subr.bf16.mxu0 0
  %4766 = vmatpush1.bf16.msra.mxu0 0
  %4767 = vmatprep.subr.bf16.mxu0 0
  %4768 = vmatpush1.bf16.msra.mxu0 0
  %4769 = vmatprep.subr.bf16.mxu0 0
  %4770 = vmatpush1.bf16.msra.mxu0 0
  %4771 = vmatprep.subr.bf16.mxu0 0
  %4772 = vmatpush1.bf16.msra.mxu0 0
  %4773 = vmatprep.subr.bf16.mxu0 0
  %4774 = vmatpush1.bf16.msra.mxu0 0
  %4775 = vmatprep.subr.bf16.mxu0 0
  %4776 = vmatpush1.bf16.msra.mxu0 0
  %4777 = vmatprep.subr.bf16.mxu0 0
  %4778 = vmatpush1.bf16.msra.mxu0 0
  %4779 = vmatprep.subr.bf16.mxu0 0
  %4780 = vmatpush1.bf16.msra.mxu0 0
  %4781 = vmatprep.subr.bf16.mxu0 0
  %4782 = vmatpush1.bf16.msra.mxu0 0
  %4783 = vmatprep.subr.bf16.mxu0 0
  %4784 = vmatpush1.bf16.msra.mxu0 0
  %4785 = vmatprep.subr.bf16.mxu0 0
  %4786 = vmatpush1.bf16.msra.mxu0 0
  %4787 = vmatprep.subr.bf16.mxu0 0
  %4788 = vmatpush1.bf16.msra.mxu0 0
  %4789 = vmatprep.mubr.bf16.mxu0 0
  %4790 = vmatmul.mubr.bf16.gmra.mrb[0].mxu0 %v1250
  %v4791 = vpop.f32.mrb[0].mxu0
  %v4792 = vadd.f32 0.0, %v4791
  %v4793 = vpop.f32.mrb[0].mxu0
  %v4794 = vpop.f32.mrb[0].mxu0
  %v4795 = vadd.f32 0.0, %v4794
  %v4796 = vpop.f32.mrb[0].mxu0
  %4797 = vmatprep.mubr.bf16.mxu0 0
  %4798 = vmatmul.mubr.bf16.gmra.mrb[0].mxu0 %v1253
  %v4799 = vpop.f32.mrb[0].mxu0
  %v4800 = vadd.f32 0.0, %v4799
  %v4801 = vpop.f32.mrb[0].mxu0
  %v4802 = vpop.f32.mrb[0].mxu0
  %v4803 = vadd.f32 0.0, %v4802
  %v4804 = vpop.f32.mrb[0].mxu0
  %4805 = vmatprep.mubr.bf16.mxu0 0
  %4806 = vmatmul.mubr.bf16.gmra.mrb[0].mxu0 %v1256
  %v4807 = vpop.f32.mrb[0].mxu0
  %v4808 = vadd.f32 0.0, %v4807
  %v4809 = vpop.f32.mrb[0].mxu0
  %v4810 = vpop.f32.mrb[0].mxu0
  %v4811 = vadd.f32 0.0, %v4810
  %v4812 = vpop.f32.mrb[0].mxu0
  %4813 = vmatprep.mubr.bf16.mxu0 0
  %4814 = vmatmul.mubr.bf16.gmra.mrb[0].mxu0 %v1259
  %v4815 = vpop.f32.mrb[0].mxu0
  %v4816 = vadd.f32 0.0, %v4815
  %v4817 = vpop.f32.mrb[0].mxu0
  %v4818 = vpop.f32.mrb[0].mxu0
  %v4819 = vadd.f32 0.0, %v4818
  %v4820 = vpop.f32.mrb[0].mxu0
  %4821 = vdwg.mxu0
  %v4830 = vunpack.c.l.b16 %v4717
  %v4831 = vunpack.c.l.b16 %v4718
  %v4832 = vunpack.c.l.b16 %v4719
  %v4833 = vunpack.c.l.b16 %v4720
  %v4834 = vunpack.c.l.b16 %v4721
  %v4835 = vunpack.c.l.b16 %v4722
  %v4836 = vunpack.c.l.b16 %v4723
  %v4837 = vunpack.c.l.b16 %v4724
  %v4838 = vpack.c.b16 %v4831, %v4830
  %v4839 = vpack.c.b16 %v4833, %v4832
  %v4840 = vpack.c.b16 %v4835, %v4834
  %v4841 = vpack.c.b16 %v4837, %v4836
  %4846 = vmatprep.subr.bf16.mxu0 0
  %4847 = vmatpush1.bf16.msra.mxu0 %v4838
  %4848 = vmatprep.subr.bf16.mxu0 0
  %4849 = vmatpush1.bf16.msra.mxu0 %v4839
  %4850 = vmatprep.subr.bf16.mxu0 0
  %4851 = vmatpush1.bf16.msra.mxu0 %v4840
  %4852 = vmatprep.subr.bf16.mxu0 0
  %4853 = vmatpush1.bf16.msra.mxu0 %v4841
  %4854 = vmatprep.subr.bf16.mxu0 0
  %4855 = vmatpush1.bf16.msra.mxu0 0
  %4856 = vmatprep.subr.bf16.mxu0 0
  %4857 = vmatpush1.bf16.msra.mxu0 0
  %4858 = vmatprep.subr.bf16.mxu0 0
  %4859 = vmatpush1.bf16.msra.mxu0 0
  %4860 = vmatprep.subr.bf16.mxu0 0
  %4861 = vmatpush1.bf16.msra.mxu0 0
  %4862 = vmatprep.subr.bf16.mxu0 0
  %4863 = vmatpush1.bf16.msra.mxu0 0
  %4864 = vmatprep.subr.bf16.mxu0 0
  %4865 = vmatpush1.bf16.msra.mxu0 0
  %4866 = vmatprep.subr.bf16.mxu0 0
  %4867 = vmatpush1.bf16.msra.mxu0 0
  %4868 = vmatprep.subr.bf16.mxu0 0
  %4869 = vmatpush1.bf16.msra.mxu0 0
  %4870 = vmatprep.subr.bf16.mxu0 0
  %4871 = vmatpush1.bf16.msra.mxu0 0
  %4872 = vmatprep.subr.bf16.mxu0 0
  %4873 = vmatpush1.bf16.msra.mxu0 0
  %4874 = vmatprep.subr.bf16.mxu0 0
  %4875 = vmatpush1.bf16.msra.mxu0 0
  %4876 = vmatprep.subr.bf16.mxu0 0
  %4877 = vmatpush1.bf16.msra.mxu0 0
  %4878 = vmatprep.mubr.bf16.mxu0 0
  %4879 = vmatmul.mubr.bf16.gmra.mrb[0].mxu0 %v1149
  %v4880 = vpop.f32.mrb[0].mxu0
  %v4881 = vadd.f32 %v4792, %v4880
  %v4882 = vpop.f32.mrb[0].mxu0
  %v4883 = vpop.f32.mrb[0].mxu0
  %v4884 = vadd.f32 %v4795, %v4883
  %v4885 = vpop.f32.mrb[0].mxu0
  %4886 = vmatprep.mubr.bf16.mxu0 0
  %4887 = vmatmul.mubr.bf16.gmra.mrb[0].mxu0 %v1152
  %v4888 = vpop.f32.mrb[0].mxu0
  %v4889 = vadd.f32 %v4800, %v4888
  %v4890 = vpop.f32.mrb[0].mxu0
  %v4891 = vpop.f32.mrb[0].mxu0
  %v4892 = vadd.f32 %v4803, %v4891
  %v4893 = vpop.f32.mrb[0].mxu0
  %4894 = vmatprep.mubr.bf16.mxu0 0
  %4895 = vmatmul.mubr.bf16.gmra.mrb[0].mxu0 %v1155
  %v4896 = vpop.f32.mrb[0].mxu0
  %v4897 = vadd.f32 %v4808, %v4896
  %v4898 = vpop.f32.mrb[0].mxu0
  %v4899 = vpop.f32.mrb[0].mxu0
  %v4900 = vadd.f32 %v4811, %v4899
  %v4901 = vpop.f32.mrb[0].mxu0
  %4902 = vmatprep.mubr.bf16.mxu0 0
  %4903 = vmatmul.mubr.bf16.gmra.mrb[0].mxu0 %v1158
  %v4904 = vpop.f32.mrb[0].mxu0
  %v4905 = vadd.f32 %v4816, %v4904
  %v4906 = vpop.f32.mrb[0].mxu0
  %v4907 = vpop.f32.mrb[0].mxu0
  %v4908 = vadd.f32 %v4819, %v4907
  %v4909 = vpop.f32.mrb[0].mxu0
  %4910 = vdwg.mxu0
  %v4911 = vld [vmem:[%s8 + $0x40] sm:$0xf]
  %v4912 = vld [vmem:[%s8 + $0x44] sm:$0xf]
  %v4913 = vld [vmem:[%s8 + $0x48] sm:$0xf]
  %v4914 = vld [vmem:[%s8 + $0x4c] sm:$0xf]
  %v4915 = vld [vmem:[%s8 + $0x50] sm:$0xf]
  %v4916 = vld [vmem:[%s8 + $0x54] sm:$0xf]
  %v4917 = vld [vmem:[%s8 + $0x58] sm:$0xf]
  %v4918 = vld [vmem:[%s8 + $0x5c] sm:$0xf]
  %v4919 = vld [vmem:[%s8 + $0x60] sm:$0xf]
  %v4920 = vld [vmem:[%s8 + $0x64] sm:$0xf]
  %v4921 = vld [vmem:[%s8 + $0x68] sm:$0xf]
  %v4922 = vld [vmem:[%s8 + $0x6c] sm:$0xf]
  %v4923 = vld [vmem:[%s8 + $0x70] sm:$0xf]
  %v4924 = vld [vmem:[%s8 + $0x74] sm:$0xf]
  %v4925 = vld [vmem:[%s8 + $0x78] sm:$0xf]
  %v4926 = vld [vmem:[%s8 + $0x7c] sm:$0xf]
  %v4935 = vunpack.c.l.b16 %v4919
  %v4936 = vunpack.c.l.b16 %v4920
  %v4937 = vunpack.c.l.b16 %v4921
  %v4938 = vunpack.c.l.b16 %v4922
  %v4939 = vunpack.c.l.b16 %v4923
  %v4940 = vunpack.c.l.b16 %v4924
  %v4941 = vunpack.c.l.b16 %v4925
  %v4942 = vunpack.c.l.b16 %v4926
  %v4943 = vpack.c.b16 %v4936, %v4935
  %v4944 = vpack.c.b16 %v4938, %v4937
  %v4945 = vpack.c.b16 %v4940, %v4939
  %v4946 = vpack.c.b16 %v4942, %v4941
  %4951 = vmatprep.subr.bf16.mxu0 0
  %4952 = vmatpush1.bf16.msra.mxu0 %v4943
  %4953 = vmatprep.subr.bf16.mxu0 0
  %4954 = vmatpush1.bf16.msra.mxu0 %v4944
  %4955 = vmatprep.subr.bf16.mxu0 0
  %4956 = vmatpush1.bf16.msra.mxu0 %v4945
  %4957 = vmatprep.subr.bf16.mxu0 0
  %4958 = vmatpush1.bf16.msra.mxu0 %v4946
  %4959 = vmatprep.subr.bf16.mxu0 0
  %4960 = vmatpush1.bf16.msra.mxu0 0
  %4961 = vmatprep.subr.bf16.mxu0 0
  %4962 = vmatpush1.bf16.msra.mxu0 0
  %4963 = vmatprep.subr.bf16.mxu0 0
  %4964 = vmatpush1.bf16.msra.mxu0 0
  %4965 = vmatprep.subr.bf16.mxu0 0
  %4966 = vmatpush1.bf16.msra.mxu0 0
  %4967 = vmatprep.subr.bf16.mxu0 0
  %4968 = vmatpush1.bf16.msra.mxu0 0
  %4969 = vmatprep.subr.bf16.mxu0 0
  %4970 = vmatpush1.bf16.msra.mxu0 0
  %4971 = vmatprep.subr.bf16.mxu0 0
  %4972 = vmatpush1.bf16.msra.mxu0 0
  %4973 = vmatprep.subr.bf16.mxu0 0
  %4974 = vmatpush1.bf16.msra.mxu0 0
  %4975 = vmatprep.subr.bf16.mxu0 0
  %4976 = vmatpush1.bf16.msra.mxu0 0
  %4977 = vmatprep.subr.bf16.mxu0 0
  %4978 = vmatpush1.bf16.msra.mxu0 0
  %4979 = vmatprep.subr.bf16.mxu0 0
  %4980 = vmatpush1.bf16.msra.mxu0 0
  %4981 = vmatprep.subr.bf16.mxu0 0
  %4982 = vmatpush1.bf16.msra.mxu0 0
  %4983 = vmatprep.mubr.bf16.mxu0 0
  %4984 = vmatmul.mubr.bf16.gmra.mrb[0].mxu0 %v1149
  %v4985 = vpop.f32.mrb[0].mxu0
  %v4986 = vadd.f32 0.0, %v4985
  %v4987 = vpop.f32.mrb[0].mxu0
  %v4988 = vpop.f32.mrb[0].mxu0
  %v4989 = vadd.f32 0.0, %v4988
  %v4990 = vpop.f32.mrb[0].mxu0
  %4991 = vmatprep.mubr.bf16.mxu0 0
  %4992 = vmatmul.mubr.bf16.gmra.mrb[0].mxu0 %v1152
  %v4993 = vpop.f32.mrb[0].mxu0
  %v4994 = vadd.f32 0.0, %v4993
  %v4995 = vpop.f32.mrb[0].mxu0
  %v4996 = vpop.f32.mrb[0].mxu0
  %v4997 = vadd.f32 0.0, %v4996
  %v4998 = vpop.f32.mrb[0].mxu0
  %4999 = vmatprep.mubr.bf16.mxu0 0
  %5000 = vmatmul.mubr.bf16.gmra.mrb[0].mxu0 %v1155
  %v5001 = vpop.f32.mrb[0].mxu0
  %v5002 = vadd.f32 0.0, %v5001
  %v5003 = vpop.f32.mrb[0].mxu0
  %v5004 = vpop.f32.mrb[0].mxu0
  %v5005 = vadd.f32 0.0, %v5004
  %v5006 = vpop.f32.mrb[0].mxu0
  %5007 = vmatprep.mubr.bf16.mxu0 0
  %5008 = vmatmul.mubr.bf16.gmra.mrb[0].mxu0 %v1158
  %v5009 = vpop.f32.mrb[0].mxu0
  %v5010 = vadd.f32 0.0, %v5009
  %v5011 = vpop.f32.mrb[0].mxu0
  %v5012 = vpop.f32.mrb[0].mxu0
  %v5013 = vadd.f32 0.0, %v5012
  %v5014 = vpop.f32.mrb[0].mxu0
  %5015 = vdwg.mxu0
  %v5024 = vunpack.c.l.b16 %v4911
  %v5025 = vunpack.c.l.b16 %v4912
  %v5026 = vunpack.c.l.b16 %v4913
  %v5027 = vunpack.c.l.b16 %v4914
  %v5028 = vunpack.c.l.b16 %v4915
  %v5029 = vunpack.c.l.b16 %v4916
  %v5030 = vunpack.c.l.b16 %v4917
  %v5031 = vunpack.c.l.b16 %v4918
  %v5032 = vpack.c.b16 %v5025, %v5024
  %v5033 = vpack.c.b16 %v5027, %v5026
  %v5034 = vpack.c.b16 %v5029, %v5028
  %v5035 = vpack.c.b16 %v5031, %v5030
  %5040 = vmatprep.subr.bf16.mxu0 0
  %5041 = vmatpush1.bf16.msra.mxu0 %v5032
  %5042 = vmatprep.subr.bf16.mxu0 0
  %5043 = vmatpush1.bf16.msra.mxu0 %v5033
  %5044 = vmatprep.subr.bf16.mxu0 0
  %5045 = vmatpush1.bf16.msra.mxu0 %v5034
  %5046 = vmatprep.subr.bf16.mxu0 0
  %5047 = vmatpush1.bf16.msra.mxu0 %v5035
  %5048 = vmatprep.subr.bf16.mxu0 0
  %5049 = vmatpush1.bf16.msra.mxu0 0
  %5050 = vmatprep.subr.bf16.mxu0 0
  %5051 = vmatpush1.bf16.msra.mxu0 0
  %5052 = vmatprep.subr.bf16.mxu0 0
  %5053 = vmatpush1.bf16.msra.mxu0 0
  %5054 = vmatprep.subr.bf16.mxu0 0
  %5055 = vmatpush1.bf16.msra.mxu0 0
  %5056 = vmatprep.subr.bf16.mxu0 0
  %5057 = vmatpush1.bf16.msra.mxu0 0
  %5058 = vmatprep.subr.bf16.mxu0 0
  %5059 = vmatpush1.bf16.msra.mxu0 0
  %5060 = vmatprep.subr.bf16.mxu0 0
  %5061 = vmatpush1.bf16.msra.mxu0 0
  %5062 = vmatprep.subr.bf16.mxu0 0
  %5063 = vmatpush1.bf16.msra.mxu0 0
  %5064 = vmatprep.subr.bf16.mxu0 0
  %5065 = vmatpush1.bf16.msra.mxu0 0
  %5066 = vmatprep.subr.bf16.mxu0 0
  %5067 = vmatpush1.bf16.msra.mxu0 0
  %5068 = vmatprep.subr.bf16.mxu0 0
  %5069 = vmatpush1.bf16.msra.mxu0 0
  %5070 = vmatprep.subr.bf16.mxu0 0
  %5071 = vmatpush1.bf16.msra.mxu0 0
  %5072 = vmatprep.mubr.bf16.mxu0 0
  %5073 = vmatmul.mubr.bf16.gmra.mrb[0].mxu0 %v1363
  %v5074 = vpop.f32.mrb[0].mxu0
  %v5075 = vadd.f32 %v4986, %v5074
  %v5076 = vpop.f32.mrb[0].mxu0
  %v5077 = vpop.f32.mrb[0].mxu0
  %v5078 = vadd.f32 %v4989, %v5077
  %v5079 = vpop.f32.mrb[0].mxu0
  %5080 = vmatprep.mubr.bf16.mxu0 0
  %5081 = vmatmul.mubr.bf16.gmra.mrb[0].mxu0 %v1366
  %v5082 = vpop.f32.mrb[0].mxu0
  %v5083 = vadd.f32 %v4994, %v5082
  %v5084 = vpop.f32.mrb[0].mxu0
  %v5085 = vpop.f32.mrb[0].mxu0
  %v5086 = vadd.f32 %v4997, %v5085
  %v5087 = vpop.f32.mrb[0].mxu0
  %5088 = vmatprep.mubr.bf16.mxu0 0
  %5089 = vmatmul.mubr.bf16.gmra.mrb[0].mxu0 %v1369
  %v5090 = vpop.f32.mrb[0].mxu0
  %v5091 = vadd.f32 %v5002, %v5090
  %v5092 = vpop.f32.mrb[0].mxu0
  %v5093 = vpop.f32.mrb[0].mxu0
  %v5094 = vadd.f32 %v5005, %v5093
  %v5095 = vpop.f32.mrb[0].mxu0
  %5096 = vmatprep.mubr.bf16.mxu0 0
  %5097 = vmatmul.mubr.bf16.gmra.mrb[0].mxu0 %v1372
  %v5098 = vpop.f32.mrb[0].mxu0
  %v5099 = vadd.f32 %v5010, %v5098
  %v5100 = vpop.f32.mrb[0].mxu0
  %v5101 = vpop.f32.mrb[0].mxu0
  %v5102 = vadd.f32 %v5013, %v5101
  %v5103 = vpop.f32.mrb[0].mxu0
  %5104 = vdwg.mxu0
  %v5105 = vadd.f32 %v4481, %v4881
  %v5106 = vadd.f32 %v4484, %v4884
  %v5107 = vadd.f32 %v4489, %v4889
  %v5108 = vadd.f32 %v4492, %v4892
  %v5109 = vadd.f32 %v4497, %v4897
  %v5110 = vadd.f32 %v4500, %v4900
  %v5111 = vadd.f32 %v4505, %v4905
  %v5112 = vadd.f32 %v4508, %v4908
  %v5113 = vadd.f32 %v4687, %v5075
  %v5114 = vadd.f32 %v4690, %v5078
  %v5115 = vadd.f32 %v4695, %v5083
  %v5116 = vadd.f32 %v4698, %v5086
  %v5117 = vadd.f32 %v4703, %v5091
  %v5118 = vadd.f32 %v4706, %v5094
  %v5119 = vadd.f32 %v4711, %v5099
  %v5120 = vadd.f32 %v4714, %v5102
  %v5121 = vpack.c.bf16 %v5106, %v5105
  %v5122 = vpack.c.bf16 %v5108, %v5107
  %v5123 = vpack.c.bf16 %v5110, %v5109
  %v5124 = vpack.c.bf16 %v5112, %v5111
  %v5125 = vpack.c.bf16 %v5114, %v5113
  %v5126 = vpack.c.bf16 %v5116, %v5115
  %v5127 = vpack.c.bf16 %v5118, %v5117
  %v5128 = vpack.c.bf16 %v5120, %v5119
  %vm5129 = vcmp.eq.s32.totalorder %v126, %v2663
  %vm5130 = vcmp.eq.s32.totalorder %v127, %v2663
  %vm5131 = vcmp.eq.s32.totalorder %v128, %v2663
  %vm5132 = vcmp.eq.s32.totalorder %v129, %v2663
  %v5133 = vsel %vm5129, 1, 0
  %v5134 = vsel %vm5130, 1, 0
  %v5135 = vsel %vm5131, 1, 0
  %v5136 = vsel %vm5132, 1, 0
  %v5137 = vcvt.s32.f32 %v5133
  %v5138 = vcvt.s32.f32 %v5134
  %v5139 = vcvt.s32.f32 %v5135
  %v5140 = vcvt.s32.f32 %v5136
  %v5141 = vpack.c.bf16 %v5138, %v5137
  %v5142 = vpack.c.bf16 %v5140, %v5139
  %vm5143 = vcmp.eq.s32.totalorder %v126, %v2671
  %vm5144 = vcmp.eq.s32.totalorder %v127, %v2671
  %vm5145 = vcmp.eq.s32.totalorder %v128, %v2671
  %vm5146 = vcmp.eq.s32.totalorder %v129, %v2671
  %v5147 = vsel %vm5143, 1, 0
  %v5148 = vsel %vm5144, 1, 0
  %v5149 = vsel %vm5145, 1, 0
  %v5150 = vsel %vm5146, 1, 0
  %v5151 = vcvt.s32.f32 %v5147
  %v5152 = vcvt.s32.f32 %v5148
  %v5153 = vcvt.s32.f32 %v5149
  %v5154 = vcvt.s32.f32 %v5150
  %v5155 = vpack.c.bf16 %v5152, %v5151
  %v5156 = vpack.c.bf16 %v5154, %v5153
  %v5157 = vsel %vm214, %v2678, 0
  %v5159 = vsel %vm214, %v3894, 0
  %v5162 = vsel %vm214, %v5155, 0
  %v5165 = vsel %vm214, %v5156, 0
  %5167 = vmatprep.subr.bf16.mxu0 0
  %5168 = vmatpush1.bf16.msra.mxu0 %v5125
  %5169 = vmatprep.subr.bf16.mxu0 0
  %5170 = vmatpush1.bf16.msra.mxu0 %v5126
  %5171 = vmatprep.subr.bf16.mxu0 0
  %5172 = vmatpush1.bf16.msra.mxu0 0
  %5173 = vmatprep.subr.bf16.mxu0 0
  %5174 = vmatpush1.bf16.msra.mxu0 0
  %5175 = vmatprep.subr.bf16.mxu0 0
  %5176 = vmatpush1.bf16.msra.mxu0 0
  %5177 = vmatprep.subr.bf16.mxu0 0
  %5178 = vmatpush1.bf16.msra.mxu0 0
  %5179 = vmatprep.subr.bf16.mxu0 0
  %5180 = vmatpush1.bf16.msra.mxu0 0
  %5181 = vmatprep.subr.bf16.mxu0 0
  %5182 = vmatpush1.bf16.msra.mxu0 0
  %5183 = vmatprep.subr.bf16.mxu0 0
  %5184 = vmatpush1.bf16.msra.mxu0 0
  %5185 = vmatprep.subr.bf16.mxu0 0
  %5186 = vmatpush1.bf16.msra.mxu0 0
  %5187 = vmatprep.subr.bf16.mxu0 0
  %5188 = vmatpush1.bf16.msra.mxu0 0
  %5189 = vmatprep.subr.bf16.mxu0 0
  %5190 = vmatpush1.bf16.msra.mxu0 0
  %5191 = vmatprep.subr.bf16.mxu0 0
  %5192 = vmatpush1.bf16.msra.mxu0 0
  %5193 = vmatprep.subr.bf16.mxu0 0
  %5194 = vmatpush1.bf16.msra.mxu0 0
  %5195 = vmatprep.subr.bf16.mxu0 0
  %5196 = vmatpush1.bf16.msra.mxu0 0
  %5197 = vmatprep.subr.bf16.mxu0 0
  %5198 = vmatpush1.bf16.msra.mxu0 0
  %5199 = vmatprep.mubr.bf16.mxu0 0
  %5200 = vmatmul.mubr.bf16.gmra.mrb[0].mxu0 %v5157
  %v5201 = vpop.f32.mrb[0].mxu0
  %v5202 = vadd.f32 0.0, %v5201
  %v5203 = vpop.f32.mrb[0].mxu0
  %v5204 = vpop.f32.mrb[0].mxu0
  %v5205 = vadd.f32 0.0, %v5204
  %v5206 = vpop.f32.mrb[0].mxu0
  %5207 = vmatprep.mubr.bf16.mxu0 0
  %5208 = vmatmul.mubr.bf16.gmra.mrb[0].mxu0 %v5159
  %v5209 = vpop.f32.mrb[0].mxu0
  %v5210 = vadd.f32 0.0, %v5209
  %v5211 = vpop.f32.mrb[0].mxu0
  %v5212 = vpop.f32.mrb[0].mxu0
  %v5213 = vadd.f32 0.0, %v5212
  %v5214 = vpop.f32.mrb[0].mxu0
  %5215 = vmatprep.mubr.bf16.mxu0 0
  %5216 = vmatmul.mubr.bf16.gmra.mrb[0].mxu0 %v5162
  %v5217 = vpop.f32.mrb[0].mxu0
  %v5218 = vadd.f32 0.0, %v5217
  %v5219 = vpop.f32.mrb[0].mxu0
  %v5220 = vpop.f32.mrb[0].mxu0
  %v5221 = vadd.f32 0.0, %v5220
  %v5222 = vpop.f32.mrb[0].mxu0
  %5223 = vmatprep.mubr.bf16.mxu0 0
  %5224 = vmatmul.mubr.bf16.gmra.mrb[0].mxu0 %v5165
  %v5225 = vpop.f32.mrb[0].mxu0
  %v5226 = vadd.f32 0.0, %v5225
  %v5227 = vpop.f32.mrb[0].mxu0
  %v5228 = vpop.f32.mrb[0].mxu0
  %v5229 = vadd.f32 0.0, %v5228
  %v5230 = vpop.f32.mrb[0].mxu0
  %5231 = vdwg.mxu0
  %5232 = vmatprep.subr.bf16.mxu0 0
  %5233 = vmatpush1.bf16.msra.mxu0 %v5127
  %5234 = vmatprep.subr.bf16.mxu0 0
  %5235 = vmatpush1.bf16.msra.mxu0 %v5128
  %5236 = vmatprep.subr.bf16.mxu0 0
  %5237 = vmatpush1.bf16.msra.mxu0 0
  %5238 = vmatprep.subr.bf16.mxu0 0
  %5239 = vmatpush1.bf16.msra.mxu0 0
  %5240 = vmatprep.subr.bf16.mxu0 0
  %5241 = vmatpush1.bf16.msra.mxu0 0
  %5242 = vmatprep.subr.bf16.mxu0 0
  %5243 = vmatpush1.bf16.msra.mxu0 0
  %5244 = vmatprep.subr.bf16.mxu0 0
  %5245 = vmatpush1.bf16.msra.mxu0 0
  %5246 = vmatprep.subr.bf16.mxu0 0
  %5247 = vmatpush1.bf16.msra.mxu0 0
  %5248 = vmatprep.subr.bf16.mxu0 0
  %5249 = vmatpush1.bf16.msra.mxu0 0
  %5250 = vmatprep.subr.bf16.mxu0 0
  %5251 = vmatpush1.bf16.msra.mxu0 0
  %5252 = vmatprep.subr.bf16.mxu0 0
  %5253 = vmatpush1.bf16.msra.mxu0 0
  %5254 = vmatprep.subr.bf16.mxu0 0
  %5255 = vmatpush1.bf16.msra.mxu0 0
  %5256 = vmatprep.subr.bf16.mxu0 0
  %5257 = vmatpush1.bf16.msra.mxu0 0
  %5258 = vmatprep.subr.bf16.mxu0 0
  %5259 = vmatpush1.bf16.msra.mxu0 0
  %5260 = vmatprep.subr.bf16.mxu0 0
  %5261 = vmatpush1.bf16.msra.mxu0 0
  %5262 = vmatprep.subr.bf16.mxu0 0
  %5263 = vmatpush1.bf16.msra.mxu0 0
  %5264 = vmatprep.mubr.bf16.mxu0 0
  %5265 = vmatmul.mubr.bf16.gmra.mrb[0].mxu0 %v5157
  %v5266 = vpop.f32.mrb[0].mxu0
  %v5267 = vadd.f32 0.0, %v5266
  %v5268 = vpop.f32.mrb[0].mxu0
  %v5269 = vpop.f32.mrb[0].mxu0
  %v5270 = vadd.f32 0.0, %v5269
  %v5271 = vpop.f32.mrb[0].mxu0
  %5272 = vmatprep.mubr.bf16.mxu0 0
  %5273 = vmatmul.mubr.bf16.gmra.mrb[0].mxu0 %v5159
  %v5274 = vpop.f32.mrb[0].mxu0
  %v5275 = vadd.f32 0.0, %v5274
  %v5276 = vpop.f32.mrb[0].mxu0
  %v5277 = vpop.f32.mrb[0].mxu0
  %v5278 = vadd.f32 0.0, %v5277
  %v5279 = vpop.f32.mrb[0].mxu0
  %5280 = vmatprep.mubr.bf16.mxu0 0
  %5281 = vmatmul.mubr.bf16.gmra.mrb[0].mxu0 %v5162
  %v5282 = vpop.f32.mrb[0].mxu0
  %v5283 = vadd.f32 0.0, %v5282
  %v5284 = vpop.f32.mrb[0].mxu0
  %v5285 = vpop.f32.mrb[0].mxu0
  %v5286 = vadd.f32 0.0, %v5285
  %v5287 = vpop.f32.mrb[0].mxu0
  %5288 = vmatprep.mubr.bf16.mxu0 0
  %5289 = vmatmul.mubr.bf16.gmra.mrb[0].mxu0 %v5165
  %v5290 = vpop.f32.mrb[0].mxu0
  %v5291 = vadd.f32 0.0, %v5290
  %v5292 = vpop.f32.mrb[0].mxu0
  %v5293 = vpop.f32.mrb[0].mxu0
  %v5294 = vadd.f32 0.0, %v5293
  %v5295 = vpop.f32.mrb[0].mxu0
  %5296 = vdwg.mxu0
  %v5297 = vsel %vm214, %v2670, 0
  %v5299 = vsel %vm214, %v3887, 0
  %v5302 = vsel %vm214, %v5141, 0
  %v5305 = vsel %vm214, %v5142, 0
  %5307 = vmatprep.subr.bf16.mxu0 0
  %5308 = vmatpush1.bf16.msra.mxu0 %v5121
  %5309 = vmatprep.subr.bf16.mxu0 0
  %5310 = vmatpush1.bf16.msra.mxu0 %v5122
  %5311 = vmatprep.subr.bf16.mxu0 0
  %5312 = vmatpush1.bf16.msra.mxu0 0
  %5313 = vmatprep.subr.bf16.mxu0 0
  %5314 = vmatpush1.bf16.msra.mxu0 0
  %5315 = vmatprep.subr.bf16.mxu0 0
  %5316 = vmatpush1.bf16.msra.mxu0 0
  %5317 = vmatprep.subr.bf16.mxu0 0
  %5318 = vmatpush1.bf16.msra.mxu0 0
  %5319 = vmatprep.subr.bf16.mxu0 0
  %5320 = vmatpush1.bf16.msra.mxu0 0
  %5321 = vmatprep.subr.bf16.mxu0 0
  %5322 = vmatpush1.bf16.msra.mxu0 0
  %5323 = vmatprep.subr.bf16.mxu0 0
  %5324 = vmatpush1.bf16.msra.mxu0 0
  %5325 = vmatprep.subr.bf16.mxu0 0
  %5326 = vmatpush1.bf16.msra.mxu0 0
  %5327 = vmatprep.subr.bf16.mxu0 0
  %5328 = vmatpush1.bf16.msra.mxu0 0
  %5329 = vmatprep.subr.bf16.mxu0 0
  %5330 = vmatpush1.bf16.msra.mxu0 0
  %5331 = vmatprep.subr.bf16.mxu0 0
  %5332 = vmatpush1.bf16.msra.mxu0 0
  %5333 = vmatprep.subr.bf16.mxu0 0
  %5334 = vmatpush1.bf16.msra.mxu0 0
  %5335 = vmatprep.subr.bf16.mxu0 0
  %5336 = vmatpush1.bf16.msra.mxu0 0
  %5337 = vmatprep.subr.bf16.mxu0 0
  %5338 = vmatpush1.bf16.msra.mxu0 0
  %5339 = vmatprep.mubr.bf16.mxu0 0
  %5340 = vmatmul.mubr.bf16.gmra.mrb[0].mxu0 %v5297
  %v5341 = vpop.f32.mrb[0].mxu0
  %v5342 = vadd.f32 %v5202, %v5341
  %v5343 = vpop.f32.mrb[0].mxu0
  %v5344 = vpop.f32.mrb[0].mxu0
  %v5345 = vadd.f32 %v5205, %v5344
  %v5346 = vpop.f32.mrb[0].mxu0
  %5347 = vmatprep.mubr.bf16.mxu0 0
  %5348 = vmatmul.mubr.bf16.gmra.mrb[0].mxu0 %v5299
  %v5349 = vpop.f32.mrb[0].mxu0
  %v5350 = vadd.f32 %v5210, %v5349
  %v5351 = vpop.f32.mrb[0].mxu0
  %v5352 = vpop.f32.mrb[0].mxu0
  %v5353 = vadd.f32 %v5213, %v5352
  %v5354 = vpop.f32.mrb[0].mxu0
  %5355 = vmatprep.mubr.bf16.mxu0 0
  %5356 = vmatmul.mubr.bf16.gmra.mrb[0].mxu0 %v5302
  %v5357 = vpop.f32.mrb[0].mxu0
  %v5358 = vadd.f32 %v5218, %v5357
  %v5359 = vpop.f32.mrb[0].mxu0
  %v5360 = vpop.f32.mrb[0].mxu0
  %v5361 = vadd.f32 %v5221, %v5360
  %v5362 = vpop.f32.mrb[0].mxu0
  %5363 = vmatprep.mubr.bf16.mxu0 0
  %5364 = vmatmul.mubr.bf16.gmra.mrb[0].mxu0 %v5305
  %v5365 = vpop.f32.mrb[0].mxu0
  %v5366 = vadd.f32 %v5226, %v5365
  %v5367 = vpop.f32.mrb[0].mxu0
  %v5368 = vpop.f32.mrb[0].mxu0
  %v5369 = vadd.f32 %v5229, %v5368
  %v5370 = vpop.f32.mrb[0].mxu0
  %5371 = vdwg.mxu0
  %5372 = vmatprep.subr.bf16.mxu0 0
  %5373 = vmatpush1.bf16.msra.mxu0 %v5123
  %5374 = vmatprep.subr.bf16.mxu0 0
  %5375 = vmatpush1.bf16.msra.mxu0 %v5124
  %5376 = vmatprep.subr.bf16.mxu0 0
  %5377 = vmatpush1.bf16.msra.mxu0 0
  %5378 = vmatprep.subr.bf16.mxu0 0
  %5379 = vmatpush1.bf16.msra.mxu0 0
  %5380 = vmatprep.subr.bf16.mxu0 0
  %5381 = vmatpush1.bf16.msra.mxu0 0
  %5382 = vmatprep.subr.bf16.mxu0 0
  %5383 = vmatpush1.bf16.msra.mxu0 0
  %5384 = vmatprep.subr.bf16.mxu0 0
  %5385 = vmatpush1.bf16.msra.mxu0 0
  %5386 = vmatprep.subr.bf16.mxu0 0
  %5387 = vmatpush1.bf16.msra.mxu0 0
  %5388 = vmatprep.subr.bf16.mxu0 0
  %5389 = vmatpush1.bf16.msra.mxu0 0
  %5390 = vmatprep.subr.bf16.mxu0 0
  %5391 = vmatpush1.bf16.msra.mxu0 0
  %5392 = vmatprep.subr.bf16.mxu0 0
  %5393 = vmatpush1.bf16.msra.mxu0 0
  %5394 = vmatprep.subr.bf16.mxu0 0
  %5395 = vmatpush1.bf16.msra.mxu0 0
  %5396 = vmatprep.subr.bf16.mxu0 0
  %5397 = vmatpush1.bf16.msra.mxu0 0
  %5398 = vmatprep.subr.bf16.mxu0 0
  %5399 = vmatpush1.bf16.msra.mxu0 0
  %5400 = vmatprep.subr.bf16.mxu0 0
  %5401 = vmatpush1.bf16.msra.mxu0 0
  %5402 = vmatprep.subr.bf16.mxu0 0
  %5403 = vmatpush1.bf16.msra.mxu0 0
  %5404 = vmatprep.mubr.bf16.mxu0 0
  %5405 = vmatmul.mubr.bf16.gmra.mrb[0].mxu0 %v5297
  %v5406 = vpop.f32.mrb[0].mxu0
  %v5407 = vadd.f32 %v5267, %v5406
  %v5408 = vpop.f32.mrb[0].mxu0
  %v5409 = vpop.f32.mrb[0].mxu0
  %v5410 = vadd.f32 %v5270, %v5409
  %v5411 = vpop.f32.mrb[0].mxu0
  %5412 = vmatprep.mubr.bf16.mxu0 0
  %5413 = vmatmul.mubr.bf16.gmra.mrb[0].mxu0 %v5299
  %v5414 = vpop.f32.mrb[0].mxu0
  %v5415 = vadd.f32 %v5275, %v5414
  %v5416 = vpop.f32.mrb[0].mxu0
  %v5417 = vpop.f32.mrb[0].mxu0
  %v5418 = vadd.f32 %v5278, %v5417
  %v5419 = vpop.f32.mrb[0].mxu0
  %5420 = vmatprep.mubr.bf16.mxu0 0
  %5421 = vmatmul.mubr.bf16.gmra.mrb[0].mxu0 %v5302
  %v5422 = vpop.f32.mrb[0].mxu0
  %v5423 = vadd.f32 %v5283, %v5422
  %v5424 = vpop.f32.mrb[0].mxu0
  %v5425 = vpop.f32.mrb[0].mxu0
  %v5426 = vadd.f32 %v5286, %v5425
  %v5427 = vpop.f32.mrb[0].mxu0
  %5428 = vmatprep.mubr.bf16.mxu0 0
  %5429 = vmatmul.mubr.bf16.gmra.mrb[0].mxu0 %v5305
  %v5430 = vpop.f32.mrb[0].mxu0
  %v5431 = vadd.f32 %v5291, %v5430
  %v5432 = vpop.f32.mrb[0].mxu0
  %v5433 = vpop.f32.mrb[0].mxu0
  %v5434 = vadd.f32 %v5294, %v5433
  %v5435 = vpop.f32.mrb[0].mxu0
  %5436 = vdwg.mxu0
  %v5437 = vsel %vm214, %v5342, 0.0
  %v5438 = vsel %vm214, %v5345, 0.0
  %v5439 = vadd.f32 %v5437, %v5438
  %v5440 = vsel %vm214, %v5350, 0.0
  %v5441 = vadd.f32 %v5439, %v5440
  %v5442 = vsel %vm214, %v5353, 0.0
  %v5443 = vadd.f32 %v5441, %v5442
  %v5444 = vsel %vm214, %v5358, 0.0
  %v5445 = vadd.f32 %v5443, %v5444
  %v5446 = vsel %vm214, %v5361, 0.0
  %v5447 = vadd.f32 %v5445, %v5446
  %v5448 = vsel %vm214, %v5366, 0.0
  %v5449 = vadd.f32 %v5447, %v5448
  %v5450 = vsel %vm214, %v5369, 0.0
  %v5451 = vadd.f32 %v5449, %v5450
  %v5452 = vrot.slane %v5451, 4
  %v5453 = vadd.f32 %v5451, %v5452
  %v5454 = vrot.slane %v5453, 2
  %v5455 = vadd.f32 %v5453, %v5454
  %v5456 = vrot.slane %v5455, 1
  %v5457 = vadd.f32 %v5455, %v5456
  %v5458 = vsel %vm214, %v5407, 0.0
  %v5459 = vsel %vm214, %v5410, 0.0
  %v5460 = vadd.f32 %v5458, %v5459
  %v5461 = vsel %vm214, %v5415, 0.0
  %v5462 = vadd.f32 %v5460, %v5461
  %v5463 = vsel %vm214, %v5418, 0.0
  %v5464 = vadd.f32 %v5462, %v5463
  %v5465 = vsel %vm214, %v5423, 0.0
  %v5466 = vadd.f32 %v5464, %v5465
  %v5467 = vsel %vm214, %v5426, 0.0
  %v5468 = vadd.f32 %v5466, %v5467
  %v5469 = vsel %vm214, %v5431, 0.0
  %v5470 = vadd.f32 %v5468, %v5469
  %v5471 = vsel %vm214, %v5434, 0.0
  %v5472 = vadd.f32 %v5470, %v5471
  %v5473 = vrot.slane %v5472, 4
  %v5474 = vadd.f32 %v5472, %v5473
  %v5475 = vrot.slane %v5474, 2
  %v5476 = vadd.f32 %v5474, %v5475
  %v5477 = vrot.slane %v5476, 1
  %v5478 = vadd.f32 %v5476, %v5477
  %v5479 = vmul.f32 %v5457, %v673
  %v5480 = vmul.f32 %v5478, %v673
  %v5481 = vsub.f32 %v5342, %v5479
  %v5482 = vsub.f32 %v5345, %v5479
  %v5483 = vsub.f32 %v5350, %v5479
  %v5484 = vsub.f32 %v5353, %v5479
  %v5485 = vsub.f32 %v5358, %v5479
  %v5486 = vsub.f32 %v5361, %v5479
  %v5487 = vsub.f32 %v5366, %v5479
  %v5488 = vsub.f32 %v5369, %v5479
  %v5489 = vsub.f32 %v5407, %v5480
  %v5490 = vsub.f32 %v5410, %v5480
  %v5491 = vsub.f32 %v5415, %v5480
  %v5492 = vsub.f32 %v5418, %v5480
  %v5493 = vsub.f32 %v5423, %v5480
  %v5494 = vsub.f32 %v5426, %v5480
  %v5495 = vsub.f32 %v5431, %v5480
  %v5496 = vsub.f32 %v5434, %v5480
  %v5497 = vmul.f32 %v5481, %v5481
  %v5498 = vmul.f32 %v5482, %v5482
  %v5499 = vmul.f32 %v5483, %v5483
  %v5500 = vmul.f32 %v5484, %v5484
  %v5501 = vmul.f32 %v5485, %v5485
  %v5502 = vmul.f32 %v5486, %v5486
  %v5503 = vmul.f32 %v5487, %v5487
  %v5504 = vmul.f32 %v5488, %v5488
  %v5505 = vmul.f32 %v5489, %v5489
  %v5506 = vmul.f32 %v5490, %v5490
  %v5507 = vmul.f32 %v5491, %v5491
  %v5508 = vmul.f32 %v5492, %v5492
  %v5509 = vmul.f32 %v5493, %v5493
  %v5510 = vmul.f32 %v5494, %v5494
  %v5511 = vmul.f32 %v5495, %v5495
  %v5512 = vmul.f32 %v5496, %v5496
  %v5513 = vsel %vm214, %v5497, 0.0
  %v5514 = vsel %vm214, %v5498, 0.0
  %v5515 = vadd.f32 %v5513, %v5514
  %v5516 = vsel %vm214, %v5499, 0.0
  %v5517 = vadd.f32 %v5515, %v5516
  %v5518 = vsel %vm214, %v5500, 0.0
  %v5519 = vadd.f32 %v5517, %v5518
  %v5520 = vsel %vm214, %v5501, 0.0
  %v5521 = vadd.f32 %v5519, %v5520
  %v5522 = vsel %vm214, %v5502, 0.0
  %v5523 = vadd.f32 %v5521, %v5522
  %v5524 = vsel %vm214, %v5503, 0.0
  %v5525 = vadd.f32 %v5523, %v5524
  %v5526 = vsel %vm214, %v5504, 0.0
  %v5527 = vadd.f32 %v5525, %v5526
  %v5528 = vrot.slane %v5527, 4
  %v5529 = vadd.f32 %v5527, %v5528
  %v5530 = vrot.slane %v5529, 2
  %v5531 = vadd.f32 %v5529, %v5530
  %v5532 = vrot.slane %v5531, 1
  %v5533 = vadd.f32 %v5531, %v5532
  %v5534 = vsel %vm214, %v5505, 0.0
  %v5535 = vsel %vm214, %v5506, 0.0
  %v5536 = vadd.f32 %v5534, %v5535
  %v5537 = vsel %vm214, %v5507, 0.0
  %v5538 = vadd.f32 %v5536, %v5537
  %v5539 = vsel %vm214, %v5508, 0.0
  %v5540 = vadd.f32 %v5538, %v5539
  %v5541 = vsel %vm214, %v5509, 0.0
  %v5542 = vadd.f32 %v5540, %v5541
  %v5543 = vsel %vm214, %v5510, 0.0
  %v5544 = vadd.f32 %v5542, %v5543
  %v5545 = vsel %vm214, %v5511, 0.0
  %v5546 = vadd.f32 %v5544, %v5545
  %v5547 = vsel %vm214, %v5512, 0.0
  %v5548 = vadd.f32 %v5546, %v5547
  %v5549 = vrot.slane %v5548, 4
  %v5550 = vadd.f32 %v5548, %v5549
  %v5551 = vrot.slane %v5550, 2
  %v5552 = vadd.f32 %v5550, %v5551
  %v5553 = vrot.slane %v5552, 1
  %v5554 = vadd.f32 %v5552, %v5553
  %v5555 = vmul.f32 %v5533, %v673
  %v5556 = vmul.f32 %v5554, %v673
  %v5557 = vadd.f32 %v5555, 1e-05
  %v5558 = vadd.f32 %v5556, 1e-05
  %v5559 = vrsqrt.pop %v5557
  %v5560 = vrsqrt.pop %v5558
  %v5561 = vmul.f32 %v5481, %v5559
  %v5562 = vmul.f32 %v5482, %v5559
  %v5563 = vmul.f32 %v5483, %v5559
  %v5564 = vmul.f32 %v5484, %v5559
  %v5565 = vmul.f32 %v5485, %v5559
  %v5566 = vmul.f32 %v5486, %v5559
  %v5567 = vmul.f32 %v5487, %v5559
  %v5568 = vmul.f32 %v5488, %v5559
  %v5569 = vmul.f32 %v5489, %v5560
  %v5570 = vmul.f32 %v5490, %v5560
  %v5571 = vmul.f32 %v5491, %v5560
  %v5572 = vmul.f32 %v5492, %v5560
  %v5573 = vmul.f32 %v5493, %v5560
  %v5574 = vmul.f32 %v5494, %v5560
  %v5575 = vmul.f32 %v5495, %v5560
  %v5576 = vmul.f32 %v5496, %v5560
  %vm5577 = vcmp.gt.f32.partialorder %v5561, 0.0
  %vm5578 = vcmp.gt.f32.partialorder %v5562, 0.0
  %vm5579 = vcmp.gt.f32.partialorder %v5563, 0.0
  %vm5580 = vcmp.gt.f32.partialorder %v5564, 0.0
  %vm5581 = vcmp.gt.f32.partialorder %v5565, 0.0
  %vm5582 = vcmp.gt.f32.partialorder %v5566, 0.0
  %vm5583 = vcmp.gt.f32.partialorder %v5567, 0.0
  %vm5584 = vcmp.gt.f32.partialorder %v5568, 0.0
  %vm5585 = vcmp.gt.f32.partialorder %v5569, 0.0
  %vm5586 = vcmp.gt.f32.partialorder %v5570, 0.0
  %vm5587 = vcmp.gt.f32.partialorder %v5571, 0.0
  %vm5588 = vcmp.gt.f32.partialorder %v5572, 0.0
  %vm5589 = vcmp.gt.f32.partialorder %v5573, 0.0
  %vm5590 = vcmp.gt.f32.partialorder %v5574, 0.0
  %vm5591 = vcmp.gt.f32.partialorder %v5575, 0.0
  %vm5592 = vcmp.gt.f32.partialorder %v5576, 0.0
  %v5593 = vmin.f32 %v5561, 0.0
  %v5594 = vmin.f32 %v5562, 0.0
  %v5595 = vmin.f32 %v5563, 0.0
  %v5596 = vmin.f32 %v5564, 0.0
  %v5597 = vmin.f32 %v5565, 0.0
  %v5598 = vmin.f32 %v5566, 0.0
  %v5599 = vmin.f32 %v5567, 0.0
  %v5600 = vmin.f32 %v5568, 0.0
  %v5601 = vmin.f32 %v5569, 0.0
  %v5602 = vmin.f32 %v5570, 0.0
  %v5603 = vmin.f32 %v5571, 0.0
  %v5604 = vmin.f32 %v5572, 0.0
  %v5605 = vmin.f32 %v5573, 0.0
  %v5606 = vmin.f32 %v5574, 0.0
  %v5607 = vmin.f32 %v5575, 0.0
  %v5608 = vmin.f32 %v5576, 0.0
  %v5609 = vmul.f32 %v5593, 1.442695
  %v5610 = vpow.pop %v5609
  %v5611 = vmul.f32 %v5594, 1.442695
  %v5612 = vpow.pop %v5611
  %v5613 = vmul.f32 %v5595, 1.442695
  %v5614 = vpow.pop %v5613
  %v5615 = vmul.f32 %v5596, 1.442695
  %v5616 = vpow.pop %v5615
  %v5617 = vmul.f32 %v5597, 1.442695
  %v5618 = vpow.pop %v5617
  %v5619 = vmul.f32 %v5598, 1.442695
  %v5620 = vpow.pop %v5619
  %v5621 = vmul.f32 %v5599, 1.442695
  %v5622 = vpow.pop %v5621
  %v5623 = vmul.f32 %v5600, 1.442695
  %v5624 = vpow.pop %v5623
  %v5625 = vmul.f32 %v5601, 1.442695
  %v5626 = vpow.pop %v5625
  %v5627 = vmul.f32 %v5602, 1.442695
  %v5628 = vpow.pop %v5627
  %v5629 = vmul.f32 %v5603, 1.442695
  %v5630 = vpow.pop %v5629
  %v5631 = vmul.f32 %v5604, 1.442695
  %v5632 = vpow.pop %v5631
  %v5633 = vmul.f32 %v5605, 1.442695
  %v5634 = vpow.pop %v5633
  %v5635 = vmul.f32 %v5606, 1.442695
  %v5636 = vpow.pop %v5635
  %v5637 = vmul.f32 %v5607, 1.442695
  %v5638 = vpow.pop %v5637
  %v5639 = vmul.f32 %v5608, 1.442695
  %v5640 = vpow.pop %v5639
  %v5641 = vsub.f32 %v5610, 1.0
  %v5642 = vsub.f32 %v5612, 1.0
  %v5643 = vsub.f32 %v5614, 1.0
  %v5644 = vsub.f32 %v5616, 1.0
  %v5645 = vsub.f32 %v5618, 1.0
  %v5646 = vsub.f32 %v5620, 1.0
  %v5647 = vsub.f32 %v5622, 1.0
  %v5648 = vsub.f32 %v5624, 1.0
  %v5649 = vsub.f32 %v5626, 1.0
  %v5650 = vsub.f32 %v5628, 1.0
  %v5651 = vsub.f32 %v5630, 1.0
  %v5652 = vsub.f32 %v5632, 1.0
  %v5653 = vsub.f32 %v5634, 1.0
  %v5654 = vsub.f32 %v5636, 1.0
  %v5655 = vsub.f32 %v5638, 1.0
  %v5656 = vsub.f32 %v5640, 1.0
  %v5657 = vsel %vm5577, %v5561, %v5641
  %v5658 = vsel %vm5578, %v5562, %v5642
  %v5659 = vsel %vm5579, %v5563, %v5643
  %v5660 = vsel %vm5580, %v5564, %v5644
  %v5661 = vsel %vm5581, %v5565, %v5645
  %v5662 = vsel %vm5582, %v5566, %v5646
  %v5663 = vsel %vm5583, %v5567, %v5647
  %v5664 = vsel %vm5584, %v5568, %v5648
  %v5665 = vsel %vm5585, %v5569, %v5649
  %v5666 = vsel %vm5586, %v5570, %v5650
  %v5667 = vsel %vm5587, %v5571, %v5651
  %v5668 = vsel %vm5588, %v5572, %v5652
  %v5669 = vsel %vm5589, %v5573, %v5653
  %v5670 = vsel %vm5590, %v5574, %v5654
  %v5671 = vsel %vm5591, %v5575, %v5655
  %v5672 = vsel %vm5592, %v5576, %v5656
  %v5673 = vrot.slane %v5657, 7
  %v5674 = vrot.slane %v5658, 7
  %v5675 = vrot.slane %v5659, 7
  %v5676 = vrot.slane %v5660, 7
  %v5677 = vrot.slane %v5661, 7
  %v5678 = vrot.slane %v5662, 7
  %v5679 = vrot.slane %v5663, 7
  %v5680 = vrot.slane %v5664, 7
  %v5681 = vrot.slane %v5665, 7
  %v5682 = vrot.slane %v5666, 7
  %v5683 = vrot.slane %v5667, 7
  %v5684 = vrot.slane %v5668, 7
  %v5685 = vrot.slane %v5669, 7
  %v5686 = vrot.slane %v5670, 7
  %v5687 = vrot.slane %v5671, 7
  %v5688 = vrot.slane %v5672, 7
  %v5689 = vsel %vm73, %v5687, %v5688
  %v5690 = vsel %vm73, %v5686, %v5687
  %v5691 = vsel %vm73, %v5685, %v5686
  %v5692 = vsel %vm73, %v5684, %v5685
  %v5693 = vsel %vm73, %v5683, %v5684
  %v5694 = vsel %vm73, %v5682, %v5683
  %v5695 = vsel %vm73, %v5681, %v5682
  %v5696 = vsel %vm73, %v5680, %v5681
  %v5697 = vsel %vm73, %v5679, %v5680
  %v5698 = vsel %vm73, %v5678, %v5679
  %v5699 = vsel %vm73, %v5677, %v5678
  %v5700 = vsel %vm73, %v5676, %v5677
  %v5701 = vsel %vm73, %v5675, %v5676
  %v5702 = vsel %vm73, %v5674, %v5675
  %v5703 = vsel %vm73, %v5673, %v5674
  %v5704 = vsel %vm73, %v5688, %v5673
  %v5705 = vrot.slane %v5657, 1
  %v5706 = vrot.slane %v5658, 1
  %v5707 = vrot.slane %v5659, 1
  %v5708 = vrot.slane %v5660, 1
  %v5709 = vrot.slane %v5661, 1
  %v5710 = vrot.slane %v5662, 1
  %v5711 = vrot.slane %v5663, 1
  %v5712 = vrot.slane %v5664, 1
  %v5713 = vrot.slane %v5665, 1
  %v5714 = vrot.slane %v5666, 1
  %v5715 = vrot.slane %v5667, 1
  %v5716 = vrot.slane %v5668, 1
  %v5717 = vrot.slane %v5669, 1
  %v5718 = vrot.slane %v5670, 1
  %v5719 = vrot.slane %v5671, 1
  %v5720 = vrot.slane %v5672, 1
  %v5721 = vsel %vm106, %v5719, %v5720
  %v5722 = vsel %vm106, %v5718, %v5719
  %v5723 = vsel %vm106, %v5717, %v5718
  %v5724 = vsel %vm106, %v5716, %v5717
  %v5725 = vsel %vm106, %v5715, %v5716
  %v5726 = vsel %vm106, %v5714, %v5715
  %v5727 = vsel %vm106, %v5713, %v5714
  %v5728 = vsel %vm106, %v5712, %v5713
  %v5729 = vsel %vm106, %v5711, %v5712
  %v5730 = vsel %vm106, %v5710, %v5711
  %v5731 = vsel %vm106, %v5709, %v5710
  %v5732 = vsel %vm106, %v5708, %v5709
  %v5733 = vsel %vm106, %v5707, %v5708
  %v5734 = vsel %vm106, %v5706, %v5707
  %v5735 = vsel %vm106, %v5705, %v5706
  %v5736 = vsel %vm106, %v5720, %v5705
  %v5737 = vsel %vm130, 0.0, %v5704
  %v5738 = vsel %vm131, 0.0, %v5703
  %v5739 = vsel %vm132, 0.0, %v5702
  %v5740 = vsel %vm133, 0.0, %v5701
  %v5741 = vsel %vm134, 0.0, %v5700
  %v5742 = vsel %vm135, 0.0, %v5699
  %v5743 = vsel %vm136, 0.0, %v5698
  %v5744 = vsel %vm137, 0.0, %v5697
  %v5745 = vsel %vm130, 0.0, %v5696
  %v5746 = vsel %vm131, 0.0, %v5695
  %v5747 = vsel %vm132, 0.0, %v5694
  %v5748 = vsel %vm133, 0.0, %v5693
  %v5749 = vsel %vm134, 0.0, %v5692
  %v5750 = vsel %vm135, 0.0, %v5691
  %v5751 = vsel %vm136, 0.0, %v5690
  %v5752 = vsel %vm137, 0.0, %v5689
  %v5753 = vsel %vm154, 0.0, %v5735
  %v5754 = vsel %vm155, 0.0, %v5734
  %v5755 = vsel %vm156, 0.0, %v5733
  %v5756 = vsel %vm157, 0.0, %v5732
  %v5757 = vsel %vm158, 0.0, %v5731
  %v5758 = vsel %vm159, 0.0, %v5730
  %v5759 = vsel %vm160, 0.0, %v5729
  %v5760 = vsel %vm161, 0.0, %v5728
  %v5761 = vsel %vm154, 0.0, %v5727
  %v5762 = vsel %vm155, 0.0, %v5726
  %v5763 = vsel %vm156, 0.0, %v5725
  %v5764 = vsel %vm157, 0.0, %v5724
  %v5765 = vsel %vm158, 0.0, %v5723
  %v5766 = vsel %vm159, 0.0, %v5722
  %v5767 = vsel %vm160, 0.0, %v5721
  %v5768 = vsel %vm161, 0.0, %v5736
  %v5769 = vpack.c.bf16 %v5738, %v5737
  %v5770 = vpack.c.bf16 %v5740, %v5739
  %v5771 = vpack.c.bf16 %v5742, %v5741
  %v5772 = vpack.c.bf16 %v5744, %v5743
  %v5773 = vpack.c.bf16 %v5746, %v5745
  %v5774 = vpack.c.bf16 %v5748, %v5747
  %v5775 = vpack.c.bf16 %v5750, %v5749
  %v5776 = vpack.c.bf16 %v5752, %v5751
  %v5777 = vld [vmem:[%s9] sm:$0xf]
  %v5778 = vld [vmem:[%s9 + $0x4] sm:$0xf]
  %v5779 = vld [vmem:[%s9 + $0x8] sm:$0xf]
  %v5780 = vld [vmem:[%s9 + $0xc] sm:$0xf]
  %v5781 = vpack.c.bf16 %v5658, %v5657
  %v5782 = vpack.c.bf16 %v5660, %v5659
  %v5783 = vpack.c.bf16 %v5662, %v5661
  %v5784 = vpack.c.bf16 %v5664, %v5663
  %v5785 = vpack.c.bf16 %v5666, %v5665
  %v5786 = vpack.c.bf16 %v5668, %v5667
  %v5787 = vpack.c.bf16 %v5670, %v5669
  %v5788 = vpack.c.bf16 %v5672, %v5671
  %v5789 = vld [vmem:[%s9 + $0x10] sm:$0xf]
  %v5790 = vld [vmem:[%s9 + $0x14] sm:$0xf]
  %v5791 = vld [vmem:[%s9 + $0x18] sm:$0xf]
  %v5792 = vld [vmem:[%s9 + $0x1c] sm:$0xf]
  %v5797 = vunpack.c.l.b16 %v5789
  %v5798 = vunpack.c.l.b16 %v5790
  %v5799 = vunpack.c.l.b16 %v5791
  %v5800 = vunpack.c.l.b16 %v5792
  %v5801 = vpack.c.b16 %v5798, %v5797
  %v5802 = vpack.c.b16 %v5800, %v5799
  %v5806 = vsel %vm214, %v5781, 0
  %v5809 = vsel %vm214, %v5782, 0
  %v5812 = vsel %vm214, %v5783, 0
  %v5815 = vsel %vm214, %v5784, 0
  %v5818 = vsel %vm214, %v5785, 0
  %v5821 = vsel %vm214, %v5786, 0
  %v5824 = vsel %vm214, %v5787, 0
  %v5827 = vsel %vm214, %v5788, 0
  %5829 = vmatprep.subr.bf16.mxu0 0
  %5830 = vmatpush1.bf16.msra.mxu0 %v5801
  %5831 = vmatprep.subr.bf16.mxu0 0
  %5832 = vmatpush1.bf16.msra.mxu0 %v5802
  %5833 = vmatprep.subr.bf16.mxu0 0
  %5834 = vmatpush1.bf16.msra.mxu0 0
  %5835 = vmatprep.subr.bf16.mxu0 0
  %5836 = vmatpush1.bf16.msra.mxu0 0
  %5837 = vmatprep.subr.bf16.mxu0 0
  %5838 = vmatpush1.bf16.msra.mxu0 0
  %5839 = vmatprep.subr.bf16.mxu0 0
  %5840 = vmatpush1.bf16.msra.mxu0 0
  %5841 = vmatprep.subr.bf16.mxu0 0
  %5842 = vmatpush1.bf16.msra.mxu0 0
  %5843 = vmatprep.subr.bf16.mxu0 0
  %5844 = vmatpush1.bf16.msra.mxu0 0
  %5845 = vmatprep.subr.bf16.mxu0 0
  %5846 = vmatpush1.bf16.msra.mxu0 0
  %5847 = vmatprep.subr.bf16.mxu0 0
  %5848 = vmatpush1.bf16.msra.mxu0 0
  %5849 = vmatprep.subr.bf16.mxu0 0
  %5850 = vmatpush1.bf16.msra.mxu0 0
  %5851 = vmatprep.subr.bf16.mxu0 0
  %5852 = vmatpush1.bf16.msra.mxu0 0
  %5853 = vmatprep.subr.bf16.mxu0 0
  %5854 = vmatpush1.bf16.msra.mxu0 0
  %5855 = vmatprep.subr.bf16.mxu0 0
  %5856 = vmatpush1.bf16.msra.mxu0 0
  %5857 = vmatprep.subr.bf16.mxu0 0
  %5858 = vmatpush1.bf16.msra.mxu0 0
  %5859 = vmatprep.subr.bf16.mxu0 0
  %5860 = vmatpush1.bf16.msra.mxu0 0
  %5861 = vmatprep.mubr.bf16.mxu0 0
  %5862 = vmatmul.mubr.bf16.gmra.mrb[0].mxu0 %v5806
  %v5863 = vpop.f32.mrb[0].mxu0
  %v5864 = vadd.f32 0.0, %v5863
  %v5865 = vpop.f32.mrb[0].mxu0
  %v5866 = vpop.f32.mrb[0].mxu0
  %v5867 = vadd.f32 0.0, %v5866
  %v5868 = vpop.f32.mrb[0].mxu0
  %5869 = vmatprep.mubr.bf16.mxu0 0
  %5870 = vmatmul.mubr.bf16.gmra.mrb[0].mxu0 %v5809
  %v5871 = vpop.f32.mrb[0].mxu0
  %v5872 = vadd.f32 0.0, %v5871
  %v5873 = vpop.f32.mrb[0].mxu0
  %v5874 = vpop.f32.mrb[0].mxu0
  %v5875 = vadd.f32 0.0, %v5874
  %v5876 = vpop.f32.mrb[0].mxu0
  %5877 = vmatprep.mubr.bf16.mxu0 0
  %5878 = vmatmul.mubr.bf16.gmra.mrb[0].mxu0 %v5812
  %v5879 = vpop.f32.mrb[0].mxu0
  %v5880 = vadd.f32 0.0, %v5879
  %v5881 = vpop.f32.mrb[0].mxu0
  %v5882 = vpop.f32.mrb[0].mxu0
  %v5883 = vadd.f32 0.0, %v5882
  %v5884 = vpop.f32.mrb[0].mxu0
  %5885 = vmatprep.mubr.bf16.mxu0 0
  %5886 = vmatmul.mubr.bf16.gmra.mrb[0].mxu0 %v5815
  %v5887 = vpop.f32.mrb[0].mxu0
  %v5888 = vadd.f32 0.0, %v5887
  %v5889 = vpop.f32.mrb[0].mxu0
  %v5890 = vpop.f32.mrb[0].mxu0
  %v5891 = vadd.f32 0.0, %v5890
  %v5892 = vpop.f32.mrb[0].mxu0
  %5893 = vmatprep.mubr.bf16.mxu0 0
  %5894 = vmatmul.mubr.bf16.gmra.mrb[0].mxu0 %v5818
  %v5895 = vpop.f32.mrb[0].mxu0
  %v5896 = vadd.f32 0.0, %v5895
  %v5897 = vpop.f32.mrb[0].mxu0
  %v5898 = vpop.f32.mrb[0].mxu0
  %v5899 = vadd.f32 0.0, %v5898
  %v5900 = vpop.f32.mrb[0].mxu0
  %5901 = vmatprep.mubr.bf16.mxu0 0
  %5902 = vmatmul.mubr.bf16.gmra.mrb[0].mxu0 %v5821
  %v5903 = vpop.f32.mrb[0].mxu0
  %v5904 = vadd.f32 0.0, %v5903
  %v5905 = vpop.f32.mrb[0].mxu0
  %v5906 = vpop.f32.mrb[0].mxu0
  %v5907 = vadd.f32 0.0, %v5906
  %v5908 = vpop.f32.mrb[0].mxu0
  %5909 = vmatprep.mubr.bf16.mxu0 0
  %5910 = vmatmul.mubr.bf16.gmra.mrb[0].mxu0 %v5824
  %v5911 = vpop.f32.mrb[0].mxu0
  %v5912 = vadd.f32 0.0, %v5911
  %v5913 = vpop.f32.mrb[0].mxu0
  %v5914 = vpop.f32.mrb[0].mxu0
  %v5915 = vadd.f32 0.0, %v5914
  %v5916 = vpop.f32.mrb[0].mxu0
  %5917 = vmatprep.mubr.bf16.mxu0 0
  %5918 = vmatmul.mubr.bf16.gmra.mrb[0].mxu0 %v5827
  %v5919 = vpop.f32.mrb[0].mxu0
  %v5920 = vadd.f32 0.0, %v5919
  %v5921 = vpop.f32.mrb[0].mxu0
  %v5922 = vpop.f32.mrb[0].mxu0
  %v5923 = vadd.f32 0.0, %v5922
  %v5924 = vpop.f32.mrb[0].mxu0
  %5925 = vdwg.mxu0
  %v5930 = vunpack.c.l.b16 %v5777
  %v5931 = vunpack.c.l.b16 %v5778
  %v5932 = vunpack.c.l.b16 %v5779
  %v5933 = vunpack.c.l.b16 %v5780
  %v5934 = vpack.c.b16 %v5931, %v5930
  %v5935 = vpack.c.b16 %v5933, %v5932
  %v5939 = vsel %vm214, %v5769, 0
  %v5942 = vsel %vm214, %v5770, 0
  %v5945 = vsel %vm214, %v5771, 0
  %v5948 = vsel %vm214, %v5772, 0
  %v5951 = vsel %vm214, %v5773, 0
  %v5954 = vsel %vm214, %v5774, 0
  %v5957 = vsel %vm214, %v5775, 0
  %v5960 = vsel %vm214, %v5776, 0
  %5962 = vmatprep.subr.bf16.mxu0 0
  %5963 = vmatpush1.bf16.msra.mxu0 %v5934
  %5964 = vmatprep.subr.bf16.mxu0 0
  %5965 = vmatpush1.bf16.msra.mxu0 %v5935
  %5966 = vmatprep.subr.bf16.mxu0 0
  %5967 = vmatpush1.bf16.msra.mxu0 0
  %5968 = vmatprep.subr.bf16.mxu0 0
  %5969 = vmatpush1.bf16.msra.mxu0 0
  %5970 = vmatprep.subr.bf16.mxu0 0
  %5971 = vmatpush1.bf16.msra.mxu0 0
  %5972 = vmatprep.subr.bf16.mxu0 0
  %5973 = vmatpush1.bf16.msra.mxu0 0
  %5974 = vmatprep.subr.bf16.mxu0 0
  %5975 = vmatpush1.bf16.msra.mxu0 0
  %5976 = vmatprep.subr.bf16.mxu0 0
  %5977 = vmatpush1.bf16.msra.mxu0 0
  %5978 = vmatprep.subr.bf16.mxu0 0
  %5979 = vmatpush1.bf16.msra.mxu0 0
  %5980 = vmatprep.subr.bf16.mxu0 0
  %5981 = vmatpush1.bf16.msra.mxu0 0
  %5982 = vmatprep.subr.bf16.mxu0 0
  %5983 = vmatpush1.bf16.msra.mxu0 0
  %5984 = vmatprep.subr.bf16.mxu0 0
  %5985 = vmatpush1.bf16.msra.mxu0 0
  %5986 = vmatprep.subr.bf16.mxu0 0
  %5987 = vmatpush1.bf16.msra.mxu0 0
  %5988 = vmatprep.subr.bf16.mxu0 0
  %5989 = vmatpush1.bf16.msra.mxu0 0
  %5990 = vmatprep.subr.bf16.mxu0 0
  %5991 = vmatpush1.bf16.msra.mxu0 0
  %5992 = vmatprep.subr.bf16.mxu0 0
  %5993 = vmatpush1.bf16.msra.mxu0 0
  %5994 = vmatprep.mubr.bf16.mxu0 0
  %5995 = vmatmul.mubr.bf16.gmra.mrb[0].mxu0 %v5939
  %v5996 = vpop.f32.mrb[0].mxu0
  %v5997 = vadd.f32 %v5864, %v5996
  %v5998 = vpop.f32.mrb[0].mxu0
  %v5999 = vpop.f32.mrb[0].mxu0
  %v6000 = vadd.f32 %v5867, %v5999
  %v6001 = vpop.f32.mrb[0].mxu0
  %6002 = vmatprep.mubr.bf16.mxu0 0
  %6003 = vmatmul.mubr.bf16.gmra.mrb[0].mxu0 %v5942
  %v6004 = vpop.f32.mrb[0].mxu0
  %v6005 = vadd.f32 %v5872, %v6004
  %v6006 = vpop.f32.mrb[0].mxu0
  %v6007 = vpop.f32.mrb[0].mxu0
  %v6008 = vadd.f32 %v5875, %v6007
  %v6009 = vpop.f32.mrb[0].mxu0
  %6010 = vmatprep.mubr.bf16.mxu0 0
  %6011 = vmatmul.mubr.bf16.gmra.mrb[0].mxu0 %v5945
  %v6012 = vpop.f32.mrb[0].mxu0
  %v6013 = vadd.f32 %v5880, %v6012
  %v6014 = vpop.f32.mrb[0].mxu0
  %v6015 = vpop.f32.mrb[0].mxu0
  %v6016 = vadd.f32 %v5883, %v6015
  %v6017 = vpop.f32.mrb[0].mxu0
  %6018 = vmatprep.mubr.bf16.mxu0 0
  %6019 = vmatmul.mubr.bf16.gmra.mrb[0].mxu0 %v5948
  %v6020 = vpop.f32.mrb[0].mxu0
  %v6021 = vadd.f32 %v5888, %v6020
  %v6022 = vpop.f32.mrb[0].mxu0
  %v6023 = vpop.f32.mrb[0].mxu0
  %v6024 = vadd.f32 %v5891, %v6023
  %v6025 = vpop.f32.mrb[0].mxu0
  %6026 = vmatprep.mubr.bf16.mxu0 0
  %6027 = vmatmul.mubr.bf16.gmra.mrb[0].mxu0 %v5951
  %v6028 = vpop.f32.mrb[0].mxu0
  %v6029 = vadd.f32 %v5896, %v6028
  %v6030 = vpop.f32.mrb[0].mxu0
  %v6031 = vpop.f32.mrb[0].mxu0
  %v6032 = vadd.f32 %v5899, %v6031
  %v6033 = vpop.f32.mrb[0].mxu0
  %6034 = vmatprep.mubr.bf16.mxu0 0
  %6035 = vmatmul.mubr.bf16.gmra.mrb[0].mxu0 %v5954
  %v6036 = vpop.f32.mrb[0].mxu0
  %v6037 = vadd.f32 %v5904, %v6036
  %v6038 = vpop.f32.mrb[0].mxu0
  %v6039 = vpop.f32.mrb[0].mxu0
  %v6040 = vadd.f32 %v5907, %v6039
  %v6041 = vpop.f32.mrb[0].mxu0
  %6042 = vmatprep.mubr.bf16.mxu0 0
  %6043 = vmatmul.mubr.bf16.gmra.mrb[0].mxu0 %v5957
  %v6044 = vpop.f32.mrb[0].mxu0
  %v6045 = vadd.f32 %v5912, %v6044
  %v6046 = vpop.f32.mrb[0].mxu0
  %v6047 = vpop.f32.mrb[0].mxu0
  %v6048 = vadd.f32 %v5915, %v6047
  %v6049 = vpop.f32.mrb[0].mxu0
  %6050 = vmatprep.mubr.bf16.mxu0 0
  %6051 = vmatmul.mubr.bf16.gmra.mrb[0].mxu0 %v5960
  %v6052 = vpop.f32.mrb[0].mxu0
  %v6053 = vadd.f32 %v5920, %v6052
  %v6054 = vpop.f32.mrb[0].mxu0
  %v6055 = vpop.f32.mrb[0].mxu0
  %v6056 = vadd.f32 %v5923, %v6055
  %v6057 = vpop.f32.mrb[0].mxu0
  %6058 = vdwg.mxu0
  %v6059 = vpack.c.bf16 %v5754, %v5753
  %v6060 = vpack.c.bf16 %v5756, %v5755
  %v6061 = vpack.c.bf16 %v5758, %v5757
  %v6062 = vpack.c.bf16 %v5760, %v5759
  %v6063 = vpack.c.bf16 %v5762, %v5761
  %v6064 = vpack.c.bf16 %v5764, %v5763
  %v6065 = vpack.c.bf16 %v5766, %v5765
  %v6066 = vpack.c.bf16 %v5768, %v5767
  %v6067 = vld [vmem:[%s9 + $0x20] sm:$0xf]
  %v6068 = vld [vmem:[%s9 + $0x24] sm:$0xf]
  %v6069 = vld [vmem:[%s9 + $0x28] sm:$0xf]
  %v6070 = vld [vmem:[%s9 + $0x2c] sm:$0xf]
  %v6075 = vunpack.c.l.b16 %v6067
  %v6076 = vunpack.c.l.b16 %v6068
  %v6077 = vunpack.c.l.b16 %v6069
  %v6078 = vunpack.c.l.b16 %v6070
  %v6079 = vpack.c.b16 %v6076, %v6075
  %v6080 = vpack.c.b16 %v6078, %v6077
  %v6084 = vsel %vm214, %v6059, 0
  %v6087 = vsel %vm214, %v6060, 0
  %v6090 = vsel %vm214, %v6061, 0
  %v6093 = vsel %vm214, %v6062, 0
  %v6096 = vsel %vm214, %v6063, 0
  %v6099 = vsel %vm214, %v6064, 0
  %v6102 = vsel %vm214, %v6065, 0
  %v6105 = vsel %vm214, %v6066, 0
  %6107 = vmatprep.subr.bf16.mxu0 0
  %6108 = vmatpush1.bf16.msra.mxu0 %v6079
  %6109 = vmatprep.subr.bf16.mxu0 0
  %6110 = vmatpush1.bf16.msra.mxu0 %v6080
  %6111 = vmatprep.subr.bf16.mxu0 0
  %6112 = vmatpush1.bf16.msra.mxu0 0
  %6113 = vmatprep.subr.bf16.mxu0 0
  %6114 = vmatpush1.bf16.msra.mxu0 0
  %6115 = vmatprep.subr.bf16.mxu0 0
  %6116 = vmatpush1.bf16.msra.mxu0 0
  %6117 = vmatprep.subr.bf16.mxu0 0
  %6118 = vmatpush1.bf16.msra.mxu0 0
  %6119 = vmatprep.subr.bf16.mxu0 0
  %6120 = vmatpush1.bf16.msra.mxu0 0
  %6121 = vmatprep.subr.bf16.mxu0 0
  %6122 = vmatpush1.bf16.msra.mxu0 0
  %6123 = vmatprep.subr.bf16.mxu0 0
  %6124 = vmatpush1.bf16.msra.mxu0 0
  %6125 = vmatprep.subr.bf16.mxu0 0
  %6126 = vmatpush1.bf16.msra.mxu0 0
  %6127 = vmatprep.subr.bf16.mxu0 0
  %6128 = vmatpush1.bf16.msra.mxu0 0
  %6129 = vmatprep.subr.bf16.mxu0 0
  %6130 = vmatpush1.bf16.msra.mxu0 0
  %6131 = vmatprep.subr.bf16.mxu0 0
  %6132 = vmatpush1.bf16.msra.mxu0 0
  %6133 = vmatprep.subr.bf16.mxu0 0
  %6134 = vmatpush1.bf16.msra.mxu0 0
  %6135 = vmatprep.subr.bf16.mxu0 0
  %6136 = vmatpush1.bf16.msra.mxu0 0
  %6137 = vmatprep.subr.bf16.mxu0 0
  %6138 = vmatpush1.bf16.msra.mxu0 0
  %6139 = vmatprep.mubr.bf16.mxu0 0
  %6140 = vmatmul.mubr.bf16.gmra.mrb[0].mxu0 %v6084
  %v6141 = vpop.f32.mrb[0].mxu0
  %v6142 = vadd.f32 0.0, %v6141
  %v6143 = vpop.f32.mrb[0].mxu0
  %v6144 = vpop.f32.mrb[0].mxu0
  %v6145 = vadd.f32 0.0, %v6144
  %v6146 = vpop.f32.mrb[0].mxu0
  %6147 = vmatprep.mubr.bf16.mxu0 0
  %6148 = vmatmul.mubr.bf16.gmra.mrb[0].mxu0 %v6087
  %v6149 = vpop.f32.mrb[0].mxu0
  %v6150 = vadd.f32 0.0, %v6149
  %v6151 = vpop.f32.mrb[0].mxu0
  %v6152 = vpop.f32.mrb[0].mxu0
  %v6153 = vadd.f32 0.0, %v6152
  %v6154 = vpop.f32.mrb[0].mxu0
  %6155 = vmatprep.mubr.bf16.mxu0 0
  %6156 = vmatmul.mubr.bf16.gmra.mrb[0].mxu0 %v6090
  %v6157 = vpop.f32.mrb[0].mxu0
  %v6158 = vadd.f32 0.0, %v6157
  %v6159 = vpop.f32.mrb[0].mxu0
  %v6160 = vpop.f32.mrb[0].mxu0
  %v6161 = vadd.f32 0.0, %v6160
  %v6162 = vpop.f32.mrb[0].mxu0
  %6163 = vmatprep.mubr.bf16.mxu0 0
  %6164 = vmatmul.mubr.bf16.gmra.mrb[0].mxu0 %v6093
  %v6165 = vpop.f32.mrb[0].mxu0
  %v6166 = vadd.f32 0.0, %v6165
  %v6167 = vpop.f32.mrb[0].mxu0
  %v6168 = vpop.f32.mrb[0].mxu0
  %v6169 = vadd.f32 0.0, %v6168
  %v6170 = vpop.f32.mrb[0].mxu0
  %6171 = vmatprep.mubr.bf16.mxu0 0
  %6172 = vmatmul.mubr.bf16.gmra.mrb[0].mxu0 %v6096
  %v6173 = vpop.f32.mrb[0].mxu0
  %v6174 = vadd.f32 0.0, %v6173
  %v6175 = vpop.f32.mrb[0].mxu0
  %v6176 = vpop.f32.mrb[0].mxu0
  %v6177 = vadd.f32 0.0, %v6176
  %v6178 = vpop.f32.mrb[0].mxu0
  %6179 = vmatprep.mubr.bf16.mxu0 0
  %6180 = vmatmul.mubr.bf16.gmra.mrb[0].mxu0 %v6099
  %v6181 = vpop.f32.mrb[0].mxu0
  %v6182 = vadd.f32 0.0, %v6181
  %v6183 = vpop.f32.mrb[0].mxu0
  %v6184 = vpop.f32.mrb[0].mxu0
  %v6185 = vadd.f32 0.0, %v6184
  %v6186 = vpop.f32.mrb[0].mxu0
  %6187 = vmatprep.mubr.bf16.mxu0 0
  %6188 = vmatmul.mubr.bf16.gmra.mrb[0].mxu0 %v6102
  %v6189 = vpop.f32.mrb[0].mxu0
  %v6190 = vadd.f32 0.0, %v6189
  %v6191 = vpop.f32.mrb[0].mxu0
  %v6192 = vpop.f32.mrb[0].mxu0
  %v6193 = vadd.f32 0.0, %v6192
  %v6194 = vpop.f32.mrb[0].mxu0
  %6195 = vmatprep.mubr.bf16.mxu0 0
  %6196 = vmatmul.mubr.bf16.gmra.mrb[0].mxu0 %v6105
  %v6197 = vpop.f32.mrb[0].mxu0
  %v6198 = vadd.f32 0.0, %v6197
  %v6199 = vpop.f32.mrb[0].mxu0
  %v6200 = vpop.f32.mrb[0].mxu0
  %v6201 = vadd.f32 0.0, %v6200
  %v6202 = vpop.f32.mrb[0].mxu0
  %6203 = vdwg.mxu0
  %v6204 = vadd.f32 %v5997, %v6142
  %v6205 = vadd.f32 %v6000, %v6145
  %v6206 = vadd.f32 %v6005, %v6150
  %v6207 = vadd.f32 %v6008, %v6153
  %v6208 = vadd.f32 %v6013, %v6158
  %v6209 = vadd.f32 %v6016, %v6161
  %v6210 = vadd.f32 %v6021, %v6166
  %v6211 = vadd.f32 %v6024, %v6169
  %v6212 = vadd.f32 %v6029, %v6174
  %v6213 = vadd.f32 %v6032, %v6177
  %v6214 = vadd.f32 %v6037, %v6182
  %v6215 = vadd.f32 %v6040, %v6185
  %v6216 = vadd.f32 %v6045, %v6190
  %v6217 = vadd.f32 %v6048, %v6193
  %v6218 = vadd.f32 %v6053, %v6198
  %v6219 = vadd.f32 %v6056, %v6201
  %v6220 = vld [vmem:[%s10] sm:$0xf]
  %v6221 = vld [vmem:[%s10 + $0x4] sm:$0xf]
  %v6222 = vld [vmem:[%s10 + $0x8] sm:$0xf]
  %v6223 = vld [vmem:[%s10 + $0xc] sm:$0xf]
  %v6224 = vld [vmem:[%s10 + $0x10] sm:$0xf]
  %v6225 = vld [vmem:[%s10 + $0x14] sm:$0xf]
  %v6226 = vld [vmem:[%s10 + $0x18] sm:$0xf]
  %v6227 = vld [vmem:[%s10 + $0x1c] sm:$0xf]
  %v6232 = vunpack.c.l.b16 %v6224
  %v6233 = vunpack.c.l.b16 %v6225
  %v6234 = vunpack.c.l.b16 %v6226
  %v6235 = vunpack.c.l.b16 %v6227
  %v6236 = vpack.c.b16 %v6233, %v6232
  %v6237 = vpack.c.b16 %v6235, %v6234
  %6240 = vmatprep.subr.bf16.mxu0 0
  %6241 = vmatpush1.bf16.msra.mxu0 %v6236
  %6242 = vmatprep.subr.bf16.mxu0 0
  %6243 = vmatpush1.bf16.msra.mxu0 %v6237
  %6244 = vmatprep.subr.bf16.mxu0 0
  %6245 = vmatpush1.bf16.msra.mxu0 0
  %6246 = vmatprep.subr.bf16.mxu0 0
  %6247 = vmatpush1.bf16.msra.mxu0 0
  %6248 = vmatprep.subr.bf16.mxu0 0
  %6249 = vmatpush1.bf16.msra.mxu0 0
  %6250 = vmatprep.subr.bf16.mxu0 0
  %6251 = vmatpush1.bf16.msra.mxu0 0
  %6252 = vmatprep.subr.bf16.mxu0 0
  %6253 = vmatpush1.bf16.msra.mxu0 0
  %6254 = vmatprep.subr.bf16.mxu0 0
  %6255 = vmatpush1.bf16.msra.mxu0 0
  %6256 = vmatprep.subr.bf16.mxu0 0
  %6257 = vmatpush1.bf16.msra.mxu0 0
  %6258 = vmatprep.subr.bf16.mxu0 0
  %6259 = vmatpush1.bf16.msra.mxu0 0
  %6260 = vmatprep.subr.bf16.mxu0 0
  %6261 = vmatpush1.bf16.msra.mxu0 0
  %6262 = vmatprep.subr.bf16.mxu0 0
  %6263 = vmatpush1.bf16.msra.mxu0 0
  %6264 = vmatprep.subr.bf16.mxu0 0
  %6265 = vmatpush1.bf16.msra.mxu0 0
  %6266 = vmatprep.subr.bf16.mxu0 0
  %6267 = vmatpush1.bf16.msra.mxu0 0
  %6268 = vmatprep.subr.bf16.mxu0 0
  %6269 = vmatpush1.bf16.msra.mxu0 0
  %6270 = vmatprep.subr.bf16.mxu0 0
  %6271 = vmatpush1.bf16.msra.mxu0 0
  %6272 = vmatprep.mubr.bf16.mxu0 0
  %6273 = vmatmul.mubr.bf16.gmra.mrb[0].mxu0 %v216
  %v6274 = vpop.f32.mrb[0].mxu0
  %v6275 = vadd.f32 0.0, %v6274
  %v6276 = vpop.f32.mrb[0].mxu0
  %v6277 = vpop.f32.mrb[0].mxu0
  %v6278 = vadd.f32 0.0, %v6277
  %v6279 = vpop.f32.mrb[0].mxu0
  %6280 = vmatprep.mubr.bf16.mxu0 0
  %6281 = vmatmul.mubr.bf16.gmra.mrb[0].mxu0 %v219
  %v6282 = vpop.f32.mrb[0].mxu0
  %v6283 = vadd.f32 0.0, %v6282
  %v6284 = vpop.f32.mrb[0].mxu0
  %v6285 = vpop.f32.mrb[0].mxu0
  %v6286 = vadd.f32 0.0, %v6285
  %v6287 = vpop.f32.mrb[0].mxu0
  %6288 = vmatprep.mubr.bf16.mxu0 0
  %6289 = vmatmul.mubr.bf16.gmra.mrb[0].mxu0 %v222
  %v6290 = vpop.f32.mrb[0].mxu0
  %v6291 = vadd.f32 0.0, %v6290
  %v6292 = vpop.f32.mrb[0].mxu0
  %v6293 = vpop.f32.mrb[0].mxu0
  %v6294 = vadd.f32 0.0, %v6293
  %v6295 = vpop.f32.mrb[0].mxu0
  %6296 = vmatprep.mubr.bf16.mxu0 0
  %6297 = vmatmul.mubr.bf16.gmra.mrb[0].mxu0 %v225
  %v6298 = vpop.f32.mrb[0].mxu0
  %v6299 = vadd.f32 0.0, %v6298
  %v6300 = vpop.f32.mrb[0].mxu0
  %v6301 = vpop.f32.mrb[0].mxu0
  %v6302 = vadd.f32 0.0, %v6301
  %v6303 = vpop.f32.mrb[0].mxu0
  %6304 = vmatprep.mubr.bf16.mxu0 0
  %6305 = vmatmul.mubr.bf16.gmra.mrb[0].mxu0 %v228
  %v6306 = vpop.f32.mrb[0].mxu0
  %v6307 = vadd.f32 0.0, %v6306
  %v6308 = vpop.f32.mrb[0].mxu0
  %v6309 = vpop.f32.mrb[0].mxu0
  %v6310 = vadd.f32 0.0, %v6309
  %v6311 = vpop.f32.mrb[0].mxu0
  %6312 = vmatprep.mubr.bf16.mxu0 0
  %6313 = vmatmul.mubr.bf16.gmra.mrb[0].mxu0 %v231
  %v6314 = vpop.f32.mrb[0].mxu0
  %v6315 = vadd.f32 0.0, %v6314
  %v6316 = vpop.f32.mrb[0].mxu0
  %v6317 = vpop.f32.mrb[0].mxu0
  %v6318 = vadd.f32 0.0, %v6317
  %v6319 = vpop.f32.mrb[0].mxu0
  %6320 = vmatprep.mubr.bf16.mxu0 0
  %6321 = vmatmul.mubr.bf16.gmra.mrb[0].mxu0 %v234
  %v6322 = vpop.f32.mrb[0].mxu0
  %v6323 = vadd.f32 0.0, %v6322
  %v6324 = vpop.f32.mrb[0].mxu0
  %v6325 = vpop.f32.mrb[0].mxu0
  %v6326 = vadd.f32 0.0, %v6325
  %v6327 = vpop.f32.mrb[0].mxu0
  %6328 = vmatprep.mubr.bf16.mxu0 0
  %6329 = vmatmul.mubr.bf16.gmra.mrb[0].mxu0 %v237
  %v6330 = vpop.f32.mrb[0].mxu0
  %v6331 = vadd.f32 0.0, %v6330
  %v6332 = vpop.f32.mrb[0].mxu0
  %v6333 = vpop.f32.mrb[0].mxu0
  %v6334 = vadd.f32 0.0, %v6333
  %v6335 = vpop.f32.mrb[0].mxu0
  %6336 = vdwg.mxu0
  %v6341 = vunpack.c.l.b16 %v6220
  %v6342 = vunpack.c.l.b16 %v6221
  %v6343 = vunpack.c.l.b16 %v6222
  %v6344 = vunpack.c.l.b16 %v6223
  %v6345 = vpack.c.b16 %v6342, %v6341
  %v6346 = vpack.c.b16 %v6344, %v6343
  %6349 = vmatprep.subr.bf16.mxu0 0
  %6350 = vmatpush1.bf16.msra.mxu0 %v6345
  %6351 = vmatprep.subr.bf16.mxu0 0
  %6352 = vmatpush1.bf16.msra.mxu0 %v6346
  %6353 = vmatprep.subr.bf16.mxu0 0
  %6354 = vmatpush1.bf16.msra.mxu0 0
  %6355 = vmatprep.subr.bf16.mxu0 0
  %6356 = vmatpush1.bf16.msra.mxu0 0
  %6357 = vmatprep.subr.bf16.mxu0 0
  %6358 = vmatpush1.bf16.msra.mxu0 0
  %6359 = vmatprep.subr.bf16.mxu0 0
  %6360 = vmatpush1.bf16.msra.mxu0 0
  %6361 = vmatprep.subr.bf16.mxu0 0
  %6362 = vmatpush1.bf16.msra.mxu0 0
  %6363 = vmatprep.subr.bf16.mxu0 0
  %6364 = vmatpush1.bf16.msra.mxu0 0
  %6365 = vmatprep.subr.bf16.mxu0 0
  %6366 = vmatpush1.bf16.msra.mxu0 0
  %6367 = vmatprep.subr.bf16.mxu0 0
  %6368 = vmatpush1.bf16.msra.mxu0 0
  %6369 = vmatprep.subr.bf16.mxu0 0
  %6370 = vmatpush1.bf16.msra.mxu0 0
  %6371 = vmatprep.subr.bf16.mxu0 0
  %6372 = vmatpush1.bf16.msra.mxu0 0
  %6373 = vmatprep.subr.bf16.mxu0 0
  %6374 = vmatpush1.bf16.msra.mxu0 0
  %6375 = vmatprep.subr.bf16.mxu0 0
  %6376 = vmatpush1.bf16.msra.mxu0 0
  %6377 = vmatprep.subr.bf16.mxu0 0
  %6378 = vmatpush1.bf16.msra.mxu0 0
  %6379 = vmatprep.subr.bf16.mxu0 0
  %6380 = vmatpush1.bf16.msra.mxu0 0
  %6381 = vmatprep.mubr.bf16.mxu0 0
  %6382 = vmatmul.mubr.bf16.gmra.mrb[0].mxu0 %v349
  %v6383 = vpop.f32.mrb[0].mxu0
  %v6384 = vadd.f32 %v6275, %v6383
  %v6385 = vpop.f32.mrb[0].mxu0
  %v6386 = vpop.f32.mrb[0].mxu0
  %v6387 = vadd.f32 %v6278, %v6386
  %v6388 = vpop.f32.mrb[0].mxu0
  %6389 = vmatprep.mubr.bf16.mxu0 0
  %6390 = vmatmul.mubr.bf16.gmra.mrb[0].mxu0 %v352
  %v6391 = vpop.f32.mrb[0].mxu0
  %v6392 = vadd.f32 %v6283, %v6391
  %v6393 = vpop.f32.mrb[0].mxu0
  %v6394 = vpop.f32.mrb[0].mxu0
  %v6395 = vadd.f32 %v6286, %v6394
  %v6396 = vpop.f32.mrb[0].mxu0
  %6397 = vmatprep.mubr.bf16.mxu0 0
  %6398 = vmatmul.mubr.bf16.gmra.mrb[0].mxu0 %v355
  %v6399 = vpop.f32.mrb[0].mxu0
  %v6400 = vadd.f32 %v6291, %v6399
  %v6401 = vpop.f32.mrb[0].mxu0
  %v6402 = vpop.f32.mrb[0].mxu0
  %v6403 = vadd.f32 %v6294, %v6402
  %v6404 = vpop.f32.mrb[0].mxu0
  %6405 = vmatprep.mubr.bf16.mxu0 0
  %6406 = vmatmul.mubr.bf16.gmra.mrb[0].mxu0 %v358
  %v6407 = vpop.f32.mrb[0].mxu0
  %v6408 = vadd.f32 %v6299, %v6407
  %v6409 = vpop.f32.mrb[0].mxu0
  %v6410 = vpop.f32.mrb[0].mxu0
  %v6411 = vadd.f32 %v6302, %v6410
  %v6412 = vpop.f32.mrb[0].mxu0
  %6413 = vmatprep.mubr.bf16.mxu0 0
  %6414 = vmatmul.mubr.bf16.gmra.mrb[0].mxu0 %v361
  %v6415 = vpop.f32.mrb[0].mxu0
  %v6416 = vadd.f32 %v6307, %v6415
  %v6417 = vpop.f32.mrb[0].mxu0
  %v6418 = vpop.f32.mrb[0].mxu0
  %v6419 = vadd.f32 %v6310, %v6418
  %v6420 = vpop.f32.mrb[0].mxu0
  %6421 = vmatprep.mubr.bf16.mxu0 0
  %6422 = vmatmul.mubr.bf16.gmra.mrb[0].mxu0 %v364
  %v6423 = vpop.f32.mrb[0].mxu0
  %v6424 = vadd.f32 %v6315, %v6423
  %v6425 = vpop.f32.mrb[0].mxu0
  %v6426 = vpop.f32.mrb[0].mxu0
  %v6427 = vadd.f32 %v6318, %v6426
  %v6428 = vpop.f32.mrb[0].mxu0
  %6429 = vmatprep.mubr.bf16.mxu0 0
  %6430 = vmatmul.mubr.bf16.gmra.mrb[0].mxu0 %v367
  %v6431 = vpop.f32.mrb[0].mxu0
  %v6432 = vadd.f32 %v6323, %v6431
  %v6433 = vpop.f32.mrb[0].mxu0
  %v6434 = vpop.f32.mrb[0].mxu0
  %v6435 = vadd.f32 %v6326, %v6434
  %v6436 = vpop.f32.mrb[0].mxu0
  %6437 = vmatprep.mubr.bf16.mxu0 0
  %6438 = vmatmul.mubr.bf16.gmra.mrb[0].mxu0 %v370
  %v6439 = vpop.f32.mrb[0].mxu0
  %v6440 = vadd.f32 %v6331, %v6439
  %v6441 = vpop.f32.mrb[0].mxu0
  %v6442 = vpop.f32.mrb[0].mxu0
  %v6443 = vadd.f32 %v6334, %v6442
  %v6444 = vpop.f32.mrb[0].mxu0
  %6445 = vdwg.mxu0
  %v6446 = vld [vmem:[%s10 + $0x20] sm:$0xf]
  %v6447 = vld [vmem:[%s10 + $0x24] sm:$0xf]
  %v6448 = vld [vmem:[%s10 + $0x28] sm:$0xf]
  %v6449 = vld [vmem:[%s10 + $0x2c] sm:$0xf]
  %v6454 = vunpack.c.l.b16 %v6446
  %v6455 = vunpack.c.l.b16 %v6447
  %v6456 = vunpack.c.l.b16 %v6448
  %v6457 = vunpack.c.l.b16 %v6449
  %v6458 = vpack.c.b16 %v6455, %v6454
  %v6459 = vpack.c.b16 %v6457, %v6456
  %6462 = vmatprep.subr.bf16.mxu0 0
  %6463 = vmatpush1.bf16.msra.mxu0 %v6458
  %6464 = vmatprep.subr.bf16.mxu0 0
  %6465 = vmatpush1.bf16.msra.mxu0 %v6459
  %6466 = vmatprep.subr.bf16.mxu0 0
  %6467 = vmatpush1.bf16.msra.mxu0 0
  %6468 = vmatprep.subr.bf16.mxu0 0
  %6469 = vmatpush1.bf16.msra.mxu0 0
  %6470 = vmatprep.subr.bf16.mxu0 0
  %6471 = vmatpush1.bf16.msra.mxu0 0
  %6472 = vmatprep.subr.bf16.mxu0 0
  %6473 = vmatpush1.bf16.msra.mxu0 0
  %6474 = vmatprep.subr.bf16.mxu0 0
  %6475 = vmatpush1.bf16.msra.mxu0 0
  %6476 = vmatprep.subr.bf16.mxu0 0
  %6477 = vmatpush1.bf16.msra.mxu0 0
  %6478 = vmatprep.subr.bf16.mxu0 0
  %6479 = vmatpush1.bf16.msra.mxu0 0
  %6480 = vmatprep.subr.bf16.mxu0 0
  %6481 = vmatpush1.bf16.msra.mxu0 0
  %6482 = vmatprep.subr.bf16.mxu0 0
  %6483 = vmatpush1.bf16.msra.mxu0 0
  %6484 = vmatprep.subr.bf16.mxu0 0
  %6485 = vmatpush1.bf16.msra.mxu0 0
  %6486 = vmatprep.subr.bf16.mxu0 0
  %6487 = vmatpush1.bf16.msra.mxu0 0
  %6488 = vmatprep.subr.bf16.mxu0 0
  %6489 = vmatpush1.bf16.msra.mxu0 0
  %6490 = vmatprep.subr.bf16.mxu0 0
  %6491 = vmatpush1.bf16.msra.mxu0 0
  %6492 = vmatprep.subr.bf16.mxu0 0
  %6493 = vmatpush1.bf16.msra.mxu0 0
  %6494 = vmatprep.mubr.bf16.mxu0 0
  %6495 = vmatmul.mubr.bf16.gmra.mrb[0].mxu0 %v494
  %v6496 = vpop.f32.mrb[0].mxu0
  %v6497 = vadd.f32 0.0, %v6496
  %v6498 = vpop.f32.mrb[0].mxu0
  %v6499 = vpop.f32.mrb[0].mxu0
  %v6500 = vadd.f32 0.0, %v6499
  %v6501 = vpop.f32.mrb[0].mxu0
  %6502 = vmatprep.mubr.bf16.mxu0 0
  %6503 = vmatmul.mubr.bf16.gmra.mrb[0].mxu0 %v497
  %v6504 = vpop.f32.mrb[0].mxu0
  %v6505 = vadd.f32 0.0, %v6504
  %v6506 = vpop.f32.mrb[0].mxu0
  %v6507 = vpop.f32.mrb[0].mxu0
  %v6508 = vadd.f32 0.0, %v6507
  %v6509 = vpop.f32.mrb[0].mxu0
  %6510 = vmatprep.mubr.bf16.mxu0 0
  %6511 = vmatmul.mubr.bf16.gmra.mrb[0].mxu0 %v500
  %v6512 = vpop.f32.mrb[0].mxu0
  %v6513 = vadd.f32 0.0, %v6512
  %v6514 = vpop.f32.mrb[0].mxu0
  %v6515 = vpop.f32.mrb[0].mxu0
  %v6516 = vadd.f32 0.0, %v6515
  %v6517 = vpop.f32.mrb[0].mxu0
  %6518 = vmatprep.mubr.bf16.mxu0 0
  %6519 = vmatmul.mubr.bf16.gmra.mrb[0].mxu0 %v503
  %v6520 = vpop.f32.mrb[0].mxu0
  %v6521 = vadd.f32 0.0, %v6520
  %v6522 = vpop.f32.mrb[0].mxu0
  %v6523 = vpop.f32.mrb[0].mxu0
  %v6524 = vadd.f32 0.0, %v6523
  %v6525 = vpop.f32.mrb[0].mxu0
  %6526 = vmatprep.mubr.bf16.mxu0 0
  %6527 = vmatmul.mubr.bf16.gmra.mrb[0].mxu0 %v506
  %v6528 = vpop.f32.mrb[0].mxu0
  %v6529 = vadd.f32 0.0, %v6528
  %v6530 = vpop.f32.mrb[0].mxu0
  %v6531 = vpop.f32.mrb[0].mxu0
  %v6532 = vadd.f32 0.0, %v6531
  %v6533 = vpop.f32.mrb[0].mxu0
  %6534 = vmatprep.mubr.bf16.mxu0 0
  %6535 = vmatmul.mubr.bf16.gmra.mrb[0].mxu0 %v509
  %v6536 = vpop.f32.mrb[0].mxu0
  %v6537 = vadd.f32 0.0, %v6536
  %v6538 = vpop.f32.mrb[0].mxu0
  %v6539 = vpop.f32.mrb[0].mxu0
  %v6540 = vadd.f32 0.0, %v6539
  %v6541 = vpop.f32.mrb[0].mxu0
  %6542 = vmatprep.mubr.bf16.mxu0 0
  %6543 = vmatmul.mubr.bf16.gmra.mrb[0].mxu0 %v512
  %v6544 = vpop.f32.mrb[0].mxu0
  %v6545 = vadd.f32 0.0, %v6544
  %v6546 = vpop.f32.mrb[0].mxu0
  %v6547 = vpop.f32.mrb[0].mxu0
  %v6548 = vadd.f32 0.0, %v6547
  %v6549 = vpop.f32.mrb[0].mxu0
  %6550 = vmatprep.mubr.bf16.mxu0 0
  %6551 = vmatmul.mubr.bf16.gmra.mrb[0].mxu0 %v515
  %v6552 = vpop.f32.mrb[0].mxu0
  %v6553 = vadd.f32 0.0, %v6552
  %v6554 = vpop.f32.mrb[0].mxu0
  %v6555 = vpop.f32.mrb[0].mxu0
  %v6556 = vadd.f32 0.0, %v6555
  %v6557 = vpop.f32.mrb[0].mxu0
  %6558 = vdwg.mxu0
  %v6559 = vadd.f32 %v6384, %v6497
  %v6560 = vadd.f32 %v6387, %v6500
  %v6561 = vadd.f32 %v6392, %v6505
  %v6562 = vadd.f32 %v6395, %v6508
  %v6563 = vadd.f32 %v6400, %v6513
  %v6564 = vadd.f32 %v6403, %v6516
  %v6565 = vadd.f32 %v6408, %v6521
  %v6566 = vadd.f32 %v6411, %v6524
  %v6567 = vadd.f32 %v6416, %v6529
  %v6568 = vadd.f32 %v6419, %v6532
  %v6569 = vadd.f32 %v6424, %v6537
  %v6570 = vadd.f32 %v6427, %v6540
  %v6571 = vadd.f32 %v6432, %v6545
  %v6572 = vadd.f32 %v6435, %v6548
  %v6573 = vadd.f32 %v6440, %v6553
  %v6574 = vadd.f32 %v6443, %v6556
  %v6575 = vadd.f32 %v6204, %v6559
  %v6576 = vadd.f32 %v6205, %v6560
  %v6577 = vadd.f32 %v6206, %v6561
  %v6578 = vadd.f32 %v6207, %v6562
  %v6579 = vadd.f32 %v6208, %v6563
  %v6580 = vadd.f32 %v6209, %v6564
  %v6581 = vadd.f32 %v6210, %v6565
  %v6582 = vadd.f32 %v6211, %v6566
  %v6583 = vadd.f32 %v6212, %v6567
  %v6584 = vadd.f32 %v6213, %v6568
  %v6585 = vadd.f32 %v6214, %v6569
  %v6586 = vadd.f32 %v6215, %v6570
  %v6587 = vadd.f32 %v6216, %v6571
  %v6588 = vadd.f32 %v6217, %v6572
  %v6589 = vadd.f32 %v6218, %v6573
  %v6590 = vadd.f32 %v6219, %v6574
  %v6591 = vsel %vm214, %v6575, 0.0
  %v6592 = vsel %vm214, %v6576, 0.0
  %v6593 = vadd.f32 %v6591, %v6592
  %v6594 = vsel %vm214, %v6577, 0.0
  %v6595 = vadd.f32 %v6593, %v6594
  %v6596 = vsel %vm214, %v6578, 0.0
  %v6597 = vadd.f32 %v6595, %v6596
  %v6598 = vsel %vm214, %v6579, 0.0
  %v6599 = vadd.f32 %v6597, %v6598
  %v6600 = vsel %vm214, %v6580, 0.0
  %v6601 = vadd.f32 %v6599, %v6600
  %v6602 = vsel %vm214, %v6581, 0.0
  %v6603 = vadd.f32 %v6601, %v6602
  %v6604 = vsel %vm214, %v6582, 0.0
  %v6605 = vadd.f32 %v6603, %v6604
  %v6606 = vrot.slane %v6605, 4
  %v6607 = vadd.f32 %v6605, %v6606
  %v6608 = vrot.slane %v6607, 2
  %v6609 = vadd.f32 %v6607, %v6608
  %v6610 = vrot.slane %v6609, 1
  %v6611 = vadd.f32 %v6609, %v6610
  %v6612 = vsel %vm214, %v6583, 0.0
  %v6613 = vsel %vm214, %v6584, 0.0
  %v6614 = vadd.f32 %v6612, %v6613
  %v6615 = vsel %vm214, %v6585, 0.0
  %v6616 = vadd.f32 %v6614, %v6615
  %v6617 = vsel %vm214, %v6586, 0.0
  %v6618 = vadd.f32 %v6616, %v6617
  %v6619 = vsel %vm214, %v6587, 0.0
  %v6620 = vadd.f32 %v6618, %v6619
  %v6621 = vsel %vm214, %v6588, 0.0
  %v6622 = vadd.f32 %v6620, %v6621
  %v6623 = vsel %vm214, %v6589, 0.0
  %v6624 = vadd.f32 %v6622, %v6623
  %v6625 = vsel %vm214, %v6590, 0.0
  %v6626 = vadd.f32 %v6624, %v6625
  %v6627 = vrot.slane %v6626, 4
  %v6628 = vadd.f32 %v6626, %v6627
  %v6629 = vrot.slane %v6628, 2
  %v6630 = vadd.f32 %v6628, %v6629
  %v6631 = vrot.slane %v6630, 1
  %v6632 = vadd.f32 %v6630, %v6631
  %v6633 = vmul.f32 %v6611, %v673
  %v6634 = vmul.f32 %v6632, %v673
  %v6635 = vsub.f32 %v6575, %v6633
  %v6636 = vsub.f32 %v6576, %v6633
  %v6637 = vsub.f32 %v6577, %v6633
  %v6638 = vsub.f32 %v6578, %v6633
  %v6639 = vsub.f32 %v6579, %v6633
  %v6640 = vsub.f32 %v6580, %v6633
  %v6641 = vsub.f32 %v6581, %v6633
  %v6642 = vsub.f32 %v6582, %v6633
  %v6643 = vsub.f32 %v6583, %v6634
  %v6644 = vsub.f32 %v6584, %v6634
  %v6645 = vsub.f32 %v6585, %v6634
  %v6646 = vsub.f32 %v6586, %v6634
  %v6647 = vsub.f32 %v6587, %v6634
  %v6648 = vsub.f32 %v6588, %v6634
  %v6649 = vsub.f32 %v6589, %v6634
  %v6650 = vsub.f32 %v6590, %v6634
  %v6651 = vmul.f32 %v6635, %v6635
  %v6652 = vmul.f32 %v6636, %v6636
  %v6653 = vmul.f32 %v6637, %v6637
  %v6654 = vmul.f32 %v6638, %v6638
  %v6655 = vmul.f32 %v6639, %v6639
  %v6656 = vmul.f32 %v6640, %v6640
  %v6657 = vmul.f32 %v6641, %v6641
  %v6658 = vmul.f32 %v6642, %v6642
  %v6659 = vmul.f32 %v6643, %v6643
  %v6660 = vmul.f32 %v6644, %v6644
  %v6661 = vmul.f32 %v6645, %v6645
  %v6662 = vmul.f32 %v6646, %v6646
  %v6663 = vmul.f32 %v6647, %v6647
  %v6664 = vmul.f32 %v6648, %v6648
  %v6665 = vmul.f32 %v6649, %v6649
  %v6666 = vmul.f32 %v6650, %v6650
  %v6667 = vsel %vm214, %v6651, 0.0
  %v6668 = vsel %vm214, %v6652, 0.0
  %v6669 = vadd.f32 %v6667, %v6668
  %v6670 = vsel %vm214, %v6653, 0.0
  %v6671 = vadd.f32 %v6669, %v6670
  %v6672 = vsel %vm214, %v6654, 0.0
  %v6673 = vadd.f32 %v6671, %v6672
  %v6674 = vsel %vm214, %v6655, 0.0
  %v6675 = vadd.f32 %v6673, %v6674
  %v6676 = vsel %vm214, %v6656, 0.0
  %v6677 = vadd.f32 %v6675, %v6676
  %v6678 = vsel %vm214, %v6657, 0.0
  %v6679 = vadd.f32 %v6677, %v6678
  %v6680 = vsel %vm214, %v6658, 0.0
  %v6681 = vadd.f32 %v6679, %v6680
  %v6682 = vrot.slane %v6681, 4
  %v6683 = vadd.f32 %v6681, %v6682
  %v6684 = vrot.slane %v6683, 2
  %v6685 = vadd.f32 %v6683, %v6684
  %v6686 = vrot.slane %v6685, 1
  %v6687 = vadd.f32 %v6685, %v6686
  %v6688 = vsel %vm214, %v6659, 0.0
  %v6689 = vsel %vm214, %v6660, 0.0
  %v6690 = vadd.f32 %v6688, %v6689
  %v6691 = vsel %vm214, %v6661, 0.0
  %v6692 = vadd.f32 %v6690, %v6691
  %v6693 = vsel %vm214, %v6662, 0.0
  %v6694 = vadd.f32 %v6692, %v6693
  %v6695 = vsel %vm214, %v6663, 0.0
  %v6696 = vadd.f32 %v6694, %v6695
  %v6697 = vsel %vm214, %v6664, 0.0
  %v6698 = vadd.f32 %v6696, %v6697
  %v6699 = vsel %vm214, %v6665, 0.0
  %v6700 = vadd.f32 %v6698, %v6699
  %v6701 = vsel %vm214, %v6666, 0.0
  %v6702 = vadd.f32 %v6700, %v6701
  %v6703 = vrot.slane %v6702, 4
  %v6704 = vadd.f32 %v6702, %v6703
  %v6705 = vrot.slane %v6704, 2
  %v6706 = vadd.f32 %v6704, %v6705
  %v6707 = vrot.slane %v6706, 1
  %v6708 = vadd.f32 %v6706, %v6707
  %v6709 = vmul.f32 %v6687, %v673
  %v6710 = vmul.f32 %v6708, %v673
  %v6711 = vadd.f32 %v6709, 1e-05
  %v6712 = vadd.f32 %v6710, 1e-05
  %v6713 = vrsqrt.pop %v6711
  %v6714 = vrsqrt.pop %v6712
  %v6715 = vmul.f32 %v6635, %v6713
  %v6716 = vmul.f32 %v6636, %v6713
  %v6717 = vmul.f32 %v6637, %v6713
  %v6718 = vmul.f32 %v6638, %v6713
  %v6719 = vmul.f32 %v6639, %v6713
  %v6720 = vmul.f32 %v6640, %v6713
  %v6721 = vmul.f32 %v6641, %v6713
  %v6722 = vmul.f32 %v6642, %v6713
  %v6723 = vmul.f32 %v6643, %v6714
  %v6724 = vmul.f32 %v6644, %v6714
  %v6725 = vmul.f32 %v6645, %v6714
  %v6726 = vmul.f32 %v6646, %v6714
  %v6727 = vmul.f32 %v6647, %v6714
  %v6728 = vmul.f32 %v6648, %v6714
  %v6729 = vmul.f32 %v6649, %v6714
  %v6730 = vmul.f32 %v6650, %v6714
  %vm6731 = vcmp.gt.f32.partialorder %v6715, 0.0
  %vm6732 = vcmp.gt.f32.partialorder %v6716, 0.0
  %vm6733 = vcmp.gt.f32.partialorder %v6717, 0.0
  %vm6734 = vcmp.gt.f32.partialorder %v6718, 0.0
  %vm6735 = vcmp.gt.f32.partialorder %v6719, 0.0
  %vm6736 = vcmp.gt.f32.partialorder %v6720, 0.0
  %vm6737 = vcmp.gt.f32.partialorder %v6721, 0.0
  %vm6738 = vcmp.gt.f32.partialorder %v6722, 0.0
  %vm6739 = vcmp.gt.f32.partialorder %v6723, 0.0
  %vm6740 = vcmp.gt.f32.partialorder %v6724, 0.0
  %vm6741 = vcmp.gt.f32.partialorder %v6725, 0.0
  %vm6742 = vcmp.gt.f32.partialorder %v6726, 0.0
  %vm6743 = vcmp.gt.f32.partialorder %v6727, 0.0
  %vm6744 = vcmp.gt.f32.partialorder %v6728, 0.0
  %vm6745 = vcmp.gt.f32.partialorder %v6729, 0.0
  %vm6746 = vcmp.gt.f32.partialorder %v6730, 0.0
  %v6747 = vmin.f32 %v6715, 0.0
  %v6748 = vmin.f32 %v6716, 0.0
  %v6749 = vmin.f32 %v6717, 0.0
  %v6750 = vmin.f32 %v6718, 0.0
  %v6751 = vmin.f32 %v6719, 0.0
  %v6752 = vmin.f32 %v6720, 0.0
  %v6753 = vmin.f32 %v6721, 0.0
  %v6754 = vmin.f32 %v6722, 0.0
  %v6755 = vmin.f32 %v6723, 0.0
  %v6756 = vmin.f32 %v6724, 0.0
  %v6757 = vmin.f32 %v6725, 0.0
  %v6758 = vmin.f32 %v6726, 0.0
  %v6759 = vmin.f32 %v6727, 0.0
  %v6760 = vmin.f32 %v6728, 0.0
  %v6761 = vmin.f32 %v6729, 0.0
  %v6762 = vmin.f32 %v6730, 0.0
  %v6763 = vmul.f32 %v6747, 1.442695
  %v6764 = vpow.pop %v6763
  %v6765 = vmul.f32 %v6748, 1.442695
  %v6766 = vpow.pop %v6765
  %v6767 = vmul.f32 %v6749, 1.442695
  %v6768 = vpow.pop %v6767
  %v6769 = vmul.f32 %v6750, 1.442695
  %v6770 = vpow.pop %v6769
  %v6771 = vmul.f32 %v6751, 1.442695
  %v6772 = vpow.pop %v6771
  %v6773 = vmul.f32 %v6752, 1.442695
  %v6774 = vpow.pop %v6773
  %v6775 = vmul.f32 %v6753, 1.442695
  %v6776 = vpow.pop %v6775
  %v6777 = vmul.f32 %v6754, 1.442695
  %v6778 = vpow.pop %v6777
  %v6779 = vmul.f32 %v6755, 1.442695
  %v6780 = vpow.pop %v6779
  %v6781 = vmul.f32 %v6756, 1.442695
  %v6782 = vpow.pop %v6781
  %v6783 = vmul.f32 %v6757, 1.442695
  %v6784 = vpow.pop %v6783
  %v6785 = vmul.f32 %v6758, 1.442695
  %v6786 = vpow.pop %v6785
  %v6787 = vmul.f32 %v6759, 1.442695
  %v6788 = vpow.pop %v6787
  %v6789 = vmul.f32 %v6760, 1.442695
  %v6790 = vpow.pop %v6789
  %v6791 = vmul.f32 %v6761, 1.442695
  %v6792 = vpow.pop %v6791
  %v6793 = vmul.f32 %v6762, 1.442695
  %v6794 = vpow.pop %v6793
  %v6795 = vsub.f32 %v6764, 1.0
  %v6796 = vsub.f32 %v6766, 1.0
  %v6797 = vsub.f32 %v6768, 1.0
  %v6798 = vsub.f32 %v6770, 1.0
  %v6799 = vsub.f32 %v6772, 1.0
  %v6800 = vsub.f32 %v6774, 1.0
  %v6801 = vsub.f32 %v6776, 1.0
  %v6802 = vsub.f32 %v6778, 1.0
  %v6803 = vsub.f32 %v6780, 1.0
  %v6804 = vsub.f32 %v6782, 1.0
  %v6805 = vsub.f32 %v6784, 1.0
  %v6806 = vsub.f32 %v6786, 1.0
  %v6807 = vsub.f32 %v6788, 1.0
  %v6808 = vsub.f32 %v6790, 1.0
  %v6809 = vsub.f32 %v6792, 1.0
  %v6810 = vsub.f32 %v6794, 1.0
  %v6811 = vsel %vm6731, %v6715, %v6795
  %v6812 = vsel %vm6732, %v6716, %v6796
  %v6813 = vsel %vm6733, %v6717, %v6797
  %v6814 = vsel %vm6734, %v6718, %v6798
  %v6815 = vsel %vm6735, %v6719, %v6799
  %v6816 = vsel %vm6736, %v6720, %v6800
  %v6817 = vsel %vm6737, %v6721, %v6801
  %v6818 = vsel %vm6738, %v6722, %v6802
  %v6819 = vsel %vm6739, %v6723, %v6803
  %v6820 = vsel %vm6740, %v6724, %v6804
  %v6821 = vsel %vm6741, %v6725, %v6805
  %v6822 = vsel %vm6742, %v6726, %v6806
  %v6823 = vsel %vm6743, %v6727, %v6807
  %v6824 = vsel %vm6744, %v6728, %v6808
  %v6825 = vsel %vm6745, %v6729, %v6809
  %v6826 = vsel %vm6746, %v6730, %v6810
  %6827 = vst.msk [vmem:[%s11] sm:$0xff] %vm214, %v6811
  %6828 = vst.msk [vmem:[%s11 + $0x8] sm:$0xff] %vm214, %v6812
  %6829 = vst.msk [vmem:[%s11 + $0x10] sm:$0xff] %vm214, %v6813
  %6830 = vst.msk [vmem:[%s11 + $0x18] sm:$0xff] %vm214, %v6814
  %6831 = vst.msk [vmem:[%s11 + $0x20] sm:$0xff] %vm214, %v6815
  %6832 = vst.msk [vmem:[%s11 + $0x28] sm:$0xff] %vm214, %v6816
  %6833 = vst.msk [vmem:[%s11 + $0x30] sm:$0xff] %vm214, %v6817
  %6834 = vst.msk [vmem:[%s11 + $0x38] sm:$0xff] %vm214, %v6818
  %6835 = vst.msk [vmem:[%s11 + $0x40] sm:$0xff] %vm214, %v6819
  %6836 = vst.msk [vmem:[%s11 + $0x48] sm:$0xff] %vm214, %v6820
  %6837 = vst.msk [vmem:[%s11 + $0x50] sm:$0xff] %vm214, %v6821
  %6838 = vst.msk [vmem:[%s11 + $0x58] sm:$0xff] %vm214, %v6822
  %6839 = vst.msk [vmem:[%s11 + $0x60] sm:$0xff] %vm214, %v6823
  %6840 = vst.msk [vmem:[%s11 + $0x68] sm:$0xff] %vm214, %v6824
  %6841 = vst.msk [vmem:[%s11 + $0x70] sm:$0xff] %vm214, %v6825
  %6842 = vst.msk [vmem:[%s11 + $0x78] sm:$0xff] %vm214, %v6826
  // Predicated region
  $region46: #{tpu_custom_call.1} parent=0 // pred_check
    _
  $region47: #{tpu_custom_call.1} parent=0 // pred_check_branch
    %6844 = sbr.rel (0) target = $region49
  $region48: #{tpu_custom_call.1} parent=0 // pred_region
    _
  $region49: #{tpu_custom_call.1} parent=0 // pred_fallthru
    _
  // Predicated region
  $region50: #{tpu_custom_call.1} parent=0 // pred_check
    _
  $region51: #{tpu_custom_call.1} parent=0 // pred_check_branch
    %6846 = sbr.rel (0) target = $region53
  $region52: #{tpu_custom_call.1} parent=0 // pred_region
    _
  $region53: #{tpu_custom_call.1} parent=0 // pred_fallthru
    _

</llo_original>
